<compile_context>
chip_gen: v5e
topology: v5e:2x2
jax: 0.10.0
libtpu: 0.0.40
codegen_flags: <defaults>
</compile_context>

<pallas_src>
import functools

import jax
import jax.numpy as jnp
from jax.experimental import pallas as pl
from jax.experimental.pallas import tpu as pltpu


# ---------------------------------------------------------------------------
# Model configuration (small, deterministic)
# ---------------------------------------------------------------------------
DESCRIPTION = [
    ("item_id", 100, "spr"),
    ("user_id", 50, "spr"),
    ("category", 20, "spr"),
    ("hist_items", 100, "seq"),
    ("price", 1, "ctn"),
    ("label", 2, "label"),
]
ITEM_ID_NAME = "item_id"
EMBED_DIM = 16
MLP_DIMS = (32, 16)
BN_EPS = 1e-5
TILE_B = 1024           # default batch tile (rows); ~128 KiB bf16 per buffer


def _pairs(num_fields):
    row, col = [], []
    for i in range(num_fields - 1):
        for j in range(i + 1, num_fields):
            row.append(i)
            col.append(j)
    return row, col


# ---------------------------------------------------------------------------
# Pallas kernel: InnerProductNetwork folded into MLP-layer-1 + MLP + sigmoid
# ---------------------------------------------------------------------------
def pnn_kernel(emb_ref, w1e_ref, w1c_ref, b1_ref, w2_ref, b2_ref,
               wo_ref, bo_ref, out_ref, *, num_fields, embed_dim):
    # bf16 on the wire; upcast before any VPU math (v5e has no bf16 VALU).
    emb = emb_ref[...].astype(jnp.float32)                     # (TB, F*E)

    # ---- hidden layer 1: embedding part of the (split) first matmul ----
    h = jnp.dot(emb, w1e_ref[...], preferred_element_type=jnp.float32)

    # ---- InnerProductNetwork cross terms, folded into the first matmul ----
    # For pair p=(i,j): (e_i * e_j) @ W1c_exp[p]  with W1c_exp[p] = the cross
    # weight row of pair p replicated over the embed_dim lanes.  The 16-lane
    # reduction therefore runs on the MXU; no jnp.sum, no concatenates.
    fields = [emb[:, f * embed_dim:(f + 1) * embed_dim] for f in range(num_fields)]
    row, col = _pairs(num_fields)
    for p, (i, j) in enumerate(zip(row, col)):
        prod = fields[i] * fields[j]                           # VPU, f32
        wp = w1c_ref[p * embed_dim:(p + 1) * embed_dim, :]     # static (E, H1) slice
        h += jnp.dot(prod, wp, preferred_element_type=jnp.float32)

    # BatchNorm(eval) already folded into w*/b* on the host; Dropout = identity.
    h = jnp.maximum(h + b1_ref[...], 0.0)

    # ---- hidden layer 2 ----
    h = jnp.dot(h, w2_ref[...], preferred_element_type=jnp.float32) + b2_ref[...]
    h = jnp.maximum(h, 0.0)

    # ---- output layer + sigmoid (exp rides the EUP slot) ----
    o = jnp.dot(h, wo_ref[...], preferred_element_type=jnp.float32) + bo_ref[...]
    out_ref[...] = 1.0 / (1.0 + jnp.exp(-o))


def pnn_forward_pallas(emb_flat, kparams, num_fields, embed_dim, tile_b=TILE_B):
    """emb_flat: (B, num_fields*embed_dim) float32. Returns (B,) float32."""
    B, FE = emb_flat.shape
    n_tiles = pl.cdiv(B, tile_b)
    b_pad = n_tiles * tile_b

    emb_bf16 = emb_flat.astype(jnp.bfloat16)
    if b_pad != B:
        emb_bf16 = jnp.pad(emb_bf16, ((0, b_pad - B), (0, 0)))

    weights = (kparams["w1e"], kparams["w1c"], kparams["b1"],
               kparams["w2"], kparams["b2"], kparams["wo"], kparams["bo"])

    in_specs = [pl.BlockSpec((tile_b, FE), lambda i: (i, 0))]
    in_specs += [pl.BlockSpec(w.shape, lambda i: (0, 0)) for w in weights]

    out = pl.pallas_call(
        functools.partial(pnn_kernel, num_fields=num_fields, embed_dim=embed_dim),
        grid=(n_tiles,),
        in_specs=in_specs,
        out_specs=pl.BlockSpec((tile_b, 1), lambda i: (i, 0)),
        out_shape=jax.ShapeDtypeStruct((b_pad, 1), jnp.float32),
        compiler_params=pltpu.CompilerParams(
            dimension_semantics=("parallel",)),   # megacore sharding on v7x
    )(emb_bf16, *weights)
    return out[:B, 0]                                          # squeeze(dim=1)


# ---------------------------------------------------------------------------
# JAX glue: embedding lookups (equivalent of torch.nn.Embedding / concat)
# ---------------------------------------------------------------------------
def embed_fields(x_dict, tables, description, item_id_name):
    item_emb = tables[item_id_name][x_dict[item_id_name]]      # (B, E)
    if item_emb.ndim == 2:
        item_emb = item_emb[:, None, :]                        # (B, 1, E)
    embs = [item_emb]
    for name, _, typ in description:
        if name == item_id_name or typ == "label":
            continue
        if typ == "spr":
            embs.append(tables[name][x_dict[name]])            # (B, 1, E)
        elif typ == "ctn":
            # TODO(synk): torch computes Linear(1,1)(x) into `linears` but never
            # uses it downstream -> intentionally omitted (no effect on output).
            pass
        elif typ == "seq":
            embs.append(tables[name][x_dict[name]].sum(axis=1, keepdims=True))
    emb = jnp.concatenate(embs, axis=1)                        # (B, F, E)
    return emb.reshape(emb.shape[0], -1)                       # (B, F*E)


# ---------------------------------------------------------------------------
# Deterministic parameter init (raw, PyTorch-equivalent layout)
# ---------------------------------------------------------------------------
def init_params(key, description, embed_dim, mlp_dims):
    keys = iter(jax.random.split(key, 64))
    tables = {}
    num_fields = 0
    for name, size, typ in description:
        if typ in ("spr", "seq"):
            tables[name] = jax.random.normal(next(keys), (size, embed_dim),
                                             dtype=jnp.float32)
            num_fields += 1
    embed_output_dim = num_fields * embed_dim
    num_ix = num_fields * (num_fields - 1) // 2
    d_in = embed_output_dim + num_ix

    dims = [d_in] + list(mlp_dims)
    raw = {}
    for idx in range(len(mlp_dims)):
        fan_in, fan_out = dims[idx], dims[idx + 1]
        bound = 1.0 / (fan_in ** 0.5)
        raw[f"w{idx+1}"] = jax.random.uniform(next(keys), (fan_in, fan_out),
                                              jnp.float32, -bound, bound)
        raw[f"b{idx+1}"] = jax.random.uniform(next(keys), (fan_out,),
                                              jnp.float32, -bound, bound)
        raw[f"g{idx+1}"] = jnp.ones((fan_out,), jnp.float32)    # BN gamma
        raw[f"be{idx+1}"] = jnp.zeros((fan_out,), jnp.float32)  # BN beta
        raw[f"mean{idx+1}"] = jnp.zeros((fan_out,), jnp.float32)
        raw[f"var{idx+1}"] = jnp.ones((fan_out,), jnp.float32)
    bound = 1.0 / (mlp_dims[-1] ** 0.5)
    raw["wo"] = jax.random.uniform(next(keys), (mlp_dims[-1], 1),
                                   jnp.float32, -bound, bound)
    raw["bo"] = jax.random.uniform(next(keys), (1, 1), jnp.float32, -bound, bound)
    return tables, raw, num_fields


def prepare_kernel_params(raw, num_fields, embed_dim):
    """Fold BatchNorm (eval) into the Linear layers and split/expand W1."""
    fe = num_fields * embed_dim
    scale1 = raw["g1"] / jnp.sqrt(raw["var1"] + BN_EPS)
    w1 = raw["w1"] * scale1[None, :]
    b1 = (raw["b1"] - raw["mean1"]) * scale1 + raw["be1"]
    scale2 = raw["g2"] / jnp.sqrt(raw["var2"] + BN_EPS)
    w2 = raw["w2"] * scale2[None, :]
    b2 = (raw["b2"] - raw["mean2"]) * scale2 + raw["be2"]

    w1e = w1[:fe]                                    # (F*E, H1)  embedding part
    w1c = w1[fe:]                                    # (num_ix, H1) cross part
    w1c_exp = jnp.repeat(w1c, embed_dim, axis=0)     # (num_ix*E, H1)
    return {"w1e": w1e, "w1c": w1c_exp, "b1": b1[None, :],
            "w2": w2, "b2": b2[None, :],
            "wo": raw["wo"], "bo": raw["bo"]}


# ---------------------------------------------------------------------------
# Pure-JAX reference (un-fused, un-split math) for a correctness check
# ---------------------------------------------------------------------------
def reference_forward(emb_flat, raw, num_fields, embed_dim):
    row, col = _pairs(num_fields)
    e3 = emb_flat.reshape(emb_flat.shape[0], num_fields, embed_dim)
    cross = jnp.sum(e3[:, row] * e3[:, col], axis=2)
    x = jnp.concatenate([emb_flat, cross], axis=1)

    def bn(h, idx):
        return ((h - raw[f"mean{idx}"]) / jnp.sqrt(raw[f"var{idx}"] + BN_EPS)
                * raw[f"g{idx}"] + raw[f"be{idx}"])

    h = jnp.maximum(bn(x @ raw["w1"] + raw["b1"], 1), 0.0)
    h = jnp.maximum(bn(h @ raw["w2"] + raw["b2"], 2), 0.0)
    o = h @ raw["wo"] + raw["bo"]
    return jax.nn.sigmoid(o)[:, 0]


# ---------------------------------------------------------------------------
if __name__ == "__main__":
    key = jax.random.PRNGKey(0)
    k_param, k_i1, k_i2, k_i3, k_i4, k_i5, k_big = jax.random.split(key, 7)

    tables, raw, num_fields = init_params(k_param, DESCRIPTION, EMBED_DIM, MLP_DIMS)
    kparams = prepare_kernel_params(raw, num_fields, EMBED_DIM)

    # ---- small end-to-end example (batch=2, seq=8) ----
    B, SEQ_LEN = 2, 8
    x_dict = {
        "item_id": jax.random.randint(k_i1, (B,), 0, 100, dtype=jnp.int32),
        "user_id": jax.random.randint(k_i2, (B, 1), 0, 50, dtype=jnp.int32),
        "category": jax.random.randint(k_i3, (B, 1), 0, 20, dtype=jnp.int32),
        "hist_items": jax.random.randint(k_i4, (B, SEQ_LEN), 0, 100, dtype=jnp.int32),
        "price": jax.random.uniform(k_i5, (B, 1), jnp.float32),  # ctn: unused downstream
    }
    emb_flat = embed_fields(x_dict, tables, DESCRIPTION, ITEM_ID_NAME)  # (B, F*E)

    # kernel ships emb as bf16; compare against reference fed the same rounded values
    emb_used = emb_flat.astype(jnp.bfloat16).astype(jnp.float32)

    out = pnn_forward_pallas(emb_used, kparams, num_fields, EMBED_DIM)
    out = jax.block_until_ready(out)
    ref = reference_forward(emb_used, raw, num_fields, EMBED_DIM)
    assert out.shape == (B,)
    assert bool(jnp.allclose(out, ref, rtol=1e-3, atol=1e-5)), (out, ref)

    # ---- larger check: exercises padding + multi-step grid pipelining ----
    B2 = 300
    emb_big = jax.random.normal(k_big, (B2, num_fields * EMBED_DIM), jnp.float32)
    emb_big = emb_big.astype(jnp.bfloat16).astype(jnp.float32)
    out2 = pnn_forward_pallas(emb_big, kparams, num_fields, EMBED_DIM, tile_b=128)
    out2 = jax.block_until_ready(out2)
    ref2 = reference_forward(emb_big, raw, num_fields, EMBED_DIM)
    assert out2.shape == (B2,)
    assert bool(jnp.allclose(out2, ref2, rtol=1e-3, atol=1e-5)), (out2, ref2)

    print("KERNEL_OK")
</pallas_src>

<mosaic_0001>
module attributes {stable_mosaic.version = 11 : i64} {
  func.func @pnn_kernel(%arg0: i32, %arg1: memref<1024x64xbf16, #tpu.memory_space<vmem>>, %arg2: memref<64x32xf32, #tpu.memory_space<vmem>>, %arg3: memref<96x32xf32, #tpu.memory_space<vmem>>, %arg4: memref<1x32xf32, #tpu.memory_space<vmem>>, %arg5: memref<32x16xf32, #tpu.memory_space<vmem>>, %arg6: memref<1x16xf32, #tpu.memory_space<vmem>>, %arg7: memref<16x1xf32, #tpu.memory_space<vmem>>, %arg8: memref<1x1xf32, #tpu.memory_space<vmem>>, %arg9: memref<1024x1xf32, #tpu.memory_space<vmem>>) attributes {dimension_semantics = [#tpu.dimension_semantics<parallel>], iteration_bounds = array<i64: 1>, scalar_prefetch = 0 : i64, scratch_operands = 0 : i64, tpu.core_type = #tpu.core_type<tc>, window_params = [{transform_indices = @transform_0, window_bounds = array<i64: 1024, 64>}, {pipeline_mode = #tpu.pipeline_mode<synchronous>, transform_indices = @transform_1, window_bounds = array<i64: 64, 32>}, {pipeline_mode = #tpu.pipeline_mode<synchronous>, transform_indices = @transform_2, window_bounds = array<i64: 96, 32>}, {pipeline_mode = #tpu.pipeline_mode<synchronous>, transform_indices = @transform_3, window_bounds = array<i64: 1, 32>}, {pipeline_mode = #tpu.pipeline_mode<synchronous>, transform_indices = @transform_4, window_bounds = array<i64: 32, 16>}, {pipeline_mode = #tpu.pipeline_mode<synchronous>, transform_indices = @transform_5, window_bounds = array<i64: 1, 16>}, {pipeline_mode = #tpu.pipeline_mode<synchronous>, transform_indices = @transform_6, window_bounds = array<i64: 16, 1>}, {pipeline_mode = #tpu.pipeline_mode<synchronous>, transform_indices = @transform_7, window_bounds = array<i64: 1, 1>}, {transform_indices = @transform_8, window_bounds = array<i64: 1024, 1>}]} {
    %c0 = arith.constant 0 : index
    %c0_0 = arith.constant 0 : index
    %0 = vector.load %arg1[%c0, %c0_0] : memref<1024x64xbf16, #tpu.memory_space<vmem>>, vector<1024x64xbf16>
    %1 = arith.extf %0 : vector<1024x64xbf16> to vector<1024x64xf32>
    %c0_1 = arith.constant 0 : index
    %c0_2 = arith.constant 0 : index
    %2 = vector.load %arg2[%c0_1, %c0_2] : memref<64x32xf32, #tpu.memory_space<vmem>>, vector<64x32xf32>
    %cst = arith.constant dense<0.000000e+00> : vector<1024x32xf32>
    %3 = tpu.matmul %1, %2, %cst {dimension_numbers = #tpu.dot_dimension_numbers<[1], [0], [0], [1], [0, 0, 1, 1], [], []>} : vector<1024x64xf32>, vector<64x32xf32>, vector<1024x32xf32> -> vector<1024x32xf32>
    %4 = vector.extract_strided_slice %1 {offsets = [0, 0], sizes = [1024, 16], strides = [1, 1]} : vector<1024x64xf32> to vector<1024x16xf32>
    %5 = vector.extract_strided_slice %1 {offsets = [0, 16], sizes = [1024, 16], strides = [1, 1]} : vector<1024x64xf32> to vector<1024x16xf32>
    %6 = vector.extract_strided_slice %1 {offsets = [0, 32], sizes = [1024, 16], strides = [1, 1]} : vector<1024x64xf32> to vector<1024x16xf32>
    %7 = vector.extract_strided_slice %1 {offsets = [0, 48], sizes = [1024, 16], strides = [1, 1]} : vector<1024x64xf32> to vector<1024x16xf32>
    %8 = arith.mulf %4, %5 : vector<1024x16xf32>
    %c0_3 = arith.constant 0 : index
    %c0_4 = arith.constant 0 : index
    %9 = vector.load %arg3[%c0_3, %c0_4] : memref<96x32xf32, #tpu.memory_space<vmem>>, vector<16x32xf32>
    %cst_5 = arith.constant dense<0.000000e+00> : vector<1024x32xf32>
    %10 = tpu.matmul %8, %9, %cst_5 {dimension_numbers = #tpu.dot_dimension_numbers<[1], [0], [0], [1], [0, 0, 1, 1], [], []>} : vector<1024x16xf32>, vector<16x32xf32>, vector<1024x32xf32> -> vector<1024x32xf32>
    %11 = arith.addf %3, %10 : vector<1024x32xf32>
    %12 = arith.mulf %4, %6 : vector<1024x16xf32>
    %c16 = arith.constant 16 : index
    %c0_6 = arith.constant 0 : index
    %13 = vector.load %arg3[%c16, %c0_6] : memref<96x32xf32, #tpu.memory_space<vmem>>, vector<16x32xf32>
    %cst_7 = arith.constant dense<0.000000e+00> : vector<1024x32xf32>
    %14 = tpu.matmul %12, %13, %cst_7 {dimension_numbers = #tpu.dot_dimension_numbers<[1], [0], [0], [1], [0, 0, 1, 1], [], []>} : vector<1024x16xf32>, vector<16x32xf32>, vector<1024x32xf32> -> vector<1024x32xf32>
    %15 = arith.addf %11, %14 : vector<1024x32xf32>
    %16 = arith.mulf %4, %7 : vector<1024x16xf32>
    %c32 = arith.constant 32 : index
    %c0_8 = arith.constant 0 : index
    %17 = vector.load %arg3[%c32, %c0_8] : memref<96x32xf32, #tpu.memory_space<vmem>>, vector<16x32xf32>
    %cst_9 = arith.constant dense<0.000000e+00> : vector<1024x32xf32>
    %18 = tpu.matmul %16, %17, %cst_9 {dimension_numbers = #tpu.dot_dimension_numbers<[1], [0], [0], [1], [0, 0, 1, 1], [], []>} : vector<1024x16xf32>, vector<16x32xf32>, vector<1024x32xf32> -> vector<1024x32xf32>
    %19 = arith.addf %15, %18 : vector<1024x32xf32>
    %20 = arith.mulf %5, %6 : vector<1024x16xf32>
    %c48 = arith.constant 48 : index
    %c0_10 = arith.constant 0 : index
    %21 = vector.load %arg3[%c48, %c0_10] : memref<96x32xf32, #tpu.memory_space<vmem>>, vector<16x32xf32>
    %cst_11 = arith.constant dense<0.000000e+00> : vector<1024x32xf32>
    %22 = tpu.matmul %20, %21, %cst_11 {dimension_numbers = #tpu.dot_dimension_numbers<[1], [0], [0], [1], [0, 0, 1, 1], [], []>} : vector<1024x16xf32>, vector<16x32xf32>, vector<1024x32xf32> -> vector<1024x32xf32>
    %23 = arith.addf %19, %22 : vector<1024x32xf32>
    %24 = arith.mulf %5, %7 : vector<1024x16xf32>
    %c64 = arith.constant 64 : index
    %c0_12 = arith.constant 0 : index
    %25 = vector.load %arg3[%c64, %c0_12] : memref<96x32xf32, #tpu.memory_space<vmem>>, vector<16x32xf32>
    %cst_13 = arith.constant dense<0.000000e+00> : vector<1024x32xf32>
    %26 = tpu.matmul %24, %25, %cst_13 {dimension_numbers = #tpu.dot_dimension_numbers<[1], [0], [0], [1], [0, 0, 1, 1], [], []>} : vector<1024x16xf32>, vector<16x32xf32>, vector<1024x32xf32> -> vector<1024x32xf32>
    %27 = arith.addf %23, %26 : vector<1024x32xf32>
    %28 = arith.mulf %6, %7 : vector<1024x16xf32>
    %c80 = arith.constant 80 : index
    %c0_14 = arith.constant 0 : index
    %29 = vector.load %arg3[%c80, %c0_14] : memref<96x32xf32, #tpu.memory_space<vmem>>, vector<16x32xf32>
    %cst_15 = arith.constant dense<0.000000e+00> : vector<1024x32xf32>
    %30 = tpu.matmul %28, %29, %cst_15 {dimension_numbers = #tpu.dot_dimension_numbers<[1], [0], [0], [1], [0, 0, 1, 1], [], []>} : vector<1024x16xf32>, vector<16x32xf32>, vector<1024x32xf32> -> vector<1024x32xf32>
    %31 = arith.addf %27, %30 : vector<1024x32xf32>
    %c0_16 = arith.constant 0 : index
    %c0_17 = arith.constant 0 : index
    %32 = vector.load %arg4[%c0_16, %c0_17] : memref<1x32xf32, #tpu.memory_space<vmem>>, vector<1x32xf32>
    %33 = vector.broadcast %32 : vector<1x32xf32> to vector<1024x32xf32>
    %34 = arith.addf %31, %33 : vector<1024x32xf32>
    %cst_18 = arith.constant 0.000000e+00 : f32
    %35 = vector.broadcast %cst_18 : f32 to vector<1024x32xf32>
    %36 = arith.maximumf %34, %35 : vector<1024x32xf32>
    %c0_19 = arith.constant 0 : index
    %c0_20 = arith.constant 0 : index
    %37 = vector.load %arg5[%c0_19, %c0_20] : memref<32x16xf32, #tpu.memory_space<vmem>>, vector<32x16xf32>
    %cst_21 = arith.constant dense<0.000000e+00> : vector<1024x16xf32>
    %38 = tpu.matmul %36, %37, %cst_21 {dimension_numbers = #tpu.dot_dimension_numbers<[1], [0], [0], [1], [0, 0, 1, 1], [], []>} : vector<1024x32xf32>, vector<32x16xf32>, vector<1024x16xf32> -> vector<1024x16xf32>
    %c0_22 = arith.constant 0 : index
    %c0_23 = arith.constant 0 : index
    %39 = vector.load %arg6[%c0_22, %c0_23] : memref<1x16xf32, #tpu.memory_space<vmem>>, vector<1x16xf32>
    %40 = vector.broadcast %39 : vector<1x16xf32> to vector<1024x16xf32>
    %41 = arith.addf %38, %40 : vector<1024x16xf32>
    %cst_24 = arith.constant 0.000000e+00 : f32
    %42 = vector.broadcast %cst_24 : f32 to vector<1024x16xf32>
    %43 = arith.maximumf %41, %42 : vector<1024x16xf32>
    %c0_25 = arith.constant 0 : index
    %c0_26 = arith.constant 0 : index
    %44 = vector.load %arg7[%c0_25, %c0_26] : memref<16x1xf32, #tpu.memory_space<vmem>>, vector<16x1xf32>
    %cst_27 = arith.constant dense<0.000000e+00> : vector<1024x1xf32>
    %45 = tpu.matmul %43, %44, %cst_27 {dimension_numbers = #tpu.dot_dimension_numbers<[1], [0], [0], [1], [0, 0, 1, 1], [], []>} : vector<1024x16xf32>, vector<16x1xf32>, vector<1024x1xf32> -> vector<1024x1xf32>
    %c0_28 = arith.constant 0 : index
    %c0_29 = arith.constant 0 : index
    %46 = vector.load %arg8[%c0_28, %c0_29] : memref<1x1xf32, #tpu.memory_space<vmem>>, vector<1x1xf32>
    %47 = vector.broadcast %46 : vector<1x1xf32> to vector<1024x1xf32>
    %48 = arith.addf %45, %47 : vector<1024x1xf32>
    %cst_30 = arith.constant 0.000000e+00 : f32
    %49 = vector.broadcast %cst_30 : f32 to vector<1024x1xf32>
    %50 = arith.subf %49, %48 : vector<1024x1xf32>
    %51 = math.exp %50 : vector<1024x1xf32>
    %cst_31 = arith.constant 1.000000e+00 : f32
    %52 = vector.broadcast %cst_31 : f32 to vector<1024x1xf32>
    %53 = arith.addf %52, %51 : vector<1024x1xf32>
    %cst_32 = arith.constant 1.000000e+00 : f32
    %54 = vector.broadcast %cst_32 : f32 to vector<1024x1xf32>
    %55 = arith.divf %54, %53 : vector<1024x1xf32>
    %c0_33 = arith.constant 0 : index
    %c0_34 = arith.constant 0 : index
    %56 = vector.load %arg9[%c0_33, %c0_34] : memref<1024x1xf32, #tpu.memory_space<vmem>>, vector<1024x1xf32>
    tpu.vector_store %arg9[%c0_33, %c0_34], %55 {strides = array<i32>} : memref<1024x1xf32, #tpu.memory_space<vmem>>, vector<1024x1xf32>,
    return
  }
  func.func @transform_0(%arg0: i32) -> (i32, i32) {
    %c0_i32 = arith.constant 0 : i32
    %c0_i32_0 = arith.constant 0 : i32
    return %arg0, %c0_i32 : i32, i32
  }
  func.func @transform_1(%arg0: i32) -> (i32, i32) {
    %c0_i32 = arith.constant 0 : i32
    %c0_i32_0 = arith.constant 0 : i32
    %c0_i32_1 = arith.constant 0 : i32
    return %c0_i32, %c0_i32_0 : i32, i32
  }
  func.func @transform_2(%arg0: i32) -> (i32, i32) {
    %c0_i32 = arith.constant 0 : i32
    %c0_i32_0 = arith.constant 0 : i32
    %c0_i32_1 = arith.constant 0 : i32
    return %c0_i32, %c0_i32_0 : i32, i32
  }
  func.func @transform_3(%arg0: i32) -> (i32, i32) {
    %c0_i32 = arith.constant 0 : i32
    %c0_i32_0 = arith.constant 0 : i32
    %c0_i32_1 = arith.constant 0 : i32
    return %c0_i32, %c0_i32_0 : i32, i32
  }
  func.func @transform_4(%arg0: i32) -> (i32, i32) {
    %c0_i32 = arith.constant 0 : i32
    %c0_i32_0 = arith.constant 0 : i32
    %c0_i32_1 = arith.constant 0 : i32
    return %c0_i32, %c0_i32_0 : i32, i32
  }
  func.func @transform_5(%arg0: i32) -> (i32, i32) {
    %c0_i32 = arith.constant 0 : i32
    %c0_i32_0 = arith.constant 0 : i32
    %c0_i32_1 = arith.constant 0 : i32
    return %c0_i32, %c0_i32_0 : i32, i32
  }
  func.func @transform_6(%arg0: i32) -> (i32, i32) {
    %c0_i32 = arith.constant 0 : i32
    %c0_i32_0 = arith.constant 0 : i32
    %c0_i32_1 = arith.constant 0 : i32
    return %c0_i32, %c0_i32_0 : i32, i32
  }
  func.func @transform_7(%arg0: i32) -> (i32, i32) {
    %c0_i32 = arith.constant 0 : i32
    %c0_i32_0 = arith.constant 0 : i32
    %c0_i32_1 = arith.constant 0 : i32
    return %c0_i32, %c0_i32_0 : i32, i32
  }
  func.func @transform_8(%arg0: i32) -> (i32, i32) {
    %c0_i32 = arith.constant 0 : i32
    %c0_i32_0 = arith.constant 0 : i32
    return %arg0, %c0_i32 : i32, i32
  }
}

</mosaic_0001>

<llo_original>
// kernel: tpu_custom_call.1
$region0: #{tpu_custom_call.1}
  #allocation0 [shape = 'u32[]', space=smem, size = 0x4, offset = 0x4, fixed_abs, tag = 'smem constant byte address 0x4 - core index']
  #allocation1 [shape = 'u32[72,128]{1,0:T(1,128)}', space=vmem, size = 0x9000, scoped, tag = 'internal scratch']
  #allocation2 [shape = 'f32[1,1]{1,0:T(1,128)S(1)}', space=vmem, size = 0x200, scoped, tag = 'scoped memory for tpu_custom_call.1']
  %s0 = inlined_call_operand.vmem [shape: bf16[1024,64], index: 0, kind: input, shape index: {}]
  %s1 = inlined_call_operand.vmem [shape: f32[64,32], index: 1, kind: input, shape index: {}]
  %s2 = inlined_call_operand.vmem [shape: f32[96,32], index: 2, kind: input, shape index: {}]
  %s3 = inlined_call_operand.vmem [shape: f32[1,32], index: 3, kind: input, shape index: {}]
  %s4 = inlined_call_operand.vmem [shape: f32[32,16], index: 4, kind: input, shape index: {}]
  %s5 = inlined_call_operand.vmem [shape: f32[1,16], index: 5, kind: input, shape index: {}]
  %s6 = inlined_call_operand.vmem [shape: f32[16,1], index: 6, kind: input, shape index: {}]
  %s7 = inlined_call_operand.<no memory space> [shape: f32[1,1], index: 7, kind: input, shape index: {}]
  %s8 = inlined_call_operand.vmem [shape: f32[1024,1], index: 8, kind: output, shape index: {}]
  %s9 = sld [smem:[#allocation0]]
  $region42: #{tpu_custom_call.1} parent=0
    _
  %s11 = ssub.s32 1, %s9
  %s12 = scalar_select 0, %s11, %s9
  %v13 = vstv %s7
  %14 = vst [vmem:[#allocation2] sm:$0x1] %v13
  // Predicated region
  $region2: #{tpu_custom_call.1} parent=0 // pred_check
    _
  $region3: #{tpu_custom_call.1} parent=0 // pred_check_branch
    %16 = sbr.rel (0) target = $region5
  $region4: #{tpu_custom_call.1} parent=0 // pred_region
    _
  $region5: #{tpu_custom_call.1} parent=0 // pred_fallthru
    _
  // Predicated region
  $region6: #{tpu_custom_call.1} parent=0 // pred_check
    _
  $region7: #{tpu_custom_call.1} parent=0 // pred_check_branch
    %18 = sbr.rel (0) target = $region9
  $region8: #{tpu_custom_call.1} parent=0 // pred_region
    _
  $region9: #{tpu_custom_call.1} parent=0 // pred_fallthru
    _
  // Predicated region
  $region10: #{tpu_custom_call.1} parent=0 // pred_check
    _
  $region11: #{tpu_custom_call.1} parent=0 // pred_check_branch
    %20 = sbr.rel (0) target = $region13
  $region12: #{tpu_custom_call.1} parent=0 // pred_region
    _
  $region13: #{tpu_custom_call.1} parent=0 // pred_fallthru
    _
  // Predicated region
  $region14: #{tpu_custom_call.1} parent=0 // pred_check
    _
  $region15: #{tpu_custom_call.1} parent=0 // pred_check_branch
    %22 = sbr.rel (0) target = $region17
  $region16: #{tpu_custom_call.1} parent=0 // pred_region
    _
  $region17: #{tpu_custom_call.1} parent=0 // pred_fallthru
    _
  // Predicated region
  $region18: #{tpu_custom_call.1} parent=0 // pred_check
    _
  $region19: #{tpu_custom_call.1} parent=0 // pred_check_branch
    %24 = sbr.rel (0) target = $region21
  $region20: #{tpu_custom_call.1} parent=0 // pred_region
    _
  $region21: #{tpu_custom_call.1} parent=0 // pred_fallthru
    _
  // Predicated region
  $region22: #{tpu_custom_call.1} parent=0 // pred_check
    _
  $region23: #{tpu_custom_call.1} parent=0 // pred_check_branch
    %26 = sbr.rel (0) target = $region25
  $region24: #{tpu_custom_call.1} parent=0 // pred_region
    _
  $region25: #{tpu_custom_call.1} parent=0 // pred_fallthru
    _
  // Predicated region
  $region26: #{tpu_custom_call.1} parent=0 // pred_check
    _
  $region27: #{tpu_custom_call.1} parent=0 // pred_check_branch
    %28 = sbr.rel (0) target = $region29
  $region28: #{tpu_custom_call.1} parent=0 // pred_region
    _
  $region29: #{tpu_custom_call.1} parent=0 // pred_fallthru
    _
  // Predicated region
  $region30: #{tpu_custom_call.1} parent=0 // pred_check
    _
  $region31: #{tpu_custom_call.1} parent=0 // pred_check_branch
    %30 = sbr.rel (0) target = $region33
  $region32: #{tpu_custom_call.1} parent=0 // pred_region
    _
  $region33: #{tpu_custom_call.1} parent=0 // pred_fallthru
    _
  %v31 = vld [vmem:[%s0] sm:$0xf]
  %v32 = vld [vmem:[%s0 + $0x4] sm:$0xf]
  %v33 = vld [vmem:[%s0 + $0x8] sm:$0xf]
  %v34 = vld [vmem:[%s0 + $0xc] sm:$0xf]
  %v35 = vld [vmem:[%s0 + $0x10] sm:$0xf]
  %v36 = vld [vmem:[%s0 + $0x14] sm:$0xf]
  %v37 = vld [vmem:[%s0 + $0x18] sm:$0xf]
  %v38 = vld [vmem:[%s0 + $0x1c] sm:$0xf]
  %v39 = vld [vmem:[%s0 + $0x20] sm:$0xf]
  %v40 = vld [vmem:[%s0 + $0x24] sm:$0xf]
  %v41 = vld [vmem:[%s0 + $0x28] sm:$0xf]
  %v42 = vld [vmem:[%s0 + $0x2c] sm:$0xf]
  %v43 = vld [vmem:[%s0 + $0x30] sm:$0xf]
  %v44 = vld [vmem:[%s0 + $0x34] sm:$0xf]
  %v45 = vld [vmem:[%s0 + $0x38] sm:$0xf]
  %v46 = vld [vmem:[%s0 + $0x3c] sm:$0xf]
  %v47 = vld [vmem:[%s0 + $0x40] sm:$0xf]
  %v48 = vld [vmem:[%s0 + $0x44] sm:$0xf]
  %v49 = vld [vmem:[%s0 + $0x48] sm:$0xf]
  %v50 = vld [vmem:[%s0 + $0x4c] sm:$0xf]
  %v51 = vld [vmem:[%s0 + $0x50] sm:$0xf]
  %v52 = vld [vmem:[%s0 + $0x54] sm:$0xf]
  %v53 = vld [vmem:[%s0 + $0x58] sm:$0xf]
  %v54 = vld [vmem:[%s0 + $0x5c] sm:$0xf]
  %v55 = vld [vmem:[%s0 + $0x60] sm:$0xf]
  %v56 = vld [vmem:[%s0 + $0x64] sm:$0xf]
  %v57 = vld [vmem:[%s0 + $0x68] sm:$0xf]
  %v58 = vld [vmem:[%s0 + $0x6c] sm:$0xf]
  %v59 = vld [vmem:[%s0 + $0x70] sm:$0xf]
  %v60 = vld [vmem:[%s0 + $0x74] sm:$0xf]
  %v61 = vld [vmem:[%s0 + $0x78] sm:$0xf]
  %v62 = vld [vmem:[%s0 + $0x7c] sm:$0xf]
  %v63 = vld [vmem:[%s0 + $0x80] sm:$0xf]
  %v64 = vld [vmem:[%s0 + $0x84] sm:$0xf]
  %v65 = vld [vmem:[%s0 + $0x88] sm:$0xf]
  %v66 = vld [vmem:[%s0 + $0x8c] sm:$0xf]
  %v67 = vld [vmem:[%s0 + $0x90] sm:$0xf]
  %v68 = vld [vmem:[%s0 + $0x94] sm:$0xf]
  %v69 = vld [vmem:[%s0 + $0x98] sm:$0xf]
  %v70 = vld [vmem:[%s0 + $0x9c] sm:$0xf]
  %v71 = vld [vmem:[%s0 + $0xa0] sm:$0xf]
  %v72 = vld [vmem:[%s0 + $0xa4] sm:$0xf]
  %v73 = vld [vmem:[%s0 + $0xa8] sm:$0xf]
  %v74 = vld [vmem:[%s0 + $0xac] sm:$0xf]
  %v75 = vld [vmem:[%s0 + $0xb0] sm:$0xf]
  %v76 = vld [vmem:[%s0 + $0xb4] sm:$0xf]
  %v77 = vld [vmem:[%s0 + $0xb8] sm:$0xf]
  %v78 = vld [vmem:[%s0 + $0xbc] sm:$0xf]
  %v79 = vld [vmem:[%s0 + $0xc0] sm:$0xf]
  %v80 = vld [vmem:[%s0 + $0xc4] sm:$0xf]
  %v81 = vld [vmem:[%s0 + $0xc8] sm:$0xf]
  %v82 = vld [vmem:[%s0 + $0xcc] sm:$0xf]
  %v83 = vld [vmem:[%s0 + $0xd0] sm:$0xf]
  %v84 = vld [vmem:[%s0 + $0xd4] sm:$0xf]
  %v85 = vld [vmem:[%s0 + $0xd8] sm:$0xf]
  %v86 = vld [vmem:[%s0 + $0xdc] sm:$0xf]
  %v87 = vld [vmem:[%s0 + $0xe0] sm:$0xf]
  %v88 = vld [vmem:[%s0 + $0xe4] sm:$0xf]
  %v89 = vld [vmem:[%s0 + $0xe8] sm:$0xf]
  %v90 = vld [vmem:[%s0 + $0xec] sm:$0xf]
  %v91 = vld [vmem:[%s0 + $0xf0] sm:$0xf]
  %v92 = vld [vmem:[%s0 + $0xf4] sm:$0xf]
  %v93 = vld [vmem:[%s0 + $0xf8] sm:$0xf]
  %v94 = vld [vmem:[%s0 + $0xfc] sm:$0xf]
  %v95 = vld [vmem:[%s0 + $0x100] sm:$0xf]
  %v96 = vld [vmem:[%s0 + $0x104] sm:$0xf]
  %v97 = vld [vmem:[%s0 + $0x108] sm:$0xf]
  %v98 = vld [vmem:[%s0 + $0x10c] sm:$0xf]
  %v99 = vld [vmem:[%s0 + $0x110] sm:$0xf]
  %v100 = vld [vmem:[%s0 + $0x114] sm:$0xf]
  %v101 = vld [vmem:[%s0 + $0x118] sm:$0xf]
  %v102 = vld [vmem:[%s0 + $0x11c] sm:$0xf]
  %v103 = vld [vmem:[%s0 + $0x120] sm:$0xf]
  %v104 = vld [vmem:[%s0 + $0x124] sm:$0xf]
  %v105 = vld [vmem:[%s0 + $0x128] sm:$0xf]
  %v106 = vld [vmem:[%s0 + $0x12c] sm:$0xf]
  %v107 = vld [vmem:[%s0 + $0x130] sm:$0xf]
  %v108 = vld [vmem:[%s0 + $0x134] sm:$0xf]
  %v109 = vld [vmem:[%s0 + $0x138] sm:$0xf]
  %v110 = vld [vmem:[%s0 + $0x13c] sm:$0xf]
  %v111 = vld [vmem:[%s0 + $0x140] sm:$0xf]
  %v112 = vld [vmem:[%s0 + $0x144] sm:$0xf]
  %v113 = vld [vmem:[%s0 + $0x148] sm:$0xf]
  %v114 = vld [vmem:[%s0 + $0x14c] sm:$0xf]
  %v115 = vld [vmem:[%s0 + $0x150] sm:$0xf]
  %v116 = vld [vmem:[%s0 + $0x154] sm:$0xf]
  %v117 = vld [vmem:[%s0 + $0x158] sm:$0xf]
  %v118 = vld [vmem:[%s0 + $0x15c] sm:$0xf]
  %v119 = vld [vmem:[%s0 + $0x160] sm:$0xf]
  %v120 = vld [vmem:[%s0 + $0x164] sm:$0xf]
  %v121 = vld [vmem:[%s0 + $0x168] sm:$0xf]
  %v122 = vld [vmem:[%s0 + $0x16c] sm:$0xf]
  %v123 = vld [vmem:[%s0 + $0x170] sm:$0xf]
  %v124 = vld [vmem:[%s0 + $0x174] sm:$0xf]
  %v125 = vld [vmem:[%s0 + $0x178] sm:$0xf]
  %v126 = vld [vmem:[%s0 + $0x17c] sm:$0xf]
  %v127 = vld [vmem:[%s0 + $0x180] sm:$0xf]
  %v128 = vld [vmem:[%s0 + $0x184] sm:$0xf]
  %v129 = vld [vmem:[%s0 + $0x188] sm:$0xf]
  %v130 = vld [vmem:[%s0 + $0x18c] sm:$0xf]
  %v131 = vld [vmem:[%s0 + $0x190] sm:$0xf]
  %v132 = vld [vmem:[%s0 + $0x194] sm:$0xf]
  %v133 = vld [vmem:[%s0 + $0x198] sm:$0xf]
  %v134 = vld [vmem:[%s0 + $0x19c] sm:$0xf]
  %v135 = vld [vmem:[%s0 + $0x1a0] sm:$0xf]
  %v136 = vld [vmem:[%s0 + $0x1a4] sm:$0xf]
  %v137 = vld [vmem:[%s0 + $0x1a8] sm:$0xf]
  %v138 = vld [vmem:[%s0 + $0x1ac] sm:$0xf]
  %v139 = vld [vmem:[%s0 + $0x1b0] sm:$0xf]
  %v140 = vld [vmem:[%s0 + $0x1b4] sm:$0xf]
  %v141 = vld [vmem:[%s0 + $0x1b8] sm:$0xf]
  %v142 = vld [vmem:[%s0 + $0x1bc] sm:$0xf]
  %v143 = vld [vmem:[%s0 + $0x1c0] sm:$0xf]
  %v144 = vld [vmem:[%s0 + $0x1c4] sm:$0xf]
  %v145 = vld [vmem:[%s0 + $0x1c8] sm:$0xf]
  %v146 = vld [vmem:[%s0 + $0x1cc] sm:$0xf]
  %v147 = vld [vmem:[%s0 + $0x1d0] sm:$0xf]
  %v148 = vld [vmem:[%s0 + $0x1d4] sm:$0xf]
  %v149 = vld [vmem:[%s0 + $0x1d8] sm:$0xf]
  %v150 = vld [vmem:[%s0 + $0x1dc] sm:$0xf]
  %v151 = vld [vmem:[%s0 + $0x1e0] sm:$0xf]
  %v152 = vld [vmem:[%s0 + $0x1e4] sm:$0xf]
  %v153 = vld [vmem:[%s0 + $0x1e8] sm:$0xf]
  %v154 = vld [vmem:[%s0 + $0x1ec] sm:$0xf]
  %v155 = vld [vmem:[%s0 + $0x1f0] sm:$0xf]
  %v156 = vld [vmem:[%s0 + $0x1f4] sm:$0xf]
  %v157 = vld [vmem:[%s0 + $0x1f8] sm:$0xf]
  %v158 = vld [vmem:[%s0 + $0x1fc] sm:$0xf]
  %v159 = vunpack.c.l.bf16 %v31
  %v160 = vunpack.c.l.bf16 %v32
  %v161 = vunpack.c.l.bf16 %v33
  %v162 = vunpack.c.l.bf16 %v34
  %v163 = vunpack.c.l.bf16 %v35
  %v164 = vunpack.c.l.bf16 %v36
  %v165 = vunpack.c.l.bf16 %v37
  %v166 = vunpack.c.l.bf16 %v38
  %v167 = vunpack.c.l.bf16 %v39
  %v168 = vunpack.c.l.bf16 %v40
  %v169 = vunpack.c.l.bf16 %v41
  %v170 = vunpack.c.l.bf16 %v42
  %v171 = vunpack.c.l.bf16 %v43
  %v172 = vunpack.c.l.bf16 %v44
  %v173 = vunpack.c.l.bf16 %v45
  %v174 = vunpack.c.l.bf16 %v46
  %v175 = vunpack.c.l.bf16 %v47
  %v176 = vunpack.c.l.bf16 %v48
  %v177 = vunpack.c.l.bf16 %v49
  %v178 = vunpack.c.l.bf16 %v50
  %v179 = vunpack.c.l.bf16 %v51
  %v180 = vunpack.c.l.bf16 %v52
  %v181 = vunpack.c.l.bf16 %v53
  %v182 = vunpack.c.l.bf16 %v54
  %v183 = vunpack.c.l.bf16 %v55
  %v184 = vunpack.c.l.bf16 %v56
  %v185 = vunpack.c.l.bf16 %v57
  %v186 = vunpack.c.l.bf16 %v58
  %v187 = vunpack.c.l.bf16 %v59
  %v188 = vunpack.c.l.bf16 %v60
  %v189 = vunpack.c.l.bf16 %v61
  %v190 = vunpack.c.l.bf16 %v62
  %v191 = vunpack.c.l.bf16 %v63
  %v192 = vunpack.c.l.bf16 %v64
  %v193 = vunpack.c.l.bf16 %v65
  %v194 = vunpack.c.l.bf16 %v66
  %v195 = vunpack.c.l.bf16 %v67
  %v196 = vunpack.c.l.bf16 %v68
  %v197 = vunpack.c.l.bf16 %v69
  %v198 = vunpack.c.l.bf16 %v70
  %v199 = vunpack.c.l.bf16 %v71
  %v200 = vunpack.c.l.bf16 %v72
  %v201 = vunpack.c.l.bf16 %v73
  %v202 = vunpack.c.l.bf16 %v74
  %v203 = vunpack.c.l.bf16 %v75
  %v204 = vunpack.c.l.bf16 %v76
  %v205 = vunpack.c.l.bf16 %v77
  %v206 = vunpack.c.l.bf16 %v78
  %v207 = vunpack.c.l.bf16 %v79
  %v208 = vunpack.c.l.bf16 %v80
  %v209 = vunpack.c.l.bf16 %v81
  %v210 = vunpack.c.l.bf16 %v82
  %v211 = vunpack.c.l.bf16 %v83
  %v212 = vunpack.c.l.bf16 %v84
  %v213 = vunpack.c.l.bf16 %v85
  %v214 = vunpack.c.l.bf16 %v86
  %v215 = vunpack.c.l.bf16 %v87
  %v216 = vunpack.c.l.bf16 %v88
  %v217 = vunpack.c.l.bf16 %v89
  %v218 = vunpack.c.l.bf16 %v90
  %v219 = vunpack.c.l.bf16 %v91
  %v220 = vunpack.c.l.bf16 %v92
  %v221 = vunpack.c.l.bf16 %v93
  %v222 = vunpack.c.l.bf16 %v94
  %v223 = vunpack.c.l.bf16 %v95
  %v224 = vunpack.c.l.bf16 %v96
  %v225 = vunpack.c.l.bf16 %v97
  %v226 = vunpack.c.l.bf16 %v98
  %v227 = vunpack.c.l.bf16 %v99
  %v228 = vunpack.c.l.bf16 %v100
  %v229 = vunpack.c.l.bf16 %v101
  %v230 = vunpack.c.l.bf16 %v102
  %v231 = vunpack.c.l.bf16 %v103
  %v232 = vunpack.c.l.bf16 %v104
  %v233 = vunpack.c.l.bf16 %v105
  %v234 = vunpack.c.l.bf16 %v106
  %v235 = vunpack.c.l.bf16 %v107
  %v236 = vunpack.c.l.bf16 %v108
  %v237 = vunpack.c.l.bf16 %v109
  %v238 = vunpack.c.l.bf16 %v110
  %v239 = vunpack.c.l.bf16 %v111
  %v240 = vunpack.c.l.bf16 %v112
  %v241 = vunpack.c.l.bf16 %v113
  %v242 = vunpack.c.l.bf16 %v114
  %v243 = vunpack.c.l.bf16 %v115
  %v244 = vunpack.c.l.bf16 %v116
  %v245 = vunpack.c.l.bf16 %v117
  %v246 = vunpack.c.l.bf16 %v118
  %v247 = vunpack.c.l.bf16 %v119
  %v248 = vunpack.c.l.bf16 %v120
  %v249 = vunpack.c.l.bf16 %v121
  %v250 = vunpack.c.l.bf16 %v122
  %v251 = vunpack.c.l.bf16 %v123
  %v252 = vunpack.c.l.bf16 %v124
  %v253 = vunpack.c.l.bf16 %v125
  %v254 = vunpack.c.l.bf16 %v126
  %v255 = vunpack.c.l.bf16 %v127
  %v256 = vunpack.c.l.bf16 %v128
  %v257 = vunpack.c.l.bf16 %v129
  %v258 = vunpack.c.l.bf16 %v130
  %v259 = vunpack.c.l.bf16 %v131
  %v260 = vunpack.c.l.bf16 %v132
  %v261 = vunpack.c.l.bf16 %v133
  %v262 = vunpack.c.l.bf16 %v134
  %v263 = vunpack.c.l.bf16 %v135
  %v264 = vunpack.c.l.bf16 %v136
  %v265 = vunpack.c.l.bf16 %v137
  %v266 = vunpack.c.l.bf16 %v138
  %v267 = vunpack.c.l.bf16 %v139
  %v268 = vunpack.c.l.bf16 %v140
  %v269 = vunpack.c.l.bf16 %v141
  %v270 = vunpack.c.l.bf16 %v142
  %v271 = vunpack.c.l.bf16 %v143
  %v272 = vunpack.c.l.bf16 %v144
  %v273 = vunpack.c.l.bf16 %v145
  %v274 = vunpack.c.l.bf16 %v146
  %v275 = vunpack.c.l.bf16 %v147
  %v276 = vunpack.c.l.bf16 %v148
  %v277 = vunpack.c.l.bf16 %v149
  %v278 = vunpack.c.l.bf16 %v150
  %v279 = vunpack.c.l.bf16 %v151
  %v280 = vunpack.c.l.bf16 %v152
  %v281 = vunpack.c.l.bf16 %v153
  %v282 = vunpack.c.l.bf16 %v154
  %v283 = vunpack.c.l.bf16 %v155
  %v284 = vunpack.c.l.bf16 %v156
  %v285 = vunpack.c.l.bf16 %v157
  %v286 = vunpack.c.l.bf16 %v158
  %v287 = vld [vmem:[%s1] sm:$0xff]
  %v288 = vld [vmem:[%s1 + $0x8] sm:$0xff]
  %v289 = vld [vmem:[%s1 + $0x10] sm:$0xff]
  %v290 = vld [vmem:[%s1 + $0x18] sm:$0xff]
  %v291 = vld [vmem:[%s1 + $0x20] sm:$0xff]
  %v292 = vld [vmem:[%s1 + $0x28] sm:$0xff]
  %v293 = vld [vmem:[%s1 + $0x30] sm:$0xff]
  %v294 = vld [vmem:[%s1 + $0x38] sm:$0xff]
  %423 = vrot.lane.b32.xlu0 %v159, 112
  %v424 = vpop.permute.xlu0 %423
  %425 = vrot.lane.b32.xlu0 %v160, 112
  %v426 = vpop.permute.xlu0 %425
  %427 = vrot.lane.b32.xlu0 %v161, 112
  %v428 = vpop.permute.xlu0 %427
  %429 = vrot.lane.b32.xlu0 %v162, 112
  %v430 = vpop.permute.xlu0 %429
  %431 = vrot.lane.b32.xlu0 %v163, 112
  %v432 = vpop.permute.xlu0 %431
  %433 = vrot.lane.b32.xlu0 %v164, 112
  %v434 = vpop.permute.xlu0 %433
  %435 = vrot.lane.b32.xlu0 %v165, 112
  %v436 = vpop.permute.xlu0 %435
  %437 = vrot.lane.b32.xlu0 %v166, 112
  %v438 = vpop.permute.xlu0 %437
  %439 = vrot.lane.b32.xlu0 %v167, 112
  %v440 = vpop.permute.xlu0 %439
  %441 = vrot.lane.b32.xlu0 %v168, 112
  %v442 = vpop.permute.xlu0 %441
  %443 = vrot.lane.b32.xlu0 %v169, 112
  %v444 = vpop.permute.xlu0 %443
  %445 = vrot.lane.b32.xlu0 %v170, 112
  %v446 = vpop.permute.xlu0 %445
  %447 = vrot.lane.b32.xlu0 %v171, 112
  %v448 = vpop.permute.xlu0 %447
  %449 = vrot.lane.b32.xlu0 %v172, 112
  %v450 = vpop.permute.xlu0 %449
  %451 = vrot.lane.b32.xlu0 %v173, 112
  %v452 = vpop.permute.xlu0 %451
  %453 = vrot.lane.b32.xlu0 %v174, 112
  %v454 = vpop.permute.xlu0 %453
  %455 = vrot.lane.b32.xlu0 %v175, 112
  %v456 = vpop.permute.xlu0 %455
  %457 = vrot.lane.b32.xlu0 %v176, 112
  %v458 = vpop.permute.xlu0 %457
  %459 = vrot.lane.b32.xlu0 %v177, 112
  %v460 = vpop.permute.xlu0 %459
  %461 = vrot.lane.b32.xlu0 %v178, 112
  %v462 = vpop.permute.xlu0 %461
  %463 = vrot.lane.b32.xlu0 %v179, 112
  %v464 = vpop.permute.xlu0 %463
  %465 = vrot.lane.b32.xlu0 %v180, 112
  %v466 = vpop.permute.xlu0 %465
  %467 = vrot.lane.b32.xlu0 %v181, 112
  %v468 = vpop.permute.xlu0 %467
  %469 = vrot.lane.b32.xlu0 %v182, 112
  %v470 = vpop.permute.xlu0 %469
  %471 = vrot.lane.b32.xlu0 %v183, 112
  %v472 = vpop.permute.xlu0 %471
  %473 = vrot.lane.b32.xlu0 %v184, 112
  %v474 = vpop.permute.xlu0 %473
  %475 = vrot.lane.b32.xlu0 %v185, 112
  %v476 = vpop.permute.xlu0 %475
  %477 = vrot.lane.b32.xlu0 %v186, 112
  %v478 = vpop.permute.xlu0 %477
  %479 = vrot.lane.b32.xlu0 %v187, 112
  %v480 = vpop.permute.xlu0 %479
  %481 = vrot.lane.b32.xlu0 %v188, 112
  %v482 = vpop.permute.xlu0 %481
  %483 = vrot.lane.b32.xlu0 %v189, 112
  %v484 = vpop.permute.xlu0 %483
  %485 = vrot.lane.b32.xlu0 %v190, 112
  %v486 = vpop.permute.xlu0 %485
  %487 = vrot.lane.b32.xlu0 %v191, 112
  %v488 = vpop.permute.xlu0 %487
  %489 = vrot.lane.b32.xlu0 %v192, 112
  %v490 = vpop.permute.xlu0 %489
  %491 = vrot.lane.b32.xlu0 %v193, 112
  %v492 = vpop.permute.xlu0 %491
  %493 = vrot.lane.b32.xlu0 %v194, 112
  %v494 = vpop.permute.xlu0 %493
  %495 = vrot.lane.b32.xlu0 %v195, 112
  %v496 = vpop.permute.xlu0 %495
  %497 = vrot.lane.b32.xlu0 %v196, 112
  %v498 = vpop.permute.xlu0 %497
  %499 = vrot.lane.b32.xlu0 %v197, 112
  %v500 = vpop.permute.xlu0 %499
  %501 = vrot.lane.b32.xlu0 %v198, 112
  %v502 = vpop.permute.xlu0 %501
  %503 = vrot.lane.b32.xlu0 %v199, 112
  %v504 = vpop.permute.xlu0 %503
  %505 = vrot.lane.b32.xlu0 %v200, 112
  %v506 = vpop.permute.xlu0 %505
  %507 = vrot.lane.b32.xlu0 %v201, 112
  %v508 = vpop.permute.xlu0 %507
  %509 = vrot.lane.b32.xlu0 %v202, 112
  %v510 = vpop.permute.xlu0 %509
  %511 = vrot.lane.b32.xlu0 %v203, 112
  %v512 = vpop.permute.xlu0 %511
  %513 = vrot.lane.b32.xlu0 %v204, 112
  %v514 = vpop.permute.xlu0 %513
  %515 = vrot.lane.b32.xlu0 %v205, 112
  %v516 = vpop.permute.xlu0 %515
  %517 = vrot.lane.b32.xlu0 %v206, 112
  %v518 = vpop.permute.xlu0 %517
  %519 = vrot.lane.b32.xlu0 %v207, 112
  %v520 = vpop.permute.xlu0 %519
  %521 = vrot.lane.b32.xlu0 %v208, 112
  %v522 = vpop.permute.xlu0 %521
  %523 = vrot.lane.b32.xlu0 %v209, 112
  %v524 = vpop.permute.xlu0 %523
  %525 = vrot.lane.b32.xlu0 %v210, 112
  %v526 = vpop.permute.xlu0 %525
  %527 = vrot.lane.b32.xlu0 %v211, 112
  %v528 = vpop.permute.xlu0 %527
  %529 = vrot.lane.b32.xlu0 %v212, 112
  %v530 = vpop.permute.xlu0 %529
  %531 = vrot.lane.b32.xlu0 %v213, 112
  %v532 = vpop.permute.xlu0 %531
  %533 = vrot.lane.b32.xlu0 %v214, 112
  %v534 = vpop.permute.xlu0 %533
  %535 = vrot.lane.b32.xlu0 %v215, 112
  %v536 = vpop.permute.xlu0 %535
  %537 = vrot.lane.b32.xlu0 %v216, 112
  %v538 = vpop.permute.xlu0 %537
  %539 = vrot.lane.b32.xlu0 %v217, 112
  %v540 = vpop.permute.xlu0 %539
  %541 = vrot.lane.b32.xlu0 %v218, 112
  %v542 = vpop.permute.xlu0 %541
  %543 = vrot.lane.b32.xlu0 %v219, 112
  %v544 = vpop.permute.xlu0 %543
  %545 = vrot.lane.b32.xlu0 %v220, 112
  %v546 = vpop.permute.xlu0 %545
  %547 = vrot.lane.b32.xlu0 %v221, 112
  %v548 = vpop.permute.xlu0 %547
  %549 = vrot.lane.b32.xlu0 %v222, 112
  %v550 = vpop.permute.xlu0 %549
  %551 = vrot.lane.b32.xlu0 %v223, 112
  %v552 = vpop.permute.xlu0 %551
  %553 = vrot.lane.b32.xlu0 %v224, 112
  %v554 = vpop.permute.xlu0 %553
  %555 = vrot.lane.b32.xlu0 %v225, 112
  %v556 = vpop.permute.xlu0 %555
  %557 = vrot.lane.b32.xlu0 %v226, 112
  %v558 = vpop.permute.xlu0 %557
  %559 = vrot.lane.b32.xlu0 %v227, 112
  %v560 = vpop.permute.xlu0 %559
  %561 = vrot.lane.b32.xlu0 %v228, 112
  %v562 = vpop.permute.xlu0 %561
  %563 = vrot.lane.b32.xlu0 %v229, 112
  %v564 = vpop.permute.xlu0 %563
  %565 = vrot.lane.b32.xlu0 %v230, 112
  %v566 = vpop.permute.xlu0 %565
  %567 = vrot.lane.b32.xlu0 %v231, 112
  %v568 = vpop.permute.xlu0 %567
  %569 = vrot.lane.b32.xlu0 %v232, 112
  %v570 = vpop.permute.xlu0 %569
  %571 = vrot.lane.b32.xlu0 %v233, 112
  %v572 = vpop.permute.xlu0 %571
  %573 = vrot.lane.b32.xlu0 %v234, 112
  %v574 = vpop.permute.xlu0 %573
  %575 = vrot.lane.b32.xlu0 %v235, 112
  %v576 = vpop.permute.xlu0 %575
  %577 = vrot.lane.b32.xlu0 %v236, 112
  %v578 = vpop.permute.xlu0 %577
  %579 = vrot.lane.b32.xlu0 %v237, 112
  %v580 = vpop.permute.xlu0 %579
  %581 = vrot.lane.b32.xlu0 %v238, 112
  %v582 = vpop.permute.xlu0 %581
  %583 = vrot.lane.b32.xlu0 %v239, 112
  %v584 = vpop.permute.xlu0 %583
  %585 = vrot.lane.b32.xlu0 %v240, 112
  %v586 = vpop.permute.xlu0 %585
  %587 = vrot.lane.b32.xlu0 %v241, 112
  %v588 = vpop.permute.xlu0 %587
  %589 = vrot.lane.b32.xlu0 %v242, 112
  %v590 = vpop.permute.xlu0 %589
  %591 = vrot.lane.b32.xlu0 %v243, 112
  %v592 = vpop.permute.xlu0 %591
  %593 = vrot.lane.b32.xlu0 %v244, 112
  %v594 = vpop.permute.xlu0 %593
  %595 = vrot.lane.b32.xlu0 %v245, 112
  %v596 = vpop.permute.xlu0 %595
  %597 = vrot.lane.b32.xlu0 %v246, 112
  %v598 = vpop.permute.xlu0 %597
  %599 = vrot.lane.b32.xlu0 %v247, 112
  %v600 = vpop.permute.xlu0 %599
  %601 = vrot.lane.b32.xlu0 %v248, 112
  %v602 = vpop.permute.xlu0 %601
  %603 = vrot.lane.b32.xlu0 %v249, 112
  %v604 = vpop.permute.xlu0 %603
  %605 = vrot.lane.b32.xlu0 %v250, 112
  %v606 = vpop.permute.xlu0 %605
  %607 = vrot.lane.b32.xlu0 %v251, 112
  %v608 = vpop.permute.xlu0 %607
  %609 = vrot.lane.b32.xlu0 %v252, 112
  %v610 = vpop.permute.xlu0 %609
  %611 = vrot.lane.b32.xlu0 %v253, 112
  %v612 = vpop.permute.xlu0 %611
  %613 = vrot.lane.b32.xlu0 %v254, 112
  %v614 = vpop.permute.xlu0 %613
  %615 = vrot.lane.b32.xlu0 %v255, 112
  %v616 = vpop.permute.xlu0 %615
  %617 = vrot.lane.b32.xlu0 %v256, 112
  %v618 = vpop.permute.xlu0 %617
  %619 = vrot.lane.b32.xlu0 %v257, 112
  %v620 = vpop.permute.xlu0 %619
  %621 = vrot.lane.b32.xlu0 %v258, 112
  %v622 = vpop.permute.xlu0 %621
  %623 = vrot.lane.b32.xlu0 %v259, 112
  %v624 = vpop.permute.xlu0 %623
  %625 = vrot.lane.b32.xlu0 %v260, 112
  %v626 = vpop.permute.xlu0 %625
  %627 = vrot.lane.b32.xlu0 %v261, 112
  %v628 = vpop.permute.xlu0 %627
  %629 = vrot.lane.b32.xlu0 %v262, 112
  %v630 = vpop.permute.xlu0 %629
  %631 = vrot.lane.b32.xlu0 %v263, 112
  %v632 = vpop.permute.xlu0 %631
  %633 = vrot.lane.b32.xlu0 %v264, 112
  %v634 = vpop.permute.xlu0 %633
  %635 = vrot.lane.b32.xlu0 %v265, 112
  %v636 = vpop.permute.xlu0 %635
  %637 = vrot.lane.b32.xlu0 %v266, 112
  %v638 = vpop.permute.xlu0 %637
  %639 = vrot.lane.b32.xlu0 %v267, 112
  %v640 = vpop.permute.xlu0 %639
  %641 = vrot.lane.b32.xlu0 %v268, 112
  %v642 = vpop.permute.xlu0 %641
  %643 = vrot.lane.b32.xlu0 %v269, 112
  %v644 = vpop.permute.xlu0 %643
  %645 = vrot.lane.b32.xlu0 %v270, 112
  %v646 = vpop.permute.xlu0 %645
  %647 = vrot.lane.b32.xlu0 %v271, 112
  %v648 = vpop.permute.xlu0 %647
  %649 = vrot.lane.b32.xlu0 %v272, 112
  %v650 = vpop.permute.xlu0 %649
  %651 = vrot.lane.b32.xlu0 %v273, 112
  %v652 = vpop.permute.xlu0 %651
  %653 = vrot.lane.b32.xlu0 %v274, 112
  %v654 = vpop.permute.xlu0 %653
  %655 = vrot.lane.b32.xlu0 %v275, 112
  %v656 = vpop.permute.xlu0 %655
  %657 = vrot.lane.b32.xlu0 %v276, 112
  %v658 = vpop.permute.xlu0 %657
  %659 = vrot.lane.b32.xlu0 %v277, 112
  %v660 = vpop.permute.xlu0 %659
  %661 = vrot.lane.b32.xlu0 %v278, 112
  %v662 = vpop.permute.xlu0 %661
  %663 = vrot.lane.b32.xlu0 %v279, 112
  %v664 = vpop.permute.xlu0 %663
  %665 = vrot.lane.b32.xlu0 %v280, 112
  %v666 = vpop.permute.xlu0 %665
  %667 = vrot.lane.b32.xlu0 %v281, 112
  %v668 = vpop.permute.xlu0 %667
  %669 = vrot.lane.b32.xlu0 %v282, 112
  %v670 = vpop.permute.xlu0 %669
  %671 = vrot.lane.b32.xlu0 %v283, 112
  %v672 = vpop.permute.xlu0 %671
  %673 = vrot.lane.b32.xlu0 %v284, 112
  %v674 = vpop.permute.xlu0 %673
  %675 = vrot.lane.b32.xlu0 %v285, 112
  %v676 = vpop.permute.xlu0 %675
  %677 = vrot.lane.b32.xlu0 %v286, 112
  %v678 = vpop.permute.xlu0 %677
  %v807 = vmul.f32 %v159, %v424
  %v808 = vmul.f32 %v160, %v426
  %v809 = vmul.f32 %v161, %v428
  %v810 = vmul.f32 %v162, %v430
  %v811 = vmul.f32 %v163, %v432
  %v812 = vmul.f32 %v164, %v434
  %v813 = vmul.f32 %v165, %v436
  %v814 = vmul.f32 %v166, %v438
  %v815 = vmul.f32 %v167, %v440
  %v816 = vmul.f32 %v168, %v442
  %v817 = vmul.f32 %v169, %v444
  %v818 = vmul.f32 %v170, %v446
  %v819 = vmul.f32 %v171, %v448
  %v820 = vmul.f32 %v172, %v450
  %v821 = vmul.f32 %v173, %v452
  %v822 = vmul.f32 %v174, %v454
  %v823 = vmul.f32 %v175, %v456
  %v824 = vmul.f32 %v176, %v458
  %v825 = vmul.f32 %v177, %v460
  %v826 = vmul.f32 %v178, %v462
  %v827 = vmul.f32 %v179, %v464
  %v828 = vmul.f32 %v180, %v466
  %v829 = vmul.f32 %v181, %v468
  %v830 = vmul.f32 %v182, %v470
  %v831 = vmul.f32 %v183, %v472
  %v832 = vmul.f32 %v184, %v474
  %v833 = vmul.f32 %v185, %v476
  %v834 = vmul.f32 %v186, %v478
  %v835 = vmul.f32 %v187, %v480
  %v836 = vmul.f32 %v188, %v482
  %v837 = vmul.f32 %v189, %v484
  %v838 = vmul.f32 %v190, %v486
  %v839 = vmul.f32 %v191, %v488
  %v840 = vmul.f32 %v192, %v490
  %v841 = vmul.f32 %v193, %v492
  %v842 = vmul.f32 %v194, %v494
  %v843 = vmul.f32 %v195, %v496
  %v844 = vmul.f32 %v196, %v498
  %v845 = vmul.f32 %v197, %v500
  %v846 = vmul.f32 %v198, %v502
  %v847 = vmul.f32 %v199, %v504
  %v848 = vmul.f32 %v200, %v506
  %v849 = vmul.f32 %v201, %v508
  %v850 = vmul.f32 %v202, %v510
  %v851 = vmul.f32 %v203, %v512
  %v852 = vmul.f32 %v204, %v514
  %v853 = vmul.f32 %v205, %v516
  %v854 = vmul.f32 %v206, %v518
  %v855 = vmul.f32 %v207, %v520
  %v856 = vmul.f32 %v208, %v522
  %v857 = vmul.f32 %v209, %v524
  %v858 = vmul.f32 %v210, %v526
  %v859 = vmul.f32 %v211, %v528
  %v860 = vmul.f32 %v212, %v530
  %v861 = vmul.f32 %v213, %v532
  %v862 = vmul.f32 %v214, %v534
  %v863 = vmul.f32 %v215, %v536
  %v864 = vmul.f32 %v216, %v538
  %v865 = vmul.f32 %v217, %v540
  %v866 = vmul.f32 %v218, %v542
  %v867 = vmul.f32 %v219, %v544
  %v868 = vmul.f32 %v220, %v546
  %v869 = vmul.f32 %v221, %v548
  %v870 = vmul.f32 %v222, %v550
  %v871 = vmul.f32 %v223, %v552
  %v872 = vmul.f32 %v224, %v554
  %v873 = vmul.f32 %v225, %v556
  %v874 = vmul.f32 %v226, %v558
  %v875 = vmul.f32 %v227, %v560
  %v876 = vmul.f32 %v228, %v562
  %v877 = vmul.f32 %v229, %v564
  %v878 = vmul.f32 %v230, %v566
  %v879 = vmul.f32 %v231, %v568
  %v880 = vmul.f32 %v232, %v570
  %v881 = vmul.f32 %v233, %v572
  %v882 = vmul.f32 %v234, %v574
  %v883 = vmul.f32 %v235, %v576
  %v884 = vmul.f32 %v236, %v578
  %v885 = vmul.f32 %v237, %v580
  %v886 = vmul.f32 %v238, %v582
  %v887 = vmul.f32 %v239, %v584
  %v888 = vmul.f32 %v240, %v586
  %v889 = vmul.f32 %v241, %v588
  %v890 = vmul.f32 %v242, %v590
  %v891 = vmul.f32 %v243, %v592
  %v892 = vmul.f32 %v244, %v594
  %v893 = vmul.f32 %v245, %v596
  %v894 = vmul.f32 %v246, %v598
  %v895 = vmul.f32 %v247, %v600
  %v896 = vmul.f32 %v248, %v602
  %v897 = vmul.f32 %v249, %v604
  %v898 = vmul.f32 %v250, %v606
  %v899 = vmul.f32 %v251, %v608
  %v900 = vmul.f32 %v252, %v610
  %v901 = vmul.f32 %v253, %v612
  %v902 = vmul.f32 %v254, %v614
  %v903 = vmul.f32 %v255, %v616
  %v904 = vmul.f32 %v256, %v618
  %v905 = vmul.f32 %v257, %v620
  %v906 = vmul.f32 %v258, %v622
  %v907 = vmul.f32 %v259, %v624
  %v908 = vmul.f32 %v260, %v626
  %v909 = vmul.f32 %v261, %v628
  %v910 = vmul.f32 %v262, %v630
  %v911 = vmul.f32 %v263, %v632
  %v912 = vmul.f32 %v264, %v634
  %v913 = vmul.f32 %v265, %v636
  %v914 = vmul.f32 %v266, %v638
  %v915 = vmul.f32 %v267, %v640
  %v916 = vmul.f32 %v268, %v642
  %v917 = vmul.f32 %v269, %v644
  %v918 = vmul.f32 %v270, %v646
  %v919 = vmul.f32 %v271, %v648
  %v920 = vmul.f32 %v272, %v650
  %v921 = vmul.f32 %v273, %v652
  %v922 = vmul.f32 %v274, %v654
  %v923 = vmul.f32 %v275, %v656
  %v924 = vmul.f32 %v276, %v658
  %v925 = vmul.f32 %v277, %v660
  %v926 = vmul.f32 %v278, %v662
  %v927 = vmul.f32 %v279, %v664
  %v928 = vmul.f32 %v280, %v666
  %v929 = vmul.f32 %v281, %v668
  %v930 = vmul.f32 %v282, %v670
  %v931 = vmul.f32 %v283, %v672
  %v932 = vmul.f32 %v284, %v674
  %v933 = vmul.f32 %v285, %v676
  %v934 = vmul.f32 %v286, %v678
  %v935 = vld [vmem:[%s2] sm:$0xff]
  %v936 = vld [vmem:[%s2 + $0x8] sm:$0xff]
  %vm937 = vcmask 130048
  %v939 = vsel %vm937, %v807, 0
  %v942 = vsel %vm937, %v808, 0
  %v945 = vsel %vm937, %v809, 0
  %v948 = vsel %vm937, %v810, 0
  %v951 = vsel %vm937, %v811, 0
  %v954 = vsel %vm937, %v812, 0
  %v957 = vsel %vm937, %v813, 0
  %v960 = vsel %vm937, %v814, 0
  %v963 = vsel %vm937, %v815, 0
  %v966 = vsel %vm937, %v816, 0
  %v969 = vsel %vm937, %v817, 0
  %v972 = vsel %vm937, %v818, 0
  %v975 = vsel %vm937, %v819, 0
  %v978 = vsel %vm937, %v820, 0
  %v981 = vsel %vm937, %v821, 0
  %v984 = vsel %vm937, %v822, 0
  %v987 = vsel %vm937, %v823, 0
  %v990 = vsel %vm937, %v824, 0
  %v993 = vsel %vm937, %v825, 0
  %v996 = vsel %vm937, %v826, 0
  %v999 = vsel %vm937, %v827, 0
  %v1002 = vsel %vm937, %v828, 0
  %v1005 = vsel %vm937, %v829, 0
  %v1008 = vsel %vm937, %v830, 0
  %v1011 = vsel %vm937, %v831, 0
  %v1014 = vsel %vm937, %v832, 0
  %v1017 = vsel %vm937, %v833, 0
  %v1020 = vsel %vm937, %v834, 0
  %v1023 = vsel %vm937, %v835, 0
  %v1026 = vsel %vm937, %v836, 0
  %v1029 = vsel %vm937, %v837, 0
  %v1032 = vsel %vm937, %v838, 0
  %v1035 = vsel %vm937, %v839, 0
  %v1038 = vsel %vm937, %v840, 0
  %v1041 = vsel %vm937, %v841, 0
  %v1044 = vsel %vm937, %v842, 0
  %v1047 = vsel %vm937, %v843, 0
  %v1050 = vsel %vm937, %v844, 0
  %v1053 = vsel %vm937, %v845, 0
  %v1056 = vsel %vm937, %v846, 0
  %v1059 = vsel %vm937, %v847, 0
  %v1062 = vsel %vm937, %v848, 0
  %v1065 = vsel %vm937, %v849, 0
  %v1068 = vsel %vm937, %v850, 0
  %v1071 = vsel %vm937, %v851, 0
  %v1074 = vsel %vm937, %v852, 0
  %v1077 = vsel %vm937, %v853, 0
  %v1080 = vsel %vm937, %v854, 0
  %v1083 = vsel %vm937, %v855, 0
  %v1086 = vsel %vm937, %v856, 0
  %v1089 = vsel %vm937, %v857, 0
  %v1092 = vsel %vm937, %v858, 0
  %v1095 = vsel %vm937, %v859, 0
  %v1098 = vsel %vm937, %v860, 0
  %v1101 = vsel %vm937, %v861, 0
  %v1104 = vsel %vm937, %v862, 0
  %v1107 = vsel %vm937, %v863, 0
  %v1110 = vsel %vm937, %v864, 0
  %v1113 = vsel %vm937, %v865, 0
  %v1116 = vsel %vm937, %v866, 0
  %v1119 = vsel %vm937, %v867, 0
  %v1122 = vsel %vm937, %v868, 0
  %v1125 = vsel %vm937, %v869, 0
  %v1128 = vsel %vm937, %v870, 0
  %v1131 = vsel %vm937, %v871, 0
  %v1134 = vsel %vm937, %v872, 0
  %v1137 = vsel %vm937, %v873, 0
  %v1140 = vsel %vm937, %v874, 0
  %v1143 = vsel %vm937, %v875, 0
  %v1146 = vsel %vm937, %v876, 0
  %v1149 = vsel %vm937, %v877, 0
  %v1152 = vsel %vm937, %v878, 0
  %v1155 = vsel %vm937, %v879, 0
  %v1158 = vsel %vm937, %v880, 0
  %v1161 = vsel %vm937, %v881, 0
  %v1164 = vsel %vm937, %v882, 0
  %v1167 = vsel %vm937, %v883, 0
  %v1170 = vsel %vm937, %v884, 0
  %v1173 = vsel %vm937, %v885, 0
  %v1176 = vsel %vm937, %v886, 0
  %v1179 = vsel %vm937, %v887, 0
  %v1182 = vsel %vm937, %v888, 0
  %v1185 = vsel %vm937, %v889, 0
  %v1188 = vsel %vm937, %v890, 0
  %v1191 = vsel %vm937, %v891, 0
  %v1194 = vsel %vm937, %v892, 0
  %v1197 = vsel %vm937, %v893, 0
  %v1200 = vsel %vm937, %v894, 0
  %v1203 = vsel %vm937, %v895, 0
  %v1206 = vsel %vm937, %v896, 0
  %v1209 = vsel %vm937, %v897, 0
  %v1212 = vsel %vm937, %v898, 0
  %v1215 = vsel %vm937, %v899, 0
  %v1218 = vsel %vm937, %v900, 0
  %v1221 = vsel %vm937, %v901, 0
  %v1224 = vsel %vm937, %v902, 0
  %v1227 = vsel %vm937, %v903, 0
  %v1230 = vsel %vm937, %v904, 0
  %v1233 = vsel %vm937, %v905, 0
  %v1236 = vsel %vm937, %v906, 0
  %v1239 = vsel %vm937, %v907, 0
  %v1242 = vsel %vm937, %v908, 0
  %v1245 = vsel %vm937, %v909, 0
  %v1248 = vsel %vm937, %v910, 0
  %v1251 = vsel %vm937, %v911, 0
  %v1254 = vsel %vm937, %v912, 0
  %v1257 = vsel %vm937, %v913, 0
  %v1260 = vsel %vm937, %v914, 0
  %v1263 = vsel %vm937, %v915, 0
  %v1266 = vsel %vm937, %v916, 0
  %v1269 = vsel %vm937, %v917, 0
  %v1272 = vsel %vm937, %v918, 0
  %v1275 = vsel %vm937, %v919, 0
  %v1278 = vsel %vm937, %v920, 0
  %v1281 = vsel %vm937, %v921, 0
  %v1284 = vsel %vm937, %v922, 0
  %v1287 = vsel %vm937, %v923, 0
  %v1290 = vsel %vm937, %v924, 0
  %v1293 = vsel %vm937, %v925, 0
  %v1296 = vsel %vm937, %v926, 0
  %v1299 = vsel %vm937, %v927, 0
  %v1302 = vsel %vm937, %v928, 0
  %v1305 = vsel %vm937, %v929, 0
  %v1308 = vsel %vm937, %v930, 0
  %v1311 = vsel %vm937, %v931, 0
  %v1314 = vsel %vm937, %v932, 0
  %v1317 = vsel %vm937, %v933, 0
  %v1320 = vsel %vm937, %v934, 0
  %1322 = vmatpush.msra.mxu0 0.0
  %1323 = vmatpush.msra.mxu0 0.0
  %1324 = vmatpush.msra.mxu0 0.0
  %1325 = vmatpush.msra.mxu0 0.0
  %1326 = vmatpush.msra.mxu0 0.0
  %1327 = vmatpush.msra.mxu0 0.0
  %1328 = vmatpush.msra.mxu0 0.0
  %1329 = vmatpush.msra.mxu0 0.0
  %1330 = vmatpush.msra.mxu0 0.0
  %1331 = vmatpush.msra.mxu0 0.0
  %1332 = vmatpush.msra.mxu0 0.0
  %1333 = vmatpush.msra.mxu0 0.0
  %1334 = vmatpush.msra.mxu0 0.0
  %1335 = vmatpush.msra.mxu0 0.0
  %1336 = vmatpush.msra.mxu0 %v936
  %1337 = vmatpush.msra.mxu0 %v935
  %1338 = vmatmul.f32.gmra.mxu0 %v939
  %v1339 = vpop.f32.mrf.mxu0
  %v1340 = vadd.f32 0.0, %v1339
  %1341 = vmatmul.f32.gmra.mxu0 %v942
  %v1342 = vpop.f32.mrf.mxu0
  %v1343 = vadd.f32 0.0, %v1342
  %1344 = vmatmul.f32.gmra.mxu0 %v945
  %v1345 = vpop.f32.mrf.mxu0
  %v1346 = vadd.f32 0.0, %v1345
  %1347 = vmatmul.f32.gmra.mxu0 %v948
  %v1348 = vpop.f32.mrf.mxu0
  %v1349 = vadd.f32 0.0, %v1348
  %1350 = vmatmul.f32.gmra.mxu0 %v951
  %v1351 = vpop.f32.mrf.mxu0
  %v1352 = vadd.f32 0.0, %v1351
  %1353 = vmatmul.f32.gmra.mxu0 %v954
  %v1354 = vpop.f32.mrf.mxu0
  %v1355 = vadd.f32 0.0, %v1354
  %1356 = vmatmul.f32.gmra.mxu0 %v957
  %v1357 = vpop.f32.mrf.mxu0
  %v1358 = vadd.f32 0.0, %v1357
  %1359 = vmatmul.f32.gmra.mxu0 %v960
  %v1360 = vpop.f32.mrf.mxu0
  %v1361 = vadd.f32 0.0, %v1360
  %1362 = vmatmul.f32.gmra.mxu0 %v963
  %v1363 = vpop.f32.mrf.mxu0
  %v1364 = vadd.f32 0.0, %v1363
  %1365 = vmatmul.f32.gmra.mxu0 %v966
  %v1366 = vpop.f32.mrf.mxu0
  %v1367 = vadd.f32 0.0, %v1366
  %1368 = vmatmul.f32.gmra.mxu0 %v969
  %v1369 = vpop.f32.mrf.mxu0
  %v1370 = vadd.f32 0.0, %v1369
  %1371 = vmatmul.f32.gmra.mxu0 %v972
  %v1372 = vpop.f32.mrf.mxu0
  %v1373 = vadd.f32 0.0, %v1372
  %1374 = vmatmul.f32.gmra.mxu0 %v975
  %v1375 = vpop.f32.mrf.mxu0
  %v1376 = vadd.f32 0.0, %v1375
  %1377 = vmatmul.f32.gmra.mxu0 %v978
  %v1378 = vpop.f32.mrf.mxu0
  %v1379 = vadd.f32 0.0, %v1378
  %1380 = vmatmul.f32.gmra.mxu0 %v981
  %v1381 = vpop.f32.mrf.mxu0
  %v1382 = vadd.f32 0.0, %v1381
  %1383 = vmatmul.f32.gmra.mxu0 %v984
  %v1384 = vpop.f32.mrf.mxu0
  %v1385 = vadd.f32 0.0, %v1384
  %1386 = vmatmul.f32.gmra.mxu0 %v987
  %v1387 = vpop.f32.mrf.mxu0
  %v1388 = vadd.f32 0.0, %v1387
  %1389 = vmatmul.f32.gmra.mxu0 %v990
  %v1390 = vpop.f32.mrf.mxu0
  %v1391 = vadd.f32 0.0, %v1390
  %1392 = vmatmul.f32.gmra.mxu0 %v993
  %v1393 = vpop.f32.mrf.mxu0
  %v1394 = vadd.f32 0.0, %v1393
  %1395 = vmatmul.f32.gmra.mxu0 %v996
  %v1396 = vpop.f32.mrf.mxu0
  %v1397 = vadd.f32 0.0, %v1396
  %1398 = vmatmul.f32.gmra.mxu0 %v999
  %v1399 = vpop.f32.mrf.mxu0
  %v1400 = vadd.f32 0.0, %v1399
  %1401 = vmatmul.f32.gmra.mxu0 %v1002
  %v1402 = vpop.f32.mrf.mxu0
  %v1403 = vadd.f32 0.0, %v1402
  %1404 = vmatmul.f32.gmra.mxu0 %v1005
  %v1405 = vpop.f32.mrf.mxu0
  %v1406 = vadd.f32 0.0, %v1405
  %1407 = vmatmul.f32.gmra.mxu0 %v1008
  %v1408 = vpop.f32.mrf.mxu0
  %v1409 = vadd.f32 0.0, %v1408
  %1410 = vmatmul.f32.gmra.mxu0 %v1011
  %v1411 = vpop.f32.mrf.mxu0
  %v1412 = vadd.f32 0.0, %v1411
  %1413 = vmatmul.f32.gmra.mxu0 %v1014
  %v1414 = vpop.f32.mrf.mxu0
  %v1415 = vadd.f32 0.0, %v1414
  %1416 = vmatmul.f32.gmra.mxu0 %v1017
  %v1417 = vpop.f32.mrf.mxu0
  %v1418 = vadd.f32 0.0, %v1417
  %1419 = vmatmul.f32.gmra.mxu0 %v1020
  %v1420 = vpop.f32.mrf.mxu0
  %v1421 = vadd.f32 0.0, %v1420
  %1422 = vmatmul.f32.gmra.mxu0 %v1023
  %v1423 = vpop.f32.mrf.mxu0
  %v1424 = vadd.f32 0.0, %v1423
  %1425 = vmatmul.f32.gmra.mxu0 %v1026
  %v1426 = vpop.f32.mrf.mxu0
  %v1427 = vadd.f32 0.0, %v1426
  %1428 = vmatmul.f32.gmra.mxu0 %v1029
  %v1429 = vpop.f32.mrf.mxu0
  %v1430 = vadd.f32 0.0, %v1429
  %1431 = vmatmul.f32.gmra.mxu0 %v1032
  %v1432 = vpop.f32.mrf.mxu0
  %v1433 = vadd.f32 0.0, %v1432
  %1434 = vmatmul.f32.gmra.mxu0 %v1035
  %v1435 = vpop.f32.mrf.mxu0
  %v1436 = vadd.f32 0.0, %v1435
  %1437 = vmatmul.f32.gmra.mxu0 %v1038
  %v1438 = vpop.f32.mrf.mxu0
  %v1439 = vadd.f32 0.0, %v1438
  %1440 = vmatmul.f32.gmra.mxu0 %v1041
  %v1441 = vpop.f32.mrf.mxu0
  %v1442 = vadd.f32 0.0, %v1441
  %1443 = vmatmul.f32.gmra.mxu0 %v1044
  %v1444 = vpop.f32.mrf.mxu0
  %v1445 = vadd.f32 0.0, %v1444
  %1446 = vmatmul.f32.gmra.mxu0 %v1047
  %v1447 = vpop.f32.mrf.mxu0
  %v1448 = vadd.f32 0.0, %v1447
  %1449 = vmatmul.f32.gmra.mxu0 %v1050
  %v1450 = vpop.f32.mrf.mxu0
  %v1451 = vadd.f32 0.0, %v1450
  %1452 = vmatmul.f32.gmra.mxu0 %v1053
  %v1453 = vpop.f32.mrf.mxu0
  %v1454 = vadd.f32 0.0, %v1453
  %1455 = vmatmul.f32.gmra.mxu0 %v1056
  %v1456 = vpop.f32.mrf.mxu0
  %v1457 = vadd.f32 0.0, %v1456
  %1458 = vmatmul.f32.gmra.mxu0 %v1059
  %v1459 = vpop.f32.mrf.mxu0
  %v1460 = vadd.f32 0.0, %v1459
  %1461 = vmatmul.f32.gmra.mxu0 %v1062
  %v1462 = vpop.f32.mrf.mxu0
  %v1463 = vadd.f32 0.0, %v1462
  %1464 = vmatmul.f32.gmra.mxu0 %v1065
  %v1465 = vpop.f32.mrf.mxu0
  %v1466 = vadd.f32 0.0, %v1465
  %1467 = vmatmul.f32.gmra.mxu0 %v1068
  %v1468 = vpop.f32.mrf.mxu0
  %v1469 = vadd.f32 0.0, %v1468
  %1470 = vmatmul.f32.gmra.mxu0 %v1071
  %v1471 = vpop.f32.mrf.mxu0
  %v1472 = vadd.f32 0.0, %v1471
  %1473 = vmatmul.f32.gmra.mxu0 %v1074
  %v1474 = vpop.f32.mrf.mxu0
  %v1475 = vadd.f32 0.0, %v1474
  %1476 = vmatmul.f32.gmra.mxu0 %v1077
  %v1477 = vpop.f32.mrf.mxu0
  %v1478 = vadd.f32 0.0, %v1477
  %1479 = vmatmul.f32.gmra.mxu0 %v1080
  %v1480 = vpop.f32.mrf.mxu0
  %v1481 = vadd.f32 0.0, %v1480
  %1482 = vmatmul.f32.gmra.mxu0 %v1083
  %v1483 = vpop.f32.mrf.mxu0
  %v1484 = vadd.f32 0.0, %v1483
  %1485 = vmatmul.f32.gmra.mxu0 %v1086
  %v1486 = vpop.f32.mrf.mxu0
  %v1487 = vadd.f32 0.0, %v1486
  %1488 = vmatmul.f32.gmra.mxu0 %v1089
  %v1489 = vpop.f32.mrf.mxu0
  %v1490 = vadd.f32 0.0, %v1489
  %1491 = vmatmul.f32.gmra.mxu0 %v1092
  %v1492 = vpop.f32.mrf.mxu0
  %v1493 = vadd.f32 0.0, %v1492
  %1494 = vmatmul.f32.gmra.mxu0 %v1095
  %v1495 = vpop.f32.mrf.mxu0
  %v1496 = vadd.f32 0.0, %v1495
  %1497 = vmatmul.f32.gmra.mxu0 %v1098
  %v1498 = vpop.f32.mrf.mxu0
  %v1499 = vadd.f32 0.0, %v1498
  %1500 = vmatmul.f32.gmra.mxu0 %v1101
  %v1501 = vpop.f32.mrf.mxu0
  %v1502 = vadd.f32 0.0, %v1501
  %1503 = vmatmul.f32.gmra.mxu0 %v1104
  %v1504 = vpop.f32.mrf.mxu0
  %v1505 = vadd.f32 0.0, %v1504
  %1506 = vmatmul.f32.gmra.mxu0 %v1107
  %v1507 = vpop.f32.mrf.mxu0
  %v1508 = vadd.f32 0.0, %v1507
  %1509 = vmatmul.f32.gmra.mxu0 %v1110
  %v1510 = vpop.f32.mrf.mxu0
  %v1511 = vadd.f32 0.0, %v1510
  %1512 = vmatmul.f32.gmra.mxu0 %v1113
  %v1513 = vpop.f32.mrf.mxu0
  %v1514 = vadd.f32 0.0, %v1513
  %1515 = vmatmul.f32.gmra.mxu0 %v1116
  %v1516 = vpop.f32.mrf.mxu0
  %v1517 = vadd.f32 0.0, %v1516
  %1518 = vmatmul.f32.gmra.mxu0 %v1119
  %v1519 = vpop.f32.mrf.mxu0
  %v1520 = vadd.f32 0.0, %v1519
  %1521 = vmatmul.f32.gmra.mxu0 %v1122
  %v1522 = vpop.f32.mrf.mxu0
  %v1523 = vadd.f32 0.0, %v1522
  %1524 = vmatmul.f32.gmra.mxu0 %v1125
  %v1525 = vpop.f32.mrf.mxu0
  %v1526 = vadd.f32 0.0, %v1525
  %1527 = vmatmul.f32.gmra.mxu0 %v1128
  %v1528 = vpop.f32.mrf.mxu0
  %v1529 = vadd.f32 0.0, %v1528
  %1530 = vmatmul.f32.gmra.mxu0 %v1131
  %v1531 = vpop.f32.mrf.mxu0
  %v1532 = vadd.f32 0.0, %v1531
  %1533 = vmatmul.f32.gmra.mxu0 %v1134
  %v1534 = vpop.f32.mrf.mxu0
  %v1535 = vadd.f32 0.0, %v1534
  %1536 = vmatmul.f32.gmra.mxu0 %v1137
  %v1537 = vpop.f32.mrf.mxu0
  %v1538 = vadd.f32 0.0, %v1537
  %1539 = vmatmul.f32.gmra.mxu0 %v1140
  %v1540 = vpop.f32.mrf.mxu0
  %v1541 = vadd.f32 0.0, %v1540
  %1542 = vmatmul.f32.gmra.mxu0 %v1143
  %v1543 = vpop.f32.mrf.mxu0
  %v1544 = vadd.f32 0.0, %v1543
  %1545 = vmatmul.f32.gmra.mxu0 %v1146
  %v1546 = vpop.f32.mrf.mxu0
  %v1547 = vadd.f32 0.0, %v1546
  %1548 = vmatmul.f32.gmra.mxu0 %v1149
  %v1549 = vpop.f32.mrf.mxu0
  %v1550 = vadd.f32 0.0, %v1549
  %1551 = vmatmul.f32.gmra.mxu0 %v1152
  %v1552 = vpop.f32.mrf.mxu0
  %v1553 = vadd.f32 0.0, %v1552
  %1554 = vmatmul.f32.gmra.mxu0 %v1155
  %v1555 = vpop.f32.mrf.mxu0
  %v1556 = vadd.f32 0.0, %v1555
  %1557 = vmatmul.f32.gmra.mxu0 %v1158
  %v1558 = vpop.f32.mrf.mxu0
  %v1559 = vadd.f32 0.0, %v1558
  %1560 = vmatmul.f32.gmra.mxu0 %v1161
  %v1561 = vpop.f32.mrf.mxu0
  %v1562 = vadd.f32 0.0, %v1561
  %1563 = vmatmul.f32.gmra.mxu0 %v1164
  %v1564 = vpop.f32.mrf.mxu0
  %v1565 = vadd.f32 0.0, %v1564
  %1566 = vmatmul.f32.gmra.mxu0 %v1167
  %v1567 = vpop.f32.mrf.mxu0
  %v1568 = vadd.f32 0.0, %v1567
  %1569 = vmatmul.f32.gmra.mxu0 %v1170
  %v1570 = vpop.f32.mrf.mxu0
  %v1571 = vadd.f32 0.0, %v1570
  %1572 = vmatmul.f32.gmra.mxu0 %v1173
  %v1573 = vpop.f32.mrf.mxu0
  %v1574 = vadd.f32 0.0, %v1573
  %1575 = vmatmul.f32.gmra.mxu0 %v1176
  %v1576 = vpop.f32.mrf.mxu0
  %v1577 = vadd.f32 0.0, %v1576
  %1578 = vmatmul.f32.gmra.mxu0 %v1179
  %v1579 = vpop.f32.mrf.mxu0
  %v1580 = vadd.f32 0.0, %v1579
  %1581 = vmatmul.f32.gmra.mxu0 %v1182
  %v1582 = vpop.f32.mrf.mxu0
  %v1583 = vadd.f32 0.0, %v1582
  %1584 = vmatmul.f32.gmra.mxu0 %v1185
  %v1585 = vpop.f32.mrf.mxu0
  %v1586 = vadd.f32 0.0, %v1585
  %1587 = vmatmul.f32.gmra.mxu0 %v1188
  %v1588 = vpop.f32.mrf.mxu0
  %v1589 = vadd.f32 0.0, %v1588
  %1590 = vmatmul.f32.gmra.mxu0 %v1191
  %v1591 = vpop.f32.mrf.mxu0
  %v1592 = vadd.f32 0.0, %v1591
  %1593 = vmatmul.f32.gmra.mxu0 %v1194
  %v1594 = vpop.f32.mrf.mxu0
  %v1595 = vadd.f32 0.0, %v1594
  %1596 = vmatmul.f32.gmra.mxu0 %v1197
  %v1597 = vpop.f32.mrf.mxu0
  %v1598 = vadd.f32 0.0, %v1597
  %1599 = vmatmul.f32.gmra.mxu0 %v1200
  %v1600 = vpop.f32.mrf.mxu0
  %v1601 = vadd.f32 0.0, %v1600
  %1602 = vmatmul.f32.gmra.mxu0 %v1203
  %v1603 = vpop.f32.mrf.mxu0
  %v1604 = vadd.f32 0.0, %v1603
  %1605 = vmatmul.f32.gmra.mxu0 %v1206
  %v1606 = vpop.f32.mrf.mxu0
  %v1607 = vadd.f32 0.0, %v1606
  %1608 = vmatmul.f32.gmra.mxu0 %v1209
  %v1609 = vpop.f32.mrf.mxu0
  %v1610 = vadd.f32 0.0, %v1609
  %1611 = vmatmul.f32.gmra.mxu0 %v1212
  %v1612 = vpop.f32.mrf.mxu0
  %v1613 = vadd.f32 0.0, %v1612
  %1614 = vmatmul.f32.gmra.mxu0 %v1215
  %v1615 = vpop.f32.mrf.mxu0
  %v1616 = vadd.f32 0.0, %v1615
  %1617 = vmatmul.f32.gmra.mxu0 %v1218
  %v1618 = vpop.f32.mrf.mxu0
  %v1619 = vadd.f32 0.0, %v1618
  %1620 = vmatmul.f32.gmra.mxu0 %v1221
  %v1621 = vpop.f32.mrf.mxu0
  %v1622 = vadd.f32 0.0, %v1621
  %1623 = vmatmul.f32.gmra.mxu0 %v1224
  %v1624 = vpop.f32.mrf.mxu0
  %v1625 = vadd.f32 0.0, %v1624
  %1626 = vmatmul.f32.gmra.mxu0 %v1227
  %v1627 = vpop.f32.mrf.mxu0
  %v1628 = vadd.f32 0.0, %v1627
  %1629 = vmatmul.f32.gmra.mxu0 %v1230
  %v1630 = vpop.f32.mrf.mxu0
  %v1631 = vadd.f32 0.0, %v1630
  %1632 = vmatmul.f32.gmra.mxu0 %v1233
  %v1633 = vpop.f32.mrf.mxu0
  %v1634 = vadd.f32 0.0, %v1633
  %1635 = vmatmul.f32.gmra.mxu0 %v1236
  %v1636 = vpop.f32.mrf.mxu0
  %v1637 = vadd.f32 0.0, %v1636
  %1638 = vmatmul.f32.gmra.mxu0 %v1239
  %v1639 = vpop.f32.mrf.mxu0
  %v1640 = vadd.f32 0.0, %v1639
  %1641 = vmatmul.f32.gmra.mxu0 %v1242
  %v1642 = vpop.f32.mrf.mxu0
  %v1643 = vadd.f32 0.0, %v1642
  %1644 = vmatmul.f32.gmra.mxu0 %v1245
  %v1645 = vpop.f32.mrf.mxu0
  %v1646 = vadd.f32 0.0, %v1645
  %1647 = vmatmul.f32.gmra.mxu0 %v1248
  %v1648 = vpop.f32.mrf.mxu0
  %v1649 = vadd.f32 0.0, %v1648
  %1650 = vmatmul.f32.gmra.mxu0 %v1251
  %v1651 = vpop.f32.mrf.mxu0
  %v1652 = vadd.f32 0.0, %v1651
  %1653 = vmatmul.f32.gmra.mxu0 %v1254
  %v1654 = vpop.f32.mrf.mxu0
  %v1655 = vadd.f32 0.0, %v1654
  %1656 = vmatmul.f32.gmra.mxu0 %v1257
  %v1657 = vpop.f32.mrf.mxu0
  %v1658 = vadd.f32 0.0, %v1657
  %1659 = vmatmul.f32.gmra.mxu0 %v1260
  %v1660 = vpop.f32.mrf.mxu0
  %v1661 = vadd.f32 0.0, %v1660
  %1662 = vmatmul.f32.gmra.mxu0 %v1263
  %v1663 = vpop.f32.mrf.mxu0
  %v1664 = vadd.f32 0.0, %v1663
  %1665 = vmatmul.f32.gmra.mxu0 %v1266
  %v1666 = vpop.f32.mrf.mxu0
  %v1667 = vadd.f32 0.0, %v1666
  %1668 = vmatmul.f32.gmra.mxu0 %v1269
  %v1669 = vpop.f32.mrf.mxu0
  %v1670 = vadd.f32 0.0, %v1669
  %1671 = vmatmul.f32.gmra.mxu0 %v1272
  %v1672 = vpop.f32.mrf.mxu0
  %v1673 = vadd.f32 0.0, %v1672
  %1674 = vmatmul.f32.gmra.mxu0 %v1275
  %v1675 = vpop.f32.mrf.mxu0
  %v1676 = vadd.f32 0.0, %v1675
  %1677 = vmatmul.f32.gmra.mxu0 %v1278
  %v1678 = vpop.f32.mrf.mxu0
  %v1679 = vadd.f32 0.0, %v1678
  %1680 = vmatmul.f32.gmra.mxu0 %v1281
  %v1681 = vpop.f32.mrf.mxu0
  %v1682 = vadd.f32 0.0, %v1681
  %1683 = vmatmul.f32.gmra.mxu0 %v1284
  %v1684 = vpop.f32.mrf.mxu0
  %v1685 = vadd.f32 0.0, %v1684
  %1686 = vmatmul.f32.gmra.mxu0 %v1287
  %v1687 = vpop.f32.mrf.mxu0
  %v1688 = vadd.f32 0.0, %v1687
  %1689 = vmatmul.f32.gmra.mxu0 %v1290
  %v1690 = vpop.f32.mrf.mxu0
  %v1691 = vadd.f32 0.0, %v1690
  %1692 = vmatmul.f32.gmra.mxu0 %v1293
  %v1693 = vpop.f32.mrf.mxu0
  %v1694 = vadd.f32 0.0, %v1693
  %1695 = vmatmul.f32.gmra.mxu0 %v1296
  %v1696 = vpop.f32.mrf.mxu0
  %v1697 = vadd.f32 0.0, %v1696
  %1698 = vmatmul.f32.gmra.mxu0 %v1299
  %v1699 = vpop.f32.mrf.mxu0
  %v1700 = vadd.f32 0.0, %v1699
  %1701 = vmatmul.f32.gmra.mxu0 %v1302
  %v1702 = vpop.f32.mrf.mxu0
  %v1703 = vadd.f32 0.0, %v1702
  %1704 = vmatmul.f32.gmra.mxu0 %v1305
  %v1705 = vpop.f32.mrf.mxu0
  %v1706 = vadd.f32 0.0, %v1705
  %1707 = vmatmul.f32.gmra.mxu0 %v1308
  %v1708 = vpop.f32.mrf.mxu0
  %v1709 = vadd.f32 0.0, %v1708
  %1710 = vmatmul.f32.gmra.mxu0 %v1311
  %v1711 = vpop.f32.mrf.mxu0
  %v1712 = vadd.f32 0.0, %v1711
  %1713 = vmatmul.f32.gmra.mxu0 %v1314
  %v1714 = vpop.f32.mrf.mxu0
  %v1715 = vadd.f32 0.0, %v1714
  %1716 = vmatmul.f32.gmra.mxu0 %v1317
  %v1717 = vpop.f32.mrf.mxu0
  %v1718 = vadd.f32 0.0, %v1717
  %1719 = vmatmul.f32.gmra.mxu0 %v1320
  %v1720 = vpop.f32.mrf.mxu0
  %v1721 = vadd.f32 0.0, %v1720
  %1722 = vdwg.mxu0
  %vm1723 = vcmask 523264
  %v1724 = vsel %vm1723, %v159, 0
  %v1726 = vsel %vm1723, %v160, 0
  %v1728 = vsel %vm1723, %v161, 0
  %v1730 = vsel %vm1723, %v162, 0
  %v1732 = vsel %vm1723, %v163, 0
  %v1734 = vsel %vm1723, %v164, 0
  %v1736 = vsel %vm1723, %v165, 0
  %v1738 = vsel %vm1723, %v166, 0
  %v1740 = vsel %vm1723, %v167, 0
  %v1742 = vsel %vm1723, %v168, 0
  %v1744 = vsel %vm1723, %v169, 0
  %v1746 = vsel %vm1723, %v170, 0
  %v1748 = vsel %vm1723, %v171, 0
  %v1750 = vsel %vm1723, %v172, 0
  %v1752 = vsel %vm1723, %v173, 0
  %v1754 = vsel %vm1723, %v174, 0
  %v1756 = vsel %vm1723, %v175, 0
  %v1758 = vsel %vm1723, %v176, 0
  %v1760 = vsel %vm1723, %v177, 0
  %v1762 = vsel %vm1723, %v178, 0
  %v1764 = vsel %vm1723, %v179, 0
  %v1766 = vsel %vm1723, %v180, 0
  %v1768 = vsel %vm1723, %v181, 0
  %v1770 = vsel %vm1723, %v182, 0
  %v1772 = vsel %vm1723, %v183, 0
  %v1774 = vsel %vm1723, %v184, 0
  %v1776 = vsel %vm1723, %v185, 0
  %v1778 = vsel %vm1723, %v186, 0
  %v1780 = vsel %vm1723, %v187, 0
  %v1782 = vsel %vm1723, %v188, 0
  %v1784 = vsel %vm1723, %v189, 0
  %v1786 = vsel %vm1723, %v190, 0
  %v1788 = vsel %vm1723, %v191, 0
  %v1790 = vsel %vm1723, %v192, 0
  %v1792 = vsel %vm1723, %v193, 0
  %v1794 = vsel %vm1723, %v194, 0
  %v1796 = vsel %vm1723, %v195, 0
  %v1798 = vsel %vm1723, %v196, 0
  %v1800 = vsel %vm1723, %v197, 0
  %v1802 = vsel %vm1723, %v198, 0
  %v1804 = vsel %vm1723, %v199, 0
  %v1806 = vsel %vm1723, %v200, 0
  %v1808 = vsel %vm1723, %v201, 0
  %v1810 = vsel %vm1723, %v202, 0
  %v1812 = vsel %vm1723, %v203, 0
  %v1814 = vsel %vm1723, %v204, 0
  %v1816 = vsel %vm1723, %v205, 0
  %v1818 = vsel %vm1723, %v206, 0
  %v1820 = vsel %vm1723, %v207, 0
  %v1822 = vsel %vm1723, %v208, 0
  %v1824 = vsel %vm1723, %v209, 0
  %v1826 = vsel %vm1723, %v210, 0
  %v1828 = vsel %vm1723, %v211, 0
  %v1830 = vsel %vm1723, %v212, 0
  %v1832 = vsel %vm1723, %v213, 0
  %v1834 = vsel %vm1723, %v214, 0
  %v1836 = vsel %vm1723, %v215, 0
  %v1838 = vsel %vm1723, %v216, 0
  %v1840 = vsel %vm1723, %v217, 0
  %v1842 = vsel %vm1723, %v218, 0
  %v1844 = vsel %vm1723, %v219, 0
  %v1846 = vsel %vm1723, %v220, 0
  %v1848 = vsel %vm1723, %v221, 0
  %v1850 = vsel %vm1723, %v222, 0
  %v1852 = vsel %vm1723, %v223, 0
  %v1854 = vsel %vm1723, %v224, 0
  %v1856 = vsel %vm1723, %v225, 0
  %v1858 = vsel %vm1723, %v226, 0
  %v1860 = vsel %vm1723, %v227, 0
  %v1862 = vsel %vm1723, %v228, 0
  %v1864 = vsel %vm1723, %v229, 0
  %v1866 = vsel %vm1723, %v230, 0
  %v1868 = vsel %vm1723, %v231, 0
  %v1870 = vsel %vm1723, %v232, 0
  %v1872 = vsel %vm1723, %v233, 0
  %v1874 = vsel %vm1723, %v234, 0
  %v1876 = vsel %vm1723, %v235, 0
  %v1878 = vsel %vm1723, %v236, 0
  %v1880 = vsel %vm1723, %v237, 0
  %v1882 = vsel %vm1723, %v238, 0
  %v1884 = vsel %vm1723, %v239, 0
  %v1886 = vsel %vm1723, %v240, 0
  %v1888 = vsel %vm1723, %v241, 0
  %v1890 = vsel %vm1723, %v242, 0
  %v1892 = vsel %vm1723, %v243, 0
  %v1894 = vsel %vm1723, %v244, 0
  %v1896 = vsel %vm1723, %v245, 0
  %v1898 = vsel %vm1723, %v246, 0
  %v1900 = vsel %vm1723, %v247, 0
  %v1902 = vsel %vm1723, %v248, 0
  %v1904 = vsel %vm1723, %v249, 0
  %v1906 = vsel %vm1723, %v250, 0
  %v1908 = vsel %vm1723, %v251, 0
  %v1910 = vsel %vm1723, %v252, 0
  %v1912 = vsel %vm1723, %v253, 0
  %v1914 = vsel %vm1723, %v254, 0
  %v1916 = vsel %vm1723, %v255, 0
  %v1918 = vsel %vm1723, %v256, 0
  %v1920 = vsel %vm1723, %v257, 0
  %v1922 = vsel %vm1723, %v258, 0
  %v1924 = vsel %vm1723, %v259, 0
  %v1926 = vsel %vm1723, %v260, 0
  %v1928 = vsel %vm1723, %v261, 0
  %v1930 = vsel %vm1723, %v262, 0
  %v1932 = vsel %vm1723, %v263, 0
  %v1934 = vsel %vm1723, %v264, 0
  %v1936 = vsel %vm1723, %v265, 0
  %v1938 = vsel %vm1723, %v266, 0
  %v1940 = vsel %vm1723, %v267, 0
  %v1942 = vsel %vm1723, %v268, 0
  %v1944 = vsel %vm1723, %v269, 0
  %v1946 = vsel %vm1723, %v270, 0
  %v1948 = vsel %vm1723, %v271, 0
  %v1950 = vsel %vm1723, %v272, 0
  %v1952 = vsel %vm1723, %v273, 0
  %v1954 = vsel %vm1723, %v274, 0
  %v1956 = vsel %vm1723, %v275, 0
  %v1958 = vsel %vm1723, %v276, 0
  %v1960 = vsel %vm1723, %v277, 0
  %v1962 = vsel %vm1723, %v278, 0
  %v1964 = vsel %vm1723, %v279, 0
  %v1966 = vsel %vm1723, %v280, 0
  %v1968 = vsel %vm1723, %v281, 0
  %v1970 = vsel %vm1723, %v282, 0
  %v1972 = vsel %vm1723, %v283, 0
  %v1974 = vsel %vm1723, %v284, 0
  %v1976 = vsel %vm1723, %v285, 0
  %v1978 = vsel %vm1723, %v286, 0
  %1980 = vmatpush.msra.mxu0 0.0
  %1981 = vmatpush.msra.mxu0 0.0
  %1982 = vmatpush.msra.mxu0 0.0
  %1983 = vmatpush.msra.mxu0 0.0
  %1984 = vmatpush.msra.mxu0 0.0
  %1985 = vmatpush.msra.mxu0 0.0
  %1986 = vmatpush.msra.mxu0 0.0
  %1987 = vmatpush.msra.mxu0 0.0
  %1988 = vmatpush.msra.mxu0 %v294
  %1989 = vmatpush.msra.mxu0 %v293
  %1990 = vmatpush.msra.mxu0 %v292
  %1991 = vmatpush.msra.mxu0 %v291
  %1992 = vmatpush.msra.mxu0 %v290
  %1993 = vmatpush.msra.mxu0 %v289
  %1994 = vmatpush.msra.mxu0 %v288
  %1995 = vmatpush.msra.mxu0 %v287
  %1996 = vmatmul.f32.gmra.mxu0 %v1724
  %v1997 = vpop.f32.mrf.mxu0
  %v1998 = vadd.f32 %v1340, %v1997
  %1999 = vmatmul.f32.gmra.mxu0 %v1726
  %v2000 = vpop.f32.mrf.mxu0
  %v2001 = vadd.f32 %v1343, %v2000
  %2002 = vmatmul.f32.gmra.mxu0 %v1728
  %v2003 = vpop.f32.mrf.mxu0
  %v2004 = vadd.f32 %v1346, %v2003
  %2005 = vmatmul.f32.gmra.mxu0 %v1730
  %v2006 = vpop.f32.mrf.mxu0
  %v2007 = vadd.f32 %v1349, %v2006
  %2008 = vmatmul.f32.gmra.mxu0 %v1732
  %v2009 = vpop.f32.mrf.mxu0
  %v2010 = vadd.f32 %v1352, %v2009
  %2011 = vmatmul.f32.gmra.mxu0 %v1734
  %v2012 = vpop.f32.mrf.mxu0
  %v2013 = vadd.f32 %v1355, %v2012
  %2014 = vmatmul.f32.gmra.mxu0 %v1736
  %v2015 = vpop.f32.mrf.mxu0
  %v2016 = vadd.f32 %v1358, %v2015
  %2017 = vmatmul.f32.gmra.mxu0 %v1738
  %v2018 = vpop.f32.mrf.mxu0
  %v2019 = vadd.f32 %v1361, %v2018
  %2020 = vmatmul.f32.gmra.mxu0 %v1740
  %v2021 = vpop.f32.mrf.mxu0
  %v2022 = vadd.f32 %v1364, %v2021
  %2023 = vmatmul.f32.gmra.mxu0 %v1742
  %v2024 = vpop.f32.mrf.mxu0
  %v2025 = vadd.f32 %v1367, %v2024
  %2026 = vmatmul.f32.gmra.mxu0 %v1744
  %v2027 = vpop.f32.mrf.mxu0
  %v2028 = vadd.f32 %v1370, %v2027
  %2029 = vmatmul.f32.gmra.mxu0 %v1746
  %v2030 = vpop.f32.mrf.mxu0
  %v2031 = vadd.f32 %v1373, %v2030
  %2032 = vmatmul.f32.gmra.mxu0 %v1748
  %v2033 = vpop.f32.mrf.mxu0
  %v2034 = vadd.f32 %v1376, %v2033
  %2035 = vmatmul.f32.gmra.mxu0 %v1750
  %v2036 = vpop.f32.mrf.mxu0
  %v2037 = vadd.f32 %v1379, %v2036
  %2038 = vmatmul.f32.gmra.mxu0 %v1752
  %v2039 = vpop.f32.mrf.mxu0
  %v2040 = vadd.f32 %v1382, %v2039
  %2041 = vmatmul.f32.gmra.mxu0 %v1754
  %v2042 = vpop.f32.mrf.mxu0
  %v2043 = vadd.f32 %v1385, %v2042
  %2044 = vmatmul.f32.gmra.mxu0 %v1756
  %v2045 = vpop.f32.mrf.mxu0
  %v2046 = vadd.f32 %v1388, %v2045
  %2047 = vmatmul.f32.gmra.mxu0 %v1758
  %v2048 = vpop.f32.mrf.mxu0
  %v2049 = vadd.f32 %v1391, %v2048
  %2050 = vmatmul.f32.gmra.mxu0 %v1760
  %v2051 = vpop.f32.mrf.mxu0
  %v2052 = vadd.f32 %v1394, %v2051
  %2053 = vmatmul.f32.gmra.mxu0 %v1762
  %v2054 = vpop.f32.mrf.mxu0
  %v2055 = vadd.f32 %v1397, %v2054
  %2056 = vmatmul.f32.gmra.mxu0 %v1764
  %v2057 = vpop.f32.mrf.mxu0
  %v2058 = vadd.f32 %v1400, %v2057
  %2059 = vmatmul.f32.gmra.mxu0 %v1766
  %v2060 = vpop.f32.mrf.mxu0
  %v2061 = vadd.f32 %v1403, %v2060
  %2062 = vmatmul.f32.gmra.mxu0 %v1768
  %v2063 = vpop.f32.mrf.mxu0
  %v2064 = vadd.f32 %v1406, %v2063
  %2065 = vmatmul.f32.gmra.mxu0 %v1770
  %v2066 = vpop.f32.mrf.mxu0
  %v2067 = vadd.f32 %v1409, %v2066
  %2068 = vmatmul.f32.gmra.mxu0 %v1772
  %v2069 = vpop.f32.mrf.mxu0
  %v2070 = vadd.f32 %v1412, %v2069
  %2071 = vmatmul.f32.gmra.mxu0 %v1774
  %v2072 = vpop.f32.mrf.mxu0
  %v2073 = vadd.f32 %v1415, %v2072
  %2074 = vmatmul.f32.gmra.mxu0 %v1776
  %v2075 = vpop.f32.mrf.mxu0
  %v2076 = vadd.f32 %v1418, %v2075
  %2077 = vmatmul.f32.gmra.mxu0 %v1778
  %v2078 = vpop.f32.mrf.mxu0
  %v2079 = vadd.f32 %v1421, %v2078
  %2080 = vmatmul.f32.gmra.mxu0 %v1780
  %v2081 = vpop.f32.mrf.mxu0
  %v2082 = vadd.f32 %v1424, %v2081
  %2083 = vmatmul.f32.gmra.mxu0 %v1782
  %v2084 = vpop.f32.mrf.mxu0
  %v2085 = vadd.f32 %v1427, %v2084
  %2086 = vmatmul.f32.gmra.mxu0 %v1784
  %v2087 = vpop.f32.mrf.mxu0
  %v2088 = vadd.f32 %v1430, %v2087
  %2089 = vmatmul.f32.gmra.mxu0 %v1786
  %v2090 = vpop.f32.mrf.mxu0
  %v2091 = vadd.f32 %v1433, %v2090
  %2092 = vmatmul.f32.gmra.mxu0 %v1788
  %v2093 = vpop.f32.mrf.mxu0
  %v2094 = vadd.f32 %v1436, %v2093
  %2095 = vmatmul.f32.gmra.mxu0 %v1790
  %v2096 = vpop.f32.mrf.mxu0
  %v2097 = vadd.f32 %v1439, %v2096
  %2098 = vmatmul.f32.gmra.mxu0 %v1792
  %v2099 = vpop.f32.mrf.mxu0
  %v2100 = vadd.f32 %v1442, %v2099
  %2101 = vmatmul.f32.gmra.mxu0 %v1794
  %v2102 = vpop.f32.mrf.mxu0
  %v2103 = vadd.f32 %v1445, %v2102
  %2104 = vmatmul.f32.gmra.mxu0 %v1796
  %v2105 = vpop.f32.mrf.mxu0
  %v2106 = vadd.f32 %v1448, %v2105
  %2107 = vmatmul.f32.gmra.mxu0 %v1798
  %v2108 = vpop.f32.mrf.mxu0
  %v2109 = vadd.f32 %v1451, %v2108
  %2110 = vmatmul.f32.gmra.mxu0 %v1800
  %v2111 = vpop.f32.mrf.mxu0
  %v2112 = vadd.f32 %v1454, %v2111
  %2113 = vmatmul.f32.gmra.mxu0 %v1802
  %v2114 = vpop.f32.mrf.mxu0
  %v2115 = vadd.f32 %v1457, %v2114
  %2116 = vmatmul.f32.gmra.mxu0 %v1804
  %v2117 = vpop.f32.mrf.mxu0
  %v2118 = vadd.f32 %v1460, %v2117
  %2119 = vmatmul.f32.gmra.mxu0 %v1806
  %v2120 = vpop.f32.mrf.mxu0
  %v2121 = vadd.f32 %v1463, %v2120
  %2122 = vmatmul.f32.gmra.mxu0 %v1808
  %v2123 = vpop.f32.mrf.mxu0
  %v2124 = vadd.f32 %v1466, %v2123
  %2125 = vmatmul.f32.gmra.mxu0 %v1810
  %v2126 = vpop.f32.mrf.mxu0
  %v2127 = vadd.f32 %v1469, %v2126
  %2128 = vmatmul.f32.gmra.mxu0 %v1812
  %v2129 = vpop.f32.mrf.mxu0
  %v2130 = vadd.f32 %v1472, %v2129
  %2131 = vmatmul.f32.gmra.mxu0 %v1814
  %v2132 = vpop.f32.mrf.mxu0
  %v2133 = vadd.f32 %v1475, %v2132
  %2134 = vmatmul.f32.gmra.mxu0 %v1816
  %v2135 = vpop.f32.mrf.mxu0
  %v2136 = vadd.f32 %v1478, %v2135
  %2137 = vmatmul.f32.gmra.mxu0 %v1818
  %v2138 = vpop.f32.mrf.mxu0
  %v2139 = vadd.f32 %v1481, %v2138
  %2140 = vmatmul.f32.gmra.mxu0 %v1820
  %v2141 = vpop.f32.mrf.mxu0
  %v2142 = vadd.f32 %v1484, %v2141
  %2143 = vmatmul.f32.gmra.mxu0 %v1822
  %v2144 = vpop.f32.mrf.mxu0
  %v2145 = vadd.f32 %v1487, %v2144
  %2146 = vmatmul.f32.gmra.mxu0 %v1824
  %v2147 = vpop.f32.mrf.mxu0
  %v2148 = vadd.f32 %v1490, %v2147
  %2149 = vmatmul.f32.gmra.mxu0 %v1826
  %v2150 = vpop.f32.mrf.mxu0
  %v2151 = vadd.f32 %v1493, %v2150
  %2152 = vmatmul.f32.gmra.mxu0 %v1828
  %v2153 = vpop.f32.mrf.mxu0
  %v2154 = vadd.f32 %v1496, %v2153
  %2155 = vmatmul.f32.gmra.mxu0 %v1830
  %v2156 = vpop.f32.mrf.mxu0
  %v2157 = vadd.f32 %v1499, %v2156
  %2158 = vmatmul.f32.gmra.mxu0 %v1832
  %v2159 = vpop.f32.mrf.mxu0
  %v2160 = vadd.f32 %v1502, %v2159
  %2161 = vmatmul.f32.gmra.mxu0 %v1834
  %v2162 = vpop.f32.mrf.mxu0
  %v2163 = vadd.f32 %v1505, %v2162
  %2164 = vmatmul.f32.gmra.mxu0 %v1836
  %v2165 = vpop.f32.mrf.mxu0
  %v2166 = vadd.f32 %v1508, %v2165
  %2167 = vmatmul.f32.gmra.mxu0 %v1838
  %v2168 = vpop.f32.mrf.mxu0
  %v2169 = vadd.f32 %v1511, %v2168
  %2170 = vmatmul.f32.gmra.mxu0 %v1840
  %v2171 = vpop.f32.mrf.mxu0
  %v2172 = vadd.f32 %v1514, %v2171
  %2173 = vmatmul.f32.gmra.mxu0 %v1842
  %v2174 = vpop.f32.mrf.mxu0
  %v2175 = vadd.f32 %v1517, %v2174
  %2176 = vmatmul.f32.gmra.mxu0 %v1844
  %v2177 = vpop.f32.mrf.mxu0
  %v2178 = vadd.f32 %v1520, %v2177
  %2179 = vmatmul.f32.gmra.mxu0 %v1846
  %v2180 = vpop.f32.mrf.mxu0
  %v2181 = vadd.f32 %v1523, %v2180
  %2182 = vmatmul.f32.gmra.mxu0 %v1848
  %v2183 = vpop.f32.mrf.mxu0
  %v2184 = vadd.f32 %v1526, %v2183
  %2185 = vmatmul.f32.gmra.mxu0 %v1850
  %v2186 = vpop.f32.mrf.mxu0
  %v2187 = vadd.f32 %v1529, %v2186
  %2188 = vmatmul.f32.gmra.mxu0 %v1852
  %v2189 = vpop.f32.mrf.mxu0
  %v2190 = vadd.f32 %v1532, %v2189
  %2191 = vmatmul.f32.gmra.mxu0 %v1854
  %v2192 = vpop.f32.mrf.mxu0
  %v2193 = vadd.f32 %v1535, %v2192
  %2194 = vmatmul.f32.gmra.mxu0 %v1856
  %v2195 = vpop.f32.mrf.mxu0
  %v2196 = vadd.f32 %v1538, %v2195
  %2197 = vmatmul.f32.gmra.mxu0 %v1858
  %v2198 = vpop.f32.mrf.mxu0
  %v2199 = vadd.f32 %v1541, %v2198
  %2200 = vmatmul.f32.gmra.mxu0 %v1860
  %v2201 = vpop.f32.mrf.mxu0
  %v2202 = vadd.f32 %v1544, %v2201
  %2203 = vmatmul.f32.gmra.mxu0 %v1862
  %v2204 = vpop.f32.mrf.mxu0
  %v2205 = vadd.f32 %v1547, %v2204
  %2206 = vmatmul.f32.gmra.mxu0 %v1864
  %v2207 = vpop.f32.mrf.mxu0
  %v2208 = vadd.f32 %v1550, %v2207
  %2209 = vmatmul.f32.gmra.mxu0 %v1866
  %v2210 = vpop.f32.mrf.mxu0
  %v2211 = vadd.f32 %v1553, %v2210
  %2212 = vmatmul.f32.gmra.mxu0 %v1868
  %v2213 = vpop.f32.mrf.mxu0
  %v2214 = vadd.f32 %v1556, %v2213
  %2215 = vmatmul.f32.gmra.mxu0 %v1870
  %v2216 = vpop.f32.mrf.mxu0
  %v2217 = vadd.f32 %v1559, %v2216
  %2218 = vmatmul.f32.gmra.mxu0 %v1872
  %v2219 = vpop.f32.mrf.mxu0
  %v2220 = vadd.f32 %v1562, %v2219
  %2221 = vmatmul.f32.gmra.mxu0 %v1874
  %v2222 = vpop.f32.mrf.mxu0
  %v2223 = vadd.f32 %v1565, %v2222
  %2224 = vmatmul.f32.gmra.mxu0 %v1876
  %v2225 = vpop.f32.mrf.mxu0
  %v2226 = vadd.f32 %v1568, %v2225
  %2227 = vmatmul.f32.gmra.mxu0 %v1878
  %v2228 = vpop.f32.mrf.mxu0
  %v2229 = vadd.f32 %v1571, %v2228
  %2230 = vmatmul.f32.gmra.mxu0 %v1880
  %v2231 = vpop.f32.mrf.mxu0
  %v2232 = vadd.f32 %v1574, %v2231
  %2233 = vmatmul.f32.gmra.mxu0 %v1882
  %v2234 = vpop.f32.mrf.mxu0
  %v2235 = vadd.f32 %v1577, %v2234
  %2236 = vmatmul.f32.gmra.mxu0 %v1884
  %v2237 = vpop.f32.mrf.mxu0
  %v2238 = vadd.f32 %v1580, %v2237
  %2239 = vmatmul.f32.gmra.mxu0 %v1886
  %v2240 = vpop.f32.mrf.mxu0
  %v2241 = vadd.f32 %v1583, %v2240
  %2242 = vmatmul.f32.gmra.mxu0 %v1888
  %v2243 = vpop.f32.mrf.mxu0
  %v2244 = vadd.f32 %v1586, %v2243
  %2245 = vmatmul.f32.gmra.mxu0 %v1890
  %v2246 = vpop.f32.mrf.mxu0
  %v2247 = vadd.f32 %v1589, %v2246
  %2248 = vmatmul.f32.gmra.mxu0 %v1892
  %v2249 = vpop.f32.mrf.mxu0
  %v2250 = vadd.f32 %v1592, %v2249
  %2251 = vmatmul.f32.gmra.mxu0 %v1894
  %v2252 = vpop.f32.mrf.mxu0
  %v2253 = vadd.f32 %v1595, %v2252
  %2254 = vmatmul.f32.gmra.mxu0 %v1896
  %v2255 = vpop.f32.mrf.mxu0
  %v2256 = vadd.f32 %v1598, %v2255
  %2257 = vmatmul.f32.gmra.mxu0 %v1898
  %v2258 = vpop.f32.mrf.mxu0
  %v2259 = vadd.f32 %v1601, %v2258
  %2260 = vmatmul.f32.gmra.mxu0 %v1900
  %v2261 = vpop.f32.mrf.mxu0
  %v2262 = vadd.f32 %v1604, %v2261
  %2263 = vmatmul.f32.gmra.mxu0 %v1902
  %v2264 = vpop.f32.mrf.mxu0
  %v2265 = vadd.f32 %v1607, %v2264
  %2266 = vmatmul.f32.gmra.mxu0 %v1904
  %v2267 = vpop.f32.mrf.mxu0
  %v2268 = vadd.f32 %v1610, %v2267
  %2269 = vmatmul.f32.gmra.mxu0 %v1906
  %v2270 = vpop.f32.mrf.mxu0
  %v2271 = vadd.f32 %v1613, %v2270
  %2272 = vmatmul.f32.gmra.mxu0 %v1908
  %v2273 = vpop.f32.mrf.mxu0
  %v2274 = vadd.f32 %v1616, %v2273
  %2275 = vmatmul.f32.gmra.mxu0 %v1910
  %v2276 = vpop.f32.mrf.mxu0
  %v2277 = vadd.f32 %v1619, %v2276
  %2278 = vmatmul.f32.gmra.mxu0 %v1912
  %v2279 = vpop.f32.mrf.mxu0
  %v2280 = vadd.f32 %v1622, %v2279
  %2281 = vmatmul.f32.gmra.mxu0 %v1914
  %v2282 = vpop.f32.mrf.mxu0
  %v2283 = vadd.f32 %v1625, %v2282
  %2284 = vmatmul.f32.gmra.mxu0 %v1916
  %v2285 = vpop.f32.mrf.mxu0
  %v2286 = vadd.f32 %v1628, %v2285
  %2287 = vmatmul.f32.gmra.mxu0 %v1918
  %v2288 = vpop.f32.mrf.mxu0
  %v2289 = vadd.f32 %v1631, %v2288
  %2290 = vmatmul.f32.gmra.mxu0 %v1920
  %v2291 = vpop.f32.mrf.mxu0
  %v2292 = vadd.f32 %v1634, %v2291
  %2293 = vmatmul.f32.gmra.mxu0 %v1922
  %v2294 = vpop.f32.mrf.mxu0
  %v2295 = vadd.f32 %v1637, %v2294
  %2296 = vmatmul.f32.gmra.mxu0 %v1924
  %v2297 = vpop.f32.mrf.mxu0
  %v2298 = vadd.f32 %v1640, %v2297
  %2299 = vmatmul.f32.gmra.mxu0 %v1926
  %v2300 = vpop.f32.mrf.mxu0
  %v2301 = vadd.f32 %v1643, %v2300
  %2302 = vmatmul.f32.gmra.mxu0 %v1928
  %v2303 = vpop.f32.mrf.mxu0
  %v2304 = vadd.f32 %v1646, %v2303
  %2305 = vmatmul.f32.gmra.mxu0 %v1930
  %v2306 = vpop.f32.mrf.mxu0
  %v2307 = vadd.f32 %v1649, %v2306
  %2308 = vmatmul.f32.gmra.mxu0 %v1932
  %v2309 = vpop.f32.mrf.mxu0
  %v2310 = vadd.f32 %v1652, %v2309
  %2311 = vmatmul.f32.gmra.mxu0 %v1934
  %v2312 = vpop.f32.mrf.mxu0
  %v2313 = vadd.f32 %v1655, %v2312
  %2314 = vmatmul.f32.gmra.mxu0 %v1936
  %v2315 = vpop.f32.mrf.mxu0
  %v2316 = vadd.f32 %v1658, %v2315
  %2317 = vmatmul.f32.gmra.mxu0 %v1938
  %v2318 = vpop.f32.mrf.mxu0
  %v2319 = vadd.f32 %v1661, %v2318
  %2320 = vmatmul.f32.gmra.mxu0 %v1940
  %v2321 = vpop.f32.mrf.mxu0
  %v2322 = vadd.f32 %v1664, %v2321
  %2323 = vmatmul.f32.gmra.mxu0 %v1942
  %v2324 = vpop.f32.mrf.mxu0
  %v2325 = vadd.f32 %v1667, %v2324
  %2326 = vmatmul.f32.gmra.mxu0 %v1944
  %v2327 = vpop.f32.mrf.mxu0
  %v2328 = vadd.f32 %v1670, %v2327
  %2329 = vmatmul.f32.gmra.mxu0 %v1946
  %v2330 = vpop.f32.mrf.mxu0
  %v2331 = vadd.f32 %v1673, %v2330
  %2332 = vmatmul.f32.gmra.mxu0 %v1948
  %v2333 = vpop.f32.mrf.mxu0
  %v2334 = vadd.f32 %v1676, %v2333
  %2335 = vmatmul.f32.gmra.mxu0 %v1950
  %v2336 = vpop.f32.mrf.mxu0
  %v2337 = vadd.f32 %v1679, %v2336
  %2338 = vmatmul.f32.gmra.mxu0 %v1952
  %v2339 = vpop.f32.mrf.mxu0
  %v2340 = vadd.f32 %v1682, %v2339
  %2341 = vmatmul.f32.gmra.mxu0 %v1954
  %v2342 = vpop.f32.mrf.mxu0
  %v2343 = vadd.f32 %v1685, %v2342
  %2344 = vmatmul.f32.gmra.mxu0 %v1956
  %v2345 = vpop.f32.mrf.mxu0
  %v2346 = vadd.f32 %v1688, %v2345
  %2347 = vmatmul.f32.gmra.mxu0 %v1958
  %v2348 = vpop.f32.mrf.mxu0
  %v2349 = vadd.f32 %v1691, %v2348
  %2350 = vmatmul.f32.gmra.mxu0 %v1960
  %v2351 = vpop.f32.mrf.mxu0
  %v2352 = vadd.f32 %v1694, %v2351
  %2353 = vmatmul.f32.gmra.mxu0 %v1962
  %v2354 = vpop.f32.mrf.mxu0
  %v2355 = vadd.f32 %v1697, %v2354
  %2356 = vmatmul.f32.gmra.mxu0 %v1964
  %v2357 = vpop.f32.mrf.mxu0
  %v2358 = vadd.f32 %v1700, %v2357
  %2359 = vmatmul.f32.gmra.mxu0 %v1966
  %v2360 = vpop.f32.mrf.mxu0
  %v2361 = vadd.f32 %v1703, %v2360
  %2362 = vmatmul.f32.gmra.mxu0 %v1968
  %v2363 = vpop.f32.mrf.mxu0
  %v2364 = vadd.f32 %v1706, %v2363
  %2365 = vmatmul.f32.gmra.mxu0 %v1970
  %v2366 = vpop.f32.mrf.mxu0
  %v2367 = vadd.f32 %v1709, %v2366
  %2368 = vmatmul.f32.gmra.mxu0 %v1972
  %v2369 = vpop.f32.mrf.mxu0
  %v2370 = vadd.f32 %v1712, %v2369
  %2371 = vmatmul.f32.gmra.mxu0 %v1974
  %v2372 = vpop.f32.mrf.mxu0
  %v2373 = vadd.f32 %v1715, %v2372
  %2374 = vmatmul.f32.gmra.mxu0 %v1976
  %v2375 = vpop.f32.mrf.mxu0
  %v2376 = vadd.f32 %v1718, %v2375
  %2377 = vmatmul.f32.gmra.mxu0 %v1978
  %v2378 = vpop.f32.mrf.mxu0
  %v2379 = vadd.f32 %v1721, %v2378
  %2380 = vdwg.mxu0
  %2381 = vrot.lane.b32.xlu0 %v159, 96
  %v2382 = vpop.permute.xlu0 %2381
  %2383 = vrot.lane.b32.xlu0 %v160, 96
  %v2384 = vpop.permute.xlu0 %2383
  %2385 = vrot.lane.b32.xlu0 %v161, 96
  %v2386 = vpop.permute.xlu0 %2385
  %2387 = vrot.lane.b32.xlu0 %v162, 96
  %v2388 = vpop.permute.xlu0 %2387
  %2389 = vrot.lane.b32.xlu0 %v163, 96
  %v2390 = vpop.permute.xlu0 %2389
  %2391 = vrot.lane.b32.xlu0 %v164, 96
  %v2392 = vpop.permute.xlu0 %2391
  %2393 = vrot.lane.b32.xlu0 %v165, 96
  %v2394 = vpop.permute.xlu0 %2393
  %2395 = vrot.lane.b32.xlu0 %v166, 96
  %v2396 = vpop.permute.xlu0 %2395
  %2397 = vrot.lane.b32.xlu0 %v167, 96
  %v2398 = vpop.permute.xlu0 %2397
  %2399 = vrot.lane.b32.xlu0 %v168, 96
  %v2400 = vpop.permute.xlu0 %2399
  %2401 = vrot.lane.b32.xlu0 %v169, 96
  %v2402 = vpop.permute.xlu0 %2401
  %2403 = vrot.lane.b32.xlu0 %v170, 96
  %v2404 = vpop.permute.xlu0 %2403
  %2405 = vrot.lane.b32.xlu0 %v171, 96
  %v2406 = vpop.permute.xlu0 %2405
  %2407 = vrot.lane.b32.xlu0 %v172, 96
  %v2408 = vpop.permute.xlu0 %2407
  %2409 = vrot.lane.b32.xlu0 %v173, 96
  %v2410 = vpop.permute.xlu0 %2409
  %2411 = vrot.lane.b32.xlu0 %v174, 96
  %v2412 = vpop.permute.xlu0 %2411
  %2413 = vrot.lane.b32.xlu0 %v175, 96
  %v2414 = vpop.permute.xlu0 %2413
  %2415 = vrot.lane.b32.xlu0 %v176, 96
  %v2416 = vpop.permute.xlu0 %2415
  %2417 = vrot.lane.b32.xlu0 %v177, 96
  %v2418 = vpop.permute.xlu0 %2417
  %2419 = vrot.lane.b32.xlu0 %v178, 96
  %v2420 = vpop.permute.xlu0 %2419
  %2421 = vrot.lane.b32.xlu0 %v179, 96
  %v2422 = vpop.permute.xlu0 %2421
  %2423 = vrot.lane.b32.xlu0 %v180, 96
  %v2424 = vpop.permute.xlu0 %2423
  %2425 = vrot.lane.b32.xlu0 %v181, 96
  %v2426 = vpop.permute.xlu0 %2425
  %2427 = vrot.lane.b32.xlu0 %v182, 96
  %v2428 = vpop.permute.xlu0 %2427
  %2429 = vrot.lane.b32.xlu0 %v183, 96
  %v2430 = vpop.permute.xlu0 %2429
  %2431 = vrot.lane.b32.xlu0 %v184, 96
  %v2432 = vpop.permute.xlu0 %2431
  %2433 = vrot.lane.b32.xlu0 %v185, 96
  %v2434 = vpop.permute.xlu0 %2433
  %2435 = vrot.lane.b32.xlu0 %v186, 96
  %v2436 = vpop.permute.xlu0 %2435
  %2437 = vrot.lane.b32.xlu0 %v187, 96
  %v2438 = vpop.permute.xlu0 %2437
  %2439 = vrot.lane.b32.xlu0 %v188, 96
  %v2440 = vpop.permute.xlu0 %2439
  %2441 = vrot.lane.b32.xlu0 %v189, 96
  %v2442 = vpop.permute.xlu0 %2441
  %2443 = vrot.lane.b32.xlu0 %v190, 96
  %v2444 = vpop.permute.xlu0 %2443
  %2445 = vrot.lane.b32.xlu0 %v191, 96
  %v2446 = vpop.permute.xlu0 %2445
  %2447 = vrot.lane.b32.xlu0 %v192, 96
  %v2448 = vpop.permute.xlu0 %2447
  %2449 = vrot.lane.b32.xlu0 %v193, 96
  %v2450 = vpop.permute.xlu0 %2449
  %2451 = vrot.lane.b32.xlu0 %v194, 96
  %v2452 = vpop.permute.xlu0 %2451
  %2453 = vrot.lane.b32.xlu0 %v195, 96
  %v2454 = vpop.permute.xlu0 %2453
  %2455 = vrot.lane.b32.xlu0 %v196, 96
  %v2456 = vpop.permute.xlu0 %2455
  %2457 = vrot.lane.b32.xlu0 %v197, 96
  %v2458 = vpop.permute.xlu0 %2457
  %2459 = vrot.lane.b32.xlu0 %v198, 96
  %v2460 = vpop.permute.xlu0 %2459
  %2461 = vrot.lane.b32.xlu0 %v199, 96
  %v2462 = vpop.permute.xlu0 %2461
  %2463 = vrot.lane.b32.xlu0 %v200, 96
  %v2464 = vpop.permute.xlu0 %2463
  %2465 = vrot.lane.b32.xlu0 %v201, 96
  %v2466 = vpop.permute.xlu0 %2465
  %2467 = vrot.lane.b32.xlu0 %v202, 96
  %v2468 = vpop.permute.xlu0 %2467
  %2469 = vrot.lane.b32.xlu0 %v203, 96
  %v2470 = vpop.permute.xlu0 %2469
  %2471 = vrot.lane.b32.xlu0 %v204, 96
  %v2472 = vpop.permute.xlu0 %2471
  %2473 = vrot.lane.b32.xlu0 %v205, 96
  %v2474 = vpop.permute.xlu0 %2473
  %2475 = vrot.lane.b32.xlu0 %v206, 96
  %v2476 = vpop.permute.xlu0 %2475
  %2477 = vrot.lane.b32.xlu0 %v207, 96
  %v2478 = vpop.permute.xlu0 %2477
  %2479 = vrot.lane.b32.xlu0 %v208, 96
  %v2480 = vpop.permute.xlu0 %2479
  %2481 = vrot.lane.b32.xlu0 %v209, 96
  %v2482 = vpop.permute.xlu0 %2481
  %2483 = vrot.lane.b32.xlu0 %v210, 96
  %v2484 = vpop.permute.xlu0 %2483
  %2485 = vrot.lane.b32.xlu0 %v211, 96
  %v2486 = vpop.permute.xlu0 %2485
  %2487 = vrot.lane.b32.xlu0 %v212, 96
  %v2488 = vpop.permute.xlu0 %2487
  %2489 = vrot.lane.b32.xlu0 %v213, 96
  %v2490 = vpop.permute.xlu0 %2489
  %2491 = vrot.lane.b32.xlu0 %v214, 96
  %v2492 = vpop.permute.xlu0 %2491
  %2493 = vrot.lane.b32.xlu0 %v215, 96
  %v2494 = vpop.permute.xlu0 %2493
  %2495 = vrot.lane.b32.xlu0 %v216, 96
  %v2496 = vpop.permute.xlu0 %2495
  %2497 = vrot.lane.b32.xlu0 %v217, 96
  %v2498 = vpop.permute.xlu0 %2497
  %2499 = vrot.lane.b32.xlu0 %v218, 96
  %v2500 = vpop.permute.xlu0 %2499
  %2501 = vrot.lane.b32.xlu0 %v219, 96
  %v2502 = vpop.permute.xlu0 %2501
  %2503 = vrot.lane.b32.xlu0 %v220, 96
  %v2504 = vpop.permute.xlu0 %2503
  %2505 = vrot.lane.b32.xlu0 %v221, 96
  %v2506 = vpop.permute.xlu0 %2505
  %2507 = vrot.lane.b32.xlu0 %v222, 96
  %v2508 = vpop.permute.xlu0 %2507
  %2509 = vrot.lane.b32.xlu0 %v223, 96
  %v2510 = vpop.permute.xlu0 %2509
  %2511 = vrot.lane.b32.xlu0 %v224, 96
  %v2512 = vpop.permute.xlu0 %2511
  %2513 = vrot.lane.b32.xlu0 %v225, 96
  %v2514 = vpop.permute.xlu0 %2513
  %2515 = vrot.lane.b32.xlu0 %v226, 96
  %v2516 = vpop.permute.xlu0 %2515
  %2517 = vrot.lane.b32.xlu0 %v227, 96
  %v2518 = vpop.permute.xlu0 %2517
  %2519 = vrot.lane.b32.xlu0 %v228, 96
  %v2520 = vpop.permute.xlu0 %2519
  %2521 = vrot.lane.b32.xlu0 %v229, 96
  %v2522 = vpop.permute.xlu0 %2521
  %2523 = vrot.lane.b32.xlu0 %v230, 96
  %v2524 = vpop.permute.xlu0 %2523
  %2525 = vrot.lane.b32.xlu0 %v231, 96
  %v2526 = vpop.permute.xlu0 %2525
  %2527 = vrot.lane.b32.xlu0 %v232, 96
  %v2528 = vpop.permute.xlu0 %2527
  %2529 = vrot.lane.b32.xlu0 %v233, 96
  %v2530 = vpop.permute.xlu0 %2529
  %2531 = vrot.lane.b32.xlu0 %v234, 96
  %v2532 = vpop.permute.xlu0 %2531
  %2533 = vrot.lane.b32.xlu0 %v235, 96
  %v2534 = vpop.permute.xlu0 %2533
  %2535 = vrot.lane.b32.xlu0 %v236, 96
  %v2536 = vpop.permute.xlu0 %2535
  %2537 = vrot.lane.b32.xlu0 %v237, 96
  %v2538 = vpop.permute.xlu0 %2537
  %2539 = vrot.lane.b32.xlu0 %v238, 96
  %v2540 = vpop.permute.xlu0 %2539
  %2541 = vrot.lane.b32.xlu0 %v239, 96
  %v2542 = vpop.permute.xlu0 %2541
  %2543 = vrot.lane.b32.xlu0 %v240, 96
  %v2544 = vpop.permute.xlu0 %2543
  %2545 = vrot.lane.b32.xlu0 %v241, 96
  %v2546 = vpop.permute.xlu0 %2545
  %2547 = vrot.lane.b32.xlu0 %v242, 96
  %v2548 = vpop.permute.xlu0 %2547
  %2549 = vrot.lane.b32.xlu0 %v243, 96
  %v2550 = vpop.permute.xlu0 %2549
  %2551 = vrot.lane.b32.xlu0 %v244, 96
  %v2552 = vpop.permute.xlu0 %2551
  %2553 = vrot.lane.b32.xlu0 %v245, 96
  %v2554 = vpop.permute.xlu0 %2553
  %2555 = vrot.lane.b32.xlu0 %v246, 96
  %v2556 = vpop.permute.xlu0 %2555
  %2557 = vrot.lane.b32.xlu0 %v247, 96
  %v2558 = vpop.permute.xlu0 %2557
  %2559 = vrot.lane.b32.xlu0 %v248, 96
  %v2560 = vpop.permute.xlu0 %2559
  %2561 = vrot.lane.b32.xlu0 %v249, 96
  %v2562 = vpop.permute.xlu0 %2561
  %2563 = vrot.lane.b32.xlu0 %v250, 96
  %v2564 = vpop.permute.xlu0 %2563
  %2565 = vrot.lane.b32.xlu0 %v251, 96
  %v2566 = vpop.permute.xlu0 %2565
  %2567 = vrot.lane.b32.xlu0 %v252, 96
  %v2568 = vpop.permute.xlu0 %2567
  %2569 = vrot.lane.b32.xlu0 %v253, 96
  %v2570 = vpop.permute.xlu0 %2569
  %2571 = vrot.lane.b32.xlu0 %v254, 96
  %v2572 = vpop.permute.xlu0 %2571
  %2573 = vrot.lane.b32.xlu0 %v255, 96
  %v2574 = vpop.permute.xlu0 %2573
  %2575 = vrot.lane.b32.xlu0 %v256, 96
  %v2576 = vpop.permute.xlu0 %2575
  %2577 = vrot.lane.b32.xlu0 %v257, 96
  %v2578 = vpop.permute.xlu0 %2577
  %2579 = vrot.lane.b32.xlu0 %v258, 96
  %v2580 = vpop.permute.xlu0 %2579
  %2581 = vrot.lane.b32.xlu0 %v259, 96
  %v2582 = vpop.permute.xlu0 %2581
  %2583 = vrot.lane.b32.xlu0 %v260, 96
  %v2584 = vpop.permute.xlu0 %2583
  %2585 = vrot.lane.b32.xlu0 %v261, 96
  %v2586 = vpop.permute.xlu0 %2585
  %2587 = vrot.lane.b32.xlu0 %v262, 96
  %v2588 = vpop.permute.xlu0 %2587
  %2589 = vrot.lane.b32.xlu0 %v263, 96
  %v2590 = vpop.permute.xlu0 %2589
  %2591 = vrot.lane.b32.xlu0 %v264, 96
  %v2592 = vpop.permute.xlu0 %2591
  %2593 = vrot.lane.b32.xlu0 %v265, 96
  %v2594 = vpop.permute.xlu0 %2593
  %2595 = vrot.lane.b32.xlu0 %v266, 96
  %v2596 = vpop.permute.xlu0 %2595
  %2597 = vrot.lane.b32.xlu0 %v267, 96
  %v2598 = vpop.permute.xlu0 %2597
  %2599 = vrot.lane.b32.xlu0 %v268, 96
  %v2600 = vpop.permute.xlu0 %2599
  %2601 = vrot.lane.b32.xlu0 %v269, 96
  %v2602 = vpop.permute.xlu0 %2601
  %2603 = vrot.lane.b32.xlu0 %v270, 96
  %v2604 = vpop.permute.xlu0 %2603
  %2605 = vrot.lane.b32.xlu0 %v271, 96
  %v2606 = vpop.permute.xlu0 %2605
  %2607 = vrot.lane.b32.xlu0 %v272, 96
  %v2608 = vpop.permute.xlu0 %2607
  %2609 = vrot.lane.b32.xlu0 %v273, 96
  %v2610 = vpop.permute.xlu0 %2609
  %2611 = vrot.lane.b32.xlu0 %v274, 96
  %v2612 = vpop.permute.xlu0 %2611
  %2613 = vrot.lane.b32.xlu0 %v275, 96
  %v2614 = vpop.permute.xlu0 %2613
  %2615 = vrot.lane.b32.xlu0 %v276, 96
  %v2616 = vpop.permute.xlu0 %2615
  %2617 = vrot.lane.b32.xlu0 %v277, 96
  %v2618 = vpop.permute.xlu0 %2617
  %2619 = vrot.lane.b32.xlu0 %v278, 96
  %v2620 = vpop.permute.xlu0 %2619
  %2621 = vrot.lane.b32.xlu0 %v279, 96
  %v2622 = vpop.permute.xlu0 %2621
  %2623 = vrot.lane.b32.xlu0 %v280, 96
  %v2624 = vpop.permute.xlu0 %2623
  %2625 = vrot.lane.b32.xlu0 %v281, 96
  %v2626 = vpop.permute.xlu0 %2625
  %2627 = vrot.lane.b32.xlu0 %v282, 96
  %v2628 = vpop.permute.xlu0 %2627
  %2629 = vrot.lane.b32.xlu0 %v283, 96
  %v2630 = vpop.permute.xlu0 %2629
  %2631 = vrot.lane.b32.xlu0 %v284, 96
  %v2632 = vpop.permute.xlu0 %2631
  %2633 = vrot.lane.b32.xlu0 %v285, 96
  %v2634 = vpop.permute.xlu0 %2633
  %2635 = vrot.lane.b32.xlu0 %v286, 96
  %v2636 = vpop.permute.xlu0 %2635
  %v2765 = vmul.f32 %v159, %v2382
  %v2766 = vmul.f32 %v160, %v2384
  %v2767 = vmul.f32 %v161, %v2386
  %v2768 = vmul.f32 %v162, %v2388
  %v2769 = vmul.f32 %v163, %v2390
  %v2770 = vmul.f32 %v164, %v2392
  %v2771 = vmul.f32 %v165, %v2394
  %v2772 = vmul.f32 %v166, %v2396
  %v2773 = vmul.f32 %v167, %v2398
  %v2774 = vmul.f32 %v168, %v2400
  %v2775 = vmul.f32 %v169, %v2402
  %v2776 = vmul.f32 %v170, %v2404
  %v2777 = vmul.f32 %v171, %v2406
  %v2778 = vmul.f32 %v172, %v2408
  %v2779 = vmul.f32 %v173, %v2410
  %v2780 = vmul.f32 %v174, %v2412
  %v2781 = vmul.f32 %v175, %v2414
  %v2782 = vmul.f32 %v176, %v2416
  %v2783 = vmul.f32 %v177, %v2418
  %v2784 = vmul.f32 %v178, %v2420
  %v2785 = vmul.f32 %v179, %v2422
  %v2786 = vmul.f32 %v180, %v2424
  %v2787 = vmul.f32 %v181, %v2426
  %v2788 = vmul.f32 %v182, %v2428
  %v2789 = vmul.f32 %v183, %v2430
  %v2790 = vmul.f32 %v184, %v2432
  %v2791 = vmul.f32 %v185, %v2434
  %v2792 = vmul.f32 %v186, %v2436
  %v2793 = vmul.f32 %v187, %v2438
  %v2794 = vmul.f32 %v188, %v2440
  %v2795 = vmul.f32 %v189, %v2442
  %v2796 = vmul.f32 %v190, %v2444
  %v2797 = vmul.f32 %v191, %v2446
  %v2798 = vmul.f32 %v192, %v2448
  %v2799 = vmul.f32 %v193, %v2450
  %v2800 = vmul.f32 %v194, %v2452
  %v2801 = vmul.f32 %v195, %v2454
  %v2802 = vmul.f32 %v196, %v2456
  %v2803 = vmul.f32 %v197, %v2458
  %v2804 = vmul.f32 %v198, %v2460
  %v2805 = vmul.f32 %v199, %v2462
  %v2806 = vmul.f32 %v200, %v2464
  %v2807 = vmul.f32 %v201, %v2466
  %v2808 = vmul.f32 %v202, %v2468
  %v2809 = vmul.f32 %v203, %v2470
  %v2810 = vmul.f32 %v204, %v2472
  %v2811 = vmul.f32 %v205, %v2474
  %v2812 = vmul.f32 %v206, %v2476
  %v2813 = vmul.f32 %v207, %v2478
  %v2814 = vmul.f32 %v208, %v2480
  %v2815 = vmul.f32 %v209, %v2482
  %v2816 = vmul.f32 %v210, %v2484
  %v2817 = vmul.f32 %v211, %v2486
  %v2818 = vmul.f32 %v212, %v2488
  %v2819 = vmul.f32 %v213, %v2490
  %v2820 = vmul.f32 %v214, %v2492
  %v2821 = vmul.f32 %v215, %v2494
  %v2822 = vmul.f32 %v216, %v2496
  %v2823 = vmul.f32 %v217, %v2498
  %v2824 = vmul.f32 %v218, %v2500
  %v2825 = vmul.f32 %v219, %v2502
  %v2826 = vmul.f32 %v220, %v2504
  %v2827 = vmul.f32 %v221, %v2506
  %v2828 = vmul.f32 %v222, %v2508
  %v2829 = vmul.f32 %v223, %v2510
  %v2830 = vmul.f32 %v224, %v2512
  %v2831 = vmul.f32 %v225, %v2514
  %v2832 = vmul.f32 %v226, %v2516
  %v2833 = vmul.f32 %v227, %v2518
  %v2834 = vmul.f32 %v228, %v2520
  %v2835 = vmul.f32 %v229, %v2522
  %v2836 = vmul.f32 %v230, %v2524
  %v2837 = vmul.f32 %v231, %v2526
  %v2838 = vmul.f32 %v232, %v2528
  %v2839 = vmul.f32 %v233, %v2530
  %v2840 = vmul.f32 %v234, %v2532
  %v2841 = vmul.f32 %v235, %v2534
  %v2842 = vmul.f32 %v236, %v2536
  %v2843 = vmul.f32 %v237, %v2538
  %v2844 = vmul.f32 %v238, %v2540
  %v2845 = vmul.f32 %v239, %v2542
  %v2846 = vmul.f32 %v240, %v2544
  %v2847 = vmul.f32 %v241, %v2546
  %v2848 = vmul.f32 %v242, %v2548
  %v2849 = vmul.f32 %v243, %v2550
  %v2850 = vmul.f32 %v244, %v2552
  %v2851 = vmul.f32 %v245, %v2554
  %v2852 = vmul.f32 %v246, %v2556
  %v2853 = vmul.f32 %v247, %v2558
  %v2854 = vmul.f32 %v248, %v2560
  %v2855 = vmul.f32 %v249, %v2562
  %v2856 = vmul.f32 %v250, %v2564
  %v2857 = vmul.f32 %v251, %v2566
  %v2858 = vmul.f32 %v252, %v2568
  %v2859 = vmul.f32 %v253, %v2570
  %v2860 = vmul.f32 %v254, %v2572
  %v2861 = vmul.f32 %v255, %v2574
  %v2862 = vmul.f32 %v256, %v2576
  %v2863 = vmul.f32 %v257, %v2578
  %v2864 = vmul.f32 %v258, %v2580
  %v2865 = vmul.f32 %v259, %v2582
  %v2866 = vmul.f32 %v260, %v2584
  %v2867 = vmul.f32 %v261, %v2586
  %v2868 = vmul.f32 %v262, %v2588
  %v2869 = vmul.f32 %v263, %v2590
  %v2870 = vmul.f32 %v264, %v2592
  %v2871 = vmul.f32 %v265, %v2594
  %v2872 = vmul.f32 %v266, %v2596
  %v2873 = vmul.f32 %v267, %v2598
  %v2874 = vmul.f32 %v268, %v2600
  %v2875 = vmul.f32 %v269, %v2602
  %v2876 = vmul.f32 %v270, %v2604
  %v2877 = vmul.f32 %v271, %v2606
  %v2878 = vmul.f32 %v272, %v2608
  %v2879 = vmul.f32 %v273, %v2610
  %v2880 = vmul.f32 %v274, %v2612
  %v2881 = vmul.f32 %v275, %v2614
  %v2882 = vmul.f32 %v276, %v2616
  %v2883 = vmul.f32 %v277, %v2618
  %v2884 = vmul.f32 %v278, %v2620
  %v2885 = vmul.f32 %v279, %v2622
  %v2886 = vmul.f32 %v280, %v2624
  %v2887 = vmul.f32 %v281, %v2626
  %v2888 = vmul.f32 %v282, %v2628
  %v2889 = vmul.f32 %v283, %v2630
  %v2890 = vmul.f32 %v284, %v2632
  %v2891 = vmul.f32 %v285, %v2634
  %v2892 = vmul.f32 %v286, %v2636
  %v2893 = vld [vmem:[%s2 + $0x10] sm:$0xff]
  %v2894 = vld [vmem:[%s2 + $0x18] sm:$0xff]
  %v2896 = vsel %vm937, %v2765, 0
  %v2899 = vsel %vm937, %v2766, 0
  %v2902 = vsel %vm937, %v2767, 0
  %v2905 = vsel %vm937, %v2768, 0
  %v2908 = vsel %vm937, %v2769, 0
  %v2911 = vsel %vm937, %v2770, 0
  %v2914 = vsel %vm937, %v2771, 0
  %v2917 = vsel %vm937, %v2772, 0
  %v2920 = vsel %vm937, %v2773, 0
  %v2923 = vsel %vm937, %v2774, 0
  %v2926 = vsel %vm937, %v2775, 0
  %v2929 = vsel %vm937, %v2776, 0
  %v2932 = vsel %vm937, %v2777, 0
  %v2935 = vsel %vm937, %v2778, 0
  %v2938 = vsel %vm937, %v2779, 0
  %v2941 = vsel %vm937, %v2780, 0
  %v2944 = vsel %vm937, %v2781, 0
  %v2947 = vsel %vm937, %v2782, 0
  %v2950 = vsel %vm937, %v2783, 0
  %v2953 = vsel %vm937, %v2784, 0
  %v2956 = vsel %vm937, %v2785, 0
  %v2959 = vsel %vm937, %v2786, 0
  %v2962 = vsel %vm937, %v2787, 0
  %v2965 = vsel %vm937, %v2788, 0
  %v2968 = vsel %vm937, %v2789, 0
  %v2971 = vsel %vm937, %v2790, 0
  %v2974 = vsel %vm937, %v2791, 0
  %v2977 = vsel %vm937, %v2792, 0
  %v2980 = vsel %vm937, %v2793, 0
  %v2983 = vsel %vm937, %v2794, 0
  %v2986 = vsel %vm937, %v2795, 0
  %v2989 = vsel %vm937, %v2796, 0
  %v2992 = vsel %vm937, %v2797, 0
  %v2995 = vsel %vm937, %v2798, 0
  %v2998 = vsel %vm937, %v2799, 0
  %v3001 = vsel %vm937, %v2800, 0
  %v3004 = vsel %vm937, %v2801, 0
  %v3007 = vsel %vm937, %v2802, 0
  %v3010 = vsel %vm937, %v2803, 0
  %v3013 = vsel %vm937, %v2804, 0
  %v3016 = vsel %vm937, %v2805, 0
  %v3019 = vsel %vm937, %v2806, 0
  %v3022 = vsel %vm937, %v2807, 0
  %v3025 = vsel %vm937, %v2808, 0
  %v3028 = vsel %vm937, %v2809, 0
  %v3031 = vsel %vm937, %v2810, 0
  %v3034 = vsel %vm937, %v2811, 0
  %v3037 = vsel %vm937, %v2812, 0
  %v3040 = vsel %vm937, %v2813, 0
  %v3043 = vsel %vm937, %v2814, 0
  %v3046 = vsel %vm937, %v2815, 0
  %v3049 = vsel %vm937, %v2816, 0
  %v3052 = vsel %vm937, %v2817, 0
  %v3055 = vsel %vm937, %v2818, 0
  %v3058 = vsel %vm937, %v2819, 0
  %v3061 = vsel %vm937, %v2820, 0
  %v3064 = vsel %vm937, %v2821, 0
  %v3067 = vsel %vm937, %v2822, 0
  %v3070 = vsel %vm937, %v2823, 0
  %v3073 = vsel %vm937, %v2824, 0
  %v3076 = vsel %vm937, %v2825, 0
  %v3079 = vsel %vm937, %v2826, 0
  %v3082 = vsel %vm937, %v2827, 0
  %v3085 = vsel %vm937, %v2828, 0
  %v3088 = vsel %vm937, %v2829, 0
  %v3091 = vsel %vm937, %v2830, 0
  %v3094 = vsel %vm937, %v2831, 0
  %v3097 = vsel %vm937, %v2832, 0
  %v3100 = vsel %vm937, %v2833, 0
  %v3103 = vsel %vm937, %v2834, 0
  %v3106 = vsel %vm937, %v2835, 0
  %v3109 = vsel %vm937, %v2836, 0
  %v3112 = vsel %vm937, %v2837, 0
  %v3115 = vsel %vm937, %v2838, 0
  %v3118 = vsel %vm937, %v2839, 0
  %v3121 = vsel %vm937, %v2840, 0
  %v3124 = vsel %vm937, %v2841, 0
  %v3127 = vsel %vm937, %v2842, 0
  %v3130 = vsel %vm937, %v2843, 0
  %v3133 = vsel %vm937, %v2844, 0
  %v3136 = vsel %vm937, %v2845, 0
  %v3139 = vsel %vm937, %v2846, 0
  %v3142 = vsel %vm937, %v2847, 0
  %v3145 = vsel %vm937, %v2848, 0
  %v3148 = vsel %vm937, %v2849, 0
  %v3151 = vsel %vm937, %v2850, 0
  %v3154 = vsel %vm937, %v2851, 0
  %v3157 = vsel %vm937, %v2852, 0
  %v3160 = vsel %vm937, %v2853, 0
  %v3163 = vsel %vm937, %v2854, 0
  %v3166 = vsel %vm937, %v2855, 0
  %v3169 = vsel %vm937, %v2856, 0
  %v3172 = vsel %vm937, %v2857, 0
  %v3175 = vsel %vm937, %v2858, 0
  %v3178 = vsel %vm937, %v2859, 0
  %v3181 = vsel %vm937, %v2860, 0
  %v3184 = vsel %vm937, %v2861, 0
  %v3187 = vsel %vm937, %v2862, 0
  %v3190 = vsel %vm937, %v2863, 0
  %v3193 = vsel %vm937, %v2864, 0
  %v3196 = vsel %vm937, %v2865, 0
  %v3199 = vsel %vm937, %v2866, 0
  %v3202 = vsel %vm937, %v2867, 0
  %v3205 = vsel %vm937, %v2868, 0
  %v3208 = vsel %vm937, %v2869, 0
  %v3211 = vsel %vm937, %v2870, 0
  %v3214 = vsel %vm937, %v2871, 0
  %v3217 = vsel %vm937, %v2872, 0
  %v3220 = vsel %vm937, %v2873, 0
  %v3223 = vsel %vm937, %v2874, 0
  %v3226 = vsel %vm937, %v2875, 0
  %v3229 = vsel %vm937, %v2876, 0
  %v3232 = vsel %vm937, %v2877, 0
  %v3235 = vsel %vm937, %v2878, 0
  %v3238 = vsel %vm937, %v2879, 0
  %v3241 = vsel %vm937, %v2880, 0
  %v3244 = vsel %vm937, %v2881, 0
  %v3247 = vsel %vm937, %v2882, 0
  %v3250 = vsel %vm937, %v2883, 0
  %v3253 = vsel %vm937, %v2884, 0
  %v3256 = vsel %vm937, %v2885, 0
  %v3259 = vsel %vm937, %v2886, 0
  %v3262 = vsel %vm937, %v2887, 0
  %v3265 = vsel %vm937, %v2888, 0
  %v3268 = vsel %vm937, %v2889, 0
  %v3271 = vsel %vm937, %v2890, 0
  %v3274 = vsel %vm937, %v2891, 0
  %v3277 = vsel %vm937, %v2892, 0
  %3279 = vmatpush.msra.mxu0 0.0
  %3280 = vmatpush.msra.mxu0 0.0
  %3281 = vmatpush.msra.mxu0 0.0
  %3282 = vmatpush.msra.mxu0 0.0
  %3283 = vmatpush.msra.mxu0 0.0
  %3284 = vmatpush.msra.mxu0 0.0
  %3285 = vmatpush.msra.mxu0 0.0
  %3286 = vmatpush.msra.mxu0 0.0
  %3287 = vmatpush.msra.mxu0 0.0
  %3288 = vmatpush.msra.mxu0 0.0
  %3289 = vmatpush.msra.mxu0 0.0
  %3290 = vmatpush.msra.mxu0 0.0
  %3291 = vmatpush.msra.mxu0 0.0
  %3292 = vmatpush.msra.mxu0 0.0
  %3293 = vmatpush.msra.mxu0 %v2894
  %3294 = vmatpush.msra.mxu0 %v2893
  %3295 = vmatmul.f32.gmra.mxu0 %v2896
  %v3296 = vpop.f32.mrf.mxu0
  %v3297 = vadd.f32 0.0, %v3296
  %3298 = vmatmul.f32.gmra.mxu0 %v2899
  %v3299 = vpop.f32.mrf.mxu0
  %v3300 = vadd.f32 0.0, %v3299
  %3301 = vmatmul.f32.gmra.mxu0 %v2902
  %v3302 = vpop.f32.mrf.mxu0
  %v3303 = vadd.f32 0.0, %v3302
  %3304 = vmatmul.f32.gmra.mxu0 %v2905
  %v3305 = vpop.f32.mrf.mxu0
  %v3306 = vadd.f32 0.0, %v3305
  %3307 = vmatmul.f32.gmra.mxu0 %v2908
  %v3308 = vpop.f32.mrf.mxu0
  %v3309 = vadd.f32 0.0, %v3308
  %3310 = vmatmul.f32.gmra.mxu0 %v2911
  %v3311 = vpop.f32.mrf.mxu0
  %v3312 = vadd.f32 0.0, %v3311
  %3313 = vmatmul.f32.gmra.mxu0 %v2914
  %v3314 = vpop.f32.mrf.mxu0
  %v3315 = vadd.f32 0.0, %v3314
  %3316 = vmatmul.f32.gmra.mxu0 %v2917
  %v3317 = vpop.f32.mrf.mxu0
  %v3318 = vadd.f32 0.0, %v3317
  %3319 = vmatmul.f32.gmra.mxu0 %v2920
  %v3320 = vpop.f32.mrf.mxu0
  %v3321 = vadd.f32 0.0, %v3320
  %3322 = vmatmul.f32.gmra.mxu0 %v2923
  %v3323 = vpop.f32.mrf.mxu0
  %v3324 = vadd.f32 0.0, %v3323
  %3325 = vmatmul.f32.gmra.mxu0 %v2926
  %v3326 = vpop.f32.mrf.mxu0
  %v3327 = vadd.f32 0.0, %v3326
  %3328 = vmatmul.f32.gmra.mxu0 %v2929
  %v3329 = vpop.f32.mrf.mxu0
  %v3330 = vadd.f32 0.0, %v3329
  %3331 = vmatmul.f32.gmra.mxu0 %v2932
  %v3332 = vpop.f32.mrf.mxu0
  %v3333 = vadd.f32 0.0, %v3332
  %3334 = vmatmul.f32.gmra.mxu0 %v2935
  %v3335 = vpop.f32.mrf.mxu0
  %v3336 = vadd.f32 0.0, %v3335
  %3337 = vmatmul.f32.gmra.mxu0 %v2938
  %v3338 = vpop.f32.mrf.mxu0
  %v3339 = vadd.f32 0.0, %v3338
  %3340 = vmatmul.f32.gmra.mxu0 %v2941
  %v3341 = vpop.f32.mrf.mxu0
  %v3342 = vadd.f32 0.0, %v3341
  %3343 = vmatmul.f32.gmra.mxu0 %v2944
  %v3344 = vpop.f32.mrf.mxu0
  %v3345 = vadd.f32 0.0, %v3344
  %3346 = vmatmul.f32.gmra.mxu0 %v2947
  %v3347 = vpop.f32.mrf.mxu0
  %v3348 = vadd.f32 0.0, %v3347
  %3349 = vmatmul.f32.gmra.mxu0 %v2950
  %v3350 = vpop.f32.mrf.mxu0
  %v3351 = vadd.f32 0.0, %v3350
  %3352 = vmatmul.f32.gmra.mxu0 %v2953
  %v3353 = vpop.f32.mrf.mxu0
  %v3354 = vadd.f32 0.0, %v3353
  %3355 = vmatmul.f32.gmra.mxu0 %v2956
  %v3356 = vpop.f32.mrf.mxu0
  %v3357 = vadd.f32 0.0, %v3356
  %3358 = vmatmul.f32.gmra.mxu0 %v2959
  %v3359 = vpop.f32.mrf.mxu0
  %v3360 = vadd.f32 0.0, %v3359
  %3361 = vmatmul.f32.gmra.mxu0 %v2962
  %v3362 = vpop.f32.mrf.mxu0
  %v3363 = vadd.f32 0.0, %v3362
  %3364 = vmatmul.f32.gmra.mxu0 %v2965
  %v3365 = vpop.f32.mrf.mxu0
  %v3366 = vadd.f32 0.0, %v3365
  %3367 = vmatmul.f32.gmra.mxu0 %v2968
  %v3368 = vpop.f32.mrf.mxu0
  %v3369 = vadd.f32 0.0, %v3368
  %3370 = vmatmul.f32.gmra.mxu0 %v2971
  %v3371 = vpop.f32.mrf.mxu0
  %v3372 = vadd.f32 0.0, %v3371
  %3373 = vmatmul.f32.gmra.mxu0 %v2974
  %v3374 = vpop.f32.mrf.mxu0
  %v3375 = vadd.f32 0.0, %v3374
  %3376 = vmatmul.f32.gmra.mxu0 %v2977
  %v3377 = vpop.f32.mrf.mxu0
  %v3378 = vadd.f32 0.0, %v3377
  %3379 = vmatmul.f32.gmra.mxu0 %v2980
  %v3380 = vpop.f32.mrf.mxu0
  %v3381 = vadd.f32 0.0, %v3380
  %3382 = vmatmul.f32.gmra.mxu0 %v2983
  %v3383 = vpop.f32.mrf.mxu0
  %v3384 = vadd.f32 0.0, %v3383
  %3385 = vmatmul.f32.gmra.mxu0 %v2986
  %v3386 = vpop.f32.mrf.mxu0
  %v3387 = vadd.f32 0.0, %v3386
  %3388 = vmatmul.f32.gmra.mxu0 %v2989
  %v3389 = vpop.f32.mrf.mxu0
  %v3390 = vadd.f32 0.0, %v3389
  %3391 = vmatmul.f32.gmra.mxu0 %v2992
  %v3392 = vpop.f32.mrf.mxu0
  %v3393 = vadd.f32 0.0, %v3392
  %3394 = vmatmul.f32.gmra.mxu0 %v2995
  %v3395 = vpop.f32.mrf.mxu0
  %v3396 = vadd.f32 0.0, %v3395
  %3397 = vmatmul.f32.gmra.mxu0 %v2998
  %v3398 = vpop.f32.mrf.mxu0
  %v3399 = vadd.f32 0.0, %v3398
  %3400 = vmatmul.f32.gmra.mxu0 %v3001
  %v3401 = vpop.f32.mrf.mxu0
  %v3402 = vadd.f32 0.0, %v3401
  %3403 = vmatmul.f32.gmra.mxu0 %v3004
  %v3404 = vpop.f32.mrf.mxu0
  %v3405 = vadd.f32 0.0, %v3404
  %3406 = vmatmul.f32.gmra.mxu0 %v3007
  %v3407 = vpop.f32.mrf.mxu0
  %v3408 = vadd.f32 0.0, %v3407
  %3409 = vmatmul.f32.gmra.mxu0 %v3010
  %v3410 = vpop.f32.mrf.mxu0
  %v3411 = vadd.f32 0.0, %v3410
  %3412 = vmatmul.f32.gmra.mxu0 %v3013
  %v3413 = vpop.f32.mrf.mxu0
  %v3414 = vadd.f32 0.0, %v3413
  %3415 = vmatmul.f32.gmra.mxu0 %v3016
  %v3416 = vpop.f32.mrf.mxu0
  %v3417 = vadd.f32 0.0, %v3416
  %3418 = vmatmul.f32.gmra.mxu0 %v3019
  %v3419 = vpop.f32.mrf.mxu0
  %v3420 = vadd.f32 0.0, %v3419
  %3421 = vmatmul.f32.gmra.mxu0 %v3022
  %v3422 = vpop.f32.mrf.mxu0
  %v3423 = vadd.f32 0.0, %v3422
  %3424 = vmatmul.f32.gmra.mxu0 %v3025
  %v3425 = vpop.f32.mrf.mxu0
  %v3426 = vadd.f32 0.0, %v3425
  %3427 = vmatmul.f32.gmra.mxu0 %v3028
  %v3428 = vpop.f32.mrf.mxu0
  %v3429 = vadd.f32 0.0, %v3428
  %3430 = vmatmul.f32.gmra.mxu0 %v3031
  %v3431 = vpop.f32.mrf.mxu0
  %v3432 = vadd.f32 0.0, %v3431
  %3433 = vmatmul.f32.gmra.mxu0 %v3034
  %v3434 = vpop.f32.mrf.mxu0
  %v3435 = vadd.f32 0.0, %v3434
  %3436 = vmatmul.f32.gmra.mxu0 %v3037
  %v3437 = vpop.f32.mrf.mxu0
  %v3438 = vadd.f32 0.0, %v3437
  %3439 = vmatmul.f32.gmra.mxu0 %v3040
  %v3440 = vpop.f32.mrf.mxu0
  %v3441 = vadd.f32 0.0, %v3440
  %3442 = vmatmul.f32.gmra.mxu0 %v3043
  %v3443 = vpop.f32.mrf.mxu0
  %v3444 = vadd.f32 0.0, %v3443
  %3445 = vmatmul.f32.gmra.mxu0 %v3046
  %v3446 = vpop.f32.mrf.mxu0
  %v3447 = vadd.f32 0.0, %v3446
  %3448 = vmatmul.f32.gmra.mxu0 %v3049
  %v3449 = vpop.f32.mrf.mxu0
  %v3450 = vadd.f32 0.0, %v3449
  %3451 = vmatmul.f32.gmra.mxu0 %v3052
  %v3452 = vpop.f32.mrf.mxu0
  %v3453 = vadd.f32 0.0, %v3452
  %3454 = vmatmul.f32.gmra.mxu0 %v3055
  %v3455 = vpop.f32.mrf.mxu0
  %v3456 = vadd.f32 0.0, %v3455
  %3457 = vmatmul.f32.gmra.mxu0 %v3058
  %v3458 = vpop.f32.mrf.mxu0
  %v3459 = vadd.f32 0.0, %v3458
  %3460 = vmatmul.f32.gmra.mxu0 %v3061
  %v3461 = vpop.f32.mrf.mxu0
  %v3462 = vadd.f32 0.0, %v3461
  %3463 = vmatmul.f32.gmra.mxu0 %v3064
  %v3464 = vpop.f32.mrf.mxu0
  %v3465 = vadd.f32 0.0, %v3464
  %3466 = vmatmul.f32.gmra.mxu0 %v3067
  %v3467 = vpop.f32.mrf.mxu0
  %v3468 = vadd.f32 0.0, %v3467
  %3469 = vmatmul.f32.gmra.mxu0 %v3070
  %v3470 = vpop.f32.mrf.mxu0
  %v3471 = vadd.f32 0.0, %v3470
  %3472 = vmatmul.f32.gmra.mxu0 %v3073
  %v3473 = vpop.f32.mrf.mxu0
  %v3474 = vadd.f32 0.0, %v3473
  %3475 = vmatmul.f32.gmra.mxu0 %v3076
  %v3476 = vpop.f32.mrf.mxu0
  %v3477 = vadd.f32 0.0, %v3476
  %3478 = vmatmul.f32.gmra.mxu0 %v3079
  %v3479 = vpop.f32.mrf.mxu0
  %v3480 = vadd.f32 0.0, %v3479
  %3481 = vmatmul.f32.gmra.mxu0 %v3082
  %v3482 = vpop.f32.mrf.mxu0
  %v3483 = vadd.f32 0.0, %v3482
  %3484 = vmatmul.f32.gmra.mxu0 %v3085
  %v3485 = vpop.f32.mrf.mxu0
  %v3486 = vadd.f32 0.0, %v3485
  %3487 = vmatmul.f32.gmra.mxu0 %v3088
  %v3488 = vpop.f32.mrf.mxu0
  %v3489 = vadd.f32 0.0, %v3488
  %3490 = vmatmul.f32.gmra.mxu0 %v3091
  %v3491 = vpop.f32.mrf.mxu0
  %v3492 = vadd.f32 0.0, %v3491
  %3493 = vmatmul.f32.gmra.mxu0 %v3094
  %v3494 = vpop.f32.mrf.mxu0
  %v3495 = vadd.f32 0.0, %v3494
  %3496 = vmatmul.f32.gmra.mxu0 %v3097
  %v3497 = vpop.f32.mrf.mxu0
  %v3498 = vadd.f32 0.0, %v3497
  %3499 = vmatmul.f32.gmra.mxu0 %v3100
  %v3500 = vpop.f32.mrf.mxu0
  %v3501 = vadd.f32 0.0, %v3500
  %3502 = vmatmul.f32.gmra.mxu0 %v3103
  %v3503 = vpop.f32.mrf.mxu0
  %v3504 = vadd.f32 0.0, %v3503
  %3505 = vmatmul.f32.gmra.mxu0 %v3106
  %v3506 = vpop.f32.mrf.mxu0
  %v3507 = vadd.f32 0.0, %v3506
  %3508 = vmatmul.f32.gmra.mxu0 %v3109
  %v3509 = vpop.f32.mrf.mxu0
  %v3510 = vadd.f32 0.0, %v3509
  %3511 = vmatmul.f32.gmra.mxu0 %v3112
  %v3512 = vpop.f32.mrf.mxu0
  %v3513 = vadd.f32 0.0, %v3512
  %3514 = vmatmul.f32.gmra.mxu0 %v3115
  %v3515 = vpop.f32.mrf.mxu0
  %v3516 = vadd.f32 0.0, %v3515
  %3517 = vmatmul.f32.gmra.mxu0 %v3118
  %v3518 = vpop.f32.mrf.mxu0
  %v3519 = vadd.f32 0.0, %v3518
  %3520 = vmatmul.f32.gmra.mxu0 %v3121
  %v3521 = vpop.f32.mrf.mxu0
  %v3522 = vadd.f32 0.0, %v3521
  %3523 = vmatmul.f32.gmra.mxu0 %v3124
  %v3524 = vpop.f32.mrf.mxu0
  %v3525 = vadd.f32 0.0, %v3524
  %3526 = vmatmul.f32.gmra.mxu0 %v3127
  %v3527 = vpop.f32.mrf.mxu0
  %v3528 = vadd.f32 0.0, %v3527
  %3529 = vmatmul.f32.gmra.mxu0 %v3130
  %v3530 = vpop.f32.mrf.mxu0
  %v3531 = vadd.f32 0.0, %v3530
  %3532 = vmatmul.f32.gmra.mxu0 %v3133
  %v3533 = vpop.f32.mrf.mxu0
  %v3534 = vadd.f32 0.0, %v3533
  %3535 = vmatmul.f32.gmra.mxu0 %v3136
  %v3536 = vpop.f32.mrf.mxu0
  %v3537 = vadd.f32 0.0, %v3536
  %3538 = vmatmul.f32.gmra.mxu0 %v3139
  %v3539 = vpop.f32.mrf.mxu0
  %v3540 = vadd.f32 0.0, %v3539
  %3541 = vmatmul.f32.gmra.mxu0 %v3142
  %v3542 = vpop.f32.mrf.mxu0
  %v3543 = vadd.f32 0.0, %v3542
  %3544 = vmatmul.f32.gmra.mxu0 %v3145
  %v3545 = vpop.f32.mrf.mxu0
  %v3546 = vadd.f32 0.0, %v3545
  %3547 = vmatmul.f32.gmra.mxu0 %v3148
  %v3548 = vpop.f32.mrf.mxu0
  %v3549 = vadd.f32 0.0, %v3548
  %3550 = vmatmul.f32.gmra.mxu0 %v3151
  %v3551 = vpop.f32.mrf.mxu0
  %v3552 = vadd.f32 0.0, %v3551
  %3553 = vmatmul.f32.gmra.mxu0 %v3154
  %v3554 = vpop.f32.mrf.mxu0
  %v3555 = vadd.f32 0.0, %v3554
  %3556 = vmatmul.f32.gmra.mxu0 %v3157
  %v3557 = vpop.f32.mrf.mxu0
  %v3558 = vadd.f32 0.0, %v3557
  %3559 = vmatmul.f32.gmra.mxu0 %v3160
  %v3560 = vpop.f32.mrf.mxu0
  %v3561 = vadd.f32 0.0, %v3560
  %3562 = vmatmul.f32.gmra.mxu0 %v3163
  %v3563 = vpop.f32.mrf.mxu0
  %v3564 = vadd.f32 0.0, %v3563
  %3565 = vmatmul.f32.gmra.mxu0 %v3166
  %v3566 = vpop.f32.mrf.mxu0
  %v3567 = vadd.f32 0.0, %v3566
  %3568 = vmatmul.f32.gmra.mxu0 %v3169
  %v3569 = vpop.f32.mrf.mxu0
  %v3570 = vadd.f32 0.0, %v3569
  %3571 = vmatmul.f32.gmra.mxu0 %v3172
  %v3572 = vpop.f32.mrf.mxu0
  %v3573 = vadd.f32 0.0, %v3572
  %3574 = vmatmul.f32.gmra.mxu0 %v3175
  %v3575 = vpop.f32.mrf.mxu0
  %v3576 = vadd.f32 0.0, %v3575
  %3577 = vmatmul.f32.gmra.mxu0 %v3178
  %v3578 = vpop.f32.mrf.mxu0
  %v3579 = vadd.f32 0.0, %v3578
  %3580 = vmatmul.f32.gmra.mxu0 %v3181
  %v3581 = vpop.f32.mrf.mxu0
  %v3582 = vadd.f32 0.0, %v3581
  %3583 = vmatmul.f32.gmra.mxu0 %v3184
  %v3584 = vpop.f32.mrf.mxu0
  %v3585 = vadd.f32 0.0, %v3584
  %3586 = vmatmul.f32.gmra.mxu0 %v3187
  %v3587 = vpop.f32.mrf.mxu0
  %v3588 = vadd.f32 0.0, %v3587
  %3589 = vmatmul.f32.gmra.mxu0 %v3190
  %v3590 = vpop.f32.mrf.mxu0
  %v3591 = vadd.f32 0.0, %v3590
  %3592 = vmatmul.f32.gmra.mxu0 %v3193
  %v3593 = vpop.f32.mrf.mxu0
  %v3594 = vadd.f32 0.0, %v3593
  %3595 = vmatmul.f32.gmra.mxu0 %v3196
  %v3596 = vpop.f32.mrf.mxu0
  %v3597 = vadd.f32 0.0, %v3596
  %3598 = vmatmul.f32.gmra.mxu0 %v3199
  %v3599 = vpop.f32.mrf.mxu0
  %v3600 = vadd.f32 0.0, %v3599
  %3601 = vmatmul.f32.gmra.mxu0 %v3202
  %v3602 = vpop.f32.mrf.mxu0
  %v3603 = vadd.f32 0.0, %v3602
  %3604 = vmatmul.f32.gmra.mxu0 %v3205
  %v3605 = vpop.f32.mrf.mxu0
  %v3606 = vadd.f32 0.0, %v3605
  %3607 = vmatmul.f32.gmra.mxu0 %v3208
  %v3608 = vpop.f32.mrf.mxu0
  %v3609 = vadd.f32 0.0, %v3608
  %3610 = vmatmul.f32.gmra.mxu0 %v3211
  %v3611 = vpop.f32.mrf.mxu0
  %v3612 = vadd.f32 0.0, %v3611
  %3613 = vmatmul.f32.gmra.mxu0 %v3214
  %v3614 = vpop.f32.mrf.mxu0
  %v3615 = vadd.f32 0.0, %v3614
  %3616 = vmatmul.f32.gmra.mxu0 %v3217
  %v3617 = vpop.f32.mrf.mxu0
  %v3618 = vadd.f32 0.0, %v3617
  %3619 = vmatmul.f32.gmra.mxu0 %v3220
  %v3620 = vpop.f32.mrf.mxu0
  %v3621 = vadd.f32 0.0, %v3620
  %3622 = vmatmul.f32.gmra.mxu0 %v3223
  %v3623 = vpop.f32.mrf.mxu0
  %v3624 = vadd.f32 0.0, %v3623
  %3625 = vmatmul.f32.gmra.mxu0 %v3226
  %v3626 = vpop.f32.mrf.mxu0
  %v3627 = vadd.f32 0.0, %v3626
  %3628 = vmatmul.f32.gmra.mxu0 %v3229
  %v3629 = vpop.f32.mrf.mxu0
  %v3630 = vadd.f32 0.0, %v3629
  %3631 = vmatmul.f32.gmra.mxu0 %v3232
  %v3632 = vpop.f32.mrf.mxu0
  %v3633 = vadd.f32 0.0, %v3632
  %3634 = vmatmul.f32.gmra.mxu0 %v3235
  %v3635 = vpop.f32.mrf.mxu0
  %v3636 = vadd.f32 0.0, %v3635
  %3637 = vmatmul.f32.gmra.mxu0 %v3238
  %v3638 = vpop.f32.mrf.mxu0
  %v3639 = vadd.f32 0.0, %v3638
  %3640 = vmatmul.f32.gmra.mxu0 %v3241
  %v3641 = vpop.f32.mrf.mxu0
  %v3642 = vadd.f32 0.0, %v3641
  %3643 = vmatmul.f32.gmra.mxu0 %v3244
  %v3644 = vpop.f32.mrf.mxu0
  %v3645 = vadd.f32 0.0, %v3644
  %3646 = vmatmul.f32.gmra.mxu0 %v3247
  %v3647 = vpop.f32.mrf.mxu0
  %v3648 = vadd.f32 0.0, %v3647
  %3649 = vmatmul.f32.gmra.mxu0 %v3250
  %v3650 = vpop.f32.mrf.mxu0
  %v3651 = vadd.f32 0.0, %v3650
  %3652 = vmatmul.f32.gmra.mxu0 %v3253
  %v3653 = vpop.f32.mrf.mxu0
  %v3654 = vadd.f32 0.0, %v3653
  %3655 = vmatmul.f32.gmra.mxu0 %v3256
  %v3656 = vpop.f32.mrf.mxu0
  %v3657 = vadd.f32 0.0, %v3656
  %3658 = vmatmul.f32.gmra.mxu0 %v3259
  %v3659 = vpop.f32.mrf.mxu0
  %v3660 = vadd.f32 0.0, %v3659
  %3661 = vmatmul.f32.gmra.mxu0 %v3262
  %v3662 = vpop.f32.mrf.mxu0
  %v3663 = vadd.f32 0.0, %v3662
  %3664 = vmatmul.f32.gmra.mxu0 %v3265
  %v3665 = vpop.f32.mrf.mxu0
  %v3666 = vadd.f32 0.0, %v3665
  %3667 = vmatmul.f32.gmra.mxu0 %v3268
  %v3668 = vpop.f32.mrf.mxu0
  %v3669 = vadd.f32 0.0, %v3668
  %3670 = vmatmul.f32.gmra.mxu0 %v3271
  %v3671 = vpop.f32.mrf.mxu0
  %v3672 = vadd.f32 0.0, %v3671
  %3673 = vmatmul.f32.gmra.mxu0 %v3274
  %v3674 = vpop.f32.mrf.mxu0
  %v3675 = vadd.f32 0.0, %v3674
  %3676 = vmatmul.f32.gmra.mxu0 %v3277
  %v3677 = vpop.f32.mrf.mxu0
  %v3678 = vadd.f32 0.0, %v3677
  %3679 = vdwg.mxu0
  %v3680 = vadd.f32 %v1998, %v3297
  %v3681 = vadd.f32 %v2001, %v3300
  %v3682 = vadd.f32 %v2004, %v3303
  %v3683 = vadd.f32 %v2007, %v3306
  %v3684 = vadd.f32 %v2010, %v3309
  %v3685 = vadd.f32 %v2013, %v3312
  %v3686 = vadd.f32 %v2016, %v3315
  %v3687 = vadd.f32 %v2019, %v3318
  %v3688 = vadd.f32 %v2022, %v3321
  %v3689 = vadd.f32 %v2025, %v3324
  %v3690 = vadd.f32 %v2028, %v3327
  %v3691 = vadd.f32 %v2031, %v3330
  %v3692 = vadd.f32 %v2034, %v3333
  %v3693 = vadd.f32 %v2037, %v3336
  %v3694 = vadd.f32 %v2040, %v3339
  %v3695 = vadd.f32 %v2043, %v3342
  %v3696 = vadd.f32 %v2046, %v3345
  %v3697 = vadd.f32 %v2049, %v3348
  %v3698 = vadd.f32 %v2052, %v3351
  %v3699 = vadd.f32 %v2055, %v3354
  %v3700 = vadd.f32 %v2058, %v3357
  %v3701 = vadd.f32 %v2061, %v3360
  %v3702 = vadd.f32 %v2064, %v3363
  %v3703 = vadd.f32 %v2067, %v3366
  %v3704 = vadd.f32 %v2070, %v3369
  %v3705 = vadd.f32 %v2073, %v3372
  %v3706 = vadd.f32 %v2076, %v3375
  %v3707 = vadd.f32 %v2079, %v3378
  %v3708 = vadd.f32 %v2082, %v3381
  %v3709 = vadd.f32 %v2085, %v3384
  %v3710 = vadd.f32 %v2088, %v3387
  %v3711 = vadd.f32 %v2091, %v3390
  %v3712 = vadd.f32 %v2094, %v3393
  %v3713 = vadd.f32 %v2097, %v3396
  %v3714 = vadd.f32 %v2100, %v3399
  %v3715 = vadd.f32 %v2103, %v3402
  %v3716 = vadd.f32 %v2106, %v3405
  %v3717 = vadd.f32 %v2109, %v3408
  %v3718 = vadd.f32 %v2112, %v3411
  %v3719 = vadd.f32 %v2115, %v3414
  %v3720 = vadd.f32 %v2118, %v3417
  %v3721 = vadd.f32 %v2121, %v3420
  %v3722 = vadd.f32 %v2124, %v3423
  %v3723 = vadd.f32 %v2127, %v3426
  %v3724 = vadd.f32 %v2130, %v3429
  %v3725 = vadd.f32 %v2133, %v3432
  %v3726 = vadd.f32 %v2136, %v3435
  %v3727 = vadd.f32 %v2139, %v3438
  %v3728 = vadd.f32 %v2142, %v3441
  %v3729 = vadd.f32 %v2145, %v3444
  %v3730 = vadd.f32 %v2148, %v3447
  %v3731 = vadd.f32 %v2151, %v3450
  %v3732 = vadd.f32 %v2154, %v3453
  %v3733 = vadd.f32 %v2157, %v3456
  %v3734 = vadd.f32 %v2160, %v3459
  %v3735 = vadd.f32 %v2163, %v3462
  %v3736 = vadd.f32 %v2166, %v3465
  %v3737 = vadd.f32 %v2169, %v3468
  %v3738 = vadd.f32 %v2172, %v3471
  %v3739 = vadd.f32 %v2175, %v3474
  %v3740 = vadd.f32 %v2178, %v3477
  %v3741 = vadd.f32 %v2181, %v3480
  %v3742 = vadd.f32 %v2184, %v3483
  %v3743 = vadd.f32 %v2187, %v3486
  %v3744 = vadd.f32 %v2190, %v3489
  %v3745 = vadd.f32 %v2193, %v3492
  %v3746 = vadd.f32 %v2196, %v3495
  %v3747 = vadd.f32 %v2199, %v3498
  %v3748 = vadd.f32 %v2202, %v3501
  %v3749 = vadd.f32 %v2205, %v3504
  %v3750 = vadd.f32 %v2208, %v3507
  %v3751 = vadd.f32 %v2211, %v3510
  %v3752 = vadd.f32 %v2214, %v3513
  %v3753 = vadd.f32 %v2217, %v3516
  %v3754 = vadd.f32 %v2220, %v3519
  %v3755 = vadd.f32 %v2223, %v3522
  %v3756 = vadd.f32 %v2226, %v3525
  %v3757 = vadd.f32 %v2229, %v3528
  %v3758 = vadd.f32 %v2232, %v3531
  %v3759 = vadd.f32 %v2235, %v3534
  %v3760 = vadd.f32 %v2238, %v3537
  %v3761 = vadd.f32 %v2241, %v3540
  %v3762 = vadd.f32 %v2244, %v3543
  %v3763 = vadd.f32 %v2247, %v3546
  %v3764 = vadd.f32 %v2250, %v3549
  %v3765 = vadd.f32 %v2253, %v3552
  %v3766 = vadd.f32 %v2256, %v3555
  %v3767 = vadd.f32 %v2259, %v3558
  %v3768 = vadd.f32 %v2262, %v3561
  %v3769 = vadd.f32 %v2265, %v3564
  %v3770 = vadd.f32 %v2268, %v3567
  %v3771 = vadd.f32 %v2271, %v3570
  %v3772 = vadd.f32 %v2274, %v3573
  %v3773 = vadd.f32 %v2277, %v3576
  %v3774 = vadd.f32 %v2280, %v3579
  %v3775 = vadd.f32 %v2283, %v3582
  %v3776 = vadd.f32 %v2286, %v3585
  %v3777 = vadd.f32 %v2289, %v3588
  %v3778 = vadd.f32 %v2292, %v3591
  %v3779 = vadd.f32 %v2295, %v3594
  %v3780 = vadd.f32 %v2298, %v3597
  %v3781 = vadd.f32 %v2301, %v3600
  %v3782 = vadd.f32 %v2304, %v3603
  %v3783 = vadd.f32 %v2307, %v3606
  %v3784 = vadd.f32 %v2310, %v3609
  %v3785 = vadd.f32 %v2313, %v3612
  %v3786 = vadd.f32 %v2316, %v3615
  %v3787 = vadd.f32 %v2319, %v3618
  %v3788 = vadd.f32 %v2322, %v3621
  %v3789 = vadd.f32 %v2325, %v3624
  %v3790 = vadd.f32 %v2328, %v3627
  %v3791 = vadd.f32 %v2331, %v3630
  %v3792 = vadd.f32 %v2334, %v3633
  %v3793 = vadd.f32 %v2337, %v3636
  %v3794 = vadd.f32 %v2340, %v3639
  %v3795 = vadd.f32 %v2343, %v3642
  %v3796 = vadd.f32 %v2346, %v3645
  %v3797 = vadd.f32 %v2349, %v3648
  %v3798 = vadd.f32 %v2352, %v3651
  %v3799 = vadd.f32 %v2355, %v3654
  %v3800 = vadd.f32 %v2358, %v3657
  %v3801 = vadd.f32 %v2361, %v3660
  %v3802 = vadd.f32 %v2364, %v3663
  %v3803 = vadd.f32 %v2367, %v3666
  %v3804 = vadd.f32 %v2370, %v3669
  %v3805 = vadd.f32 %v2373, %v3672
  %v3806 = vadd.f32 %v2376, %v3675
  %v3807 = vadd.f32 %v2379, %v3678
  %3808 = vrot.lane.b32.xlu0 %v159, 80
  %v3809 = vpop.permute.xlu0 %3808
  %3810 = vrot.lane.b32.xlu0 %v160, 80
  %v3811 = vpop.permute.xlu0 %3810
  %3812 = vrot.lane.b32.xlu0 %v161, 80
  %v3813 = vpop.permute.xlu0 %3812
  %3814 = vrot.lane.b32.xlu0 %v162, 80
  %v3815 = vpop.permute.xlu0 %3814
  %3816 = vrot.lane.b32.xlu0 %v163, 80
  %v3817 = vpop.permute.xlu0 %3816
  %3818 = vrot.lane.b32.xlu0 %v164, 80
  %v3819 = vpop.permute.xlu0 %3818
  %3820 = vrot.lane.b32.xlu0 %v165, 80
  %v3821 = vpop.permute.xlu0 %3820
  %3822 = vrot.lane.b32.xlu0 %v166, 80
  %v3823 = vpop.permute.xlu0 %3822
  %3824 = vrot.lane.b32.xlu0 %v167, 80
  %v3825 = vpop.permute.xlu0 %3824
  %3826 = vrot.lane.b32.xlu0 %v168, 80
  %v3827 = vpop.permute.xlu0 %3826
  %3828 = vrot.lane.b32.xlu0 %v169, 80
  %v3829 = vpop.permute.xlu0 %3828
  %3830 = vrot.lane.b32.xlu0 %v170, 80
  %v3831 = vpop.permute.xlu0 %3830
  %3832 = vrot.lane.b32.xlu0 %v171, 80
  %v3833 = vpop.permute.xlu0 %3832
  %3834 = vrot.lane.b32.xlu0 %v172, 80
  %v3835 = vpop.permute.xlu0 %3834
  %3836 = vrot.lane.b32.xlu0 %v173, 80
  %v3837 = vpop.permute.xlu0 %3836
  %3838 = vrot.lane.b32.xlu0 %v174, 80
  %v3839 = vpop.permute.xlu0 %3838
  %3840 = vrot.lane.b32.xlu0 %v175, 80
  %v3841 = vpop.permute.xlu0 %3840
  %3842 = vrot.lane.b32.xlu0 %v176, 80
  %v3843 = vpop.permute.xlu0 %3842
  %3844 = vrot.lane.b32.xlu0 %v177, 80
  %v3845 = vpop.permute.xlu0 %3844
  %3846 = vrot.lane.b32.xlu0 %v178, 80
  %v3847 = vpop.permute.xlu0 %3846
  %3848 = vrot.lane.b32.xlu0 %v179, 80
  %v3849 = vpop.permute.xlu0 %3848
  %3850 = vrot.lane.b32.xlu0 %v180, 80
  %v3851 = vpop.permute.xlu0 %3850
  %3852 = vrot.lane.b32.xlu0 %v181, 80
  %v3853 = vpop.permute.xlu0 %3852
  %3854 = vrot.lane.b32.xlu0 %v182, 80
  %v3855 = vpop.permute.xlu0 %3854
  %3856 = vrot.lane.b32.xlu0 %v183, 80
  %v3857 = vpop.permute.xlu0 %3856
  %3858 = vrot.lane.b32.xlu0 %v184, 80
  %v3859 = vpop.permute.xlu0 %3858
  %3860 = vrot.lane.b32.xlu0 %v185, 80
  %v3861 = vpop.permute.xlu0 %3860
  %3862 = vrot.lane.b32.xlu0 %v186, 80
  %v3863 = vpop.permute.xlu0 %3862
  %3864 = vrot.lane.b32.xlu0 %v187, 80
  %v3865 = vpop.permute.xlu0 %3864
  %3866 = vrot.lane.b32.xlu0 %v188, 80
  %v3867 = vpop.permute.xlu0 %3866
  %3868 = vrot.lane.b32.xlu0 %v189, 80
  %v3869 = vpop.permute.xlu0 %3868
  %3870 = vrot.lane.b32.xlu0 %v190, 80
  %v3871 = vpop.permute.xlu0 %3870
  %3872 = vrot.lane.b32.xlu0 %v191, 80
  %v3873 = vpop.permute.xlu0 %3872
  %3874 = vrot.lane.b32.xlu0 %v192, 80
  %v3875 = vpop.permute.xlu0 %3874
  %3876 = vrot.lane.b32.xlu0 %v193, 80
  %v3877 = vpop.permute.xlu0 %3876
  %3878 = vrot.lane.b32.xlu0 %v194, 80
  %v3879 = vpop.permute.xlu0 %3878
  %3880 = vrot.lane.b32.xlu0 %v195, 80
  %v3881 = vpop.permute.xlu0 %3880
  %3882 = vrot.lane.b32.xlu0 %v196, 80
  %v3883 = vpop.permute.xlu0 %3882
  %3884 = vrot.lane.b32.xlu0 %v197, 80
  %v3885 = vpop.permute.xlu0 %3884
  %3886 = vrot.lane.b32.xlu0 %v198, 80
  %v3887 = vpop.permute.xlu0 %3886
  %3888 = vrot.lane.b32.xlu0 %v199, 80
  %v3889 = vpop.permute.xlu0 %3888
  %3890 = vrot.lane.b32.xlu0 %v200, 80
  %v3891 = vpop.permute.xlu0 %3890
  %3892 = vrot.lane.b32.xlu0 %v201, 80
  %v3893 = vpop.permute.xlu0 %3892
  %3894 = vrot.lane.b32.xlu0 %v202, 80
  %v3895 = vpop.permute.xlu0 %3894
  %3896 = vrot.lane.b32.xlu0 %v203, 80
  %v3897 = vpop.permute.xlu0 %3896
  %3898 = vrot.lane.b32.xlu0 %v204, 80
  %v3899 = vpop.permute.xlu0 %3898
  %3900 = vrot.lane.b32.xlu0 %v205, 80
  %v3901 = vpop.permute.xlu0 %3900
  %3902 = vrot.lane.b32.xlu0 %v206, 80
  %v3903 = vpop.permute.xlu0 %3902
  %3904 = vrot.lane.b32.xlu0 %v207, 80
  %v3905 = vpop.permute.xlu0 %3904
  %3906 = vrot.lane.b32.xlu0 %v208, 80
  %v3907 = vpop.permute.xlu0 %3906
  %3908 = vrot.lane.b32.xlu0 %v209, 80
  %v3909 = vpop.permute.xlu0 %3908
  %3910 = vrot.lane.b32.xlu0 %v210, 80
  %v3911 = vpop.permute.xlu0 %3910
  %3912 = vrot.lane.b32.xlu0 %v211, 80
  %v3913 = vpop.permute.xlu0 %3912
  %3914 = vrot.lane.b32.xlu0 %v212, 80
  %v3915 = vpop.permute.xlu0 %3914
  %3916 = vrot.lane.b32.xlu0 %v213, 80
  %v3917 = vpop.permute.xlu0 %3916
  %3918 = vrot.lane.b32.xlu0 %v214, 80
  %v3919 = vpop.permute.xlu0 %3918
  %3920 = vrot.lane.b32.xlu0 %v215, 80
  %v3921 = vpop.permute.xlu0 %3920
  %3922 = vrot.lane.b32.xlu0 %v216, 80
  %v3923 = vpop.permute.xlu0 %3922
  %3924 = vrot.lane.b32.xlu0 %v217, 80
  %v3925 = vpop.permute.xlu0 %3924
  %3926 = vrot.lane.b32.xlu0 %v218, 80
  %v3927 = vpop.permute.xlu0 %3926
  %3928 = vrot.lane.b32.xlu0 %v219, 80
  %v3929 = vpop.permute.xlu0 %3928
  %3930 = vrot.lane.b32.xlu0 %v220, 80
  %v3931 = vpop.permute.xlu0 %3930
  %3932 = vrot.lane.b32.xlu0 %v221, 80
  %v3933 = vpop.permute.xlu0 %3932
  %3934 = vrot.lane.b32.xlu0 %v222, 80
  %v3935 = vpop.permute.xlu0 %3934
  %3936 = vrot.lane.b32.xlu0 %v223, 80
  %v3937 = vpop.permute.xlu0 %3936
  %3938 = vrot.lane.b32.xlu0 %v224, 80
  %v3939 = vpop.permute.xlu0 %3938
  %3940 = vrot.lane.b32.xlu0 %v225, 80
  %v3941 = vpop.permute.xlu0 %3940
  %3942 = vrot.lane.b32.xlu0 %v226, 80
  %v3943 = vpop.permute.xlu0 %3942
  %3944 = vrot.lane.b32.xlu0 %v227, 80
  %v3945 = vpop.permute.xlu0 %3944
  %3946 = vrot.lane.b32.xlu0 %v228, 80
  %v3947 = vpop.permute.xlu0 %3946
  %3948 = vrot.lane.b32.xlu0 %v229, 80
  %v3949 = vpop.permute.xlu0 %3948
  %3950 = vrot.lane.b32.xlu0 %v230, 80
  %v3951 = vpop.permute.xlu0 %3950
  %3952 = vrot.lane.b32.xlu0 %v231, 80
  %v3953 = vpop.permute.xlu0 %3952
  %3954 = vrot.lane.b32.xlu0 %v232, 80
  %v3955 = vpop.permute.xlu0 %3954
  %3956 = vrot.lane.b32.xlu0 %v233, 80
  %v3957 = vpop.permute.xlu0 %3956
  %3958 = vrot.lane.b32.xlu0 %v234, 80
  %v3959 = vpop.permute.xlu0 %3958
  %3960 = vrot.lane.b32.xlu0 %v235, 80
  %v3961 = vpop.permute.xlu0 %3960
  %3962 = vrot.lane.b32.xlu0 %v236, 80
  %v3963 = vpop.permute.xlu0 %3962
  %3964 = vrot.lane.b32.xlu0 %v237, 80
  %v3965 = vpop.permute.xlu0 %3964
  %3966 = vrot.lane.b32.xlu0 %v238, 80
  %v3967 = vpop.permute.xlu0 %3966
  %3968 = vrot.lane.b32.xlu0 %v239, 80
  %v3969 = vpop.permute.xlu0 %3968
  %3970 = vrot.lane.b32.xlu0 %v240, 80
  %v3971 = vpop.permute.xlu0 %3970
  %3972 = vrot.lane.b32.xlu0 %v241, 80
  %v3973 = vpop.permute.xlu0 %3972
  %3974 = vrot.lane.b32.xlu0 %v242, 80
  %v3975 = vpop.permute.xlu0 %3974
  %3976 = vrot.lane.b32.xlu0 %v243, 80
  %v3977 = vpop.permute.xlu0 %3976
  %3978 = vrot.lane.b32.xlu0 %v244, 80
  %v3979 = vpop.permute.xlu0 %3978
  %3980 = vrot.lane.b32.xlu0 %v245, 80
  %v3981 = vpop.permute.xlu0 %3980
  %3982 = vrot.lane.b32.xlu0 %v246, 80
  %v3983 = vpop.permute.xlu0 %3982
  %3984 = vrot.lane.b32.xlu0 %v247, 80
  %v3985 = vpop.permute.xlu0 %3984
  %3986 = vrot.lane.b32.xlu0 %v248, 80
  %v3987 = vpop.permute.xlu0 %3986
  %3988 = vrot.lane.b32.xlu0 %v249, 80
  %v3989 = vpop.permute.xlu0 %3988
  %3990 = vrot.lane.b32.xlu0 %v250, 80
  %v3991 = vpop.permute.xlu0 %3990
  %3992 = vrot.lane.b32.xlu0 %v251, 80
  %v3993 = vpop.permute.xlu0 %3992
  %3994 = vrot.lane.b32.xlu0 %v252, 80
  %v3995 = vpop.permute.xlu0 %3994
  %3996 = vrot.lane.b32.xlu0 %v253, 80
  %v3997 = vpop.permute.xlu0 %3996
  %3998 = vrot.lane.b32.xlu0 %v254, 80
  %v3999 = vpop.permute.xlu0 %3998
  %4000 = vrot.lane.b32.xlu0 %v255, 80
  %v4001 = vpop.permute.xlu0 %4000
  %4002 = vrot.lane.b32.xlu0 %v256, 80
  %v4003 = vpop.permute.xlu0 %4002
  %4004 = vrot.lane.b32.xlu0 %v257, 80
  %v4005 = vpop.permute.xlu0 %4004
  %4006 = vrot.lane.b32.xlu0 %v258, 80
  %v4007 = vpop.permute.xlu0 %4006
  %4008 = vrot.lane.b32.xlu0 %v259, 80
  %v4009 = vpop.permute.xlu0 %4008
  %4010 = vrot.lane.b32.xlu0 %v260, 80
  %v4011 = vpop.permute.xlu0 %4010
  %4012 = vrot.lane.b32.xlu0 %v261, 80
  %v4013 = vpop.permute.xlu0 %4012
  %4014 = vrot.lane.b32.xlu0 %v262, 80
  %v4015 = vpop.permute.xlu0 %4014
  %4016 = vrot.lane.b32.xlu0 %v263, 80
  %v4017 = vpop.permute.xlu0 %4016
  %4018 = vrot.lane.b32.xlu0 %v264, 80
  %v4019 = vpop.permute.xlu0 %4018
  %4020 = vrot.lane.b32.xlu0 %v265, 80
  %v4021 = vpop.permute.xlu0 %4020
  %4022 = vrot.lane.b32.xlu0 %v266, 80
  %v4023 = vpop.permute.xlu0 %4022
  %4024 = vrot.lane.b32.xlu0 %v267, 80
  %v4025 = vpop.permute.xlu0 %4024
  %4026 = vrot.lane.b32.xlu0 %v268, 80
  %v4027 = vpop.permute.xlu0 %4026
  %4028 = vrot.lane.b32.xlu0 %v269, 80
  %v4029 = vpop.permute.xlu0 %4028
  %4030 = vrot.lane.b32.xlu0 %v270, 80
  %v4031 = vpop.permute.xlu0 %4030
  %4032 = vrot.lane.b32.xlu0 %v271, 80
  %v4033 = vpop.permute.xlu0 %4032
  %4034 = vrot.lane.b32.xlu0 %v272, 80
  %v4035 = vpop.permute.xlu0 %4034
  %4036 = vrot.lane.b32.xlu0 %v273, 80
  %v4037 = vpop.permute.xlu0 %4036
  %4038 = vrot.lane.b32.xlu0 %v274, 80
  %v4039 = vpop.permute.xlu0 %4038
  %4040 = vrot.lane.b32.xlu0 %v275, 80
  %v4041 = vpop.permute.xlu0 %4040
  %4042 = vrot.lane.b32.xlu0 %v276, 80
  %v4043 = vpop.permute.xlu0 %4042
  %4044 = vrot.lane.b32.xlu0 %v277, 80
  %v4045 = vpop.permute.xlu0 %4044
  %4046 = vrot.lane.b32.xlu0 %v278, 80
  %v4047 = vpop.permute.xlu0 %4046
  %4048 = vrot.lane.b32.xlu0 %v279, 80
  %v4049 = vpop.permute.xlu0 %4048
  %4050 = vrot.lane.b32.xlu0 %v280, 80
  %v4051 = vpop.permute.xlu0 %4050
  %4052 = vrot.lane.b32.xlu0 %v281, 80
  %v4053 = vpop.permute.xlu0 %4052
  %4054 = vrot.lane.b32.xlu0 %v282, 80
  %v4055 = vpop.permute.xlu0 %4054
  %4056 = vrot.lane.b32.xlu0 %v283, 80
  %v4057 = vpop.permute.xlu0 %4056
  %4058 = vrot.lane.b32.xlu0 %v284, 80
  %v4059 = vpop.permute.xlu0 %4058
  %4060 = vrot.lane.b32.xlu0 %v285, 80
  %v4061 = vpop.permute.xlu0 %4060
  %4062 = vrot.lane.b32.xlu0 %v286, 80
  %v4063 = vpop.permute.xlu0 %4062
  %v4192 = vmul.f32 %v159, %v3809
  %v4193 = vmul.f32 %v160, %v3811
  %v4194 = vmul.f32 %v161, %v3813
  %v4195 = vmul.f32 %v162, %v3815
  %v4196 = vmul.f32 %v163, %v3817
  %v4197 = vmul.f32 %v164, %v3819
  %v4198 = vmul.f32 %v165, %v3821
  %v4199 = vmul.f32 %v166, %v3823
  %v4200 = vmul.f32 %v167, %v3825
  %v4201 = vmul.f32 %v168, %v3827
  %v4202 = vmul.f32 %v169, %v3829
  %v4203 = vmul.f32 %v170, %v3831
  %v4204 = vmul.f32 %v171, %v3833
  %v4205 = vmul.f32 %v172, %v3835
  %v4206 = vmul.f32 %v173, %v3837
  %v4207 = vmul.f32 %v174, %v3839
  %v4208 = vmul.f32 %v175, %v3841
  %v4209 = vmul.f32 %v176, %v3843
  %v4210 = vmul.f32 %v177, %v3845
  %v4211 = vmul.f32 %v178, %v3847
  %v4212 = vmul.f32 %v179, %v3849
  %v4213 = vmul.f32 %v180, %v3851
  %v4214 = vmul.f32 %v181, %v3853
  %v4215 = vmul.f32 %v182, %v3855
  %v4216 = vmul.f32 %v183, %v3857
  %v4217 = vmul.f32 %v184, %v3859
  %v4218 = vmul.f32 %v185, %v3861
  %v4219 = vmul.f32 %v186, %v3863
  %v4220 = vmul.f32 %v187, %v3865
  %v4221 = vmul.f32 %v188, %v3867
  %v4222 = vmul.f32 %v189, %v3869
  %v4223 = vmul.f32 %v190, %v3871
  %v4224 = vmul.f32 %v191, %v3873
  %v4225 = vmul.f32 %v192, %v3875
  %v4226 = vmul.f32 %v193, %v3877
  %v4227 = vmul.f32 %v194, %v3879
  %v4228 = vmul.f32 %v195, %v3881
  %v4229 = vmul.f32 %v196, %v3883
  %v4230 = vmul.f32 %v197, %v3885
  %v4231 = vmul.f32 %v198, %v3887
  %v4232 = vmul.f32 %v199, %v3889
  %v4233 = vmul.f32 %v200, %v3891
  %v4234 = vmul.f32 %v201, %v3893
  %v4235 = vmul.f32 %v202, %v3895
  %v4236 = vmul.f32 %v203, %v3897
  %v4237 = vmul.f32 %v204, %v3899
  %v4238 = vmul.f32 %v205, %v3901
  %v4239 = vmul.f32 %v206, %v3903
  %v4240 = vmul.f32 %v207, %v3905
  %v4241 = vmul.f32 %v208, %v3907
  %v4242 = vmul.f32 %v209, %v3909
  %v4243 = vmul.f32 %v210, %v3911
  %v4244 = vmul.f32 %v211, %v3913
  %v4245 = vmul.f32 %v212, %v3915
  %v4246 = vmul.f32 %v213, %v3917
  %v4247 = vmul.f32 %v214, %v3919
  %v4248 = vmul.f32 %v215, %v3921
  %v4249 = vmul.f32 %v216, %v3923
  %v4250 = vmul.f32 %v217, %v3925
  %v4251 = vmul.f32 %v218, %v3927
  %v4252 = vmul.f32 %v219, %v3929
  %v4253 = vmul.f32 %v220, %v3931
  %v4254 = vmul.f32 %v221, %v3933
  %v4255 = vmul.f32 %v222, %v3935
  %v4256 = vmul.f32 %v223, %v3937
  %v4257 = vmul.f32 %v224, %v3939
  %v4258 = vmul.f32 %v225, %v3941
  %v4259 = vmul.f32 %v226, %v3943
  %v4260 = vmul.f32 %v227, %v3945
  %v4261 = vmul.f32 %v228, %v3947
  %v4262 = vmul.f32 %v229, %v3949
  %v4263 = vmul.f32 %v230, %v3951
  %v4264 = vmul.f32 %v231, %v3953
  %v4265 = vmul.f32 %v232, %v3955
  %v4266 = vmul.f32 %v233, %v3957
  %v4267 = vmul.f32 %v234, %v3959
  %v4268 = vmul.f32 %v235, %v3961
  %v4269 = vmul.f32 %v236, %v3963
  %v4270 = vmul.f32 %v237, %v3965
  %v4271 = vmul.f32 %v238, %v3967
  %v4272 = vmul.f32 %v239, %v3969
  %v4273 = vmul.f32 %v240, %v3971
  %v4274 = vmul.f32 %v241, %v3973
  %v4275 = vmul.f32 %v242, %v3975
  %v4276 = vmul.f32 %v243, %v3977
  %v4277 = vmul.f32 %v244, %v3979
  %v4278 = vmul.f32 %v245, %v3981
  %v4279 = vmul.f32 %v246, %v3983
  %v4280 = vmul.f32 %v247, %v3985
  %v4281 = vmul.f32 %v248, %v3987
  %v4282 = vmul.f32 %v249, %v3989
  %v4283 = vmul.f32 %v250, %v3991
  %v4284 = vmul.f32 %v251, %v3993
  %v4285 = vmul.f32 %v252, %v3995
  %v4286 = vmul.f32 %v253, %v3997
  %v4287 = vmul.f32 %v254, %v3999
  %v4288 = vmul.f32 %v255, %v4001
  %v4289 = vmul.f32 %v256, %v4003
  %v4290 = vmul.f32 %v257, %v4005
  %v4291 = vmul.f32 %v258, %v4007
  %v4292 = vmul.f32 %v259, %v4009
  %v4293 = vmul.f32 %v260, %v4011
  %v4294 = vmul.f32 %v261, %v4013
  %v4295 = vmul.f32 %v262, %v4015
  %v4296 = vmul.f32 %v263, %v4017
  %v4297 = vmul.f32 %v264, %v4019
  %v4298 = vmul.f32 %v265, %v4021
  %v4299 = vmul.f32 %v266, %v4023
  %v4300 = vmul.f32 %v267, %v4025
  %v4301 = vmul.f32 %v268, %v4027
  %v4302 = vmul.f32 %v269, %v4029
  %v4303 = vmul.f32 %v270, %v4031
  %v4304 = vmul.f32 %v271, %v4033
  %v4305 = vmul.f32 %v272, %v4035
  %v4306 = vmul.f32 %v273, %v4037
  %v4307 = vmul.f32 %v274, %v4039
  %v4308 = vmul.f32 %v275, %v4041
  %v4309 = vmul.f32 %v276, %v4043
  %v4310 = vmul.f32 %v277, %v4045
  %v4311 = vmul.f32 %v278, %v4047
  %v4312 = vmul.f32 %v279, %v4049
  %v4313 = vmul.f32 %v280, %v4051
  %v4314 = vmul.f32 %v281, %v4053
  %v4315 = vmul.f32 %v282, %v4055
  %v4316 = vmul.f32 %v283, %v4057
  %v4317 = vmul.f32 %v284, %v4059
  %v4318 = vmul.f32 %v285, %v4061
  %v4319 = vmul.f32 %v286, %v4063
  %v4320 = vld [vmem:[%s2 + $0x20] sm:$0xff]
  %v4321 = vld [vmem:[%s2 + $0x28] sm:$0xff]
  %v4323 = vsel %vm937, %v4192, 0
  %v4326 = vsel %vm937, %v4193, 0
  %v4329 = vsel %vm937, %v4194, 0
  %v4332 = vsel %vm937, %v4195, 0
  %v4335 = vsel %vm937, %v4196, 0
  %v4338 = vsel %vm937, %v4197, 0
  %v4341 = vsel %vm937, %v4198, 0
  %v4344 = vsel %vm937, %v4199, 0
  %v4347 = vsel %vm937, %v4200, 0
  %v4350 = vsel %vm937, %v4201, 0
  %v4353 = vsel %vm937, %v4202, 0
  %v4356 = vsel %vm937, %v4203, 0
  %v4359 = vsel %vm937, %v4204, 0
  %v4362 = vsel %vm937, %v4205, 0
  %v4365 = vsel %vm937, %v4206, 0
  %v4368 = vsel %vm937, %v4207, 0
  %v4371 = vsel %vm937, %v4208, 0
  %v4374 = vsel %vm937, %v4209, 0
  %v4377 = vsel %vm937, %v4210, 0
  %v4380 = vsel %vm937, %v4211, 0
  %v4383 = vsel %vm937, %v4212, 0
  %v4386 = vsel %vm937, %v4213, 0
  %v4389 = vsel %vm937, %v4214, 0
  %v4392 = vsel %vm937, %v4215, 0
  %v4395 = vsel %vm937, %v4216, 0
  %v4398 = vsel %vm937, %v4217, 0
  %v4401 = vsel %vm937, %v4218, 0
  %v4404 = vsel %vm937, %v4219, 0
  %v4407 = vsel %vm937, %v4220, 0
  %v4410 = vsel %vm937, %v4221, 0
  %v4413 = vsel %vm937, %v4222, 0
  %v4416 = vsel %vm937, %v4223, 0
  %v4419 = vsel %vm937, %v4224, 0
  %v4422 = vsel %vm937, %v4225, 0
  %v4425 = vsel %vm937, %v4226, 0
  %v4428 = vsel %vm937, %v4227, 0
  %v4431 = vsel %vm937, %v4228, 0
  %v4434 = vsel %vm937, %v4229, 0
  %v4437 = vsel %vm937, %v4230, 0
  %v4440 = vsel %vm937, %v4231, 0
  %v4443 = vsel %vm937, %v4232, 0
  %v4446 = vsel %vm937, %v4233, 0
  %v4449 = vsel %vm937, %v4234, 0
  %v4452 = vsel %vm937, %v4235, 0
  %v4455 = vsel %vm937, %v4236, 0
  %v4458 = vsel %vm937, %v4237, 0
  %v4461 = vsel %vm937, %v4238, 0
  %v4464 = vsel %vm937, %v4239, 0
  %v4467 = vsel %vm937, %v4240, 0
  %v4470 = vsel %vm937, %v4241, 0
  %v4473 = vsel %vm937, %v4242, 0
  %v4476 = vsel %vm937, %v4243, 0
  %v4479 = vsel %vm937, %v4244, 0
  %v4482 = vsel %vm937, %v4245, 0
  %v4485 = vsel %vm937, %v4246, 0
  %v4488 = vsel %vm937, %v4247, 0
  %v4491 = vsel %vm937, %v4248, 0
  %v4494 = vsel %vm937, %v4249, 0
  %v4497 = vsel %vm937, %v4250, 0
  %v4500 = vsel %vm937, %v4251, 0
  %v4503 = vsel %vm937, %v4252, 0
  %v4506 = vsel %vm937, %v4253, 0
  %v4509 = vsel %vm937, %v4254, 0
  %v4512 = vsel %vm937, %v4255, 0
  %v4515 = vsel %vm937, %v4256, 0
  %v4518 = vsel %vm937, %v4257, 0
  %v4521 = vsel %vm937, %v4258, 0
  %v4524 = vsel %vm937, %v4259, 0
  %v4527 = vsel %vm937, %v4260, 0
  %v4530 = vsel %vm937, %v4261, 0
  %v4533 = vsel %vm937, %v4262, 0
  %v4536 = vsel %vm937, %v4263, 0
  %v4539 = vsel %vm937, %v4264, 0
  %v4542 = vsel %vm937, %v4265, 0
  %v4545 = vsel %vm937, %v4266, 0
  %v4548 = vsel %vm937, %v4267, 0
  %v4551 = vsel %vm937, %v4268, 0
  %v4554 = vsel %vm937, %v4269, 0
  %v4557 = vsel %vm937, %v4270, 0
  %v4560 = vsel %vm937, %v4271, 0
  %v4563 = vsel %vm937, %v4272, 0
  %v4566 = vsel %vm937, %v4273, 0
  %v4569 = vsel %vm937, %v4274, 0
  %v4572 = vsel %vm937, %v4275, 0
  %v4575 = vsel %vm937, %v4276, 0
  %v4578 = vsel %vm937, %v4277, 0
  %v4581 = vsel %vm937, %v4278, 0
  %v4584 = vsel %vm937, %v4279, 0
  %v4587 = vsel %vm937, %v4280, 0
  %v4590 = vsel %vm937, %v4281, 0
  %v4593 = vsel %vm937, %v4282, 0
  %v4596 = vsel %vm937, %v4283, 0
  %v4599 = vsel %vm937, %v4284, 0
  %v4602 = vsel %vm937, %v4285, 0
  %v4605 = vsel %vm937, %v4286, 0
  %v4608 = vsel %vm937, %v4287, 0
  %v4611 = vsel %vm937, %v4288, 0
  %v4614 = vsel %vm937, %v4289, 0
  %v4617 = vsel %vm937, %v4290, 0
  %v4620 = vsel %vm937, %v4291, 0
  %v4623 = vsel %vm937, %v4292, 0
  %v4626 = vsel %vm937, %v4293, 0
  %v4629 = vsel %vm937, %v4294, 0
  %v4632 = vsel %vm937, %v4295, 0
  %v4635 = vsel %vm937, %v4296, 0
  %v4638 = vsel %vm937, %v4297, 0
  %v4641 = vsel %vm937, %v4298, 0
  %v4644 = vsel %vm937, %v4299, 0
  %v4647 = vsel %vm937, %v4300, 0
  %v4650 = vsel %vm937, %v4301, 0
  %v4653 = vsel %vm937, %v4302, 0
  %v4656 = vsel %vm937, %v4303, 0
  %v4659 = vsel %vm937, %v4304, 0
  %v4662 = vsel %vm937, %v4305, 0
  %v4665 = vsel %vm937, %v4306, 0
  %v4668 = vsel %vm937, %v4307, 0
  %v4671 = vsel %vm937, %v4308, 0
  %v4674 = vsel %vm937, %v4309, 0
  %v4677 = vsel %vm937, %v4310, 0
  %v4680 = vsel %vm937, %v4311, 0
  %v4683 = vsel %vm937, %v4312, 0
  %v4686 = vsel %vm937, %v4313, 0
  %v4689 = vsel %vm937, %v4314, 0
  %v4692 = vsel %vm937, %v4315, 0
  %v4695 = vsel %vm937, %v4316, 0
  %v4698 = vsel %vm937, %v4317, 0
  %v4701 = vsel %vm937, %v4318, 0
  %v4704 = vsel %vm937, %v4319, 0
  %4706 = vmatpush.msra.mxu0 0.0
  %4707 = vmatpush.msra.mxu0 0.0
  %4708 = vmatpush.msra.mxu0 0.0
  %4709 = vmatpush.msra.mxu0 0.0
  %4710 = vmatpush.msra.mxu0 0.0
  %4711 = vmatpush.msra.mxu0 0.0
  %4712 = vmatpush.msra.mxu0 0.0
  %4713 = vmatpush.msra.mxu0 0.0
  %4714 = vmatpush.msra.mxu0 0.0
  %4715 = vmatpush.msra.mxu0 0.0
  %4716 = vmatpush.msra.mxu0 0.0
  %4717 = vmatpush.msra.mxu0 0.0
  %4718 = vmatpush.msra.mxu0 0.0
  %4719 = vmatpush.msra.mxu0 0.0
  %4720 = vmatpush.msra.mxu0 %v4321
  %4721 = vmatpush.msra.mxu0 %v4320
  %4722 = vmatmul.f32.gmra.mxu0 %v4323
  %v4723 = vpop.f32.mrf.mxu0
  %v4724 = vadd.f32 0.0, %v4723
  %4725 = vmatmul.f32.gmra.mxu0 %v4326
  %v4726 = vpop.f32.mrf.mxu0
  %v4727 = vadd.f32 0.0, %v4726
  %4728 = vmatmul.f32.gmra.mxu0 %v4329
  %v4729 = vpop.f32.mrf.mxu0
  %v4730 = vadd.f32 0.0, %v4729
  %4731 = vmatmul.f32.gmra.mxu0 %v4332
  %v4732 = vpop.f32.mrf.mxu0
  %v4733 = vadd.f32 0.0, %v4732
  %4734 = vmatmul.f32.gmra.mxu0 %v4335
  %v4735 = vpop.f32.mrf.mxu0
  %v4736 = vadd.f32 0.0, %v4735
  %4737 = vmatmul.f32.gmra.mxu0 %v4338
  %v4738 = vpop.f32.mrf.mxu0
  %v4739 = vadd.f32 0.0, %v4738
  %4740 = vmatmul.f32.gmra.mxu0 %v4341
  %v4741 = vpop.f32.mrf.mxu0
  %v4742 = vadd.f32 0.0, %v4741
  %4743 = vmatmul.f32.gmra.mxu0 %v4344
  %v4744 = vpop.f32.mrf.mxu0
  %v4745 = vadd.f32 0.0, %v4744
  %4746 = vmatmul.f32.gmra.mxu0 %v4347
  %v4747 = vpop.f32.mrf.mxu0
  %v4748 = vadd.f32 0.0, %v4747
  %4749 = vmatmul.f32.gmra.mxu0 %v4350
  %v4750 = vpop.f32.mrf.mxu0
  %v4751 = vadd.f32 0.0, %v4750
  %4752 = vmatmul.f32.gmra.mxu0 %v4353
  %v4753 = vpop.f32.mrf.mxu0
  %v4754 = vadd.f32 0.0, %v4753
  %4755 = vmatmul.f32.gmra.mxu0 %v4356
  %v4756 = vpop.f32.mrf.mxu0
  %v4757 = vadd.f32 0.0, %v4756
  %4758 = vmatmul.f32.gmra.mxu0 %v4359
  %v4759 = vpop.f32.mrf.mxu0
  %v4760 = vadd.f32 0.0, %v4759
  %4761 = vmatmul.f32.gmra.mxu0 %v4362
  %v4762 = vpop.f32.mrf.mxu0
  %v4763 = vadd.f32 0.0, %v4762
  %4764 = vmatmul.f32.gmra.mxu0 %v4365
  %v4765 = vpop.f32.mrf.mxu0
  %v4766 = vadd.f32 0.0, %v4765
  %4767 = vmatmul.f32.gmra.mxu0 %v4368
  %v4768 = vpop.f32.mrf.mxu0
  %v4769 = vadd.f32 0.0, %v4768
  %4770 = vmatmul.f32.gmra.mxu0 %v4371
  %v4771 = vpop.f32.mrf.mxu0
  %v4772 = vadd.f32 0.0, %v4771
  %4773 = vmatmul.f32.gmra.mxu0 %v4374
  %v4774 = vpop.f32.mrf.mxu0
  %v4775 = vadd.f32 0.0, %v4774
  %4776 = vmatmul.f32.gmra.mxu0 %v4377
  %v4777 = vpop.f32.mrf.mxu0
  %v4778 = vadd.f32 0.0, %v4777
  %4779 = vmatmul.f32.gmra.mxu0 %v4380
  %v4780 = vpop.f32.mrf.mxu0
  %v4781 = vadd.f32 0.0, %v4780
  %4782 = vmatmul.f32.gmra.mxu0 %v4383
  %v4783 = vpop.f32.mrf.mxu0
  %v4784 = vadd.f32 0.0, %v4783
  %4785 = vmatmul.f32.gmra.mxu0 %v4386
  %v4786 = vpop.f32.mrf.mxu0
  %v4787 = vadd.f32 0.0, %v4786
  %4788 = vmatmul.f32.gmra.mxu0 %v4389
  %v4789 = vpop.f32.mrf.mxu0
  %v4790 = vadd.f32 0.0, %v4789
  %4791 = vmatmul.f32.gmra.mxu0 %v4392
  %v4792 = vpop.f32.mrf.mxu0
  %v4793 = vadd.f32 0.0, %v4792
  %4794 = vmatmul.f32.gmra.mxu0 %v4395
  %v4795 = vpop.f32.mrf.mxu0
  %v4796 = vadd.f32 0.0, %v4795
  %4797 = vmatmul.f32.gmra.mxu0 %v4398
  %v4798 = vpop.f32.mrf.mxu0
  %v4799 = vadd.f32 0.0, %v4798
  %4800 = vmatmul.f32.gmra.mxu0 %v4401
  %v4801 = vpop.f32.mrf.mxu0
  %v4802 = vadd.f32 0.0, %v4801
  %4803 = vmatmul.f32.gmra.mxu0 %v4404
  %v4804 = vpop.f32.mrf.mxu0
  %v4805 = vadd.f32 0.0, %v4804
  %4806 = vmatmul.f32.gmra.mxu0 %v4407
  %v4807 = vpop.f32.mrf.mxu0
  %v4808 = vadd.f32 0.0, %v4807
  %4809 = vmatmul.f32.gmra.mxu0 %v4410
  %v4810 = vpop.f32.mrf.mxu0
  %v4811 = vadd.f32 0.0, %v4810
  %4812 = vmatmul.f32.gmra.mxu0 %v4413
  %v4813 = vpop.f32.mrf.mxu0
  %v4814 = vadd.f32 0.0, %v4813
  %4815 = vmatmul.f32.gmra.mxu0 %v4416
  %v4816 = vpop.f32.mrf.mxu0
  %v4817 = vadd.f32 0.0, %v4816
  %4818 = vmatmul.f32.gmra.mxu0 %v4419
  %v4819 = vpop.f32.mrf.mxu0
  %v4820 = vadd.f32 0.0, %v4819
  %4821 = vmatmul.f32.gmra.mxu0 %v4422
  %v4822 = vpop.f32.mrf.mxu0
  %v4823 = vadd.f32 0.0, %v4822
  %4824 = vmatmul.f32.gmra.mxu0 %v4425
  %v4825 = vpop.f32.mrf.mxu0
  %v4826 = vadd.f32 0.0, %v4825
  %4827 = vmatmul.f32.gmra.mxu0 %v4428
  %v4828 = vpop.f32.mrf.mxu0
  %v4829 = vadd.f32 0.0, %v4828
  %4830 = vmatmul.f32.gmra.mxu0 %v4431
  %v4831 = vpop.f32.mrf.mxu0
  %v4832 = vadd.f32 0.0, %v4831
  %4833 = vmatmul.f32.gmra.mxu0 %v4434
  %v4834 = vpop.f32.mrf.mxu0
  %v4835 = vadd.f32 0.0, %v4834
  %4836 = vmatmul.f32.gmra.mxu0 %v4437
  %v4837 = vpop.f32.mrf.mxu0
  %v4838 = vadd.f32 0.0, %v4837
  %4839 = vmatmul.f32.gmra.mxu0 %v4440
  %v4840 = vpop.f32.mrf.mxu0
  %v4841 = vadd.f32 0.0, %v4840
  %4842 = vmatmul.f32.gmra.mxu0 %v4443
  %v4843 = vpop.f32.mrf.mxu0
  %v4844 = vadd.f32 0.0, %v4843
  %4845 = vmatmul.f32.gmra.mxu0 %v4446
  %v4846 = vpop.f32.mrf.mxu0
  %v4847 = vadd.f32 0.0, %v4846
  %4848 = vmatmul.f32.gmra.mxu0 %v4449
  %v4849 = vpop.f32.mrf.mxu0
  %v4850 = vadd.f32 0.0, %v4849
  %4851 = vmatmul.f32.gmra.mxu0 %v4452
  %v4852 = vpop.f32.mrf.mxu0
  %v4853 = vadd.f32 0.0, %v4852
  %4854 = vmatmul.f32.gmra.mxu0 %v4455
  %v4855 = vpop.f32.mrf.mxu0
  %v4856 = vadd.f32 0.0, %v4855
  %4857 = vmatmul.f32.gmra.mxu0 %v4458
  %v4858 = vpop.f32.mrf.mxu0
  %v4859 = vadd.f32 0.0, %v4858
  %4860 = vmatmul.f32.gmra.mxu0 %v4461
  %v4861 = vpop.f32.mrf.mxu0
  %v4862 = vadd.f32 0.0, %v4861
  %4863 = vmatmul.f32.gmra.mxu0 %v4464
  %v4864 = vpop.f32.mrf.mxu0
  %v4865 = vadd.f32 0.0, %v4864
  %4866 = vmatmul.f32.gmra.mxu0 %v4467
  %v4867 = vpop.f32.mrf.mxu0
  %v4868 = vadd.f32 0.0, %v4867
  %4869 = vmatmul.f32.gmra.mxu0 %v4470
  %v4870 = vpop.f32.mrf.mxu0
  %v4871 = vadd.f32 0.0, %v4870
  %4872 = vmatmul.f32.gmra.mxu0 %v4473
  %v4873 = vpop.f32.mrf.mxu0
  %v4874 = vadd.f32 0.0, %v4873
  %4875 = vmatmul.f32.gmra.mxu0 %v4476
  %v4876 = vpop.f32.mrf.mxu0
  %v4877 = vadd.f32 0.0, %v4876
  %4878 = vmatmul.f32.gmra.mxu0 %v4479
  %v4879 = vpop.f32.mrf.mxu0
  %v4880 = vadd.f32 0.0, %v4879
  %4881 = vmatmul.f32.gmra.mxu0 %v4482
  %v4882 = vpop.f32.mrf.mxu0
  %v4883 = vadd.f32 0.0, %v4882
  %4884 = vmatmul.f32.gmra.mxu0 %v4485
  %v4885 = vpop.f32.mrf.mxu0
  %v4886 = vadd.f32 0.0, %v4885
  %4887 = vmatmul.f32.gmra.mxu0 %v4488
  %v4888 = vpop.f32.mrf.mxu0
  %v4889 = vadd.f32 0.0, %v4888
  %4890 = vmatmul.f32.gmra.mxu0 %v4491
  %v4891 = vpop.f32.mrf.mxu0
  %v4892 = vadd.f32 0.0, %v4891
  %4893 = vmatmul.f32.gmra.mxu0 %v4494
  %v4894 = vpop.f32.mrf.mxu0
  %v4895 = vadd.f32 0.0, %v4894
  %4896 = vmatmul.f32.gmra.mxu0 %v4497
  %v4897 = vpop.f32.mrf.mxu0
  %v4898 = vadd.f32 0.0, %v4897
  %4899 = vmatmul.f32.gmra.mxu0 %v4500
  %v4900 = vpop.f32.mrf.mxu0
  %v4901 = vadd.f32 0.0, %v4900
  %4902 = vmatmul.f32.gmra.mxu0 %v4503
  %v4903 = vpop.f32.mrf.mxu0
  %v4904 = vadd.f32 0.0, %v4903
  %4905 = vmatmul.f32.gmra.mxu0 %v4506
  %v4906 = vpop.f32.mrf.mxu0
  %v4907 = vadd.f32 0.0, %v4906
  %4908 = vmatmul.f32.gmra.mxu0 %v4509
  %v4909 = vpop.f32.mrf.mxu0
  %v4910 = vadd.f32 0.0, %v4909
  %4911 = vmatmul.f32.gmra.mxu0 %v4512
  %v4912 = vpop.f32.mrf.mxu0
  %v4913 = vadd.f32 0.0, %v4912
  %4914 = vmatmul.f32.gmra.mxu0 %v4515
  %v4915 = vpop.f32.mrf.mxu0
  %v4916 = vadd.f32 0.0, %v4915
  %4917 = vmatmul.f32.gmra.mxu0 %v4518
  %v4918 = vpop.f32.mrf.mxu0
  %v4919 = vadd.f32 0.0, %v4918
  %4920 = vmatmul.f32.gmra.mxu0 %v4521
  %v4921 = vpop.f32.mrf.mxu0
  %v4922 = vadd.f32 0.0, %v4921
  %4923 = vmatmul.f32.gmra.mxu0 %v4524
  %v4924 = vpop.f32.mrf.mxu0
  %v4925 = vadd.f32 0.0, %v4924
  %4926 = vmatmul.f32.gmra.mxu0 %v4527
  %v4927 = vpop.f32.mrf.mxu0
  %v4928 = vadd.f32 0.0, %v4927
  %4929 = vmatmul.f32.gmra.mxu0 %v4530
  %v4930 = vpop.f32.mrf.mxu0
  %v4931 = vadd.f32 0.0, %v4930
  %4932 = vmatmul.f32.gmra.mxu0 %v4533
  %v4933 = vpop.f32.mrf.mxu0
  %v4934 = vadd.f32 0.0, %v4933
  %4935 = vmatmul.f32.gmra.mxu0 %v4536
  %v4936 = vpop.f32.mrf.mxu0
  %v4937 = vadd.f32 0.0, %v4936
  %4938 = vmatmul.f32.gmra.mxu0 %v4539
  %v4939 = vpop.f32.mrf.mxu0
  %v4940 = vadd.f32 0.0, %v4939
  %4941 = vmatmul.f32.gmra.mxu0 %v4542
  %v4942 = vpop.f32.mrf.mxu0
  %v4943 = vadd.f32 0.0, %v4942
  %4944 = vmatmul.f32.gmra.mxu0 %v4545
  %v4945 = vpop.f32.mrf.mxu0
  %v4946 = vadd.f32 0.0, %v4945
  %4947 = vmatmul.f32.gmra.mxu0 %v4548
  %v4948 = vpop.f32.mrf.mxu0
  %v4949 = vadd.f32 0.0, %v4948
  %4950 = vmatmul.f32.gmra.mxu0 %v4551
  %v4951 = vpop.f32.mrf.mxu0
  %v4952 = vadd.f32 0.0, %v4951
  %4953 = vmatmul.f32.gmra.mxu0 %v4554
  %v4954 = vpop.f32.mrf.mxu0
  %v4955 = vadd.f32 0.0, %v4954
  %4956 = vmatmul.f32.gmra.mxu0 %v4557
  %v4957 = vpop.f32.mrf.mxu0
  %v4958 = vadd.f32 0.0, %v4957
  %4959 = vmatmul.f32.gmra.mxu0 %v4560
  %v4960 = vpop.f32.mrf.mxu0
  %v4961 = vadd.f32 0.0, %v4960
  %4962 = vmatmul.f32.gmra.mxu0 %v4563
  %v4963 = vpop.f32.mrf.mxu0
  %v4964 = vadd.f32 0.0, %v4963
  %4965 = vmatmul.f32.gmra.mxu0 %v4566
  %v4966 = vpop.f32.mrf.mxu0
  %v4967 = vadd.f32 0.0, %v4966
  %4968 = vmatmul.f32.gmra.mxu0 %v4569
  %v4969 = vpop.f32.mrf.mxu0
  %v4970 = vadd.f32 0.0, %v4969
  %4971 = vmatmul.f32.gmra.mxu0 %v4572
  %v4972 = vpop.f32.mrf.mxu0
  %v4973 = vadd.f32 0.0, %v4972
  %4974 = vmatmul.f32.gmra.mxu0 %v4575
  %v4975 = vpop.f32.mrf.mxu0
  %v4976 = vadd.f32 0.0, %v4975
  %4977 = vmatmul.f32.gmra.mxu0 %v4578
  %v4978 = vpop.f32.mrf.mxu0
  %v4979 = vadd.f32 0.0, %v4978
  %4980 = vmatmul.f32.gmra.mxu0 %v4581
  %v4981 = vpop.f32.mrf.mxu0
  %v4982 = vadd.f32 0.0, %v4981
  %4983 = vmatmul.f32.gmra.mxu0 %v4584
  %v4984 = vpop.f32.mrf.mxu0
  %v4985 = vadd.f32 0.0, %v4984
  %4986 = vmatmul.f32.gmra.mxu0 %v4587
  %v4987 = vpop.f32.mrf.mxu0
  %v4988 = vadd.f32 0.0, %v4987
  %4989 = vmatmul.f32.gmra.mxu0 %v4590
  %v4990 = vpop.f32.mrf.mxu0
  %v4991 = vadd.f32 0.0, %v4990
  %4992 = vmatmul.f32.gmra.mxu0 %v4593
  %v4993 = vpop.f32.mrf.mxu0
  %v4994 = vadd.f32 0.0, %v4993
  %4995 = vmatmul.f32.gmra.mxu0 %v4596
  %v4996 = vpop.f32.mrf.mxu0
  %v4997 = vadd.f32 0.0, %v4996
  %4998 = vmatmul.f32.gmra.mxu0 %v4599
  %v4999 = vpop.f32.mrf.mxu0
  %v5000 = vadd.f32 0.0, %v4999
  %5001 = vmatmul.f32.gmra.mxu0 %v4602
  %v5002 = vpop.f32.mrf.mxu0
  %v5003 = vadd.f32 0.0, %v5002
  %5004 = vmatmul.f32.gmra.mxu0 %v4605
  %v5005 = vpop.f32.mrf.mxu0
  %v5006 = vadd.f32 0.0, %v5005
  %5007 = vmatmul.f32.gmra.mxu0 %v4608
  %v5008 = vpop.f32.mrf.mxu0
  %v5009 = vadd.f32 0.0, %v5008
  %5010 = vmatmul.f32.gmra.mxu0 %v4611
  %v5011 = vpop.f32.mrf.mxu0
  %v5012 = vadd.f32 0.0, %v5011
  %5013 = vmatmul.f32.gmra.mxu0 %v4614
  %v5014 = vpop.f32.mrf.mxu0
  %v5015 = vadd.f32 0.0, %v5014
  %5016 = vmatmul.f32.gmra.mxu0 %v4617
  %v5017 = vpop.f32.mrf.mxu0
  %v5018 = vadd.f32 0.0, %v5017
  %5019 = vmatmul.f32.gmra.mxu0 %v4620
  %v5020 = vpop.f32.mrf.mxu0
  %v5021 = vadd.f32 0.0, %v5020
  %5022 = vmatmul.f32.gmra.mxu0 %v4623
  %v5023 = vpop.f32.mrf.mxu0
  %v5024 = vadd.f32 0.0, %v5023
  %5025 = vmatmul.f32.gmra.mxu0 %v4626
  %v5026 = vpop.f32.mrf.mxu0
  %v5027 = vadd.f32 0.0, %v5026
  %5028 = vmatmul.f32.gmra.mxu0 %v4629
  %v5029 = vpop.f32.mrf.mxu0
  %v5030 = vadd.f32 0.0, %v5029
  %5031 = vmatmul.f32.gmra.mxu0 %v4632
  %v5032 = vpop.f32.mrf.mxu0
  %v5033 = vadd.f32 0.0, %v5032
  %5034 = vmatmul.f32.gmra.mxu0 %v4635
  %v5035 = vpop.f32.mrf.mxu0
  %v5036 = vadd.f32 0.0, %v5035
  %5037 = vmatmul.f32.gmra.mxu0 %v4638
  %v5038 = vpop.f32.mrf.mxu0
  %v5039 = vadd.f32 0.0, %v5038
  %5040 = vmatmul.f32.gmra.mxu0 %v4641
  %v5041 = vpop.f32.mrf.mxu0
  %v5042 = vadd.f32 0.0, %v5041
  %5043 = vmatmul.f32.gmra.mxu0 %v4644
  %v5044 = vpop.f32.mrf.mxu0
  %v5045 = vadd.f32 0.0, %v5044
  %5046 = vmatmul.f32.gmra.mxu0 %v4647
  %v5047 = vpop.f32.mrf.mxu0
  %v5048 = vadd.f32 0.0, %v5047
  %5049 = vmatmul.f32.gmra.mxu0 %v4650
  %v5050 = vpop.f32.mrf.mxu0
  %v5051 = vadd.f32 0.0, %v5050
  %5052 = vmatmul.f32.gmra.mxu0 %v4653
  %v5053 = vpop.f32.mrf.mxu0
  %v5054 = vadd.f32 0.0, %v5053
  %5055 = vmatmul.f32.gmra.mxu0 %v4656
  %v5056 = vpop.f32.mrf.mxu0
  %v5057 = vadd.f32 0.0, %v5056
  %5058 = vmatmul.f32.gmra.mxu0 %v4659
  %v5059 = vpop.f32.mrf.mxu0
  %v5060 = vadd.f32 0.0, %v5059
  %5061 = vmatmul.f32.gmra.mxu0 %v4662
  %v5062 = vpop.f32.mrf.mxu0
  %v5063 = vadd.f32 0.0, %v5062
  %5064 = vmatmul.f32.gmra.mxu0 %v4665
  %v5065 = vpop.f32.mrf.mxu0
  %v5066 = vadd.f32 0.0, %v5065
  %5067 = vmatmul.f32.gmra.mxu0 %v4668
  %v5068 = vpop.f32.mrf.mxu0
  %v5069 = vadd.f32 0.0, %v5068
  %5070 = vmatmul.f32.gmra.mxu0 %v4671
  %v5071 = vpop.f32.mrf.mxu0
  %v5072 = vadd.f32 0.0, %v5071
  %5073 = vmatmul.f32.gmra.mxu0 %v4674
  %v5074 = vpop.f32.mrf.mxu0
  %v5075 = vadd.f32 0.0, %v5074
  %5076 = vmatmul.f32.gmra.mxu0 %v4677
  %v5077 = vpop.f32.mrf.mxu0
  %v5078 = vadd.f32 0.0, %v5077
  %5079 = vmatmul.f32.gmra.mxu0 %v4680
  %v5080 = vpop.f32.mrf.mxu0
  %v5081 = vadd.f32 0.0, %v5080
  %5082 = vmatmul.f32.gmra.mxu0 %v4683
  %v5083 = vpop.f32.mrf.mxu0
  %v5084 = vadd.f32 0.0, %v5083
  %5085 = vmatmul.f32.gmra.mxu0 %v4686
  %v5086 = vpop.f32.mrf.mxu0
  %v5087 = vadd.f32 0.0, %v5086
  %5088 = vmatmul.f32.gmra.mxu0 %v4689
  %v5089 = vpop.f32.mrf.mxu0
  %v5090 = vadd.f32 0.0, %v5089
  %5091 = vmatmul.f32.gmra.mxu0 %v4692
  %v5092 = vpop.f32.mrf.mxu0
  %v5093 = vadd.f32 0.0, %v5092
  %5094 = vmatmul.f32.gmra.mxu0 %v4695
  %v5095 = vpop.f32.mrf.mxu0
  %v5096 = vadd.f32 0.0, %v5095
  %5097 = vmatmul.f32.gmra.mxu0 %v4698
  %v5098 = vpop.f32.mrf.mxu0
  %v5099 = vadd.f32 0.0, %v5098
  %5100 = vmatmul.f32.gmra.mxu0 %v4701
  %v5101 = vpop.f32.mrf.mxu0
  %v5102 = vadd.f32 0.0, %v5101
  %5103 = vmatmul.f32.gmra.mxu0 %v4704
  %v5104 = vpop.f32.mrf.mxu0
  %v5105 = vadd.f32 0.0, %v5104
  %5106 = vdwg.mxu0
  %v5107 = vadd.f32 %v3680, %v4724
  %v5108 = vadd.f32 %v3681, %v4727
  %v5109 = vadd.f32 %v3682, %v4730
  %v5110 = vadd.f32 %v3683, %v4733
  %v5111 = vadd.f32 %v3684, %v4736
  %v5112 = vadd.f32 %v3685, %v4739
  %v5113 = vadd.f32 %v3686, %v4742
  %v5114 = vadd.f32 %v3687, %v4745
  %v5115 = vadd.f32 %v3688, %v4748
  %v5116 = vadd.f32 %v3689, %v4751
  %v5117 = vadd.f32 %v3690, %v4754
  %v5118 = vadd.f32 %v3691, %v4757
  %v5119 = vadd.f32 %v3692, %v4760
  %v5120 = vadd.f32 %v3693, %v4763
  %v5121 = vadd.f32 %v3694, %v4766
  %v5122 = vadd.f32 %v3695, %v4769
  %v5123 = vadd.f32 %v3696, %v4772
  %v5124 = vadd.f32 %v3697, %v4775
  %v5125 = vadd.f32 %v3698, %v4778
  %v5126 = vadd.f32 %v3699, %v4781
  %v5127 = vadd.f32 %v3700, %v4784
  %v5128 = vadd.f32 %v3701, %v4787
  %v5129 = vadd.f32 %v3702, %v4790
  %v5130 = vadd.f32 %v3703, %v4793
  %v5131 = vadd.f32 %v3704, %v4796
  %v5132 = vadd.f32 %v3705, %v4799
  %v5133 = vadd.f32 %v3706, %v4802
  %v5134 = vadd.f32 %v3707, %v4805
  %v5135 = vadd.f32 %v3708, %v4808
  %v5136 = vadd.f32 %v3709, %v4811
  %v5137 = vadd.f32 %v3710, %v4814
  %v5138 = vadd.f32 %v3711, %v4817
  %v5139 = vadd.f32 %v3712, %v4820
  %v5140 = vadd.f32 %v3713, %v4823
  %v5141 = vadd.f32 %v3714, %v4826
  %v5142 = vadd.f32 %v3715, %v4829
  %v5143 = vadd.f32 %v3716, %v4832
  %v5144 = vadd.f32 %v3717, %v4835
  %v5145 = vadd.f32 %v3718, %v4838
  %v5146 = vadd.f32 %v3719, %v4841
  %v5147 = vadd.f32 %v3720, %v4844
  %v5148 = vadd.f32 %v3721, %v4847
  %v5149 = vadd.f32 %v3722, %v4850
  %v5150 = vadd.f32 %v3723, %v4853
  %v5151 = vadd.f32 %v3724, %v4856
  %v5152 = vadd.f32 %v3725, %v4859
  %v5153 = vadd.f32 %v3726, %v4862
  %v5154 = vadd.f32 %v3727, %v4865
  %v5155 = vadd.f32 %v3728, %v4868
  %v5156 = vadd.f32 %v3729, %v4871
  %v5157 = vadd.f32 %v3730, %v4874
  %v5158 = vadd.f32 %v3731, %v4877
  %v5159 = vadd.f32 %v3732, %v4880
  %v5160 = vadd.f32 %v3733, %v4883
  %v5161 = vadd.f32 %v3734, %v4886
  %v5162 = vadd.f32 %v3735, %v4889
  %v5163 = vadd.f32 %v3736, %v4892
  %v5164 = vadd.f32 %v3737, %v4895
  %v5165 = vadd.f32 %v3738, %v4898
  %v5166 = vadd.f32 %v3739, %v4901
  %v5167 = vadd.f32 %v3740, %v4904
  %v5168 = vadd.f32 %v3741, %v4907
  %v5169 = vadd.f32 %v3742, %v4910
  %v5170 = vadd.f32 %v3743, %v4913
  %v5171 = vadd.f32 %v3744, %v4916
  %v5172 = vadd.f32 %v3745, %v4919
  %v5173 = vadd.f32 %v3746, %v4922
  %v5174 = vadd.f32 %v3747, %v4925
  %v5175 = vadd.f32 %v3748, %v4928
  %v5176 = vadd.f32 %v3749, %v4931
  %v5177 = vadd.f32 %v3750, %v4934
  %v5178 = vadd.f32 %v3751, %v4937
  %v5179 = vadd.f32 %v3752, %v4940
  %v5180 = vadd.f32 %v3753, %v4943
  %v5181 = vadd.f32 %v3754, %v4946
  %v5182 = vadd.f32 %v3755, %v4949
  %v5183 = vadd.f32 %v3756, %v4952
  %v5184 = vadd.f32 %v3757, %v4955
  %v5185 = vadd.f32 %v3758, %v4958
  %v5186 = vadd.f32 %v3759, %v4961
  %v5187 = vadd.f32 %v3760, %v4964
  %v5188 = vadd.f32 %v3761, %v4967
  %v5189 = vadd.f32 %v3762, %v4970
  %v5190 = vadd.f32 %v3763, %v4973
  %v5191 = vadd.f32 %v3764, %v4976
  %v5192 = vadd.f32 %v3765, %v4979
  %v5193 = vadd.f32 %v3766, %v4982
  %v5194 = vadd.f32 %v3767, %v4985
  %v5195 = vadd.f32 %v3768, %v4988
  %v5196 = vadd.f32 %v3769, %v4991
  %v5197 = vadd.f32 %v3770, %v4994
  %v5198 = vadd.f32 %v3771, %v4997
  %v5199 = vadd.f32 %v3772, %v5000
  %v5200 = vadd.f32 %v3773, %v5003
  %v5201 = vadd.f32 %v3774, %v5006
  %v5202 = vadd.f32 %v3775, %v5009
  %v5203 = vadd.f32 %v3776, %v5012
  %v5204 = vadd.f32 %v3777, %v5015
  %v5205 = vadd.f32 %v3778, %v5018
  %v5206 = vadd.f32 %v3779, %v5021
  %v5207 = vadd.f32 %v3780, %v5024
  %v5208 = vadd.f32 %v3781, %v5027
  %v5209 = vadd.f32 %v3782, %v5030
  %v5210 = vadd.f32 %v3783, %v5033
  %v5211 = vadd.f32 %v3784, %v5036
  %v5212 = vadd.f32 %v3785, %v5039
  %v5213 = vadd.f32 %v3786, %v5042
  %v5214 = vadd.f32 %v3787, %v5045
  %v5215 = vadd.f32 %v3788, %v5048
  %v5216 = vadd.f32 %v3789, %v5051
  %v5217 = vadd.f32 %v3790, %v5054
  %v5218 = vadd.f32 %v3791, %v5057
  %v5219 = vadd.f32 %v3792, %v5060
  %v5220 = vadd.f32 %v3793, %v5063
  %v5221 = vadd.f32 %v3794, %v5066
  %v5222 = vadd.f32 %v3795, %v5069
  %v5223 = vadd.f32 %v3796, %v5072
  %v5224 = vadd.f32 %v3797, %v5075
  %v5225 = vadd.f32 %v3798, %v5078
  %v5226 = vadd.f32 %v3799, %v5081
  %v5227 = vadd.f32 %v3800, %v5084
  %v5228 = vadd.f32 %v3801, %v5087
  %v5229 = vadd.f32 %v3802, %v5090
  %v5230 = vadd.f32 %v3803, %v5093
  %v5231 = vadd.f32 %v3804, %v5096
  %v5232 = vadd.f32 %v3805, %v5099
  %v5233 = vadd.f32 %v3806, %v5102
  %v5234 = vadd.f32 %v3807, %v5105
  %v5235 = vld [vmem:[%s2 + $0x30] sm:$0xff]
  %v5236 = vld [vmem:[%s2 + $0x38] sm:$0xff]
  %5237 = vrot.lane.b32.xlu0 %v807, 112
  %v5238 = vpop.permute.xlu0 %5237
  %5239 = vrot.lane.b32.xlu0 %v808, 112
  %v5240 = vpop.permute.xlu0 %5239
  %5241 = vrot.lane.b32.xlu0 %v809, 112
  %v5242 = vpop.permute.xlu0 %5241
  %5243 = vrot.lane.b32.xlu0 %v810, 112
  %v5244 = vpop.permute.xlu0 %5243
  %5245 = vrot.lane.b32.xlu0 %v811, 112
  %v5246 = vpop.permute.xlu0 %5245
  %5247 = vrot.lane.b32.xlu0 %v812, 112
  %v5248 = vpop.permute.xlu0 %5247
  %5249 = vrot.lane.b32.xlu0 %v813, 112
  %v5250 = vpop.permute.xlu0 %5249
  %5251 = vrot.lane.b32.xlu0 %v814, 112
  %v5252 = vpop.permute.xlu0 %5251
  %5253 = vrot.lane.b32.xlu0 %v815, 112
  %v5254 = vpop.permute.xlu0 %5253
  %5255 = vrot.lane.b32.xlu0 %v816, 112
  %v5256 = vpop.permute.xlu0 %5255
  %5257 = vrot.lane.b32.xlu0 %v817, 112
  %v5258 = vpop.permute.xlu0 %5257
  %5259 = vrot.lane.b32.xlu0 %v818, 112
  %v5260 = vpop.permute.xlu0 %5259
  %5261 = vrot.lane.b32.xlu0 %v819, 112
  %v5262 = vpop.permute.xlu0 %5261
  %5263 = vrot.lane.b32.xlu0 %v820, 112
  %v5264 = vpop.permute.xlu0 %5263
  %5265 = vrot.lane.b32.xlu0 %v821, 112
  %v5266 = vpop.permute.xlu0 %5265
  %5267 = vrot.lane.b32.xlu0 %v822, 112
  %v5268 = vpop.permute.xlu0 %5267
  %5269 = vrot.lane.b32.xlu0 %v823, 112
  %v5270 = vpop.permute.xlu0 %5269
  %5271 = vrot.lane.b32.xlu0 %v824, 112
  %v5272 = vpop.permute.xlu0 %5271
  %5273 = vrot.lane.b32.xlu0 %v825, 112
  %v5274 = vpop.permute.xlu0 %5273
  %5275 = vrot.lane.b32.xlu0 %v826, 112
  %v5276 = vpop.permute.xlu0 %5275
  %5277 = vrot.lane.b32.xlu0 %v827, 112
  %v5278 = vpop.permute.xlu0 %5277
  %5279 = vrot.lane.b32.xlu0 %v828, 112
  %v5280 = vpop.permute.xlu0 %5279
  %5281 = vrot.lane.b32.xlu0 %v829, 112
  %v5282 = vpop.permute.xlu0 %5281
  %5283 = vrot.lane.b32.xlu0 %v830, 112
  %v5284 = vpop.permute.xlu0 %5283
  %5285 = vrot.lane.b32.xlu0 %v831, 112
  %v5286 = vpop.permute.xlu0 %5285
  %5287 = vrot.lane.b32.xlu0 %v832, 112
  %v5288 = vpop.permute.xlu0 %5287
  %5289 = vrot.lane.b32.xlu0 %v833, 112
  %v5290 = vpop.permute.xlu0 %5289
  %5291 = vrot.lane.b32.xlu0 %v834, 112
  %v5292 = vpop.permute.xlu0 %5291
  %5293 = vrot.lane.b32.xlu0 %v835, 112
  %v5294 = vpop.permute.xlu0 %5293
  %5295 = vrot.lane.b32.xlu0 %v836, 112
  %v5296 = vpop.permute.xlu0 %5295
  %5297 = vrot.lane.b32.xlu0 %v837, 112
  %v5298 = vpop.permute.xlu0 %5297
  %5299 = vrot.lane.b32.xlu0 %v838, 112
  %v5300 = vpop.permute.xlu0 %5299
  %5301 = vrot.lane.b32.xlu0 %v839, 112
  %v5302 = vpop.permute.xlu0 %5301
  %5303 = vrot.lane.b32.xlu0 %v840, 112
  %v5304 = vpop.permute.xlu0 %5303
  %5305 = vrot.lane.b32.xlu0 %v841, 112
  %v5306 = vpop.permute.xlu0 %5305
  %5307 = vrot.lane.b32.xlu0 %v842, 112
  %v5308 = vpop.permute.xlu0 %5307
  %5309 = vrot.lane.b32.xlu0 %v843, 112
  %v5310 = vpop.permute.xlu0 %5309
  %5311 = vrot.lane.b32.xlu0 %v844, 112
  %v5312 = vpop.permute.xlu0 %5311
  %5313 = vrot.lane.b32.xlu0 %v845, 112
  %v5314 = vpop.permute.xlu0 %5313
  %5315 = vrot.lane.b32.xlu0 %v846, 112
  %v5316 = vpop.permute.xlu0 %5315
  %5317 = vrot.lane.b32.xlu0 %v847, 112
  %v5318 = vpop.permute.xlu0 %5317
  %5319 = vrot.lane.b32.xlu0 %v848, 112
  %v5320 = vpop.permute.xlu0 %5319
  %5321 = vrot.lane.b32.xlu0 %v849, 112
  %v5322 = vpop.permute.xlu0 %5321
  %5323 = vrot.lane.b32.xlu0 %v850, 112
  %v5324 = vpop.permute.xlu0 %5323
  %5325 = vrot.lane.b32.xlu0 %v851, 112
  %v5326 = vpop.permute.xlu0 %5325
  %5327 = vrot.lane.b32.xlu0 %v852, 112
  %v5328 = vpop.permute.xlu0 %5327
  %5329 = vrot.lane.b32.xlu0 %v853, 112
  %v5330 = vpop.permute.xlu0 %5329
  %5331 = vrot.lane.b32.xlu0 %v854, 112
  %v5332 = vpop.permute.xlu0 %5331
  %5333 = vrot.lane.b32.xlu0 %v855, 112
  %v5334 = vpop.permute.xlu0 %5333
  %5335 = vrot.lane.b32.xlu0 %v856, 112
  %v5336 = vpop.permute.xlu0 %5335
  %5337 = vrot.lane.b32.xlu0 %v857, 112
  %v5338 = vpop.permute.xlu0 %5337
  %5339 = vrot.lane.b32.xlu0 %v858, 112
  %v5340 = vpop.permute.xlu0 %5339
  %5341 = vrot.lane.b32.xlu0 %v859, 112
  %v5342 = vpop.permute.xlu0 %5341
  %5343 = vrot.lane.b32.xlu0 %v860, 112
  %v5344 = vpop.permute.xlu0 %5343
  %5345 = vrot.lane.b32.xlu0 %v861, 112
  %v5346 = vpop.permute.xlu0 %5345
  %5347 = vrot.lane.b32.xlu0 %v862, 112
  %v5348 = vpop.permute.xlu0 %5347
  %5349 = vrot.lane.b32.xlu0 %v863, 112
  %v5350 = vpop.permute.xlu0 %5349
  %5351 = vrot.lane.b32.xlu0 %v864, 112
  %v5352 = vpop.permute.xlu0 %5351
  %5353 = vrot.lane.b32.xlu0 %v865, 112
  %v5354 = vpop.permute.xlu0 %5353
  %5355 = vrot.lane.b32.xlu0 %v866, 112
  %v5356 = vpop.permute.xlu0 %5355
  %5357 = vrot.lane.b32.xlu0 %v867, 112
  %v5358 = vpop.permute.xlu0 %5357
  %5359 = vrot.lane.b32.xlu0 %v868, 112
  %v5360 = vpop.permute.xlu0 %5359
  %5361 = vrot.lane.b32.xlu0 %v869, 112
  %v5362 = vpop.permute.xlu0 %5361
  %5363 = vrot.lane.b32.xlu0 %v870, 112
  %v5364 = vpop.permute.xlu0 %5363
  %5365 = vrot.lane.b32.xlu0 %v871, 112
  %v5366 = vpop.permute.xlu0 %5365
  %5367 = vrot.lane.b32.xlu0 %v872, 112
  %v5368 = vpop.permute.xlu0 %5367
  %5369 = vrot.lane.b32.xlu0 %v873, 112
  %v5370 = vpop.permute.xlu0 %5369
  %5371 = vrot.lane.b32.xlu0 %v874, 112
  %v5372 = vpop.permute.xlu0 %5371
  %5373 = vrot.lane.b32.xlu0 %v875, 112
  %v5374 = vpop.permute.xlu0 %5373
  %5375 = vrot.lane.b32.xlu0 %v876, 112
  %v5376 = vpop.permute.xlu0 %5375
  %5377 = vrot.lane.b32.xlu0 %v877, 112
  %v5378 = vpop.permute.xlu0 %5377
  %5379 = vrot.lane.b32.xlu0 %v878, 112
  %v5380 = vpop.permute.xlu0 %5379
  %5381 = vrot.lane.b32.xlu0 %v879, 112
  %v5382 = vpop.permute.xlu0 %5381
  %5383 = vrot.lane.b32.xlu0 %v880, 112
  %v5384 = vpop.permute.xlu0 %5383
  %5385 = vrot.lane.b32.xlu0 %v881, 112
  %v5386 = vpop.permute.xlu0 %5385
  %5387 = vrot.lane.b32.xlu0 %v882, 112
  %v5388 = vpop.permute.xlu0 %5387
  %5389 = vrot.lane.b32.xlu0 %v883, 112
  %v5390 = vpop.permute.xlu0 %5389
  %5391 = vrot.lane.b32.xlu0 %v884, 112
  %v5392 = vpop.permute.xlu0 %5391
  %5393 = vrot.lane.b32.xlu0 %v885, 112
  %v5394 = vpop.permute.xlu0 %5393
  %5395 = vrot.lane.b32.xlu0 %v886, 112
  %v5396 = vpop.permute.xlu0 %5395
  %5397 = vrot.lane.b32.xlu0 %v887, 112
  %v5398 = vpop.permute.xlu0 %5397
  %5399 = vrot.lane.b32.xlu0 %v888, 112
  %v5400 = vpop.permute.xlu0 %5399
  %5401 = vrot.lane.b32.xlu0 %v889, 112
  %v5402 = vpop.permute.xlu0 %5401
  %5403 = vrot.lane.b32.xlu0 %v890, 112
  %v5404 = vpop.permute.xlu0 %5403
  %5405 = vrot.lane.b32.xlu0 %v891, 112
  %v5406 = vpop.permute.xlu0 %5405
  %5407 = vrot.lane.b32.xlu0 %v892, 112
  %v5408 = vpop.permute.xlu0 %5407
  %5409 = vrot.lane.b32.xlu0 %v893, 112
  %v5410 = vpop.permute.xlu0 %5409
  %5411 = vrot.lane.b32.xlu0 %v894, 112
  %v5412 = vpop.permute.xlu0 %5411
  %5413 = vrot.lane.b32.xlu0 %v895, 112
  %v5414 = vpop.permute.xlu0 %5413
  %5415 = vrot.lane.b32.xlu0 %v896, 112
  %v5416 = vpop.permute.xlu0 %5415
  %5417 = vrot.lane.b32.xlu0 %v897, 112
  %v5418 = vpop.permute.xlu0 %5417
  %5419 = vrot.lane.b32.xlu0 %v898, 112
  %v5420 = vpop.permute.xlu0 %5419
  %5421 = vrot.lane.b32.xlu0 %v899, 112
  %v5422 = vpop.permute.xlu0 %5421
  %5423 = vrot.lane.b32.xlu0 %v900, 112
  %v5424 = vpop.permute.xlu0 %5423
  %5425 = vrot.lane.b32.xlu0 %v901, 112
  %v5426 = vpop.permute.xlu0 %5425
  %5427 = vrot.lane.b32.xlu0 %v902, 112
  %v5428 = vpop.permute.xlu0 %5427
  %5429 = vrot.lane.b32.xlu0 %v903, 112
  %v5430 = vpop.permute.xlu0 %5429
  %5431 = vrot.lane.b32.xlu0 %v904, 112
  %v5432 = vpop.permute.xlu0 %5431
  %5433 = vrot.lane.b32.xlu0 %v905, 112
  %v5434 = vpop.permute.xlu0 %5433
  %5435 = vrot.lane.b32.xlu0 %v906, 112
  %v5436 = vpop.permute.xlu0 %5435
  %5437 = vrot.lane.b32.xlu0 %v907, 112
  %v5438 = vpop.permute.xlu0 %5437
  %5439 = vrot.lane.b32.xlu0 %v908, 112
  %v5440 = vpop.permute.xlu0 %5439
  %5441 = vrot.lane.b32.xlu0 %v909, 112
  %v5442 = vpop.permute.xlu0 %5441
  %5443 = vrot.lane.b32.xlu0 %v910, 112
  %v5444 = vpop.permute.xlu0 %5443
  %5445 = vrot.lane.b32.xlu0 %v911, 112
  %v5446 = vpop.permute.xlu0 %5445
  %5447 = vrot.lane.b32.xlu0 %v912, 112
  %v5448 = vpop.permute.xlu0 %5447
  %5449 = vrot.lane.b32.xlu0 %v913, 112
  %v5450 = vpop.permute.xlu0 %5449
  %5451 = vrot.lane.b32.xlu0 %v914, 112
  %v5452 = vpop.permute.xlu0 %5451
  %5453 = vrot.lane.b32.xlu0 %v915, 112
  %v5454 = vpop.permute.xlu0 %5453
  %5455 = vrot.lane.b32.xlu0 %v916, 112
  %v5456 = vpop.permute.xlu0 %5455
  %5457 = vrot.lane.b32.xlu0 %v917, 112
  %v5458 = vpop.permute.xlu0 %5457
  %5459 = vrot.lane.b32.xlu0 %v918, 112
  %v5460 = vpop.permute.xlu0 %5459
  %5461 = vrot.lane.b32.xlu0 %v919, 112
  %v5462 = vpop.permute.xlu0 %5461
  %5463 = vrot.lane.b32.xlu0 %v920, 112
  %v5464 = vpop.permute.xlu0 %5463
  %5465 = vrot.lane.b32.xlu0 %v921, 112
  %v5466 = vpop.permute.xlu0 %5465
  %5467 = vrot.lane.b32.xlu0 %v922, 112
  %v5468 = vpop.permute.xlu0 %5467
  %5469 = vrot.lane.b32.xlu0 %v923, 112
  %v5470 = vpop.permute.xlu0 %5469
  %5471 = vrot.lane.b32.xlu0 %v924, 112
  %v5472 = vpop.permute.xlu0 %5471
  %5473 = vrot.lane.b32.xlu0 %v925, 112
  %v5474 = vpop.permute.xlu0 %5473
  %5475 = vrot.lane.b32.xlu0 %v926, 112
  %v5476 = vpop.permute.xlu0 %5475
  %5477 = vrot.lane.b32.xlu0 %v927, 112
  %v5478 = vpop.permute.xlu0 %5477
  %5479 = vrot.lane.b32.xlu0 %v928, 112
  %v5480 = vpop.permute.xlu0 %5479
  %5481 = vrot.lane.b32.xlu0 %v929, 112
  %v5482 = vpop.permute.xlu0 %5481
  %5483 = vrot.lane.b32.xlu0 %v930, 112
  %v5484 = vpop.permute.xlu0 %5483
  %5485 = vrot.lane.b32.xlu0 %v931, 112
  %v5486 = vpop.permute.xlu0 %5485
  %5487 = vrot.lane.b32.xlu0 %v932, 112
  %v5488 = vpop.permute.xlu0 %5487
  %5489 = vrot.lane.b32.xlu0 %v933, 112
  %v5490 = vpop.permute.xlu0 %5489
  %5491 = vrot.lane.b32.xlu0 %v934, 112
  %v5492 = vpop.permute.xlu0 %5491
  %v5493 = vsel %vm937, %v5238, 0
  %v5495 = vsel %vm937, %v5240, 0
  %v5497 = vsel %vm937, %v5242, 0
  %v5499 = vsel %vm937, %v5244, 0
  %v5501 = vsel %vm937, %v5246, 0
  %v5503 = vsel %vm937, %v5248, 0
  %v5505 = vsel %vm937, %v5250, 0
  %v5507 = vsel %vm937, %v5252, 0
  %v5509 = vsel %vm937, %v5254, 0
  %v5511 = vsel %vm937, %v5256, 0
  %v5513 = vsel %vm937, %v5258, 0
  %v5515 = vsel %vm937, %v5260, 0
  %v5517 = vsel %vm937, %v5262, 0
  %v5519 = vsel %vm937, %v5264, 0
  %v5521 = vsel %vm937, %v5266, 0
  %v5523 = vsel %vm937, %v5268, 0
  %v5525 = vsel %vm937, %v5270, 0
  %v5527 = vsel %vm937, %v5272, 0
  %v5529 = vsel %vm937, %v5274, 0
  %v5531 = vsel %vm937, %v5276, 0
  %v5533 = vsel %vm937, %v5278, 0
  %v5535 = vsel %vm937, %v5280, 0
  %v5537 = vsel %vm937, %v5282, 0
  %v5539 = vsel %vm937, %v5284, 0
  %v5541 = vsel %vm937, %v5286, 0
  %v5543 = vsel %vm937, %v5288, 0
  %v5545 = vsel %vm937, %v5290, 0
  %v5547 = vsel %vm937, %v5292, 0
  %v5549 = vsel %vm937, %v5294, 0
  %v5551 = vsel %vm937, %v5296, 0
  %v5553 = vsel %vm937, %v5298, 0
  %v5555 = vsel %vm937, %v5300, 0
  %v5557 = vsel %vm937, %v5302, 0
  %v5559 = vsel %vm937, %v5304, 0
  %v5561 = vsel %vm937, %v5306, 0
  %v5563 = vsel %vm937, %v5308, 0
  %v5565 = vsel %vm937, %v5310, 0
  %v5567 = vsel %vm937, %v5312, 0
  %v5569 = vsel %vm937, %v5314, 0
  %v5571 = vsel %vm937, %v5316, 0
  %v5573 = vsel %vm937, %v5318, 0
  %v5575 = vsel %vm937, %v5320, 0
  %v5577 = vsel %vm937, %v5322, 0
  %v5579 = vsel %vm937, %v5324, 0
  %v5581 = vsel %vm937, %v5326, 0
  %v5583 = vsel %vm937, %v5328, 0
  %v5585 = vsel %vm937, %v5330, 0
  %v5587 = vsel %vm937, %v5332, 0
  %v5589 = vsel %vm937, %v5334, 0
  %v5591 = vsel %vm937, %v5336, 0
  %v5593 = vsel %vm937, %v5338, 0
  %v5595 = vsel %vm937, %v5340, 0
  %v5597 = vsel %vm937, %v5342, 0
  %v5599 = vsel %vm937, %v5344, 0
  %v5601 = vsel %vm937, %v5346, 0
  %v5603 = vsel %vm937, %v5348, 0
  %v5605 = vsel %vm937, %v5350, 0
  %v5607 = vsel %vm937, %v5352, 0
  %v5609 = vsel %vm937, %v5354, 0
  %v5611 = vsel %vm937, %v5356, 0
  %v5613 = vsel %vm937, %v5358, 0
  %v5615 = vsel %vm937, %v5360, 0
  %v5617 = vsel %vm937, %v5362, 0
  %v5619 = vsel %vm937, %v5364, 0
  %v5621 = vsel %vm937, %v5366, 0
  %v5623 = vsel %vm937, %v5368, 0
  %v5625 = vsel %vm937, %v5370, 0
  %v5627 = vsel %vm937, %v5372, 0
  %v5629 = vsel %vm937, %v5374, 0
  %v5631 = vsel %vm937, %v5376, 0
  %v5633 = vsel %vm937, %v5378, 0
  %v5635 = vsel %vm937, %v5380, 0
  %v5637 = vsel %vm937, %v5382, 0
  %v5639 = vsel %vm937, %v5384, 0
  %v5641 = vsel %vm937, %v5386, 0
  %v5643 = vsel %vm937, %v5388, 0
  %v5645 = vsel %vm937, %v5390, 0
  %v5647 = vsel %vm937, %v5392, 0
  %v5649 = vsel %vm937, %v5394, 0
  %v5651 = vsel %vm937, %v5396, 0
  %v5653 = vsel %vm937, %v5398, 0
  %v5655 = vsel %vm937, %v5400, 0
  %v5657 = vsel %vm937, %v5402, 0
  %v5659 = vsel %vm937, %v5404, 0
  %v5661 = vsel %vm937, %v5406, 0
  %v5663 = vsel %vm937, %v5408, 0
  %v5665 = vsel %vm937, %v5410, 0
  %v5667 = vsel %vm937, %v5412, 0
  %v5669 = vsel %vm937, %v5414, 0
  %v5671 = vsel %vm937, %v5416, 0
  %v5673 = vsel %vm937, %v5418, 0
  %v5675 = vsel %vm937, %v5420, 0
  %v5677 = vsel %vm937, %v5422, 0
  %v5679 = vsel %vm937, %v5424, 0
  %v5681 = vsel %vm937, %v5426, 0
  %v5683 = vsel %vm937, %v5428, 0
  %v5685 = vsel %vm937, %v5430, 0
  %v5687 = vsel %vm937, %v5432, 0
  %v5689 = vsel %vm937, %v5434, 0
  %v5691 = vsel %vm937, %v5436, 0
  %v5693 = vsel %vm937, %v5438, 0
  %v5695 = vsel %vm937, %v5440, 0
  %v5697 = vsel %vm937, %v5442, 0
  %v5699 = vsel %vm937, %v5444, 0
  %v5701 = vsel %vm937, %v5446, 0
  %v5703 = vsel %vm937, %v5448, 0
  %v5705 = vsel %vm937, %v5450, 0
  %v5707 = vsel %vm937, %v5452, 0
  %v5709 = vsel %vm937, %v5454, 0
  %v5711 = vsel %vm937, %v5456, 0
  %v5713 = vsel %vm937, %v5458, 0
  %v5715 = vsel %vm937, %v5460, 0
  %v5717 = vsel %vm937, %v5462, 0
  %v5719 = vsel %vm937, %v5464, 0
  %v5721 = vsel %vm937, %v5466, 0
  %v5723 = vsel %vm937, %v5468, 0
  %v5725 = vsel %vm937, %v5470, 0
  %v5727 = vsel %vm937, %v5472, 0
  %v5729 = vsel %vm937, %v5474, 0
  %v5731 = vsel %vm937, %v5476, 0
  %v5733 = vsel %vm937, %v5478, 0
  %v5735 = vsel %vm937, %v5480, 0
  %v5737 = vsel %vm937, %v5482, 0
  %v5739 = vsel %vm937, %v5484, 0
  %v5741 = vsel %vm937, %v5486, 0
  %v5743 = vsel %vm937, %v5488, 0
  %v5745 = vsel %vm937, %v5490, 0
  %v5747 = vsel %vm937, %v5492, 0
  %5749 = vmatpush.msra.mxu0 0.0
  %5750 = vmatpush.msra.mxu0 0.0
  %5751 = vmatpush.msra.mxu0 0.0
  %5752 = vmatpush.msra.mxu0 0.0
  %5753 = vmatpush.msra.mxu0 0.0
  %5754 = vmatpush.msra.mxu0 0.0
  %5755 = vmatpush.msra.mxu0 0.0
  %5756 = vmatpush.msra.mxu0 0.0
  %5757 = vmatpush.msra.mxu0 0.0
  %5758 = vmatpush.msra.mxu0 0.0
  %5759 = vmatpush.msra.mxu0 0.0
  %5760 = vmatpush.msra.mxu0 0.0
  %5761 = vmatpush.msra.mxu0 0.0
  %5762 = vmatpush.msra.mxu0 0.0
  %5763 = vmatpush.msra.mxu0 %v5236
  %5764 = vmatpush.msra.mxu0 %v5235
  %5765 = vmatmul.f32.gmra.mxu0 %v5493
  %v5766 = vpop.f32.mrf.mxu0
  %v5767 = vadd.f32 0.0, %v5766
  %5768 = vmatmul.f32.gmra.mxu0 %v5495
  %v5769 = vpop.f32.mrf.mxu0
  %v5770 = vadd.f32 0.0, %v5769
  %5771 = vmatmul.f32.gmra.mxu0 %v5497
  %v5772 = vpop.f32.mrf.mxu0
  %v5773 = vadd.f32 0.0, %v5772
  %5774 = vmatmul.f32.gmra.mxu0 %v5499
  %v5775 = vpop.f32.mrf.mxu0
  %v5776 = vadd.f32 0.0, %v5775
  %5777 = vmatmul.f32.gmra.mxu0 %v5501
  %v5778 = vpop.f32.mrf.mxu0
  %v5779 = vadd.f32 0.0, %v5778
  %5780 = vmatmul.f32.gmra.mxu0 %v5503
  %v5781 = vpop.f32.mrf.mxu0
  %v5782 = vadd.f32 0.0, %v5781
  %5783 = vmatmul.f32.gmra.mxu0 %v5505
  %v5784 = vpop.f32.mrf.mxu0
  %v5785 = vadd.f32 0.0, %v5784
  %5786 = vmatmul.f32.gmra.mxu0 %v5507
  %v5787 = vpop.f32.mrf.mxu0
  %v5788 = vadd.f32 0.0, %v5787
  %5789 = vmatmul.f32.gmra.mxu0 %v5509
  %v5790 = vpop.f32.mrf.mxu0
  %v5791 = vadd.f32 0.0, %v5790
  %5792 = vmatmul.f32.gmra.mxu0 %v5511
  %v5793 = vpop.f32.mrf.mxu0
  %v5794 = vadd.f32 0.0, %v5793
  %5795 = vmatmul.f32.gmra.mxu0 %v5513
  %v5796 = vpop.f32.mrf.mxu0
  %v5797 = vadd.f32 0.0, %v5796
  %5798 = vmatmul.f32.gmra.mxu0 %v5515
  %v5799 = vpop.f32.mrf.mxu0
  %v5800 = vadd.f32 0.0, %v5799
  %5801 = vmatmul.f32.gmra.mxu0 %v5517
  %v5802 = vpop.f32.mrf.mxu0
  %v5803 = vadd.f32 0.0, %v5802
  %5804 = vmatmul.f32.gmra.mxu0 %v5519
  %v5805 = vpop.f32.mrf.mxu0
  %v5806 = vadd.f32 0.0, %v5805
  %5807 = vmatmul.f32.gmra.mxu0 %v5521
  %v5808 = vpop.f32.mrf.mxu0
  %v5809 = vadd.f32 0.0, %v5808
  %5810 = vmatmul.f32.gmra.mxu0 %v5523
  %v5811 = vpop.f32.mrf.mxu0
  %v5812 = vadd.f32 0.0, %v5811
  %5813 = vmatmul.f32.gmra.mxu0 %v5525
  %v5814 = vpop.f32.mrf.mxu0
  %v5815 = vadd.f32 0.0, %v5814
  %5816 = vmatmul.f32.gmra.mxu0 %v5527
  %v5817 = vpop.f32.mrf.mxu0
  %v5818 = vadd.f32 0.0, %v5817
  %5819 = vmatmul.f32.gmra.mxu0 %v5529
  %v5820 = vpop.f32.mrf.mxu0
  %v5821 = vadd.f32 0.0, %v5820
  %5822 = vmatmul.f32.gmra.mxu0 %v5531
  %v5823 = vpop.f32.mrf.mxu0
  %v5824 = vadd.f32 0.0, %v5823
  %5825 = vmatmul.f32.gmra.mxu0 %v5533
  %v5826 = vpop.f32.mrf.mxu0
  %v5827 = vadd.f32 0.0, %v5826
  %5828 = vmatmul.f32.gmra.mxu0 %v5535
  %v5829 = vpop.f32.mrf.mxu0
  %v5830 = vadd.f32 0.0, %v5829
  %5831 = vmatmul.f32.gmra.mxu0 %v5537
  %v5832 = vpop.f32.mrf.mxu0
  %v5833 = vadd.f32 0.0, %v5832
  %5834 = vmatmul.f32.gmra.mxu0 %v5539
  %v5835 = vpop.f32.mrf.mxu0
  %v5836 = vadd.f32 0.0, %v5835
  %5837 = vmatmul.f32.gmra.mxu0 %v5541
  %v5838 = vpop.f32.mrf.mxu0
  %v5839 = vadd.f32 0.0, %v5838
  %5840 = vmatmul.f32.gmra.mxu0 %v5543
  %v5841 = vpop.f32.mrf.mxu0
  %v5842 = vadd.f32 0.0, %v5841
  %5843 = vmatmul.f32.gmra.mxu0 %v5545
  %v5844 = vpop.f32.mrf.mxu0
  %v5845 = vadd.f32 0.0, %v5844
  %5846 = vmatmul.f32.gmra.mxu0 %v5547
  %v5847 = vpop.f32.mrf.mxu0
  %v5848 = vadd.f32 0.0, %v5847
  %5849 = vmatmul.f32.gmra.mxu0 %v5549
  %v5850 = vpop.f32.mrf.mxu0
  %v5851 = vadd.f32 0.0, %v5850
  %5852 = vmatmul.f32.gmra.mxu0 %v5551
  %v5853 = vpop.f32.mrf.mxu0
  %v5854 = vadd.f32 0.0, %v5853
  %5855 = vmatmul.f32.gmra.mxu0 %v5553
  %v5856 = vpop.f32.mrf.mxu0
  %v5857 = vadd.f32 0.0, %v5856
  %5858 = vmatmul.f32.gmra.mxu0 %v5555
  %v5859 = vpop.f32.mrf.mxu0
  %v5860 = vadd.f32 0.0, %v5859
  %5861 = vmatmul.f32.gmra.mxu0 %v5557
  %v5862 = vpop.f32.mrf.mxu0
  %v5863 = vadd.f32 0.0, %v5862
  %5864 = vmatmul.f32.gmra.mxu0 %v5559
  %v5865 = vpop.f32.mrf.mxu0
  %v5866 = vadd.f32 0.0, %v5865
  %5867 = vmatmul.f32.gmra.mxu0 %v5561
  %v5868 = vpop.f32.mrf.mxu0
  %v5869 = vadd.f32 0.0, %v5868
  %5870 = vmatmul.f32.gmra.mxu0 %v5563
  %v5871 = vpop.f32.mrf.mxu0
  %v5872 = vadd.f32 0.0, %v5871
  %5873 = vmatmul.f32.gmra.mxu0 %v5565
  %v5874 = vpop.f32.mrf.mxu0
  %v5875 = vadd.f32 0.0, %v5874
  %5876 = vmatmul.f32.gmra.mxu0 %v5567
  %v5877 = vpop.f32.mrf.mxu0
  %v5878 = vadd.f32 0.0, %v5877
  %5879 = vmatmul.f32.gmra.mxu0 %v5569
  %v5880 = vpop.f32.mrf.mxu0
  %v5881 = vadd.f32 0.0, %v5880
  %5882 = vmatmul.f32.gmra.mxu0 %v5571
  %v5883 = vpop.f32.mrf.mxu0
  %v5884 = vadd.f32 0.0, %v5883
  %5885 = vmatmul.f32.gmra.mxu0 %v5573
  %v5886 = vpop.f32.mrf.mxu0
  %v5887 = vadd.f32 0.0, %v5886
  %5888 = vmatmul.f32.gmra.mxu0 %v5575
  %v5889 = vpop.f32.mrf.mxu0
  %v5890 = vadd.f32 0.0, %v5889
  %5891 = vmatmul.f32.gmra.mxu0 %v5577
  %v5892 = vpop.f32.mrf.mxu0
  %v5893 = vadd.f32 0.0, %v5892
  %5894 = vmatmul.f32.gmra.mxu0 %v5579
  %v5895 = vpop.f32.mrf.mxu0
  %v5896 = vadd.f32 0.0, %v5895
  %5897 = vmatmul.f32.gmra.mxu0 %v5581
  %v5898 = vpop.f32.mrf.mxu0
  %v5899 = vadd.f32 0.0, %v5898
  %5900 = vmatmul.f32.gmra.mxu0 %v5583
  %v5901 = vpop.f32.mrf.mxu0
  %v5902 = vadd.f32 0.0, %v5901
  %5903 = vmatmul.f32.gmra.mxu0 %v5585
  %v5904 = vpop.f32.mrf.mxu0
  %v5905 = vadd.f32 0.0, %v5904
  %5906 = vmatmul.f32.gmra.mxu0 %v5587
  %v5907 = vpop.f32.mrf.mxu0
  %v5908 = vadd.f32 0.0, %v5907
  %5909 = vmatmul.f32.gmra.mxu0 %v5589
  %v5910 = vpop.f32.mrf.mxu0
  %v5911 = vadd.f32 0.0, %v5910
  %5912 = vmatmul.f32.gmra.mxu0 %v5591
  %v5913 = vpop.f32.mrf.mxu0
  %v5914 = vadd.f32 0.0, %v5913
  %5915 = vmatmul.f32.gmra.mxu0 %v5593
  %v5916 = vpop.f32.mrf.mxu0
  %v5917 = vadd.f32 0.0, %v5916
  %5918 = vmatmul.f32.gmra.mxu0 %v5595
  %v5919 = vpop.f32.mrf.mxu0
  %v5920 = vadd.f32 0.0, %v5919
  %5921 = vmatmul.f32.gmra.mxu0 %v5597
  %v5922 = vpop.f32.mrf.mxu0
  %v5923 = vadd.f32 0.0, %v5922
  %5924 = vmatmul.f32.gmra.mxu0 %v5599
  %v5925 = vpop.f32.mrf.mxu0
  %v5926 = vadd.f32 0.0, %v5925
  %5927 = vmatmul.f32.gmra.mxu0 %v5601
  %v5928 = vpop.f32.mrf.mxu0
  %v5929 = vadd.f32 0.0, %v5928
  %5930 = vmatmul.f32.gmra.mxu0 %v5603
  %v5931 = vpop.f32.mrf.mxu0
  %v5932 = vadd.f32 0.0, %v5931
  %5933 = vmatmul.f32.gmra.mxu0 %v5605
  %v5934 = vpop.f32.mrf.mxu0
  %v5935 = vadd.f32 0.0, %v5934
  %5936 = vmatmul.f32.gmra.mxu0 %v5607
  %v5937 = vpop.f32.mrf.mxu0
  %v5938 = vadd.f32 0.0, %v5937
  %5939 = vmatmul.f32.gmra.mxu0 %v5609
  %v5940 = vpop.f32.mrf.mxu0
  %v5941 = vadd.f32 0.0, %v5940
  %5942 = vmatmul.f32.gmra.mxu0 %v5611
  %v5943 = vpop.f32.mrf.mxu0
  %v5944 = vadd.f32 0.0, %v5943
  %5945 = vmatmul.f32.gmra.mxu0 %v5613
  %v5946 = vpop.f32.mrf.mxu0
  %v5947 = vadd.f32 0.0, %v5946
  %5948 = vmatmul.f32.gmra.mxu0 %v5615
  %v5949 = vpop.f32.mrf.mxu0
  %v5950 = vadd.f32 0.0, %v5949
  %5951 = vmatmul.f32.gmra.mxu0 %v5617
  %v5952 = vpop.f32.mrf.mxu0
  %v5953 = vadd.f32 0.0, %v5952
  %5954 = vmatmul.f32.gmra.mxu0 %v5619
  %v5955 = vpop.f32.mrf.mxu0
  %v5956 = vadd.f32 0.0, %v5955
  %5957 = vmatmul.f32.gmra.mxu0 %v5621
  %v5958 = vpop.f32.mrf.mxu0
  %v5959 = vadd.f32 0.0, %v5958
  %5960 = vmatmul.f32.gmra.mxu0 %v5623
  %v5961 = vpop.f32.mrf.mxu0
  %v5962 = vadd.f32 0.0, %v5961
  %5963 = vmatmul.f32.gmra.mxu0 %v5625
  %v5964 = vpop.f32.mrf.mxu0
  %v5965 = vadd.f32 0.0, %v5964
  %5966 = vmatmul.f32.gmra.mxu0 %v5627
  %v5967 = vpop.f32.mrf.mxu0
  %v5968 = vadd.f32 0.0, %v5967
  %5969 = vmatmul.f32.gmra.mxu0 %v5629
  %v5970 = vpop.f32.mrf.mxu0
  %v5971 = vadd.f32 0.0, %v5970
  %5972 = vmatmul.f32.gmra.mxu0 %v5631
  %v5973 = vpop.f32.mrf.mxu0
  %v5974 = vadd.f32 0.0, %v5973
  %5975 = vmatmul.f32.gmra.mxu0 %v5633
  %v5976 = vpop.f32.mrf.mxu0
  %v5977 = vadd.f32 0.0, %v5976
  %5978 = vmatmul.f32.gmra.mxu0 %v5635
  %v5979 = vpop.f32.mrf.mxu0
  %v5980 = vadd.f32 0.0, %v5979
  %5981 = vmatmul.f32.gmra.mxu0 %v5637
  %v5982 = vpop.f32.mrf.mxu0
  %v5983 = vadd.f32 0.0, %v5982
  %5984 = vmatmul.f32.gmra.mxu0 %v5639
  %v5985 = vpop.f32.mrf.mxu0
  %v5986 = vadd.f32 0.0, %v5985
  %5987 = vmatmul.f32.gmra.mxu0 %v5641
  %v5988 = vpop.f32.mrf.mxu0
  %v5989 = vadd.f32 0.0, %v5988
  %5990 = vmatmul.f32.gmra.mxu0 %v5643
  %v5991 = vpop.f32.mrf.mxu0
  %v5992 = vadd.f32 0.0, %v5991
  %5993 = vmatmul.f32.gmra.mxu0 %v5645
  %v5994 = vpop.f32.mrf.mxu0
  %v5995 = vadd.f32 0.0, %v5994
  %5996 = vmatmul.f32.gmra.mxu0 %v5647
  %v5997 = vpop.f32.mrf.mxu0
  %v5998 = vadd.f32 0.0, %v5997
  %5999 = vmatmul.f32.gmra.mxu0 %v5649
  %v6000 = vpop.f32.mrf.mxu0
  %v6001 = vadd.f32 0.0, %v6000
  %6002 = vmatmul.f32.gmra.mxu0 %v5651
  %v6003 = vpop.f32.mrf.mxu0
  %v6004 = vadd.f32 0.0, %v6003
  %6005 = vmatmul.f32.gmra.mxu0 %v5653
  %v6006 = vpop.f32.mrf.mxu0
  %v6007 = vadd.f32 0.0, %v6006
  %6008 = vmatmul.f32.gmra.mxu0 %v5655
  %v6009 = vpop.f32.mrf.mxu0
  %v6010 = vadd.f32 0.0, %v6009
  %6011 = vmatmul.f32.gmra.mxu0 %v5657
  %v6012 = vpop.f32.mrf.mxu0
  %v6013 = vadd.f32 0.0, %v6012
  %6014 = vmatmul.f32.gmra.mxu0 %v5659
  %v6015 = vpop.f32.mrf.mxu0
  %v6016 = vadd.f32 0.0, %v6015
  %6017 = vmatmul.f32.gmra.mxu0 %v5661
  %v6018 = vpop.f32.mrf.mxu0
  %v6019 = vadd.f32 0.0, %v6018
  %6020 = vmatmul.f32.gmra.mxu0 %v5663
  %v6021 = vpop.f32.mrf.mxu0
  %v6022 = vadd.f32 0.0, %v6021
  %6023 = vmatmul.f32.gmra.mxu0 %v5665
  %v6024 = vpop.f32.mrf.mxu0
  %v6025 = vadd.f32 0.0, %v6024
  %6026 = vmatmul.f32.gmra.mxu0 %v5667
  %v6027 = vpop.f32.mrf.mxu0
  %v6028 = vadd.f32 0.0, %v6027
  %6029 = vmatmul.f32.gmra.mxu0 %v5669
  %v6030 = vpop.f32.mrf.mxu0
  %v6031 = vadd.f32 0.0, %v6030
  %6032 = vmatmul.f32.gmra.mxu0 %v5671
  %v6033 = vpop.f32.mrf.mxu0
  %v6034 = vadd.f32 0.0, %v6033
  %6035 = vmatmul.f32.gmra.mxu0 %v5673
  %v6036 = vpop.f32.mrf.mxu0
  %v6037 = vadd.f32 0.0, %v6036
  %6038 = vmatmul.f32.gmra.mxu0 %v5675
  %v6039 = vpop.f32.mrf.mxu0
  %v6040 = vadd.f32 0.0, %v6039
  %6041 = vmatmul.f32.gmra.mxu0 %v5677
  %v6042 = vpop.f32.mrf.mxu0
  %v6043 = vadd.f32 0.0, %v6042
  %6044 = vmatmul.f32.gmra.mxu0 %v5679
  %v6045 = vpop.f32.mrf.mxu0
  %v6046 = vadd.f32 0.0, %v6045
  %6047 = vmatmul.f32.gmra.mxu0 %v5681
  %v6048 = vpop.f32.mrf.mxu0
  %v6049 = vadd.f32 0.0, %v6048
  %6050 = vmatmul.f32.gmra.mxu0 %v5683
  %v6051 = vpop.f32.mrf.mxu0
  %v6052 = vadd.f32 0.0, %v6051
  %6053 = vmatmul.f32.gmra.mxu0 %v5685
  %v6054 = vpop.f32.mrf.mxu0
  %v6055 = vadd.f32 0.0, %v6054
  %6056 = vmatmul.f32.gmra.mxu0 %v5687
  %v6057 = vpop.f32.mrf.mxu0
  %v6058 = vadd.f32 0.0, %v6057
  %6059 = vmatmul.f32.gmra.mxu0 %v5689
  %v6060 = vpop.f32.mrf.mxu0
  %v6061 = vadd.f32 0.0, %v6060
  %6062 = vmatmul.f32.gmra.mxu0 %v5691
  %v6063 = vpop.f32.mrf.mxu0
  %v6064 = vadd.f32 0.0, %v6063
  %6065 = vmatmul.f32.gmra.mxu0 %v5693
  %v6066 = vpop.f32.mrf.mxu0
  %v6067 = vadd.f32 0.0, %v6066
  %6068 = vmatmul.f32.gmra.mxu0 %v5695
  %v6069 = vpop.f32.mrf.mxu0
  %v6070 = vadd.f32 0.0, %v6069
  %6071 = vmatmul.f32.gmra.mxu0 %v5697
  %v6072 = vpop.f32.mrf.mxu0
  %v6073 = vadd.f32 0.0, %v6072
  %6074 = vmatmul.f32.gmra.mxu0 %v5699
  %v6075 = vpop.f32.mrf.mxu0
  %v6076 = vadd.f32 0.0, %v6075
  %6077 = vmatmul.f32.gmra.mxu0 %v5701
  %v6078 = vpop.f32.mrf.mxu0
  %v6079 = vadd.f32 0.0, %v6078
  %6080 = vmatmul.f32.gmra.mxu0 %v5703
  %v6081 = vpop.f32.mrf.mxu0
  %v6082 = vadd.f32 0.0, %v6081
  %6083 = vmatmul.f32.gmra.mxu0 %v5705
  %v6084 = vpop.f32.mrf.mxu0
  %v6085 = vadd.f32 0.0, %v6084
  %6086 = vmatmul.f32.gmra.mxu0 %v5707
  %v6087 = vpop.f32.mrf.mxu0
  %v6088 = vadd.f32 0.0, %v6087
  %6089 = vmatmul.f32.gmra.mxu0 %v5709
  %v6090 = vpop.f32.mrf.mxu0
  %v6091 = vadd.f32 0.0, %v6090
  %6092 = vmatmul.f32.gmra.mxu0 %v5711
  %v6093 = vpop.f32.mrf.mxu0
  %v6094 = vadd.f32 0.0, %v6093
  %6095 = vmatmul.f32.gmra.mxu0 %v5713
  %v6096 = vpop.f32.mrf.mxu0
  %v6097 = vadd.f32 0.0, %v6096
  %6098 = vmatmul.f32.gmra.mxu0 %v5715
  %v6099 = vpop.f32.mrf.mxu0
  %v6100 = vadd.f32 0.0, %v6099
  %6101 = vmatmul.f32.gmra.mxu0 %v5717
  %v6102 = vpop.f32.mrf.mxu0
  %v6103 = vadd.f32 0.0, %v6102
  %6104 = vmatmul.f32.gmra.mxu0 %v5719
  %v6105 = vpop.f32.mrf.mxu0
  %v6106 = vadd.f32 0.0, %v6105
  %6107 = vmatmul.f32.gmra.mxu0 %v5721
  %v6108 = vpop.f32.mrf.mxu0
  %v6109 = vadd.f32 0.0, %v6108
  %6110 = vmatmul.f32.gmra.mxu0 %v5723
  %v6111 = vpop.f32.mrf.mxu0
  %v6112 = vadd.f32 0.0, %v6111
  %6113 = vmatmul.f32.gmra.mxu0 %v5725
  %v6114 = vpop.f32.mrf.mxu0
  %v6115 = vadd.f32 0.0, %v6114
  %6116 = vmatmul.f32.gmra.mxu0 %v5727
  %v6117 = vpop.f32.mrf.mxu0
  %v6118 = vadd.f32 0.0, %v6117
  %6119 = vmatmul.f32.gmra.mxu0 %v5729
  %v6120 = vpop.f32.mrf.mxu0
  %v6121 = vadd.f32 0.0, %v6120
  %6122 = vmatmul.f32.gmra.mxu0 %v5731
  %v6123 = vpop.f32.mrf.mxu0
  %v6124 = vadd.f32 0.0, %v6123
  %6125 = vmatmul.f32.gmra.mxu0 %v5733
  %v6126 = vpop.f32.mrf.mxu0
  %v6127 = vadd.f32 0.0, %v6126
  %6128 = vmatmul.f32.gmra.mxu0 %v5735
  %v6129 = vpop.f32.mrf.mxu0
  %v6130 = vadd.f32 0.0, %v6129
  %6131 = vmatmul.f32.gmra.mxu0 %v5737
  %v6132 = vpop.f32.mrf.mxu0
  %v6133 = vadd.f32 0.0, %v6132
  %6134 = vmatmul.f32.gmra.mxu0 %v5739
  %v6135 = vpop.f32.mrf.mxu0
  %v6136 = vadd.f32 0.0, %v6135
  %6137 = vmatmul.f32.gmra.mxu0 %v5741
  %v6138 = vpop.f32.mrf.mxu0
  %v6139 = vadd.f32 0.0, %v6138
  %6140 = vmatmul.f32.gmra.mxu0 %v5743
  %v6141 = vpop.f32.mrf.mxu0
  %v6142 = vadd.f32 0.0, %v6141
  %6143 = vmatmul.f32.gmra.mxu0 %v5745
  %v6144 = vpop.f32.mrf.mxu0
  %v6145 = vadd.f32 0.0, %v6144
  %6146 = vmatmul.f32.gmra.mxu0 %v5747
  %v6147 = vpop.f32.mrf.mxu0
  %v6148 = vadd.f32 0.0, %v6147
  %6149 = vdwg.mxu0
  %v6150 = vadd.f32 %v5107, %v5767
  %v6151 = vadd.f32 %v5108, %v5770
  %v6152 = vadd.f32 %v5109, %v5773
  %v6153 = vadd.f32 %v5110, %v5776
  %v6154 = vadd.f32 %v5111, %v5779
  %v6155 = vadd.f32 %v5112, %v5782
  %v6156 = vadd.f32 %v5113, %v5785
  %v6157 = vadd.f32 %v5114, %v5788
  %v6158 = vadd.f32 %v5115, %v5791
  %v6159 = vadd.f32 %v5116, %v5794
  %v6160 = vadd.f32 %v5117, %v5797
  %v6161 = vadd.f32 %v5118, %v5800
  %v6162 = vadd.f32 %v5119, %v5803
  %v6163 = vadd.f32 %v5120, %v5806
  %v6164 = vadd.f32 %v5121, %v5809
  %v6165 = vadd.f32 %v5122, %v5812
  %v6166 = vadd.f32 %v5123, %v5815
  %v6167 = vadd.f32 %v5124, %v5818
  %v6168 = vadd.f32 %v5125, %v5821
  %v6169 = vadd.f32 %v5126, %v5824
  %v6170 = vadd.f32 %v5127, %v5827
  %v6171 = vadd.f32 %v5128, %v5830
  %v6172 = vadd.f32 %v5129, %v5833
  %v6173 = vadd.f32 %v5130, %v5836
  %v6174 = vadd.f32 %v5131, %v5839
  %v6175 = vadd.f32 %v5132, %v5842
  %v6176 = vadd.f32 %v5133, %v5845
  %v6177 = vadd.f32 %v5134, %v5848
  %v6178 = vadd.f32 %v5135, %v5851
  %v6179 = vadd.f32 %v5136, %v5854
  %v6180 = vadd.f32 %v5137, %v5857
  %v6181 = vadd.f32 %v5138, %v5860
  %v6182 = vadd.f32 %v5139, %v5863
  %v6183 = vadd.f32 %v5140, %v5866
  %v6184 = vadd.f32 %v5141, %v5869
  %v6185 = vadd.f32 %v5142, %v5872
  %v6186 = vadd.f32 %v5143, %v5875
  %v6187 = vadd.f32 %v5144, %v5878
  %v6188 = vadd.f32 %v5145, %v5881
  %v6189 = vadd.f32 %v5146, %v5884
  %v6190 = vadd.f32 %v5147, %v5887
  %v6191 = vadd.f32 %v5148, %v5890
  %v6192 = vadd.f32 %v5149, %v5893
  %v6193 = vadd.f32 %v5150, %v5896
  %v6194 = vadd.f32 %v5151, %v5899
  %v6195 = vadd.f32 %v5152, %v5902
  %v6196 = vadd.f32 %v5153, %v5905
  %v6197 = vadd.f32 %v5154, %v5908
  %v6198 = vadd.f32 %v5155, %v5911
  %v6199 = vadd.f32 %v5156, %v5914
  %v6200 = vadd.f32 %v5157, %v5917
  %v6201 = vadd.f32 %v5158, %v5920
  %v6202 = vadd.f32 %v5159, %v5923
  %v6203 = vadd.f32 %v5160, %v5926
  %v6204 = vadd.f32 %v5161, %v5929
  %v6205 = vadd.f32 %v5162, %v5932
  %v6206 = vadd.f32 %v5163, %v5935
  %v6207 = vadd.f32 %v5164, %v5938
  %v6208 = vadd.f32 %v5165, %v5941
  %v6209 = vadd.f32 %v5166, %v5944
  %v6210 = vadd.f32 %v5167, %v5947
  %v6211 = vadd.f32 %v5168, %v5950
  %v6212 = vadd.f32 %v5169, %v5953
  %v6213 = vadd.f32 %v5170, %v5956
  %v6214 = vadd.f32 %v5171, %v5959
  %v6215 = vadd.f32 %v5172, %v5962
  %v6216 = vadd.f32 %v5173, %v5965
  %v6217 = vadd.f32 %v5174, %v5968
  %v6218 = vadd.f32 %v5175, %v5971
  %v6219 = vadd.f32 %v5176, %v5974
  %v6220 = vadd.f32 %v5177, %v5977
  %v6221 = vadd.f32 %v5178, %v5980
  %v6222 = vadd.f32 %v5179, %v5983
  %v6223 = vadd.f32 %v5180, %v5986
  %v6224 = vadd.f32 %v5181, %v5989
  %v6225 = vadd.f32 %v5182, %v5992
  %v6226 = vadd.f32 %v5183, %v5995
  %v6227 = vadd.f32 %v5184, %v5998
  %v6228 = vadd.f32 %v5185, %v6001
  %v6229 = vadd.f32 %v5186, %v6004
  %v6230 = vadd.f32 %v5187, %v6007
  %v6231 = vadd.f32 %v5188, %v6010
  %v6232 = vadd.f32 %v5189, %v6013
  %v6233 = vadd.f32 %v5190, %v6016
  %v6234 = vadd.f32 %v5191, %v6019
  %v6235 = vadd.f32 %v5192, %v6022
  %v6236 = vadd.f32 %v5193, %v6025
  %v6237 = vadd.f32 %v5194, %v6028
  %v6238 = vadd.f32 %v5195, %v6031
  %v6239 = vadd.f32 %v5196, %v6034
  %v6240 = vadd.f32 %v5197, %v6037
  %v6241 = vadd.f32 %v5198, %v6040
  %v6242 = vadd.f32 %v5199, %v6043
  %v6243 = vadd.f32 %v5200, %v6046
  %v6244 = vadd.f32 %v5201, %v6049
  %v6245 = vadd.f32 %v5202, %v6052
  %v6246 = vadd.f32 %v5203, %v6055
  %v6247 = vadd.f32 %v5204, %v6058
  %v6248 = vadd.f32 %v5205, %v6061
  %v6249 = vadd.f32 %v5206, %v6064
  %v6250 = vadd.f32 %v5207, %v6067
  %v6251 = vadd.f32 %v5208, %v6070
  %v6252 = vadd.f32 %v5209, %v6073
  %v6253 = vadd.f32 %v5210, %v6076
  %v6254 = vadd.f32 %v5211, %v6079
  %v6255 = vadd.f32 %v5212, %v6082
  %v6256 = vadd.f32 %v5213, %v6085
  %v6257 = vadd.f32 %v5214, %v6088
  %v6258 = vadd.f32 %v5215, %v6091
  %v6259 = vadd.f32 %v5216, %v6094
  %v6260 = vadd.f32 %v5217, %v6097
  %v6261 = vadd.f32 %v5218, %v6100
  %v6262 = vadd.f32 %v5219, %v6103
  %v6263 = vadd.f32 %v5220, %v6106
  %v6264 = vadd.f32 %v5221, %v6109
  %v6265 = vadd.f32 %v5222, %v6112
  %v6266 = vadd.f32 %v5223, %v6115
  %v6267 = vadd.f32 %v5224, %v6118
  %v6268 = vadd.f32 %v5225, %v6121
  %v6269 = vadd.f32 %v5226, %v6124
  %v6270 = vadd.f32 %v5227, %v6127
  %v6271 = vadd.f32 %v5228, %v6130
  %v6272 = vadd.f32 %v5229, %v6133
  %v6273 = vadd.f32 %v5230, %v6136
  %v6274 = vadd.f32 %v5231, %v6139
  %v6275 = vadd.f32 %v5232, %v6142
  %v6276 = vadd.f32 %v5233, %v6145
  %v6277 = vadd.f32 %v5234, %v6148
  %v6278 = vld [vmem:[%s2 + $0x40] sm:$0xff]
  %v6279 = vld [vmem:[%s2 + $0x48] sm:$0xff]
  %6280 = vrot.lane.b32.xlu0 %v2765, 112
  %v6281 = vpop.permute.xlu0 %6280
  %6282 = vrot.lane.b32.xlu0 %v2766, 112
  %v6283 = vpop.permute.xlu0 %6282
  %6284 = vrot.lane.b32.xlu0 %v2767, 112
  %v6285 = vpop.permute.xlu0 %6284
  %6286 = vrot.lane.b32.xlu0 %v2768, 112
  %v6287 = vpop.permute.xlu0 %6286
  %6288 = vrot.lane.b32.xlu0 %v2769, 112
  %v6289 = vpop.permute.xlu0 %6288
  %6290 = vrot.lane.b32.xlu0 %v2770, 112
  %v6291 = vpop.permute.xlu0 %6290
  %6292 = vrot.lane.b32.xlu0 %v2771, 112
  %v6293 = vpop.permute.xlu0 %6292
  %6294 = vrot.lane.b32.xlu0 %v2772, 112
  %v6295 = vpop.permute.xlu0 %6294
  %6296 = vrot.lane.b32.xlu0 %v2773, 112
  %v6297 = vpop.permute.xlu0 %6296
  %6298 = vrot.lane.b32.xlu0 %v2774, 112
  %v6299 = vpop.permute.xlu0 %6298
  %6300 = vrot.lane.b32.xlu0 %v2775, 112
  %v6301 = vpop.permute.xlu0 %6300
  %6302 = vrot.lane.b32.xlu0 %v2776, 112
  %v6303 = vpop.permute.xlu0 %6302
  %6304 = vrot.lane.b32.xlu0 %v2777, 112
  %v6305 = vpop.permute.xlu0 %6304
  %6306 = vrot.lane.b32.xlu0 %v2778, 112
  %v6307 = vpop.permute.xlu0 %6306
  %6308 = vrot.lane.b32.xlu0 %v2779, 112
  %v6309 = vpop.permute.xlu0 %6308
  %6310 = vrot.lane.b32.xlu0 %v2780, 112
  %v6311 = vpop.permute.xlu0 %6310
  %6312 = vrot.lane.b32.xlu0 %v2781, 112
  %v6313 = vpop.permute.xlu0 %6312
  %6314 = vrot.lane.b32.xlu0 %v2782, 112
  %v6315 = vpop.permute.xlu0 %6314
  %6316 = vrot.lane.b32.xlu0 %v2783, 112
  %v6317 = vpop.permute.xlu0 %6316
  %6318 = vrot.lane.b32.xlu0 %v2784, 112
  %v6319 = vpop.permute.xlu0 %6318
  %6320 = vrot.lane.b32.xlu0 %v2785, 112
  %v6321 = vpop.permute.xlu0 %6320
  %6322 = vrot.lane.b32.xlu0 %v2786, 112
  %v6323 = vpop.permute.xlu0 %6322
  %6324 = vrot.lane.b32.xlu0 %v2787, 112
  %v6325 = vpop.permute.xlu0 %6324
  %6326 = vrot.lane.b32.xlu0 %v2788, 112
  %v6327 = vpop.permute.xlu0 %6326
  %6328 = vrot.lane.b32.xlu0 %v2789, 112
  %v6329 = vpop.permute.xlu0 %6328
  %6330 = vrot.lane.b32.xlu0 %v2790, 112
  %v6331 = vpop.permute.xlu0 %6330
  %6332 = vrot.lane.b32.xlu0 %v2791, 112
  %v6333 = vpop.permute.xlu0 %6332
  %6334 = vrot.lane.b32.xlu0 %v2792, 112
  %v6335 = vpop.permute.xlu0 %6334
  %6336 = vrot.lane.b32.xlu0 %v2793, 112
  %v6337 = vpop.permute.xlu0 %6336
  %6338 = vrot.lane.b32.xlu0 %v2794, 112
  %v6339 = vpop.permute.xlu0 %6338
  %6340 = vrot.lane.b32.xlu0 %v2795, 112
  %v6341 = vpop.permute.xlu0 %6340
  %6342 = vrot.lane.b32.xlu0 %v2796, 112
  %v6343 = vpop.permute.xlu0 %6342
  %6344 = vrot.lane.b32.xlu0 %v2797, 112
  %v6345 = vpop.permute.xlu0 %6344
  %6346 = vrot.lane.b32.xlu0 %v2798, 112
  %v6347 = vpop.permute.xlu0 %6346
  %6348 = vrot.lane.b32.xlu0 %v2799, 112
  %v6349 = vpop.permute.xlu0 %6348
  %6350 = vrot.lane.b32.xlu0 %v2800, 112
  %v6351 = vpop.permute.xlu0 %6350
  %6352 = vrot.lane.b32.xlu0 %v2801, 112
  %v6353 = vpop.permute.xlu0 %6352
  %6354 = vrot.lane.b32.xlu0 %v2802, 112
  %v6355 = vpop.permute.xlu0 %6354
  %6356 = vrot.lane.b32.xlu0 %v2803, 112
  %v6357 = vpop.permute.xlu0 %6356
  %6358 = vrot.lane.b32.xlu0 %v2804, 112
  %v6359 = vpop.permute.xlu0 %6358
  %6360 = vrot.lane.b32.xlu0 %v2805, 112
  %v6361 = vpop.permute.xlu0 %6360
  %6362 = vrot.lane.b32.xlu0 %v2806, 112
  %v6363 = vpop.permute.xlu0 %6362
  %6364 = vrot.lane.b32.xlu0 %v2807, 112
  %v6365 = vpop.permute.xlu0 %6364
  %6366 = vrot.lane.b32.xlu0 %v2808, 112
  %v6367 = vpop.permute.xlu0 %6366
  %6368 = vrot.lane.b32.xlu0 %v2809, 112
  %v6369 = vpop.permute.xlu0 %6368
  %6370 = vrot.lane.b32.xlu0 %v2810, 112
  %v6371 = vpop.permute.xlu0 %6370
  %6372 = vrot.lane.b32.xlu0 %v2811, 112
  %v6373 = vpop.permute.xlu0 %6372
  %6374 = vrot.lane.b32.xlu0 %v2812, 112
  %v6375 = vpop.permute.xlu0 %6374
  %6376 = vrot.lane.b32.xlu0 %v2813, 112
  %v6377 = vpop.permute.xlu0 %6376
  %6378 = vrot.lane.b32.xlu0 %v2814, 112
  %v6379 = vpop.permute.xlu0 %6378
  %6380 = vrot.lane.b32.xlu0 %v2815, 112
  %v6381 = vpop.permute.xlu0 %6380
  %6382 = vrot.lane.b32.xlu0 %v2816, 112
  %v6383 = vpop.permute.xlu0 %6382
  %6384 = vrot.lane.b32.xlu0 %v2817, 112
  %v6385 = vpop.permute.xlu0 %6384
  %6386 = vrot.lane.b32.xlu0 %v2818, 112
  %v6387 = vpop.permute.xlu0 %6386
  %6388 = vrot.lane.b32.xlu0 %v2819, 112
  %v6389 = vpop.permute.xlu0 %6388
  %6390 = vrot.lane.b32.xlu0 %v2820, 112
  %v6391 = vpop.permute.xlu0 %6390
  %6392 = vrot.lane.b32.xlu0 %v2821, 112
  %v6393 = vpop.permute.xlu0 %6392
  %6394 = vrot.lane.b32.xlu0 %v2822, 112
  %v6395 = vpop.permute.xlu0 %6394
  %6396 = vrot.lane.b32.xlu0 %v2823, 112
  %v6397 = vpop.permute.xlu0 %6396
  %6398 = vrot.lane.b32.xlu0 %v2824, 112
  %v6399 = vpop.permute.xlu0 %6398
  %6400 = vrot.lane.b32.xlu0 %v2825, 112
  %v6401 = vpop.permute.xlu0 %6400
  %6402 = vrot.lane.b32.xlu0 %v2826, 112
  %v6403 = vpop.permute.xlu0 %6402
  %6404 = vrot.lane.b32.xlu0 %v2827, 112
  %v6405 = vpop.permute.xlu0 %6404
  %6406 = vrot.lane.b32.xlu0 %v2828, 112
  %v6407 = vpop.permute.xlu0 %6406
  %6408 = vrot.lane.b32.xlu0 %v2829, 112
  %v6409 = vpop.permute.xlu0 %6408
  %6410 = vrot.lane.b32.xlu0 %v2830, 112
  %v6411 = vpop.permute.xlu0 %6410
  %6412 = vrot.lane.b32.xlu0 %v2831, 112
  %v6413 = vpop.permute.xlu0 %6412
  %6414 = vrot.lane.b32.xlu0 %v2832, 112
  %v6415 = vpop.permute.xlu0 %6414
  %6416 = vrot.lane.b32.xlu0 %v2833, 112
  %v6417 = vpop.permute.xlu0 %6416
  %6418 = vrot.lane.b32.xlu0 %v2834, 112
  %v6419 = vpop.permute.xlu0 %6418
  %6420 = vrot.lane.b32.xlu0 %v2835, 112
  %v6421 = vpop.permute.xlu0 %6420
  %6422 = vrot.lane.b32.xlu0 %v2836, 112
  %v6423 = vpop.permute.xlu0 %6422
  %6424 = vrot.lane.b32.xlu0 %v2837, 112
  %v6425 = vpop.permute.xlu0 %6424
  %6426 = vrot.lane.b32.xlu0 %v2838, 112
  %v6427 = vpop.permute.xlu0 %6426
  %6428 = vrot.lane.b32.xlu0 %v2839, 112
  %v6429 = vpop.permute.xlu0 %6428
  %6430 = vrot.lane.b32.xlu0 %v2840, 112
  %v6431 = vpop.permute.xlu0 %6430
  %6432 = vrot.lane.b32.xlu0 %v2841, 112
  %v6433 = vpop.permute.xlu0 %6432
  %6434 = vrot.lane.b32.xlu0 %v2842, 112
  %v6435 = vpop.permute.xlu0 %6434
  %6436 = vrot.lane.b32.xlu0 %v2843, 112
  %v6437 = vpop.permute.xlu0 %6436
  %6438 = vrot.lane.b32.xlu0 %v2844, 112
  %v6439 = vpop.permute.xlu0 %6438
  %6440 = vrot.lane.b32.xlu0 %v2845, 112
  %v6441 = vpop.permute.xlu0 %6440
  %6442 = vrot.lane.b32.xlu0 %v2846, 112
  %v6443 = vpop.permute.xlu0 %6442
  %6444 = vrot.lane.b32.xlu0 %v2847, 112
  %v6445 = vpop.permute.xlu0 %6444
  %6446 = vrot.lane.b32.xlu0 %v2848, 112
  %v6447 = vpop.permute.xlu0 %6446
  %6448 = vrot.lane.b32.xlu0 %v2849, 112
  %v6449 = vpop.permute.xlu0 %6448
  %6450 = vrot.lane.b32.xlu0 %v2850, 112
  %v6451 = vpop.permute.xlu0 %6450
  %6452 = vrot.lane.b32.xlu0 %v2851, 112
  %v6453 = vpop.permute.xlu0 %6452
  %6454 = vrot.lane.b32.xlu0 %v2852, 112
  %v6455 = vpop.permute.xlu0 %6454
  %6456 = vrot.lane.b32.xlu0 %v2853, 112
  %v6457 = vpop.permute.xlu0 %6456
  %6458 = vrot.lane.b32.xlu0 %v2854, 112
  %v6459 = vpop.permute.xlu0 %6458
  %6460 = vrot.lane.b32.xlu0 %v2855, 112
  %v6461 = vpop.permute.xlu0 %6460
  %6462 = vrot.lane.b32.xlu0 %v2856, 112
  %v6463 = vpop.permute.xlu0 %6462
  %6464 = vrot.lane.b32.xlu0 %v2857, 112
  %v6465 = vpop.permute.xlu0 %6464
  %6466 = vrot.lane.b32.xlu0 %v2858, 112
  %v6467 = vpop.permute.xlu0 %6466
  %6468 = vrot.lane.b32.xlu0 %v2859, 112
  %v6469 = vpop.permute.xlu0 %6468
  %6470 = vrot.lane.b32.xlu0 %v2860, 112
  %v6471 = vpop.permute.xlu0 %6470
  %6472 = vrot.lane.b32.xlu0 %v2861, 112
  %v6473 = vpop.permute.xlu0 %6472
  %6474 = vrot.lane.b32.xlu0 %v2862, 112
  %v6475 = vpop.permute.xlu0 %6474
  %6476 = vrot.lane.b32.xlu0 %v2863, 112
  %v6477 = vpop.permute.xlu0 %6476
  %6478 = vrot.lane.b32.xlu0 %v2864, 112
  %v6479 = vpop.permute.xlu0 %6478
  %6480 = vrot.lane.b32.xlu0 %v2865, 112
  %v6481 = vpop.permute.xlu0 %6480
  %6482 = vrot.lane.b32.xlu0 %v2866, 112
  %v6483 = vpop.permute.xlu0 %6482
  %6484 = vrot.lane.b32.xlu0 %v2867, 112
  %v6485 = vpop.permute.xlu0 %6484
  %6486 = vrot.lane.b32.xlu0 %v2868, 112
  %v6487 = vpop.permute.xlu0 %6486
  %6488 = vrot.lane.b32.xlu0 %v2869, 112
  %v6489 = vpop.permute.xlu0 %6488
  %6490 = vrot.lane.b32.xlu0 %v2870, 112
  %v6491 = vpop.permute.xlu0 %6490
  %6492 = vrot.lane.b32.xlu0 %v2871, 112
  %v6493 = vpop.permute.xlu0 %6492
  %6494 = vrot.lane.b32.xlu0 %v2872, 112
  %v6495 = vpop.permute.xlu0 %6494
  %6496 = vrot.lane.b32.xlu0 %v2873, 112
  %v6497 = vpop.permute.xlu0 %6496
  %6498 = vrot.lane.b32.xlu0 %v2874, 112
  %v6499 = vpop.permute.xlu0 %6498
  %6500 = vrot.lane.b32.xlu0 %v2875, 112
  %v6501 = vpop.permute.xlu0 %6500
  %6502 = vrot.lane.b32.xlu0 %v2876, 112
  %v6503 = vpop.permute.xlu0 %6502
  %6504 = vrot.lane.b32.xlu0 %v2877, 112
  %v6505 = vpop.permute.xlu0 %6504
  %6506 = vrot.lane.b32.xlu0 %v2878, 112
  %v6507 = vpop.permute.xlu0 %6506
  %6508 = vrot.lane.b32.xlu0 %v2879, 112
  %v6509 = vpop.permute.xlu0 %6508
  %6510 = vrot.lane.b32.xlu0 %v2880, 112
  %v6511 = vpop.permute.xlu0 %6510
  %6512 = vrot.lane.b32.xlu0 %v2881, 112
  %v6513 = vpop.permute.xlu0 %6512
  %6514 = vrot.lane.b32.xlu0 %v2882, 112
  %v6515 = vpop.permute.xlu0 %6514
  %6516 = vrot.lane.b32.xlu0 %v2883, 112
  %v6517 = vpop.permute.xlu0 %6516
  %6518 = vrot.lane.b32.xlu0 %v2884, 112
  %v6519 = vpop.permute.xlu0 %6518
  %6520 = vrot.lane.b32.xlu0 %v2885, 112
  %v6521 = vpop.permute.xlu0 %6520
  %6522 = vrot.lane.b32.xlu0 %v2886, 112
  %v6523 = vpop.permute.xlu0 %6522
  %6524 = vrot.lane.b32.xlu0 %v2887, 112
  %v6525 = vpop.permute.xlu0 %6524
  %6526 = vrot.lane.b32.xlu0 %v2888, 112
  %v6527 = vpop.permute.xlu0 %6526
  %6528 = vrot.lane.b32.xlu0 %v2889, 112
  %v6529 = vpop.permute.xlu0 %6528
  %6530 = vrot.lane.b32.xlu0 %v2890, 112
  %v6531 = vpop.permute.xlu0 %6530
  %6532 = vrot.lane.b32.xlu0 %v2891, 112
  %v6533 = vpop.permute.xlu0 %6532
  %6534 = vrot.lane.b32.xlu0 %v2892, 112
  %v6535 = vpop.permute.xlu0 %6534
  %v6536 = vsel %vm937, %v6281, 0
  %v6538 = vsel %vm937, %v6283, 0
  %v6540 = vsel %vm937, %v6285, 0
  %v6542 = vsel %vm937, %v6287, 0
  %v6544 = vsel %vm937, %v6289, 0
  %v6546 = vsel %vm937, %v6291, 0
  %v6548 = vsel %vm937, %v6293, 0
  %v6550 = vsel %vm937, %v6295, 0
  %v6552 = vsel %vm937, %v6297, 0
  %v6554 = vsel %vm937, %v6299, 0
  %v6556 = vsel %vm937, %v6301, 0
  %v6558 = vsel %vm937, %v6303, 0
  %v6560 = vsel %vm937, %v6305, 0
  %v6562 = vsel %vm937, %v6307, 0
  %v6564 = vsel %vm937, %v6309, 0
  %v6566 = vsel %vm937, %v6311, 0
  %v6568 = vsel %vm937, %v6313, 0
  %v6570 = vsel %vm937, %v6315, 0
  %v6572 = vsel %vm937, %v6317, 0
  %v6574 = vsel %vm937, %v6319, 0
  %v6576 = vsel %vm937, %v6321, 0
  %v6578 = vsel %vm937, %v6323, 0
  %v6580 = vsel %vm937, %v6325, 0
  %v6582 = vsel %vm937, %v6327, 0
  %v6584 = vsel %vm937, %v6329, 0
  %v6586 = vsel %vm937, %v6331, 0
  %v6588 = vsel %vm937, %v6333, 0
  %v6590 = vsel %vm937, %v6335, 0
  %v6592 = vsel %vm937, %v6337, 0
  %v6594 = vsel %vm937, %v6339, 0
  %v6596 = vsel %vm937, %v6341, 0
  %v6598 = vsel %vm937, %v6343, 0
  %v6600 = vsel %vm937, %v6345, 0
  %v6602 = vsel %vm937, %v6347, 0
  %v6604 = vsel %vm937, %v6349, 0
  %v6606 = vsel %vm937, %v6351, 0
  %v6608 = vsel %vm937, %v6353, 0
  %v6610 = vsel %vm937, %v6355, 0
  %v6612 = vsel %vm937, %v6357, 0
  %v6614 = vsel %vm937, %v6359, 0
  %v6616 = vsel %vm937, %v6361, 0
  %v6618 = vsel %vm937, %v6363, 0
  %v6620 = vsel %vm937, %v6365, 0
  %v6622 = vsel %vm937, %v6367, 0
  %v6624 = vsel %vm937, %v6369, 0
  %v6626 = vsel %vm937, %v6371, 0
  %v6628 = vsel %vm937, %v6373, 0
  %v6630 = vsel %vm937, %v6375, 0
  %v6632 = vsel %vm937, %v6377, 0
  %v6634 = vsel %vm937, %v6379, 0
  %v6636 = vsel %vm937, %v6381, 0
  %v6638 = vsel %vm937, %v6383, 0
  %v6640 = vsel %vm937, %v6385, 0
  %v6642 = vsel %vm937, %v6387, 0
  %v6644 = vsel %vm937, %v6389, 0
  %v6646 = vsel %vm937, %v6391, 0
  %v6648 = vsel %vm937, %v6393, 0
  %v6650 = vsel %vm937, %v6395, 0
  %v6652 = vsel %vm937, %v6397, 0
  %v6654 = vsel %vm937, %v6399, 0
  %v6656 = vsel %vm937, %v6401, 0
  %v6658 = vsel %vm937, %v6403, 0
  %v6660 = vsel %vm937, %v6405, 0
  %v6662 = vsel %vm937, %v6407, 0
  %v6664 = vsel %vm937, %v6409, 0
  %v6666 = vsel %vm937, %v6411, 0
  %v6668 = vsel %vm937, %v6413, 0
  %v6670 = vsel %vm937, %v6415, 0
  %v6672 = vsel %vm937, %v6417, 0
  %v6674 = vsel %vm937, %v6419, 0
  %v6676 = vsel %vm937, %v6421, 0
  %v6678 = vsel %vm937, %v6423, 0
  %v6680 = vsel %vm937, %v6425, 0
  %v6682 = vsel %vm937, %v6427, 0
  %v6684 = vsel %vm937, %v6429, 0
  %v6686 = vsel %vm937, %v6431, 0
  %v6688 = vsel %vm937, %v6433, 0
  %v6690 = vsel %vm937, %v6435, 0
  %v6692 = vsel %vm937, %v6437, 0
  %v6694 = vsel %vm937, %v6439, 0
  %v6696 = vsel %vm937, %v6441, 0
  %v6698 = vsel %vm937, %v6443, 0
  %v6700 = vsel %vm937, %v6445, 0
  %v6702 = vsel %vm937, %v6447, 0
  %v6704 = vsel %vm937, %v6449, 0
  %v6706 = vsel %vm937, %v6451, 0
  %v6708 = vsel %vm937, %v6453, 0
  %v6710 = vsel %vm937, %v6455, 0
  %v6712 = vsel %vm937, %v6457, 0
  %v6714 = vsel %vm937, %v6459, 0
  %v6716 = vsel %vm937, %v6461, 0
  %v6718 = vsel %vm937, %v6463, 0
  %v6720 = vsel %vm937, %v6465, 0
  %v6722 = vsel %vm937, %v6467, 0
  %v6724 = vsel %vm937, %v6469, 0
  %v6726 = vsel %vm937, %v6471, 0
  %v6728 = vsel %vm937, %v6473, 0
  %v6730 = vsel %vm937, %v6475, 0
  %v6732 = vsel %vm937, %v6477, 0
  %v6734 = vsel %vm937, %v6479, 0
  %v6736 = vsel %vm937, %v6481, 0
  %v6738 = vsel %vm937, %v6483, 0
  %v6740 = vsel %vm937, %v6485, 0
  %v6742 = vsel %vm937, %v6487, 0
  %v6744 = vsel %vm937, %v6489, 0
  %v6746 = vsel %vm937, %v6491, 0
  %v6748 = vsel %vm937, %v6493, 0
  %v6750 = vsel %vm937, %v6495, 0
  %v6752 = vsel %vm937, %v6497, 0
  %v6754 = vsel %vm937, %v6499, 0
  %v6756 = vsel %vm937, %v6501, 0
  %v6758 = vsel %vm937, %v6503, 0
  %v6760 = vsel %vm937, %v6505, 0
  %v6762 = vsel %vm937, %v6507, 0
  %v6764 = vsel %vm937, %v6509, 0
  %v6766 = vsel %vm937, %v6511, 0
  %v6768 = vsel %vm937, %v6513, 0
  %v6770 = vsel %vm937, %v6515, 0
  %v6772 = vsel %vm937, %v6517, 0
  %v6774 = vsel %vm937, %v6519, 0
  %v6776 = vsel %vm937, %v6521, 0
  %v6778 = vsel %vm937, %v6523, 0
  %v6780 = vsel %vm937, %v6525, 0
  %v6782 = vsel %vm937, %v6527, 0
  %v6784 = vsel %vm937, %v6529, 0
  %v6786 = vsel %vm937, %v6531, 0
  %v6788 = vsel %vm937, %v6533, 0
  %v6790 = vsel %vm937, %v6535, 0
  %6792 = vmatpush.msra.mxu0 0.0
  %6793 = vmatpush.msra.mxu0 0.0
  %6794 = vmatpush.msra.mxu0 0.0
  %6795 = vmatpush.msra.mxu0 0.0
  %6796 = vmatpush.msra.mxu0 0.0
  %6797 = vmatpush.msra.mxu0 0.0
  %6798 = vmatpush.msra.mxu0 0.0
  %6799 = vmatpush.msra.mxu0 0.0
  %6800 = vmatpush.msra.mxu0 0.0
  %6801 = vmatpush.msra.mxu0 0.0
  %6802 = vmatpush.msra.mxu0 0.0
  %6803 = vmatpush.msra.mxu0 0.0
  %6804 = vmatpush.msra.mxu0 0.0
  %6805 = vmatpush.msra.mxu0 0.0
  %6806 = vmatpush.msra.mxu0 %v6279
  %6807 = vmatpush.msra.mxu0 %v6278
  %6808 = vmatmul.f32.gmra.mxu0 %v6536
  %v6809 = vpop.f32.mrf.mxu0
  %v6810 = vadd.f32 0.0, %v6809
  %6811 = vmatmul.f32.gmra.mxu0 %v6538
  %v6812 = vpop.f32.mrf.mxu0
  %v6813 = vadd.f32 0.0, %v6812
  %6814 = vmatmul.f32.gmra.mxu0 %v6540
  %v6815 = vpop.f32.mrf.mxu0
  %v6816 = vadd.f32 0.0, %v6815
  %6817 = vmatmul.f32.gmra.mxu0 %v6542
  %v6818 = vpop.f32.mrf.mxu0
  %v6819 = vadd.f32 0.0, %v6818
  %6820 = vmatmul.f32.gmra.mxu0 %v6544
  %v6821 = vpop.f32.mrf.mxu0
  %v6822 = vadd.f32 0.0, %v6821
  %6823 = vmatmul.f32.gmra.mxu0 %v6546
  %v6824 = vpop.f32.mrf.mxu0
  %v6825 = vadd.f32 0.0, %v6824
  %6826 = vmatmul.f32.gmra.mxu0 %v6548
  %v6827 = vpop.f32.mrf.mxu0
  %v6828 = vadd.f32 0.0, %v6827
  %6829 = vmatmul.f32.gmra.mxu0 %v6550
  %v6830 = vpop.f32.mrf.mxu0
  %v6831 = vadd.f32 0.0, %v6830
  %6832 = vmatmul.f32.gmra.mxu0 %v6552
  %v6833 = vpop.f32.mrf.mxu0
  %v6834 = vadd.f32 0.0, %v6833
  %6835 = vmatmul.f32.gmra.mxu0 %v6554
  %v6836 = vpop.f32.mrf.mxu0
  %v6837 = vadd.f32 0.0, %v6836
  %6838 = vmatmul.f32.gmra.mxu0 %v6556
  %v6839 = vpop.f32.mrf.mxu0
  %v6840 = vadd.f32 0.0, %v6839
  %6841 = vmatmul.f32.gmra.mxu0 %v6558
  %v6842 = vpop.f32.mrf.mxu0
  %v6843 = vadd.f32 0.0, %v6842
  %6844 = vmatmul.f32.gmra.mxu0 %v6560
  %v6845 = vpop.f32.mrf.mxu0
  %v6846 = vadd.f32 0.0, %v6845
  %6847 = vmatmul.f32.gmra.mxu0 %v6562
  %v6848 = vpop.f32.mrf.mxu0
  %v6849 = vadd.f32 0.0, %v6848
  %6850 = vmatmul.f32.gmra.mxu0 %v6564
  %v6851 = vpop.f32.mrf.mxu0
  %v6852 = vadd.f32 0.0, %v6851
  %6853 = vmatmul.f32.gmra.mxu0 %v6566
  %v6854 = vpop.f32.mrf.mxu0
  %v6855 = vadd.f32 0.0, %v6854
  %6856 = vmatmul.f32.gmra.mxu0 %v6568
  %v6857 = vpop.f32.mrf.mxu0
  %v6858 = vadd.f32 0.0, %v6857
  %6859 = vmatmul.f32.gmra.mxu0 %v6570
  %v6860 = vpop.f32.mrf.mxu0
  %v6861 = vadd.f32 0.0, %v6860
  %6862 = vmatmul.f32.gmra.mxu0 %v6572
  %v6863 = vpop.f32.mrf.mxu0
  %v6864 = vadd.f32 0.0, %v6863
  %6865 = vmatmul.f32.gmra.mxu0 %v6574
  %v6866 = vpop.f32.mrf.mxu0
  %v6867 = vadd.f32 0.0, %v6866
  %6868 = vmatmul.f32.gmra.mxu0 %v6576
  %v6869 = vpop.f32.mrf.mxu0
  %v6870 = vadd.f32 0.0, %v6869
  %6871 = vmatmul.f32.gmra.mxu0 %v6578
  %v6872 = vpop.f32.mrf.mxu0
  %v6873 = vadd.f32 0.0, %v6872
  %6874 = vmatmul.f32.gmra.mxu0 %v6580
  %v6875 = vpop.f32.mrf.mxu0
  %v6876 = vadd.f32 0.0, %v6875
  %6877 = vmatmul.f32.gmra.mxu0 %v6582
  %v6878 = vpop.f32.mrf.mxu0
  %v6879 = vadd.f32 0.0, %v6878
  %6880 = vmatmul.f32.gmra.mxu0 %v6584
  %v6881 = vpop.f32.mrf.mxu0
  %v6882 = vadd.f32 0.0, %v6881
  %6883 = vmatmul.f32.gmra.mxu0 %v6586
  %v6884 = vpop.f32.mrf.mxu0
  %v6885 = vadd.f32 0.0, %v6884
  %6886 = vmatmul.f32.gmra.mxu0 %v6588
  %v6887 = vpop.f32.mrf.mxu0
  %v6888 = vadd.f32 0.0, %v6887
  %6889 = vmatmul.f32.gmra.mxu0 %v6590
  %v6890 = vpop.f32.mrf.mxu0
  %v6891 = vadd.f32 0.0, %v6890
  %6892 = vmatmul.f32.gmra.mxu0 %v6592
  %v6893 = vpop.f32.mrf.mxu0
  %v6894 = vadd.f32 0.0, %v6893
  %6895 = vmatmul.f32.gmra.mxu0 %v6594
  %v6896 = vpop.f32.mrf.mxu0
  %v6897 = vadd.f32 0.0, %v6896
  %6898 = vmatmul.f32.gmra.mxu0 %v6596
  %v6899 = vpop.f32.mrf.mxu0
  %v6900 = vadd.f32 0.0, %v6899
  %6901 = vmatmul.f32.gmra.mxu0 %v6598
  %v6902 = vpop.f32.mrf.mxu0
  %v6903 = vadd.f32 0.0, %v6902
  %6904 = vmatmul.f32.gmra.mxu0 %v6600
  %v6905 = vpop.f32.mrf.mxu0
  %v6906 = vadd.f32 0.0, %v6905
  %6907 = vmatmul.f32.gmra.mxu0 %v6602
  %v6908 = vpop.f32.mrf.mxu0
  %v6909 = vadd.f32 0.0, %v6908
  %6910 = vmatmul.f32.gmra.mxu0 %v6604
  %v6911 = vpop.f32.mrf.mxu0
  %v6912 = vadd.f32 0.0, %v6911
  %6913 = vmatmul.f32.gmra.mxu0 %v6606
  %v6914 = vpop.f32.mrf.mxu0
  %v6915 = vadd.f32 0.0, %v6914
  %6916 = vmatmul.f32.gmra.mxu0 %v6608
  %v6917 = vpop.f32.mrf.mxu0
  %v6918 = vadd.f32 0.0, %v6917
  %6919 = vmatmul.f32.gmra.mxu0 %v6610
  %v6920 = vpop.f32.mrf.mxu0
  %v6921 = vadd.f32 0.0, %v6920
  %6922 = vmatmul.f32.gmra.mxu0 %v6612
  %v6923 = vpop.f32.mrf.mxu0
  %v6924 = vadd.f32 0.0, %v6923
  %6925 = vmatmul.f32.gmra.mxu0 %v6614
  %v6926 = vpop.f32.mrf.mxu0
  %v6927 = vadd.f32 0.0, %v6926
  %6928 = vmatmul.f32.gmra.mxu0 %v6616
  %v6929 = vpop.f32.mrf.mxu0
  %v6930 = vadd.f32 0.0, %v6929
  %6931 = vmatmul.f32.gmra.mxu0 %v6618
  %v6932 = vpop.f32.mrf.mxu0
  %v6933 = vadd.f32 0.0, %v6932
  %6934 = vmatmul.f32.gmra.mxu0 %v6620
  %v6935 = vpop.f32.mrf.mxu0
  %v6936 = vadd.f32 0.0, %v6935
  %6937 = vmatmul.f32.gmra.mxu0 %v6622
  %v6938 = vpop.f32.mrf.mxu0
  %v6939 = vadd.f32 0.0, %v6938
  %6940 = vmatmul.f32.gmra.mxu0 %v6624
  %v6941 = vpop.f32.mrf.mxu0
  %v6942 = vadd.f32 0.0, %v6941
  %6943 = vmatmul.f32.gmra.mxu0 %v6626
  %v6944 = vpop.f32.mrf.mxu0
  %v6945 = vadd.f32 0.0, %v6944
  %6946 = vmatmul.f32.gmra.mxu0 %v6628
  %v6947 = vpop.f32.mrf.mxu0
  %v6948 = vadd.f32 0.0, %v6947
  %6949 = vmatmul.f32.gmra.mxu0 %v6630
  %v6950 = vpop.f32.mrf.mxu0
  %v6951 = vadd.f32 0.0, %v6950
  %6952 = vmatmul.f32.gmra.mxu0 %v6632
  %v6953 = vpop.f32.mrf.mxu0
  %v6954 = vadd.f32 0.0, %v6953
  %6955 = vmatmul.f32.gmra.mxu0 %v6634
  %v6956 = vpop.f32.mrf.mxu0
  %v6957 = vadd.f32 0.0, %v6956
  %6958 = vmatmul.f32.gmra.mxu0 %v6636
  %v6959 = vpop.f32.mrf.mxu0
  %v6960 = vadd.f32 0.0, %v6959
  %6961 = vmatmul.f32.gmra.mxu0 %v6638
  %v6962 = vpop.f32.mrf.mxu0
  %v6963 = vadd.f32 0.0, %v6962
  %6964 = vmatmul.f32.gmra.mxu0 %v6640
  %v6965 = vpop.f32.mrf.mxu0
  %v6966 = vadd.f32 0.0, %v6965
  %6967 = vmatmul.f32.gmra.mxu0 %v6642
  %v6968 = vpop.f32.mrf.mxu0
  %v6969 = vadd.f32 0.0, %v6968
  %6970 = vmatmul.f32.gmra.mxu0 %v6644
  %v6971 = vpop.f32.mrf.mxu0
  %v6972 = vadd.f32 0.0, %v6971
  %6973 = vmatmul.f32.gmra.mxu0 %v6646
  %v6974 = vpop.f32.mrf.mxu0
  %v6975 = vadd.f32 0.0, %v6974
  %6976 = vmatmul.f32.gmra.mxu0 %v6648
  %v6977 = vpop.f32.mrf.mxu0
  %v6978 = vadd.f32 0.0, %v6977
  %6979 = vmatmul.f32.gmra.mxu0 %v6650
  %v6980 = vpop.f32.mrf.mxu0
  %v6981 = vadd.f32 0.0, %v6980
  %6982 = vmatmul.f32.gmra.mxu0 %v6652
  %v6983 = vpop.f32.mrf.mxu0
  %v6984 = vadd.f32 0.0, %v6983
  %6985 = vmatmul.f32.gmra.mxu0 %v6654
  %v6986 = vpop.f32.mrf.mxu0
  %v6987 = vadd.f32 0.0, %v6986
  %6988 = vmatmul.f32.gmra.mxu0 %v6656
  %v6989 = vpop.f32.mrf.mxu0
  %v6990 = vadd.f32 0.0, %v6989
  %6991 = vmatmul.f32.gmra.mxu0 %v6658
  %v6992 = vpop.f32.mrf.mxu0
  %v6993 = vadd.f32 0.0, %v6992
  %6994 = vmatmul.f32.gmra.mxu0 %v6660
  %v6995 = vpop.f32.mrf.mxu0
  %v6996 = vadd.f32 0.0, %v6995
  %6997 = vmatmul.f32.gmra.mxu0 %v6662
  %v6998 = vpop.f32.mrf.mxu0
  %v6999 = vadd.f32 0.0, %v6998
  %7000 = vmatmul.f32.gmra.mxu0 %v6664
  %v7001 = vpop.f32.mrf.mxu0
  %v7002 = vadd.f32 0.0, %v7001
  %7003 = vmatmul.f32.gmra.mxu0 %v6666
  %v7004 = vpop.f32.mrf.mxu0
  %v7005 = vadd.f32 0.0, %v7004
  %7006 = vmatmul.f32.gmra.mxu0 %v6668
  %v7007 = vpop.f32.mrf.mxu0
  %v7008 = vadd.f32 0.0, %v7007
  %7009 = vmatmul.f32.gmra.mxu0 %v6670
  %v7010 = vpop.f32.mrf.mxu0
  %v7011 = vadd.f32 0.0, %v7010
  %7012 = vmatmul.f32.gmra.mxu0 %v6672
  %v7013 = vpop.f32.mrf.mxu0
  %v7014 = vadd.f32 0.0, %v7013
  %7015 = vmatmul.f32.gmra.mxu0 %v6674
  %v7016 = vpop.f32.mrf.mxu0
  %v7017 = vadd.f32 0.0, %v7016
  %7018 = vmatmul.f32.gmra.mxu0 %v6676
  %v7019 = vpop.f32.mrf.mxu0
  %v7020 = vadd.f32 0.0, %v7019
  %7021 = vmatmul.f32.gmra.mxu0 %v6678
  %v7022 = vpop.f32.mrf.mxu0
  %v7023 = vadd.f32 0.0, %v7022
  %7024 = vmatmul.f32.gmra.mxu0 %v6680
  %v7025 = vpop.f32.mrf.mxu0
  %v7026 = vadd.f32 0.0, %v7025
  %7027 = vmatmul.f32.gmra.mxu0 %v6682
  %v7028 = vpop.f32.mrf.mxu0
  %v7029 = vadd.f32 0.0, %v7028
  %7030 = vmatmul.f32.gmra.mxu0 %v6684
  %v7031 = vpop.f32.mrf.mxu0
  %v7032 = vadd.f32 0.0, %v7031
  %7033 = vmatmul.f32.gmra.mxu0 %v6686
  %v7034 = vpop.f32.mrf.mxu0
  %v7035 = vadd.f32 0.0, %v7034
  %7036 = vmatmul.f32.gmra.mxu0 %v6688
  %v7037 = vpop.f32.mrf.mxu0
  %v7038 = vadd.f32 0.0, %v7037
  %7039 = vmatmul.f32.gmra.mxu0 %v6690
  %v7040 = vpop.f32.mrf.mxu0
  %v7041 = vadd.f32 0.0, %v7040
  %7042 = vmatmul.f32.gmra.mxu0 %v6692
  %v7043 = vpop.f32.mrf.mxu0
  %v7044 = vadd.f32 0.0, %v7043
  %7045 = vmatmul.f32.gmra.mxu0 %v6694
  %v7046 = vpop.f32.mrf.mxu0
  %v7047 = vadd.f32 0.0, %v7046
  %7048 = vmatmul.f32.gmra.mxu0 %v6696
  %v7049 = vpop.f32.mrf.mxu0
  %v7050 = vadd.f32 0.0, %v7049
  %7051 = vmatmul.f32.gmra.mxu0 %v6698
  %v7052 = vpop.f32.mrf.mxu0
  %v7053 = vadd.f32 0.0, %v7052
  %7054 = vmatmul.f32.gmra.mxu0 %v6700
  %v7055 = vpop.f32.mrf.mxu0
  %v7056 = vadd.f32 0.0, %v7055
  %7057 = vmatmul.f32.gmra.mxu0 %v6702
  %v7058 = vpop.f32.mrf.mxu0
  %v7059 = vadd.f32 0.0, %v7058
  %7060 = vmatmul.f32.gmra.mxu0 %v6704
  %v7061 = vpop.f32.mrf.mxu0
  %v7062 = vadd.f32 0.0, %v7061
  %7063 = vmatmul.f32.gmra.mxu0 %v6706
  %v7064 = vpop.f32.mrf.mxu0
  %v7065 = vadd.f32 0.0, %v7064
  %7066 = vmatmul.f32.gmra.mxu0 %v6708
  %v7067 = vpop.f32.mrf.mxu0
  %v7068 = vadd.f32 0.0, %v7067
  %7069 = vmatmul.f32.gmra.mxu0 %v6710
  %v7070 = vpop.f32.mrf.mxu0
  %v7071 = vadd.f32 0.0, %v7070
  %7072 = vmatmul.f32.gmra.mxu0 %v6712
  %v7073 = vpop.f32.mrf.mxu0
  %v7074 = vadd.f32 0.0, %v7073
  %7075 = vmatmul.f32.gmra.mxu0 %v6714
  %v7076 = vpop.f32.mrf.mxu0
  %v7077 = vadd.f32 0.0, %v7076
  %7078 = vmatmul.f32.gmra.mxu0 %v6716
  %v7079 = vpop.f32.mrf.mxu0
  %v7080 = vadd.f32 0.0, %v7079
  %7081 = vmatmul.f32.gmra.mxu0 %v6718
  %v7082 = vpop.f32.mrf.mxu0
  %v7083 = vadd.f32 0.0, %v7082
  %7084 = vmatmul.f32.gmra.mxu0 %v6720
  %v7085 = vpop.f32.mrf.mxu0
  %v7086 = vadd.f32 0.0, %v7085
  %7087 = vmatmul.f32.gmra.mxu0 %v6722
  %v7088 = vpop.f32.mrf.mxu0
  %v7089 = vadd.f32 0.0, %v7088
  %7090 = vmatmul.f32.gmra.mxu0 %v6724
  %v7091 = vpop.f32.mrf.mxu0
  %v7092 = vadd.f32 0.0, %v7091
  %7093 = vmatmul.f32.gmra.mxu0 %v6726
  %v7094 = vpop.f32.mrf.mxu0
  %v7095 = vadd.f32 0.0, %v7094
  %7096 = vmatmul.f32.gmra.mxu0 %v6728
  %v7097 = vpop.f32.mrf.mxu0
  %v7098 = vadd.f32 0.0, %v7097
  %7099 = vmatmul.f32.gmra.mxu0 %v6730
  %v7100 = vpop.f32.mrf.mxu0
  %v7101 = vadd.f32 0.0, %v7100
  %7102 = vmatmul.f32.gmra.mxu0 %v6732
  %v7103 = vpop.f32.mrf.mxu0
  %v7104 = vadd.f32 0.0, %v7103
  %7105 = vmatmul.f32.gmra.mxu0 %v6734
  %v7106 = vpop.f32.mrf.mxu0
  %v7107 = vadd.f32 0.0, %v7106
  %7108 = vmatmul.f32.gmra.mxu0 %v6736
  %v7109 = vpop.f32.mrf.mxu0
  %v7110 = vadd.f32 0.0, %v7109
  %7111 = vmatmul.f32.gmra.mxu0 %v6738
  %v7112 = vpop.f32.mrf.mxu0
  %v7113 = vadd.f32 0.0, %v7112
  %7114 = vmatmul.f32.gmra.mxu0 %v6740
  %v7115 = vpop.f32.mrf.mxu0
  %v7116 = vadd.f32 0.0, %v7115
  %7117 = vmatmul.f32.gmra.mxu0 %v6742
  %v7118 = vpop.f32.mrf.mxu0
  %v7119 = vadd.f32 0.0, %v7118
  %7120 = vmatmul.f32.gmra.mxu0 %v6744
  %v7121 = vpop.f32.mrf.mxu0
  %v7122 = vadd.f32 0.0, %v7121
  %7123 = vmatmul.f32.gmra.mxu0 %v6746
  %v7124 = vpop.f32.mrf.mxu0
  %v7125 = vadd.f32 0.0, %v7124
  %7126 = vmatmul.f32.gmra.mxu0 %v6748
  %v7127 = vpop.f32.mrf.mxu0
  %v7128 = vadd.f32 0.0, %v7127
  %7129 = vmatmul.f32.gmra.mxu0 %v6750
  %v7130 = vpop.f32.mrf.mxu0
  %v7131 = vadd.f32 0.0, %v7130
  %7132 = vmatmul.f32.gmra.mxu0 %v6752
  %v7133 = vpop.f32.mrf.mxu0
  %v7134 = vadd.f32 0.0, %v7133
  %7135 = vmatmul.f32.gmra.mxu0 %v6754
  %v7136 = vpop.f32.mrf.mxu0
  %v7137 = vadd.f32 0.0, %v7136
  %7138 = vmatmul.f32.gmra.mxu0 %v6756
  %v7139 = vpop.f32.mrf.mxu0
  %v7140 = vadd.f32 0.0, %v7139
  %7141 = vmatmul.f32.gmra.mxu0 %v6758
  %v7142 = vpop.f32.mrf.mxu0
  %v7143 = vadd.f32 0.0, %v7142
  %7144 = vmatmul.f32.gmra.mxu0 %v6760
  %v7145 = vpop.f32.mrf.mxu0
  %v7146 = vadd.f32 0.0, %v7145
  %7147 = vmatmul.f32.gmra.mxu0 %v6762
  %v7148 = vpop.f32.mrf.mxu0
  %v7149 = vadd.f32 0.0, %v7148
  %7150 = vmatmul.f32.gmra.mxu0 %v6764
  %v7151 = vpop.f32.mrf.mxu0
  %v7152 = vadd.f32 0.0, %v7151
  %7153 = vmatmul.f32.gmra.mxu0 %v6766
  %v7154 = vpop.f32.mrf.mxu0
  %v7155 = vadd.f32 0.0, %v7154
  %7156 = vmatmul.f32.gmra.mxu0 %v6768
  %v7157 = vpop.f32.mrf.mxu0
  %v7158 = vadd.f32 0.0, %v7157
  %7159 = vmatmul.f32.gmra.mxu0 %v6770
  %v7160 = vpop.f32.mrf.mxu0
  %v7161 = vadd.f32 0.0, %v7160
  %7162 = vmatmul.f32.gmra.mxu0 %v6772
  %v7163 = vpop.f32.mrf.mxu0
  %v7164 = vadd.f32 0.0, %v7163
  %7165 = vmatmul.f32.gmra.mxu0 %v6774
  %v7166 = vpop.f32.mrf.mxu0
  %v7167 = vadd.f32 0.0, %v7166
  %7168 = vmatmul.f32.gmra.mxu0 %v6776
  %v7169 = vpop.f32.mrf.mxu0
  %v7170 = vadd.f32 0.0, %v7169
  %7171 = vmatmul.f32.gmra.mxu0 %v6778
  %v7172 = vpop.f32.mrf.mxu0
  %v7173 = vadd.f32 0.0, %v7172
  %7174 = vmatmul.f32.gmra.mxu0 %v6780
  %v7175 = vpop.f32.mrf.mxu0
  %v7176 = vadd.f32 0.0, %v7175
  %7177 = vmatmul.f32.gmra.mxu0 %v6782
  %v7178 = vpop.f32.mrf.mxu0
  %v7179 = vadd.f32 0.0, %v7178
  %7180 = vmatmul.f32.gmra.mxu0 %v6784
  %v7181 = vpop.f32.mrf.mxu0
  %v7182 = vadd.f32 0.0, %v7181
  %7183 = vmatmul.f32.gmra.mxu0 %v6786
  %v7184 = vpop.f32.mrf.mxu0
  %v7185 = vadd.f32 0.0, %v7184
  %7186 = vmatmul.f32.gmra.mxu0 %v6788
  %v7187 = vpop.f32.mrf.mxu0
  %v7188 = vadd.f32 0.0, %v7187
  %7189 = vmatmul.f32.gmra.mxu0 %v6790
  %v7190 = vpop.f32.mrf.mxu0
  %v7191 = vadd.f32 0.0, %v7190
  %7192 = vdwg.mxu0
  %v7193 = vadd.f32 %v6150, %v6810
  %v7194 = vadd.f32 %v6151, %v6813
  %v7195 = vadd.f32 %v6152, %v6816
  %v7196 = vadd.f32 %v6153, %v6819
  %v7197 = vadd.f32 %v6154, %v6822
  %v7198 = vadd.f32 %v6155, %v6825
  %v7199 = vadd.f32 %v6156, %v6828
  %v7200 = vadd.f32 %v6157, %v6831
  %v7201 = vadd.f32 %v6158, %v6834
  %v7202 = vadd.f32 %v6159, %v6837
  %v7203 = vadd.f32 %v6160, %v6840
  %v7204 = vadd.f32 %v6161, %v6843
  %v7205 = vadd.f32 %v6162, %v6846
  %v7206 = vadd.f32 %v6163, %v6849
  %v7207 = vadd.f32 %v6164, %v6852
  %v7208 = vadd.f32 %v6165, %v6855
  %v7209 = vadd.f32 %v6166, %v6858
  %v7210 = vadd.f32 %v6167, %v6861
  %v7211 = vadd.f32 %v6168, %v6864
  %v7212 = vadd.f32 %v6169, %v6867
  %v7213 = vadd.f32 %v6170, %v6870
  %v7214 = vadd.f32 %v6171, %v6873
  %v7215 = vadd.f32 %v6172, %v6876
  %v7216 = vadd.f32 %v6173, %v6879
  %v7217 = vadd.f32 %v6174, %v6882
  %v7218 = vadd.f32 %v6175, %v6885
  %v7219 = vadd.f32 %v6176, %v6888
  %v7220 = vadd.f32 %v6177, %v6891
  %v7221 = vadd.f32 %v6178, %v6894
  %v7222 = vadd.f32 %v6179, %v6897
  %v7223 = vadd.f32 %v6180, %v6900
  %v7224 = vadd.f32 %v6181, %v6903
  %v7225 = vadd.f32 %v6182, %v6906
  %v7226 = vadd.f32 %v6183, %v6909
  %v7227 = vadd.f32 %v6184, %v6912
  %v7228 = vadd.f32 %v6185, %v6915
  %v7229 = vadd.f32 %v6186, %v6918
  %v7230 = vadd.f32 %v6187, %v6921
  %v7231 = vadd.f32 %v6188, %v6924
  %v7232 = vadd.f32 %v6189, %v6927
  %v7233 = vadd.f32 %v6190, %v6930
  %v7234 = vadd.f32 %v6191, %v6933
  %v7235 = vadd.f32 %v6192, %v6936
  %v7236 = vadd.f32 %v6193, %v6939
  %v7237 = vadd.f32 %v6194, %v6942
  %v7238 = vadd.f32 %v6195, %v6945
  %v7239 = vadd.f32 %v6196, %v6948
  %v7240 = vadd.f32 %v6197, %v6951
  %v7241 = vadd.f32 %v6198, %v6954
  %v7242 = vadd.f32 %v6199, %v6957
  %v7243 = vadd.f32 %v6200, %v6960
  %v7244 = vadd.f32 %v6201, %v6963
  %v7245 = vadd.f32 %v6202, %v6966
  %v7246 = vadd.f32 %v6203, %v6969
  %v7247 = vadd.f32 %v6204, %v6972
  %v7248 = vadd.f32 %v6205, %v6975
  %v7249 = vadd.f32 %v6206, %v6978
  %v7250 = vadd.f32 %v6207, %v6981
  %v7251 = vadd.f32 %v6208, %v6984
  %v7252 = vadd.f32 %v6209, %v6987
  %v7253 = vadd.f32 %v6210, %v6990
  %v7254 = vadd.f32 %v6211, %v6993
  %v7255 = vadd.f32 %v6212, %v6996
  %v7256 = vadd.f32 %v6213, %v6999
  %v7257 = vadd.f32 %v6214, %v7002
  %v7258 = vadd.f32 %v6215, %v7005
  %v7259 = vadd.f32 %v6216, %v7008
  %v7260 = vadd.f32 %v6217, %v7011
  %v7261 = vadd.f32 %v6218, %v7014
  %v7262 = vadd.f32 %v6219, %v7017
  %v7263 = vadd.f32 %v6220, %v7020
  %v7264 = vadd.f32 %v6221, %v7023
  %v7265 = vadd.f32 %v6222, %v7026
  %v7266 = vadd.f32 %v6223, %v7029
  %v7267 = vadd.f32 %v6224, %v7032
  %v7268 = vadd.f32 %v6225, %v7035
  %v7269 = vadd.f32 %v6226, %v7038
  %v7270 = vadd.f32 %v6227, %v7041
  %v7271 = vadd.f32 %v6228, %v7044
  %v7272 = vadd.f32 %v6229, %v7047
  %v7273 = vadd.f32 %v6230, %v7050
  %v7274 = vadd.f32 %v6231, %v7053
  %v7275 = vadd.f32 %v6232, %v7056
  %v7276 = vadd.f32 %v6233, %v7059
  %v7277 = vadd.f32 %v6234, %v7062
  %v7278 = vadd.f32 %v6235, %v7065
  %v7279 = vadd.f32 %v6236, %v7068
  %v7280 = vadd.f32 %v6237, %v7071
  %v7281 = vadd.f32 %v6238, %v7074
  %v7282 = vadd.f32 %v6239, %v7077
  %v7283 = vadd.f32 %v6240, %v7080
  %v7284 = vadd.f32 %v6241, %v7083
  %v7285 = vadd.f32 %v6242, %v7086
  %v7286 = vadd.f32 %v6243, %v7089
  %v7287 = vadd.f32 %v6244, %v7092
  %v7288 = vadd.f32 %v6245, %v7095
  %v7289 = vadd.f32 %v6246, %v7098
  %v7290 = vadd.f32 %v6247, %v7101
  %v7291 = vadd.f32 %v6248, %v7104
  %v7292 = vadd.f32 %v6249, %v7107
  %v7293 = vadd.f32 %v6250, %v7110
  %v7294 = vadd.f32 %v6251, %v7113
  %v7295 = vadd.f32 %v6252, %v7116
  %v7296 = vadd.f32 %v6253, %v7119
  %v7297 = vadd.f32 %v6254, %v7122
  %v7298 = vadd.f32 %v6255, %v7125
  %v7299 = vadd.f32 %v6256, %v7128
  %v7300 = vadd.f32 %v6257, %v7131
  %v7301 = vadd.f32 %v6258, %v7134
  %v7302 = vadd.f32 %v6259, %v7137
  %v7303 = vadd.f32 %v6260, %v7140
  %v7304 = vadd.f32 %v6261, %v7143
  %v7305 = vadd.f32 %v6262, %v7146
  %v7306 = vadd.f32 %v6263, %v7149
  %v7307 = vadd.f32 %v6264, %v7152
  %v7308 = vadd.f32 %v6265, %v7155
  %v7309 = vadd.f32 %v6266, %v7158
  %v7310 = vadd.f32 %v6267, %v7161
  %v7311 = vadd.f32 %v6268, %v7164
  %v7312 = vadd.f32 %v6269, %v7167
  %v7313 = vadd.f32 %v6270, %v7170
  %v7314 = vadd.f32 %v6271, %v7173
  %v7315 = vadd.f32 %v6272, %v7176
  %v7316 = vadd.f32 %v6273, %v7179
  %v7317 = vadd.f32 %v6274, %v7182
  %v7318 = vadd.f32 %v6275, %v7185
  %v7319 = vadd.f32 %v6276, %v7188
  %v7320 = vadd.f32 %v6277, %v7191
  %v7321 = vld [vmem:[%s2 + $0x50] sm:$0xff]
  %v7322 = vld [vmem:[%s2 + $0x58] sm:$0xff]
  %7323 = vrot.lane.b32.xlu0 %v807, 96
  %v7324 = vpop.permute.xlu0 %7323
  %7325 = vrot.lane.b32.xlu0 %v808, 96
  %v7326 = vpop.permute.xlu0 %7325
  %7327 = vrot.lane.b32.xlu0 %v809, 96
  %v7328 = vpop.permute.xlu0 %7327
  %7329 = vrot.lane.b32.xlu0 %v810, 96
  %v7330 = vpop.permute.xlu0 %7329
  %7331 = vrot.lane.b32.xlu0 %v811, 96
  %v7332 = vpop.permute.xlu0 %7331
  %7333 = vrot.lane.b32.xlu0 %v812, 96
  %v7334 = vpop.permute.xlu0 %7333
  %7335 = vrot.lane.b32.xlu0 %v813, 96
  %v7336 = vpop.permute.xlu0 %7335
  %7337 = vrot.lane.b32.xlu0 %v814, 96
  %v7338 = vpop.permute.xlu0 %7337
  %7339 = vrot.lane.b32.xlu0 %v815, 96
  %v7340 = vpop.permute.xlu0 %7339
  %7341 = vrot.lane.b32.xlu0 %v816, 96
  %v7342 = vpop.permute.xlu0 %7341
  %7343 = vrot.lane.b32.xlu0 %v817, 96
  %v7344 = vpop.permute.xlu0 %7343
  %7345 = vrot.lane.b32.xlu0 %v818, 96
  %v7346 = vpop.permute.xlu0 %7345
  %7347 = vrot.lane.b32.xlu0 %v819, 96
  %v7348 = vpop.permute.xlu0 %7347
  %7349 = vrot.lane.b32.xlu0 %v820, 96
  %v7350 = vpop.permute.xlu0 %7349
  %7351 = vrot.lane.b32.xlu0 %v821, 96
  %v7352 = vpop.permute.xlu0 %7351
  %7353 = vrot.lane.b32.xlu0 %v822, 96
  %v7354 = vpop.permute.xlu0 %7353
  %7355 = vrot.lane.b32.xlu0 %v823, 96
  %v7356 = vpop.permute.xlu0 %7355
  %7357 = vrot.lane.b32.xlu0 %v824, 96
  %v7358 = vpop.permute.xlu0 %7357
  %7359 = vrot.lane.b32.xlu0 %v825, 96
  %v7360 = vpop.permute.xlu0 %7359
  %7361 = vrot.lane.b32.xlu0 %v826, 96
  %v7362 = vpop.permute.xlu0 %7361
  %7363 = vrot.lane.b32.xlu0 %v827, 96
  %v7364 = vpop.permute.xlu0 %7363
  %7365 = vrot.lane.b32.xlu0 %v828, 96
  %v7366 = vpop.permute.xlu0 %7365
  %7367 = vrot.lane.b32.xlu0 %v829, 96
  %v7368 = vpop.permute.xlu0 %7367
  %7369 = vrot.lane.b32.xlu0 %v830, 96
  %v7370 = vpop.permute.xlu0 %7369
  %7371 = vrot.lane.b32.xlu0 %v831, 96
  %v7372 = vpop.permute.xlu0 %7371
  %7373 = vrot.lane.b32.xlu0 %v832, 96
  %v7374 = vpop.permute.xlu0 %7373
  %7375 = vrot.lane.b32.xlu0 %v833, 96
  %v7376 = vpop.permute.xlu0 %7375
  %7377 = vrot.lane.b32.xlu0 %v834, 96
  %v7378 = vpop.permute.xlu0 %7377
  %7379 = vrot.lane.b32.xlu0 %v835, 96
  %v7380 = vpop.permute.xlu0 %7379
  %7381 = vrot.lane.b32.xlu0 %v836, 96
  %v7382 = vpop.permute.xlu0 %7381
  %7383 = vrot.lane.b32.xlu0 %v837, 96
  %v7384 = vpop.permute.xlu0 %7383
  %7385 = vrot.lane.b32.xlu0 %v838, 96
  %v7386 = vpop.permute.xlu0 %7385
  %7387 = vrot.lane.b32.xlu0 %v839, 96
  %v7388 = vpop.permute.xlu0 %7387
  %7389 = vrot.lane.b32.xlu0 %v840, 96
  %v7390 = vpop.permute.xlu0 %7389
  %7391 = vrot.lane.b32.xlu0 %v841, 96
  %v7392 = vpop.permute.xlu0 %7391
  %7393 = vrot.lane.b32.xlu0 %v842, 96
  %v7394 = vpop.permute.xlu0 %7393
  %7395 = vrot.lane.b32.xlu0 %v843, 96
  %v7396 = vpop.permute.xlu0 %7395
  %7397 = vrot.lane.b32.xlu0 %v844, 96
  %v7398 = vpop.permute.xlu0 %7397
  %7399 = vrot.lane.b32.xlu0 %v845, 96
  %v7400 = vpop.permute.xlu0 %7399
  %7401 = vrot.lane.b32.xlu0 %v846, 96
  %v7402 = vpop.permute.xlu0 %7401
  %7403 = vrot.lane.b32.xlu0 %v847, 96
  %v7404 = vpop.permute.xlu0 %7403
  %7405 = vrot.lane.b32.xlu0 %v848, 96
  %v7406 = vpop.permute.xlu0 %7405
  %7407 = vrot.lane.b32.xlu0 %v849, 96
  %v7408 = vpop.permute.xlu0 %7407
  %7409 = vrot.lane.b32.xlu0 %v850, 96
  %v7410 = vpop.permute.xlu0 %7409
  %7411 = vrot.lane.b32.xlu0 %v851, 96
  %v7412 = vpop.permute.xlu0 %7411
  %7413 = vrot.lane.b32.xlu0 %v852, 96
  %v7414 = vpop.permute.xlu0 %7413
  %7415 = vrot.lane.b32.xlu0 %v853, 96
  %v7416 = vpop.permute.xlu0 %7415
  %7417 = vrot.lane.b32.xlu0 %v854, 96
  %v7418 = vpop.permute.xlu0 %7417
  %7419 = vrot.lane.b32.xlu0 %v855, 96
  %v7420 = vpop.permute.xlu0 %7419
  %7421 = vrot.lane.b32.xlu0 %v856, 96
  %v7422 = vpop.permute.xlu0 %7421
  %7423 = vrot.lane.b32.xlu0 %v857, 96
  %v7424 = vpop.permute.xlu0 %7423
  %7425 = vrot.lane.b32.xlu0 %v858, 96
  %v7426 = vpop.permute.xlu0 %7425
  %7427 = vrot.lane.b32.xlu0 %v859, 96
  %v7428 = vpop.permute.xlu0 %7427
  %7429 = vrot.lane.b32.xlu0 %v860, 96
  %v7430 = vpop.permute.xlu0 %7429
  %7431 = vrot.lane.b32.xlu0 %v861, 96
  %v7432 = vpop.permute.xlu0 %7431
  %7433 = vrot.lane.b32.xlu0 %v862, 96
  %v7434 = vpop.permute.xlu0 %7433
  %7435 = vrot.lane.b32.xlu0 %v863, 96
  %v7436 = vpop.permute.xlu0 %7435
  %7437 = vrot.lane.b32.xlu0 %v864, 96
  %v7438 = vpop.permute.xlu0 %7437
  %7439 = vrot.lane.b32.xlu0 %v865, 96
  %v7440 = vpop.permute.xlu0 %7439
  %7441 = vrot.lane.b32.xlu0 %v866, 96
  %v7442 = vpop.permute.xlu0 %7441
  %7443 = vrot.lane.b32.xlu0 %v867, 96
  %v7444 = vpop.permute.xlu0 %7443
  %7445 = vrot.lane.b32.xlu0 %v868, 96
  %v7446 = vpop.permute.xlu0 %7445
  %7447 = vrot.lane.b32.xlu0 %v869, 96
  %v7448 = vpop.permute.xlu0 %7447
  %7449 = vrot.lane.b32.xlu0 %v870, 96
  %v7450 = vpop.permute.xlu0 %7449
  %7451 = vrot.lane.b32.xlu0 %v871, 96
  %v7452 = vpop.permute.xlu0 %7451
  %7453 = vrot.lane.b32.xlu0 %v872, 96
  %v7454 = vpop.permute.xlu0 %7453
  %7455 = vrot.lane.b32.xlu0 %v873, 96
  %v7456 = vpop.permute.xlu0 %7455
  %7457 = vrot.lane.b32.xlu0 %v874, 96
  %v7458 = vpop.permute.xlu0 %7457
  %7459 = vrot.lane.b32.xlu0 %v875, 96
  %v7460 = vpop.permute.xlu0 %7459
  %7461 = vrot.lane.b32.xlu0 %v876, 96
  %v7462 = vpop.permute.xlu0 %7461
  %7463 = vrot.lane.b32.xlu0 %v877, 96
  %v7464 = vpop.permute.xlu0 %7463
  %7465 = vrot.lane.b32.xlu0 %v878, 96
  %v7466 = vpop.permute.xlu0 %7465
  %7467 = vrot.lane.b32.xlu0 %v879, 96
  %v7468 = vpop.permute.xlu0 %7467
  %7469 = vrot.lane.b32.xlu0 %v880, 96
  %v7470 = vpop.permute.xlu0 %7469
  %7471 = vrot.lane.b32.xlu0 %v881, 96
  %v7472 = vpop.permute.xlu0 %7471
  %7473 = vrot.lane.b32.xlu0 %v882, 96
  %v7474 = vpop.permute.xlu0 %7473
  %7475 = vrot.lane.b32.xlu0 %v883, 96
  %v7476 = vpop.permute.xlu0 %7475
  %7477 = vrot.lane.b32.xlu0 %v884, 96
  %v7478 = vpop.permute.xlu0 %7477
  %7479 = vrot.lane.b32.xlu0 %v885, 96
  %v7480 = vpop.permute.xlu0 %7479
  %7481 = vrot.lane.b32.xlu0 %v886, 96
  %v7482 = vpop.permute.xlu0 %7481
  %7483 = vrot.lane.b32.xlu0 %v887, 96
  %v7484 = vpop.permute.xlu0 %7483
  %7485 = vrot.lane.b32.xlu0 %v888, 96
  %v7486 = vpop.permute.xlu0 %7485
  %7487 = vrot.lane.b32.xlu0 %v889, 96
  %v7488 = vpop.permute.xlu0 %7487
  %7489 = vrot.lane.b32.xlu0 %v890, 96
  %v7490 = vpop.permute.xlu0 %7489
  %7491 = vrot.lane.b32.xlu0 %v891, 96
  %v7492 = vpop.permute.xlu0 %7491
  %7493 = vrot.lane.b32.xlu0 %v892, 96
  %v7494 = vpop.permute.xlu0 %7493
  %7495 = vrot.lane.b32.xlu0 %v893, 96
  %v7496 = vpop.permute.xlu0 %7495
  %7497 = vrot.lane.b32.xlu0 %v894, 96
  %v7498 = vpop.permute.xlu0 %7497
  %7499 = vrot.lane.b32.xlu0 %v895, 96
  %v7500 = vpop.permute.xlu0 %7499
  %7501 = vrot.lane.b32.xlu0 %v896, 96
  %v7502 = vpop.permute.xlu0 %7501
  %7503 = vrot.lane.b32.xlu0 %v897, 96
  %v7504 = vpop.permute.xlu0 %7503
  %7505 = vrot.lane.b32.xlu0 %v898, 96
  %v7506 = vpop.permute.xlu0 %7505
  %7507 = vrot.lane.b32.xlu0 %v899, 96
  %v7508 = vpop.permute.xlu0 %7507
  %7509 = vrot.lane.b32.xlu0 %v900, 96
  %v7510 = vpop.permute.xlu0 %7509
  %7511 = vrot.lane.b32.xlu0 %v901, 96
  %v7512 = vpop.permute.xlu0 %7511
  %7513 = vrot.lane.b32.xlu0 %v902, 96
  %v7514 = vpop.permute.xlu0 %7513
  %7515 = vrot.lane.b32.xlu0 %v903, 96
  %v7516 = vpop.permute.xlu0 %7515
  %7517 = vrot.lane.b32.xlu0 %v904, 96
  %v7518 = vpop.permute.xlu0 %7517
  %7519 = vrot.lane.b32.xlu0 %v905, 96
  %v7520 = vpop.permute.xlu0 %7519
  %7521 = vrot.lane.b32.xlu0 %v906, 96
  %v7522 = vpop.permute.xlu0 %7521
  %7523 = vrot.lane.b32.xlu0 %v907, 96
  %v7524 = vpop.permute.xlu0 %7523
  %7525 = vrot.lane.b32.xlu0 %v908, 96
  %v7526 = vpop.permute.xlu0 %7525
  %7527 = vrot.lane.b32.xlu0 %v909, 96
  %v7528 = vpop.permute.xlu0 %7527
  %7529 = vrot.lane.b32.xlu0 %v910, 96
  %v7530 = vpop.permute.xlu0 %7529
  %7531 = vrot.lane.b32.xlu0 %v911, 96
  %v7532 = vpop.permute.xlu0 %7531
  %7533 = vrot.lane.b32.xlu0 %v912, 96
  %v7534 = vpop.permute.xlu0 %7533
  %7535 = vrot.lane.b32.xlu0 %v913, 96
  %v7536 = vpop.permute.xlu0 %7535
  %7537 = vrot.lane.b32.xlu0 %v914, 96
  %v7538 = vpop.permute.xlu0 %7537
  %7539 = vrot.lane.b32.xlu0 %v915, 96
  %v7540 = vpop.permute.xlu0 %7539
  %7541 = vrot.lane.b32.xlu0 %v916, 96
  %v7542 = vpop.permute.xlu0 %7541
  %7543 = vrot.lane.b32.xlu0 %v917, 96
  %v7544 = vpop.permute.xlu0 %7543
  %7545 = vrot.lane.b32.xlu0 %v918, 96
  %v7546 = vpop.permute.xlu0 %7545
  %7547 = vrot.lane.b32.xlu0 %v919, 96
  %v7548 = vpop.permute.xlu0 %7547
  %7549 = vrot.lane.b32.xlu0 %v920, 96
  %v7550 = vpop.permute.xlu0 %7549
  %7551 = vrot.lane.b32.xlu0 %v921, 96
  %v7552 = vpop.permute.xlu0 %7551
  %7553 = vrot.lane.b32.xlu0 %v922, 96
  %v7554 = vpop.permute.xlu0 %7553
  %7555 = vrot.lane.b32.xlu0 %v923, 96
  %v7556 = vpop.permute.xlu0 %7555
  %7557 = vrot.lane.b32.xlu0 %v924, 96
  %v7558 = vpop.permute.xlu0 %7557
  %7559 = vrot.lane.b32.xlu0 %v925, 96
  %v7560 = vpop.permute.xlu0 %7559
  %7561 = vrot.lane.b32.xlu0 %v926, 96
  %v7562 = vpop.permute.xlu0 %7561
  %7563 = vrot.lane.b32.xlu0 %v927, 96
  %v7564 = vpop.permute.xlu0 %7563
  %7565 = vrot.lane.b32.xlu0 %v928, 96
  %v7566 = vpop.permute.xlu0 %7565
  %7567 = vrot.lane.b32.xlu0 %v929, 96
  %v7568 = vpop.permute.xlu0 %7567
  %7569 = vrot.lane.b32.xlu0 %v930, 96
  %v7570 = vpop.permute.xlu0 %7569
  %7571 = vrot.lane.b32.xlu0 %v931, 96
  %v7572 = vpop.permute.xlu0 %7571
  %7573 = vrot.lane.b32.xlu0 %v932, 96
  %v7574 = vpop.permute.xlu0 %7573
  %7575 = vrot.lane.b32.xlu0 %v933, 96
  %v7576 = vpop.permute.xlu0 %7575
  %7577 = vrot.lane.b32.xlu0 %v934, 96
  %v7578 = vpop.permute.xlu0 %7577
  %v7579 = vsel %vm937, %v7324, 0
  %v7581 = vsel %vm937, %v7326, 0
  %v7583 = vsel %vm937, %v7328, 0
  %v7585 = vsel %vm937, %v7330, 0
  %v7587 = vsel %vm937, %v7332, 0
  %v7589 = vsel %vm937, %v7334, 0
  %v7591 = vsel %vm937, %v7336, 0
  %v7593 = vsel %vm937, %v7338, 0
  %v7595 = vsel %vm937, %v7340, 0
  %v7597 = vsel %vm937, %v7342, 0
  %v7599 = vsel %vm937, %v7344, 0
  %v7601 = vsel %vm937, %v7346, 0
  %v7603 = vsel %vm937, %v7348, 0
  %v7605 = vsel %vm937, %v7350, 0
  %v7607 = vsel %vm937, %v7352, 0
  %v7609 = vsel %vm937, %v7354, 0
  %v7611 = vsel %vm937, %v7356, 0
  %v7613 = vsel %vm937, %v7358, 0
  %v7615 = vsel %vm937, %v7360, 0
  %v7617 = vsel %vm937, %v7362, 0
  %v7619 = vsel %vm937, %v7364, 0
  %v7621 = vsel %vm937, %v7366, 0
  %v7623 = vsel %vm937, %v7368, 0
  %v7625 = vsel %vm937, %v7370, 0
  %v7627 = vsel %vm937, %v7372, 0
  %v7629 = vsel %vm937, %v7374, 0
  %v7631 = vsel %vm937, %v7376, 0
  %v7633 = vsel %vm937, %v7378, 0
  %v7635 = vsel %vm937, %v7380, 0
  %v7637 = vsel %vm937, %v7382, 0
  %v7639 = vsel %vm937, %v7384, 0
  %v7641 = vsel %vm937, %v7386, 0
  %v7643 = vsel %vm937, %v7388, 0
  %v7645 = vsel %vm937, %v7390, 0
  %v7647 = vsel %vm937, %v7392, 0
  %v7649 = vsel %vm937, %v7394, 0
  %v7651 = vsel %vm937, %v7396, 0
  %v7653 = vsel %vm937, %v7398, 0
  %v7655 = vsel %vm937, %v7400, 0
  %v7657 = vsel %vm937, %v7402, 0
  %v7659 = vsel %vm937, %v7404, 0
  %v7661 = vsel %vm937, %v7406, 0
  %v7663 = vsel %vm937, %v7408, 0
  %v7665 = vsel %vm937, %v7410, 0
  %v7667 = vsel %vm937, %v7412, 0
  %v7669 = vsel %vm937, %v7414, 0
  %v7671 = vsel %vm937, %v7416, 0
  %v7673 = vsel %vm937, %v7418, 0
  %v7675 = vsel %vm937, %v7420, 0
  %v7677 = vsel %vm937, %v7422, 0
  %v7679 = vsel %vm937, %v7424, 0
  %v7681 = vsel %vm937, %v7426, 0
  %v7683 = vsel %vm937, %v7428, 0
  %v7685 = vsel %vm937, %v7430, 0
  %v7687 = vsel %vm937, %v7432, 0
  %v7689 = vsel %vm937, %v7434, 0
  %v7691 = vsel %vm937, %v7436, 0
  %v7693 = vsel %vm937, %v7438, 0
  %v7695 = vsel %vm937, %v7440, 0
  %v7697 = vsel %vm937, %v7442, 0
  %v7699 = vsel %vm937, %v7444, 0
  %v7701 = vsel %vm937, %v7446, 0
  %v7703 = vsel %vm937, %v7448, 0
  %v7705 = vsel %vm937, %v7450, 0
  %v7707 = vsel %vm937, %v7452, 0
  %v7709 = vsel %vm937, %v7454, 0
  %v7711 = vsel %vm937, %v7456, 0
  %v7713 = vsel %vm937, %v7458, 0
  %v7715 = vsel %vm937, %v7460, 0
  %v7717 = vsel %vm937, %v7462, 0
  %v7719 = vsel %vm937, %v7464, 0
  %v7721 = vsel %vm937, %v7466, 0
  %v7723 = vsel %vm937, %v7468, 0
  %v7725 = vsel %vm937, %v7470, 0
  %v7727 = vsel %vm937, %v7472, 0
  %v7729 = vsel %vm937, %v7474, 0
  %v7731 = vsel %vm937, %v7476, 0
  %v7733 = vsel %vm937, %v7478, 0
  %v7735 = vsel %vm937, %v7480, 0
  %v7737 = vsel %vm937, %v7482, 0
  %v7739 = vsel %vm937, %v7484, 0
  %v7741 = vsel %vm937, %v7486, 0
  %v7743 = vsel %vm937, %v7488, 0
  %v7745 = vsel %vm937, %v7490, 0
  %v7747 = vsel %vm937, %v7492, 0
  %v7749 = vsel %vm937, %v7494, 0
  %v7751 = vsel %vm937, %v7496, 0
  %v7753 = vsel %vm937, %v7498, 0
  %v7755 = vsel %vm937, %v7500, 0
  %v7757 = vsel %vm937, %v7502, 0
  %v7759 = vsel %vm937, %v7504, 0
  %v7761 = vsel %vm937, %v7506, 0
  %v7763 = vsel %vm937, %v7508, 0
  %v7765 = vsel %vm937, %v7510, 0
  %v7767 = vsel %vm937, %v7512, 0
  %v7769 = vsel %vm937, %v7514, 0
  %v7771 = vsel %vm937, %v7516, 0
  %v7773 = vsel %vm937, %v7518, 0
  %v7775 = vsel %vm937, %v7520, 0
  %v7777 = vsel %vm937, %v7522, 0
  %v7779 = vsel %vm937, %v7524, 0
  %v7781 = vsel %vm937, %v7526, 0
  %v7783 = vsel %vm937, %v7528, 0
  %v7785 = vsel %vm937, %v7530, 0
  %v7787 = vsel %vm937, %v7532, 0
  %v7789 = vsel %vm937, %v7534, 0
  %v7791 = vsel %vm937, %v7536, 0
  %v7793 = vsel %vm937, %v7538, 0
  %v7795 = vsel %vm937, %v7540, 0
  %v7797 = vsel %vm937, %v7542, 0
  %v7799 = vsel %vm937, %v7544, 0
  %v7801 = vsel %vm937, %v7546, 0
  %v7803 = vsel %vm937, %v7548, 0
  %v7805 = vsel %vm937, %v7550, 0
  %v7807 = vsel %vm937, %v7552, 0
  %v7809 = vsel %vm937, %v7554, 0
  %v7811 = vsel %vm937, %v7556, 0
  %v7813 = vsel %vm937, %v7558, 0
  %v7815 = vsel %vm937, %v7560, 0
  %v7817 = vsel %vm937, %v7562, 0
  %v7819 = vsel %vm937, %v7564, 0
  %v7821 = vsel %vm937, %v7566, 0
  %v7823 = vsel %vm937, %v7568, 0
  %v7825 = vsel %vm937, %v7570, 0
  %v7827 = vsel %vm937, %v7572, 0
  %v7829 = vsel %vm937, %v7574, 0
  %v7831 = vsel %vm937, %v7576, 0
  %v7833 = vsel %vm937, %v7578, 0
  %7835 = vmatpush.msra.mxu0 0.0
  %7836 = vmatpush.msra.mxu0 0.0
  %7837 = vmatpush.msra.mxu0 0.0
  %7838 = vmatpush.msra.mxu0 0.0
  %7839 = vmatpush.msra.mxu0 0.0
  %7840 = vmatpush.msra.mxu0 0.0
  %7841 = vmatpush.msra.mxu0 0.0
  %7842 = vmatpush.msra.mxu0 0.0
  %7843 = vmatpush.msra.mxu0 0.0
  %7844 = vmatpush.msra.mxu0 0.0
  %7845 = vmatpush.msra.mxu0 0.0
  %7846 = vmatpush.msra.mxu0 0.0
  %7847 = vmatpush.msra.mxu0 0.0
  %7848 = vmatpush.msra.mxu0 0.0
  %7849 = vmatpush.msra.mxu0 %v7322
  %7850 = vmatpush.msra.mxu0 %v7321
  %7851 = vmatmul.f32.gmra.mxu0 %v7579
  %v7852 = vpop.f32.mrf.mxu0
  %v7853 = vadd.f32 0.0, %v7852
  %7854 = vmatmul.f32.gmra.mxu0 %v7581
  %v7855 = vpop.f32.mrf.mxu0
  %v7856 = vadd.f32 0.0, %v7855
  %7857 = vmatmul.f32.gmra.mxu0 %v7583
  %v7858 = vpop.f32.mrf.mxu0
  %v7859 = vadd.f32 0.0, %v7858
  %7860 = vmatmul.f32.gmra.mxu0 %v7585
  %v7861 = vpop.f32.mrf.mxu0
  %v7862 = vadd.f32 0.0, %v7861
  %7863 = vmatmul.f32.gmra.mxu0 %v7587
  %v7864 = vpop.f32.mrf.mxu0
  %v7865 = vadd.f32 0.0, %v7864
  %7866 = vmatmul.f32.gmra.mxu0 %v7589
  %v7867 = vpop.f32.mrf.mxu0
  %v7868 = vadd.f32 0.0, %v7867
  %7869 = vmatmul.f32.gmra.mxu0 %v7591
  %v7870 = vpop.f32.mrf.mxu0
  %v7871 = vadd.f32 0.0, %v7870
  %7872 = vmatmul.f32.gmra.mxu0 %v7593
  %v7873 = vpop.f32.mrf.mxu0
  %v7874 = vadd.f32 0.0, %v7873
  %7875 = vmatmul.f32.gmra.mxu0 %v7595
  %v7876 = vpop.f32.mrf.mxu0
  %v7877 = vadd.f32 0.0, %v7876
  %7878 = vmatmul.f32.gmra.mxu0 %v7597
  %v7879 = vpop.f32.mrf.mxu0
  %v7880 = vadd.f32 0.0, %v7879
  %7881 = vmatmul.f32.gmra.mxu0 %v7599
  %v7882 = vpop.f32.mrf.mxu0
  %v7883 = vadd.f32 0.0, %v7882
  %7884 = vmatmul.f32.gmra.mxu0 %v7601
  %v7885 = vpop.f32.mrf.mxu0
  %v7886 = vadd.f32 0.0, %v7885
  %7887 = vmatmul.f32.gmra.mxu0 %v7603
  %v7888 = vpop.f32.mrf.mxu0
  %v7889 = vadd.f32 0.0, %v7888
  %7890 = vmatmul.f32.gmra.mxu0 %v7605
  %v7891 = vpop.f32.mrf.mxu0
  %v7892 = vadd.f32 0.0, %v7891
  %7893 = vmatmul.f32.gmra.mxu0 %v7607
  %v7894 = vpop.f32.mrf.mxu0
  %v7895 = vadd.f32 0.0, %v7894
  %7896 = vmatmul.f32.gmra.mxu0 %v7609
  %v7897 = vpop.f32.mrf.mxu0
  %v7898 = vadd.f32 0.0, %v7897
  %7899 = vmatmul.f32.gmra.mxu0 %v7611
  %v7900 = vpop.f32.mrf.mxu0
  %v7901 = vadd.f32 0.0, %v7900
  %7902 = vmatmul.f32.gmra.mxu0 %v7613
  %v7903 = vpop.f32.mrf.mxu0
  %v7904 = vadd.f32 0.0, %v7903
  %7905 = vmatmul.f32.gmra.mxu0 %v7615
  %v7906 = vpop.f32.mrf.mxu0
  %v7907 = vadd.f32 0.0, %v7906
  %7908 = vmatmul.f32.gmra.mxu0 %v7617
  %v7909 = vpop.f32.mrf.mxu0
  %v7910 = vadd.f32 0.0, %v7909
  %7911 = vmatmul.f32.gmra.mxu0 %v7619
  %v7912 = vpop.f32.mrf.mxu0
  %v7913 = vadd.f32 0.0, %v7912
  %7914 = vmatmul.f32.gmra.mxu0 %v7621
  %v7915 = vpop.f32.mrf.mxu0
  %v7916 = vadd.f32 0.0, %v7915
  %7917 = vmatmul.f32.gmra.mxu0 %v7623
  %v7918 = vpop.f32.mrf.mxu0
  %v7919 = vadd.f32 0.0, %v7918
  %7920 = vmatmul.f32.gmra.mxu0 %v7625
  %v7921 = vpop.f32.mrf.mxu0
  %v7922 = vadd.f32 0.0, %v7921
  %7923 = vmatmul.f32.gmra.mxu0 %v7627
  %v7924 = vpop.f32.mrf.mxu0
  %v7925 = vadd.f32 0.0, %v7924
  %7926 = vmatmul.f32.gmra.mxu0 %v7629
  %v7927 = vpop.f32.mrf.mxu0
  %v7928 = vadd.f32 0.0, %v7927
  %7929 = vmatmul.f32.gmra.mxu0 %v7631
  %v7930 = vpop.f32.mrf.mxu0
  %v7931 = vadd.f32 0.0, %v7930
  %7932 = vmatmul.f32.gmra.mxu0 %v7633
  %v7933 = vpop.f32.mrf.mxu0
  %v7934 = vadd.f32 0.0, %v7933
  %7935 = vmatmul.f32.gmra.mxu0 %v7635
  %v7936 = vpop.f32.mrf.mxu0
  %v7937 = vadd.f32 0.0, %v7936
  %7938 = vmatmul.f32.gmra.mxu0 %v7637
  %v7939 = vpop.f32.mrf.mxu0
  %v7940 = vadd.f32 0.0, %v7939
  %7941 = vmatmul.f32.gmra.mxu0 %v7639
  %v7942 = vpop.f32.mrf.mxu0
  %v7943 = vadd.f32 0.0, %v7942
  %7944 = vmatmul.f32.gmra.mxu0 %v7641
  %v7945 = vpop.f32.mrf.mxu0
  %v7946 = vadd.f32 0.0, %v7945
  %7947 = vmatmul.f32.gmra.mxu0 %v7643
  %v7948 = vpop.f32.mrf.mxu0
  %v7949 = vadd.f32 0.0, %v7948
  %7950 = vmatmul.f32.gmra.mxu0 %v7645
  %v7951 = vpop.f32.mrf.mxu0
  %v7952 = vadd.f32 0.0, %v7951
  %7953 = vmatmul.f32.gmra.mxu0 %v7647
  %v7954 = vpop.f32.mrf.mxu0
  %v7955 = vadd.f32 0.0, %v7954
  %7956 = vmatmul.f32.gmra.mxu0 %v7649
  %v7957 = vpop.f32.mrf.mxu0
  %v7958 = vadd.f32 0.0, %v7957
  %7959 = vmatmul.f32.gmra.mxu0 %v7651
  %v7960 = vpop.f32.mrf.mxu0
  %v7961 = vadd.f32 0.0, %v7960
  %7962 = vmatmul.f32.gmra.mxu0 %v7653
  %v7963 = vpop.f32.mrf.mxu0
  %v7964 = vadd.f32 0.0, %v7963
  %7965 = vmatmul.f32.gmra.mxu0 %v7655
  %v7966 = vpop.f32.mrf.mxu0
  %v7967 = vadd.f32 0.0, %v7966
  %7968 = vmatmul.f32.gmra.mxu0 %v7657
  %v7969 = vpop.f32.mrf.mxu0
  %v7970 = vadd.f32 0.0, %v7969
  %7971 = vmatmul.f32.gmra.mxu0 %v7659
  %v7972 = vpop.f32.mrf.mxu0
  %v7973 = vadd.f32 0.0, %v7972
  %7974 = vmatmul.f32.gmra.mxu0 %v7661
  %v7975 = vpop.f32.mrf.mxu0
  %v7976 = vadd.f32 0.0, %v7975
  %7977 = vmatmul.f32.gmra.mxu0 %v7663
  %v7978 = vpop.f32.mrf.mxu0
  %v7979 = vadd.f32 0.0, %v7978
  %7980 = vmatmul.f32.gmra.mxu0 %v7665
  %v7981 = vpop.f32.mrf.mxu0
  %v7982 = vadd.f32 0.0, %v7981
  %7983 = vmatmul.f32.gmra.mxu0 %v7667
  %v7984 = vpop.f32.mrf.mxu0
  %v7985 = vadd.f32 0.0, %v7984
  %7986 = vmatmul.f32.gmra.mxu0 %v7669
  %v7987 = vpop.f32.mrf.mxu0
  %v7988 = vadd.f32 0.0, %v7987
  %7989 = vmatmul.f32.gmra.mxu0 %v7671
  %v7990 = vpop.f32.mrf.mxu0
  %v7991 = vadd.f32 0.0, %v7990
  %7992 = vmatmul.f32.gmra.mxu0 %v7673
  %v7993 = vpop.f32.mrf.mxu0
  %v7994 = vadd.f32 0.0, %v7993
  %7995 = vmatmul.f32.gmra.mxu0 %v7675
  %v7996 = vpop.f32.mrf.mxu0
  %v7997 = vadd.f32 0.0, %v7996
  %7998 = vmatmul.f32.gmra.mxu0 %v7677
  %v7999 = vpop.f32.mrf.mxu0
  %v8000 = vadd.f32 0.0, %v7999
  %8001 = vmatmul.f32.gmra.mxu0 %v7679
  %v8002 = vpop.f32.mrf.mxu0
  %v8003 = vadd.f32 0.0, %v8002
  %8004 = vmatmul.f32.gmra.mxu0 %v7681
  %v8005 = vpop.f32.mrf.mxu0
  %v8006 = vadd.f32 0.0, %v8005
  %8007 = vmatmul.f32.gmra.mxu0 %v7683
  %v8008 = vpop.f32.mrf.mxu0
  %v8009 = vadd.f32 0.0, %v8008
  %8010 = vmatmul.f32.gmra.mxu0 %v7685
  %v8011 = vpop.f32.mrf.mxu0
  %v8012 = vadd.f32 0.0, %v8011
  %8013 = vmatmul.f32.gmra.mxu0 %v7687
  %v8014 = vpop.f32.mrf.mxu0
  %v8015 = vadd.f32 0.0, %v8014
  %8016 = vmatmul.f32.gmra.mxu0 %v7689
  %v8017 = vpop.f32.mrf.mxu0
  %v8018 = vadd.f32 0.0, %v8017
  %8019 = vmatmul.f32.gmra.mxu0 %v7691
  %v8020 = vpop.f32.mrf.mxu0
  %v8021 = vadd.f32 0.0, %v8020
  %8022 = vmatmul.f32.gmra.mxu0 %v7693
  %v8023 = vpop.f32.mrf.mxu0
  %v8024 = vadd.f32 0.0, %v8023
  %8025 = vmatmul.f32.gmra.mxu0 %v7695
  %v8026 = vpop.f32.mrf.mxu0
  %v8027 = vadd.f32 0.0, %v8026
  %8028 = vmatmul.f32.gmra.mxu0 %v7697
  %v8029 = vpop.f32.mrf.mxu0
  %v8030 = vadd.f32 0.0, %v8029
  %8031 = vmatmul.f32.gmra.mxu0 %v7699
  %v8032 = vpop.f32.mrf.mxu0
  %v8033 = vadd.f32 0.0, %v8032
  %8034 = vmatmul.f32.gmra.mxu0 %v7701
  %v8035 = vpop.f32.mrf.mxu0
  %v8036 = vadd.f32 0.0, %v8035
  %8037 = vmatmul.f32.gmra.mxu0 %v7703
  %v8038 = vpop.f32.mrf.mxu0
  %v8039 = vadd.f32 0.0, %v8038
  %8040 = vmatmul.f32.gmra.mxu0 %v7705
  %v8041 = vpop.f32.mrf.mxu0
  %v8042 = vadd.f32 0.0, %v8041
  %8043 = vmatmul.f32.gmra.mxu0 %v7707
  %v8044 = vpop.f32.mrf.mxu0
  %v8045 = vadd.f32 0.0, %v8044
  %8046 = vmatmul.f32.gmra.mxu0 %v7709
  %v8047 = vpop.f32.mrf.mxu0
  %v8048 = vadd.f32 0.0, %v8047
  %8049 = vmatmul.f32.gmra.mxu0 %v7711
  %v8050 = vpop.f32.mrf.mxu0
  %v8051 = vadd.f32 0.0, %v8050
  %8052 = vmatmul.f32.gmra.mxu0 %v7713
  %v8053 = vpop.f32.mrf.mxu0
  %v8054 = vadd.f32 0.0, %v8053
  %8055 = vmatmul.f32.gmra.mxu0 %v7715
  %v8056 = vpop.f32.mrf.mxu0
  %v8057 = vadd.f32 0.0, %v8056
  %8058 = vmatmul.f32.gmra.mxu0 %v7717
  %v8059 = vpop.f32.mrf.mxu0
  %v8060 = vadd.f32 0.0, %v8059
  %8061 = vmatmul.f32.gmra.mxu0 %v7719
  %v8062 = vpop.f32.mrf.mxu0
  %v8063 = vadd.f32 0.0, %v8062
  %8064 = vmatmul.f32.gmra.mxu0 %v7721
  %v8065 = vpop.f32.mrf.mxu0
  %v8066 = vadd.f32 0.0, %v8065
  %8067 = vmatmul.f32.gmra.mxu0 %v7723
  %v8068 = vpop.f32.mrf.mxu0
  %v8069 = vadd.f32 0.0, %v8068
  %8070 = vmatmul.f32.gmra.mxu0 %v7725
  %v8071 = vpop.f32.mrf.mxu0
  %v8072 = vadd.f32 0.0, %v8071
  %8073 = vmatmul.f32.gmra.mxu0 %v7727
  %v8074 = vpop.f32.mrf.mxu0
  %v8075 = vadd.f32 0.0, %v8074
  %8076 = vmatmul.f32.gmra.mxu0 %v7729
  %v8077 = vpop.f32.mrf.mxu0
  %v8078 = vadd.f32 0.0, %v8077
  %8079 = vmatmul.f32.gmra.mxu0 %v7731
  %v8080 = vpop.f32.mrf.mxu0
  %v8081 = vadd.f32 0.0, %v8080
  %8082 = vmatmul.f32.gmra.mxu0 %v7733
  %v8083 = vpop.f32.mrf.mxu0
  %v8084 = vadd.f32 0.0, %v8083
  %8085 = vmatmul.f32.gmra.mxu0 %v7735
  %v8086 = vpop.f32.mrf.mxu0
  %v8087 = vadd.f32 0.0, %v8086
  %8088 = vmatmul.f32.gmra.mxu0 %v7737
  %v8089 = vpop.f32.mrf.mxu0
  %v8090 = vadd.f32 0.0, %v8089
  %8091 = vmatmul.f32.gmra.mxu0 %v7739
  %v8092 = vpop.f32.mrf.mxu0
  %v8093 = vadd.f32 0.0, %v8092
  %8094 = vmatmul.f32.gmra.mxu0 %v7741
  %v8095 = vpop.f32.mrf.mxu0
  %v8096 = vadd.f32 0.0, %v8095
  %8097 = vmatmul.f32.gmra.mxu0 %v7743
  %v8098 = vpop.f32.mrf.mxu0
  %v8099 = vadd.f32 0.0, %v8098
  %8100 = vmatmul.f32.gmra.mxu0 %v7745
  %v8101 = vpop.f32.mrf.mxu0
  %v8102 = vadd.f32 0.0, %v8101
  %8103 = vmatmul.f32.gmra.mxu0 %v7747
  %v8104 = vpop.f32.mrf.mxu0
  %v8105 = vadd.f32 0.0, %v8104
  %8106 = vmatmul.f32.gmra.mxu0 %v7749
  %v8107 = vpop.f32.mrf.mxu0
  %v8108 = vadd.f32 0.0, %v8107
  %8109 = vmatmul.f32.gmra.mxu0 %v7751
  %v8110 = vpop.f32.mrf.mxu0
  %v8111 = vadd.f32 0.0, %v8110
  %8112 = vmatmul.f32.gmra.mxu0 %v7753
  %v8113 = vpop.f32.mrf.mxu0
  %v8114 = vadd.f32 0.0, %v8113
  %8115 = vmatmul.f32.gmra.mxu0 %v7755
  %v8116 = vpop.f32.mrf.mxu0
  %v8117 = vadd.f32 0.0, %v8116
  %8118 = vmatmul.f32.gmra.mxu0 %v7757
  %v8119 = vpop.f32.mrf.mxu0
  %v8120 = vadd.f32 0.0, %v8119
  %8121 = vmatmul.f32.gmra.mxu0 %v7759
  %v8122 = vpop.f32.mrf.mxu0
  %v8123 = vadd.f32 0.0, %v8122
  %8124 = vmatmul.f32.gmra.mxu0 %v7761
  %v8125 = vpop.f32.mrf.mxu0
  %v8126 = vadd.f32 0.0, %v8125
  %8127 = vmatmul.f32.gmra.mxu0 %v7763
  %v8128 = vpop.f32.mrf.mxu0
  %v8129 = vadd.f32 0.0, %v8128
  %8130 = vmatmul.f32.gmra.mxu0 %v7765
  %v8131 = vpop.f32.mrf.mxu0
  %v8132 = vadd.f32 0.0, %v8131
  %8133 = vmatmul.f32.gmra.mxu0 %v7767
  %v8134 = vpop.f32.mrf.mxu0
  %v8135 = vadd.f32 0.0, %v8134
  %8136 = vmatmul.f32.gmra.mxu0 %v7769
  %v8137 = vpop.f32.mrf.mxu0
  %v8138 = vadd.f32 0.0, %v8137
  %8139 = vmatmul.f32.gmra.mxu0 %v7771
  %v8140 = vpop.f32.mrf.mxu0
  %v8141 = vadd.f32 0.0, %v8140
  %8142 = vmatmul.f32.gmra.mxu0 %v7773
  %v8143 = vpop.f32.mrf.mxu0
  %v8144 = vadd.f32 0.0, %v8143
  %8145 = vmatmul.f32.gmra.mxu0 %v7775
  %v8146 = vpop.f32.mrf.mxu0
  %v8147 = vadd.f32 0.0, %v8146
  %8148 = vmatmul.f32.gmra.mxu0 %v7777
  %v8149 = vpop.f32.mrf.mxu0
  %v8150 = vadd.f32 0.0, %v8149
  %8151 = vmatmul.f32.gmra.mxu0 %v7779
  %v8152 = vpop.f32.mrf.mxu0
  %v8153 = vadd.f32 0.0, %v8152
  %8154 = vmatmul.f32.gmra.mxu0 %v7781
  %v8155 = vpop.f32.mrf.mxu0
  %v8156 = vadd.f32 0.0, %v8155
  %8157 = vmatmul.f32.gmra.mxu0 %v7783
  %v8158 = vpop.f32.mrf.mxu0
  %v8159 = vadd.f32 0.0, %v8158
  %8160 = vmatmul.f32.gmra.mxu0 %v7785
  %v8161 = vpop.f32.mrf.mxu0
  %v8162 = vadd.f32 0.0, %v8161
  %8163 = vmatmul.f32.gmra.mxu0 %v7787
  %v8164 = vpop.f32.mrf.mxu0
  %v8165 = vadd.f32 0.0, %v8164
  %8166 = vmatmul.f32.gmra.mxu0 %v7789
  %v8167 = vpop.f32.mrf.mxu0
  %v8168 = vadd.f32 0.0, %v8167
  %8169 = vmatmul.f32.gmra.mxu0 %v7791
  %v8170 = vpop.f32.mrf.mxu0
  %v8171 = vadd.f32 0.0, %v8170
  %8172 = vmatmul.f32.gmra.mxu0 %v7793
  %v8173 = vpop.f32.mrf.mxu0
  %v8174 = vadd.f32 0.0, %v8173
  %8175 = vmatmul.f32.gmra.mxu0 %v7795
  %v8176 = vpop.f32.mrf.mxu0
  %v8177 = vadd.f32 0.0, %v8176
  %8178 = vmatmul.f32.gmra.mxu0 %v7797
  %v8179 = vpop.f32.mrf.mxu0
  %v8180 = vadd.f32 0.0, %v8179
  %8181 = vmatmul.f32.gmra.mxu0 %v7799
  %v8182 = vpop.f32.mrf.mxu0
  %v8183 = vadd.f32 0.0, %v8182
  %8184 = vmatmul.f32.gmra.mxu0 %v7801
  %v8185 = vpop.f32.mrf.mxu0
  %v8186 = vadd.f32 0.0, %v8185
  %8187 = vmatmul.f32.gmra.mxu0 %v7803
  %v8188 = vpop.f32.mrf.mxu0
  %v8189 = vadd.f32 0.0, %v8188
  %8190 = vmatmul.f32.gmra.mxu0 %v7805
  %v8191 = vpop.f32.mrf.mxu0
  %v8192 = vadd.f32 0.0, %v8191
  %8193 = vmatmul.f32.gmra.mxu0 %v7807
  %v8194 = vpop.f32.mrf.mxu0
  %v8195 = vadd.f32 0.0, %v8194
  %8196 = vmatmul.f32.gmra.mxu0 %v7809
  %v8197 = vpop.f32.mrf.mxu0
  %v8198 = vadd.f32 0.0, %v8197
  %8199 = vmatmul.f32.gmra.mxu0 %v7811
  %v8200 = vpop.f32.mrf.mxu0
  %v8201 = vadd.f32 0.0, %v8200
  %8202 = vmatmul.f32.gmra.mxu0 %v7813
  %v8203 = vpop.f32.mrf.mxu0
  %v8204 = vadd.f32 0.0, %v8203
  %8205 = vmatmul.f32.gmra.mxu0 %v7815
  %v8206 = vpop.f32.mrf.mxu0
  %v8207 = vadd.f32 0.0, %v8206
  %8208 = vmatmul.f32.gmra.mxu0 %v7817
  %v8209 = vpop.f32.mrf.mxu0
  %v8210 = vadd.f32 0.0, %v8209
  %8211 = vmatmul.f32.gmra.mxu0 %v7819
  %v8212 = vpop.f32.mrf.mxu0
  %v8213 = vadd.f32 0.0, %v8212
  %8214 = vmatmul.f32.gmra.mxu0 %v7821
  %v8215 = vpop.f32.mrf.mxu0
  %v8216 = vadd.f32 0.0, %v8215
  %8217 = vmatmul.f32.gmra.mxu0 %v7823
  %v8218 = vpop.f32.mrf.mxu0
  %v8219 = vadd.f32 0.0, %v8218
  %8220 = vmatmul.f32.gmra.mxu0 %v7825
  %v8221 = vpop.f32.mrf.mxu0
  %v8222 = vadd.f32 0.0, %v8221
  %8223 = vmatmul.f32.gmra.mxu0 %v7827
  %v8224 = vpop.f32.mrf.mxu0
  %v8225 = vadd.f32 0.0, %v8224
  %8226 = vmatmul.f32.gmra.mxu0 %v7829
  %v8227 = vpop.f32.mrf.mxu0
  %v8228 = vadd.f32 0.0, %v8227
  %8229 = vmatmul.f32.gmra.mxu0 %v7831
  %v8230 = vpop.f32.mrf.mxu0
  %v8231 = vadd.f32 0.0, %v8230
  %8232 = vmatmul.f32.gmra.mxu0 %v7833
  %v8233 = vpop.f32.mrf.mxu0
  %v8234 = vadd.f32 0.0, %v8233
  %8235 = vdwg.mxu0
  %v8236 = vadd.f32 %v7193, %v7853
  %v8237 = vadd.f32 %v7194, %v7856
  %v8238 = vadd.f32 %v7195, %v7859
  %v8239 = vadd.f32 %v7196, %v7862
  %v8240 = vadd.f32 %v7197, %v7865
  %v8241 = vadd.f32 %v7198, %v7868
  %v8242 = vadd.f32 %v7199, %v7871
  %v8243 = vadd.f32 %v7200, %v7874
  %v8244 = vadd.f32 %v7201, %v7877
  %v8245 = vadd.f32 %v7202, %v7880
  %v8246 = vadd.f32 %v7203, %v7883
  %v8247 = vadd.f32 %v7204, %v7886
  %v8248 = vadd.f32 %v7205, %v7889
  %v8249 = vadd.f32 %v7206, %v7892
  %v8250 = vadd.f32 %v7207, %v7895
  %v8251 = vadd.f32 %v7208, %v7898
  %v8252 = vadd.f32 %v7209, %v7901
  %v8253 = vadd.f32 %v7210, %v7904
  %v8254 = vadd.f32 %v7211, %v7907
  %v8255 = vadd.f32 %v7212, %v7910
  %v8256 = vadd.f32 %v7213, %v7913
  %v8257 = vadd.f32 %v7214, %v7916
  %v8258 = vadd.f32 %v7215, %v7919
  %v8259 = vadd.f32 %v7216, %v7922
  %v8260 = vadd.f32 %v7217, %v7925
  %v8261 = vadd.f32 %v7218, %v7928
  %v8262 = vadd.f32 %v7219, %v7931
  %v8263 = vadd.f32 %v7220, %v7934
  %v8264 = vadd.f32 %v7221, %v7937
  %v8265 = vadd.f32 %v7222, %v7940
  %v8266 = vadd.f32 %v7223, %v7943
  %v8267 = vadd.f32 %v7224, %v7946
  %v8268 = vadd.f32 %v7225, %v7949
  %v8269 = vadd.f32 %v7226, %v7952
  %v8270 = vadd.f32 %v7227, %v7955
  %v8271 = vadd.f32 %v7228, %v7958
  %v8272 = vadd.f32 %v7229, %v7961
  %v8273 = vadd.f32 %v7230, %v7964
  %v8274 = vadd.f32 %v7231, %v7967
  %v8275 = vadd.f32 %v7232, %v7970
  %v8276 = vadd.f32 %v7233, %v7973
  %v8277 = vadd.f32 %v7234, %v7976
  %v8278 = vadd.f32 %v7235, %v7979
  %v8279 = vadd.f32 %v7236, %v7982
  %v8280 = vadd.f32 %v7237, %v7985
  %v8281 = vadd.f32 %v7238, %v7988
  %v8282 = vadd.f32 %v7239, %v7991
  %v8283 = vadd.f32 %v7240, %v7994
  %v8284 = vadd.f32 %v7241, %v7997
  %v8285 = vadd.f32 %v7242, %v8000
  %v8286 = vadd.f32 %v7243, %v8003
  %v8287 = vadd.f32 %v7244, %v8006
  %v8288 = vadd.f32 %v7245, %v8009
  %v8289 = vadd.f32 %v7246, %v8012
  %v8290 = vadd.f32 %v7247, %v8015
  %v8291 = vadd.f32 %v7248, %v8018
  %v8292 = vadd.f32 %v7249, %v8021
  %v8293 = vadd.f32 %v7250, %v8024
  %v8294 = vadd.f32 %v7251, %v8027
  %v8295 = vadd.f32 %v7252, %v8030
  %v8296 = vadd.f32 %v7253, %v8033
  %v8297 = vadd.f32 %v7254, %v8036
  %v8298 = vadd.f32 %v7255, %v8039
  %v8299 = vadd.f32 %v7256, %v8042
  %v8300 = vadd.f32 %v7257, %v8045
  %v8301 = vadd.f32 %v7258, %v8048
  %v8302 = vadd.f32 %v7259, %v8051
  %v8303 = vadd.f32 %v7260, %v8054
  %v8304 = vadd.f32 %v7261, %v8057
  %v8305 = vadd.f32 %v7262, %v8060
  %v8306 = vadd.f32 %v7263, %v8063
  %v8307 = vadd.f32 %v7264, %v8066
  %v8308 = vadd.f32 %v7265, %v8069
  %v8309 = vadd.f32 %v7266, %v8072
  %v8310 = vadd.f32 %v7267, %v8075
  %v8311 = vadd.f32 %v7268, %v8078
  %v8312 = vadd.f32 %v7269, %v8081
  %v8313 = vadd.f32 %v7270, %v8084
  %v8314 = vadd.f32 %v7271, %v8087
  %v8315 = vadd.f32 %v7272, %v8090
  %v8316 = vadd.f32 %v7273, %v8093
  %v8317 = vadd.f32 %v7274, %v8096
  %v8318 = vadd.f32 %v7275, %v8099
  %v8319 = vadd.f32 %v7276, %v8102
  %v8320 = vadd.f32 %v7277, %v8105
  %v8321 = vadd.f32 %v7278, %v8108
  %v8322 = vadd.f32 %v7279, %v8111
  %v8323 = vadd.f32 %v7280, %v8114
  %v8324 = vadd.f32 %v7281, %v8117
  %v8325 = vadd.f32 %v7282, %v8120
  %v8326 = vadd.f32 %v7283, %v8123
  %v8327 = vadd.f32 %v7284, %v8126
  %v8328 = vadd.f32 %v7285, %v8129
  %v8329 = vadd.f32 %v7286, %v8132
  %v8330 = vadd.f32 %v7287, %v8135
  %v8331 = vadd.f32 %v7288, %v8138
  %v8332 = vadd.f32 %v7289, %v8141
  %v8333 = vadd.f32 %v7290, %v8144
  %v8334 = vadd.f32 %v7291, %v8147
  %v8335 = vadd.f32 %v7292, %v8150
  %v8336 = vadd.f32 %v7293, %v8153
  %v8337 = vadd.f32 %v7294, %v8156
  %v8338 = vadd.f32 %v7295, %v8159
  %v8339 = vadd.f32 %v7296, %v8162
  %v8340 = vadd.f32 %v7297, %v8165
  %v8341 = vadd.f32 %v7298, %v8168
  %v8342 = vadd.f32 %v7299, %v8171
  %v8343 = vadd.f32 %v7300, %v8174
  %v8344 = vadd.f32 %v7301, %v8177
  %v8345 = vadd.f32 %v7302, %v8180
  %v8346 = vadd.f32 %v7303, %v8183
  %v8347 = vadd.f32 %v7304, %v8186
  %v8348 = vadd.f32 %v7305, %v8189
  %v8349 = vadd.f32 %v7306, %v8192
  %v8350 = vadd.f32 %v7307, %v8195
  %v8351 = vadd.f32 %v7308, %v8198
  %v8352 = vadd.f32 %v7309, %v8201
  %v8353 = vadd.f32 %v7310, %v8204
  %v8354 = vadd.f32 %v7311, %v8207
  %v8355 = vadd.f32 %v7312, %v8210
  %v8356 = vadd.f32 %v7313, %v8213
  %v8357 = vadd.f32 %v7314, %v8216
  %v8358 = vadd.f32 %v7315, %v8219
  %v8359 = vadd.f32 %v7316, %v8222
  %v8360 = vadd.f32 %v7317, %v8225
  %v8361 = vadd.f32 %v7318, %v8228
  %v8362 = vadd.f32 %v7319, %v8231
  %v8363 = vadd.f32 %v7320, %v8234
  %v8364 = vld [vmem:[%s3] sm:$0x1]
  %v8366 = vperm.slane %v8364, 0
  %v8368 = vadd.f32 %v8236, %v8366
  %v8369 = vadd.f32 %v8237, %v8366
  %v8370 = vadd.f32 %v8238, %v8366
  %v8371 = vadd.f32 %v8239, %v8366
  %v8372 = vadd.f32 %v8240, %v8366
  %v8373 = vadd.f32 %v8241, %v8366
  %v8374 = vadd.f32 %v8242, %v8366
  %v8375 = vadd.f32 %v8243, %v8366
  %v8376 = vadd.f32 %v8244, %v8366
  %v8377 = vadd.f32 %v8245, %v8366
  %v8378 = vadd.f32 %v8246, %v8366
  %v8379 = vadd.f32 %v8247, %v8366
  %v8380 = vadd.f32 %v8248, %v8366
  %v8381 = vadd.f32 %v8249, %v8366
  %v8382 = vadd.f32 %v8250, %v8366
  %v8383 = vadd.f32 %v8251, %v8366
  %v8384 = vadd.f32 %v8252, %v8366
  %v8385 = vadd.f32 %v8253, %v8366
  %v8386 = vadd.f32 %v8254, %v8366
  %v8387 = vadd.f32 %v8255, %v8366
  %v8388 = vadd.f32 %v8256, %v8366
  %v8389 = vadd.f32 %v8257, %v8366
  %v8390 = vadd.f32 %v8258, %v8366
  %v8391 = vadd.f32 %v8259, %v8366
  %v8392 = vadd.f32 %v8260, %v8366
  %v8393 = vadd.f32 %v8261, %v8366
  %v8394 = vadd.f32 %v8262, %v8366
  %v8395 = vadd.f32 %v8263, %v8366
  %v8396 = vadd.f32 %v8264, %v8366
  %v8397 = vadd.f32 %v8265, %v8366
  %v8398 = vadd.f32 %v8266, %v8366
  %v8399 = vadd.f32 %v8267, %v8366
  %v8400 = vadd.f32 %v8268, %v8366
  %v8401 = vadd.f32 %v8269, %v8366
  %v8402 = vadd.f32 %v8270, %v8366
  %v8403 = vadd.f32 %v8271, %v8366
  %v8404 = vadd.f32 %v8272, %v8366
  %v8405 = vadd.f32 %v8273, %v8366
  %v8406 = vadd.f32 %v8274, %v8366
  %v8407 = vadd.f32 %v8275, %v8366
  %v8408 = vadd.f32 %v8276, %v8366
  %v8409 = vadd.f32 %v8277, %v8366
  %v8410 = vadd.f32 %v8278, %v8366
  %v8411 = vadd.f32 %v8279, %v8366
  %v8412 = vadd.f32 %v8280, %v8366
  %v8413 = vadd.f32 %v8281, %v8366
  %v8414 = vadd.f32 %v8282, %v8366
  %v8415 = vadd.f32 %v8283, %v8366
  %v8416 = vadd.f32 %v8284, %v8366
  %v8417 = vadd.f32 %v8285, %v8366
  %v8418 = vadd.f32 %v8286, %v8366
  %v8419 = vadd.f32 %v8287, %v8366
  %v8420 = vadd.f32 %v8288, %v8366
  %v8421 = vadd.f32 %v8289, %v8366
  %v8422 = vadd.f32 %v8290, %v8366
  %v8423 = vadd.f32 %v8291, %v8366
  %v8424 = vadd.f32 %v8292, %v8366
  %v8425 = vadd.f32 %v8293, %v8366
  %v8426 = vadd.f32 %v8294, %v8366
  %v8427 = vadd.f32 %v8295, %v8366
  %v8428 = vadd.f32 %v8296, %v8366
  %v8429 = vadd.f32 %v8297, %v8366
  %v8430 = vadd.f32 %v8298, %v8366
  %v8431 = vadd.f32 %v8299, %v8366
  %v8432 = vadd.f32 %v8300, %v8366
  %v8433 = vadd.f32 %v8301, %v8366
  %v8434 = vadd.f32 %v8302, %v8366
  %v8435 = vadd.f32 %v8303, %v8366
  %v8436 = vadd.f32 %v8304, %v8366
  %v8437 = vadd.f32 %v8305, %v8366
  %v8438 = vadd.f32 %v8306, %v8366
  %v8439 = vadd.f32 %v8307, %v8366
  %v8440 = vadd.f32 %v8308, %v8366
  %v8441 = vadd.f32 %v8309, %v8366
  %v8442 = vadd.f32 %v8310, %v8366
  %v8443 = vadd.f32 %v8311, %v8366
  %v8444 = vadd.f32 %v8312, %v8366
  %v8445 = vadd.f32 %v8313, %v8366
  %v8446 = vadd.f32 %v8314, %v8366
  %v8447 = vadd.f32 %v8315, %v8366
  %v8448 = vadd.f32 %v8316, %v8366
  %v8449 = vadd.f32 %v8317, %v8366
  %v8450 = vadd.f32 %v8318, %v8366
  %v8451 = vadd.f32 %v8319, %v8366
  %v8452 = vadd.f32 %v8320, %v8366
  %v8453 = vadd.f32 %v8321, %v8366
  %v8454 = vadd.f32 %v8322, %v8366
  %v8455 = vadd.f32 %v8323, %v8366
  %v8456 = vadd.f32 %v8324, %v8366
  %v8457 = vadd.f32 %v8325, %v8366
  %v8458 = vadd.f32 %v8326, %v8366
  %v8459 = vadd.f32 %v8327, %v8366
  %v8460 = vadd.f32 %v8328, %v8366
  %v8461 = vadd.f32 %v8329, %v8366
  %v8462 = vadd.f32 %v8330, %v8366
  %v8463 = vadd.f32 %v8331, %v8366
  %v8464 = vadd.f32 %v8332, %v8366
  %v8465 = vadd.f32 %v8333, %v8366
  %v8466 = vadd.f32 %v8334, %v8366
  %v8467 = vadd.f32 %v8335, %v8366
  %v8468 = vadd.f32 %v8336, %v8366
  %v8469 = vadd.f32 %v8337, %v8366
  %v8470 = vadd.f32 %v8338, %v8366
  %v8471 = vadd.f32 %v8339, %v8366
  %v8472 = vadd.f32 %v8340, %v8366
  %v8473 = vadd.f32 %v8341, %v8366
  %v8474 = vadd.f32 %v8342, %v8366
  %v8475 = vadd.f32 %v8343, %v8366
  %v8476 = vadd.f32 %v8344, %v8366
  %v8477 = vadd.f32 %v8345, %v8366
  %v8478 = vadd.f32 %v8346, %v8366
  %v8479 = vadd.f32 %v8347, %v8366
  %v8480 = vadd.f32 %v8348, %v8366
  %v8481 = vadd.f32 %v8349, %v8366
  %v8482 = vadd.f32 %v8350, %v8366
  %v8483 = vadd.f32 %v8351, %v8366
  %v8484 = vadd.f32 %v8352, %v8366
  %v8485 = vadd.f32 %v8353, %v8366
  %v8486 = vadd.f32 %v8354, %v8366
  %v8487 = vadd.f32 %v8355, %v8366
  %v8488 = vadd.f32 %v8356, %v8366
  %v8489 = vadd.f32 %v8357, %v8366
  %v8490 = vadd.f32 %v8358, %v8366
  %v8491 = vadd.f32 %v8359, %v8366
  %v8492 = vadd.f32 %v8360, %v8366
  %v8493 = vadd.f32 %v8361, %v8366
  %v8494 = vadd.f32 %v8362, %v8366
  %v8495 = vadd.f32 %v8363, %v8366
  %v8496 = vmax.f32 %v8368, 0.0
  %v8497 = vmax.f32 %v8369, 0.0
  %v8498 = vmax.f32 %v8370, 0.0
  %v8499 = vmax.f32 %v8371, 0.0
  %v8500 = vmax.f32 %v8372, 0.0
  %v8501 = vmax.f32 %v8373, 0.0
  %v8502 = vmax.f32 %v8374, 0.0
  %v8503 = vmax.f32 %v8375, 0.0
  %v8504 = vmax.f32 %v8376, 0.0
  %v8505 = vmax.f32 %v8377, 0.0
  %v8506 = vmax.f32 %v8378, 0.0
  %v8507 = vmax.f32 %v8379, 0.0
  %v8508 = vmax.f32 %v8380, 0.0
  %v8509 = vmax.f32 %v8381, 0.0
  %v8510 = vmax.f32 %v8382, 0.0
  %v8511 = vmax.f32 %v8383, 0.0
  %v8512 = vmax.f32 %v8384, 0.0
  %v8513 = vmax.f32 %v8385, 0.0
  %v8514 = vmax.f32 %v8386, 0.0
  %v8515 = vmax.f32 %v8387, 0.0
  %v8516 = vmax.f32 %v8388, 0.0
  %v8517 = vmax.f32 %v8389, 0.0
  %v8518 = vmax.f32 %v8390, 0.0
  %v8519 = vmax.f32 %v8391, 0.0
  %v8520 = vmax.f32 %v8392, 0.0
  %v8521 = vmax.f32 %v8393, 0.0
  %v8522 = vmax.f32 %v8394, 0.0
  %v8523 = vmax.f32 %v8395, 0.0
  %v8524 = vmax.f32 %v8396, 0.0
  %v8525 = vmax.f32 %v8397, 0.0
  %v8526 = vmax.f32 %v8398, 0.0
  %v8527 = vmax.f32 %v8399, 0.0
  %v8528 = vmax.f32 %v8400, 0.0
  %v8529 = vmax.f32 %v8401, 0.0
  %v8530 = vmax.f32 %v8402, 0.0
  %v8531 = vmax.f32 %v8403, 0.0
  %v8532 = vmax.f32 %v8404, 0.0
  %v8533 = vmax.f32 %v8405, 0.0
  %v8534 = vmax.f32 %v8406, 0.0
  %v8535 = vmax.f32 %v8407, 0.0
  %v8536 = vmax.f32 %v8408, 0.0
  %v8537 = vmax.f32 %v8409, 0.0
  %v8538 = vmax.f32 %v8410, 0.0
  %v8539 = vmax.f32 %v8411, 0.0
  %v8540 = vmax.f32 %v8412, 0.0
  %v8541 = vmax.f32 %v8413, 0.0
  %v8542 = vmax.f32 %v8414, 0.0
  %v8543 = vmax.f32 %v8415, 0.0
  %v8544 = vmax.f32 %v8416, 0.0
  %v8545 = vmax.f32 %v8417, 0.0
  %v8546 = vmax.f32 %v8418, 0.0
  %v8547 = vmax.f32 %v8419, 0.0
  %v8548 = vmax.f32 %v8420, 0.0
  %v8549 = vmax.f32 %v8421, 0.0
  %v8550 = vmax.f32 %v8422, 0.0
  %v8551 = vmax.f32 %v8423, 0.0
  %v8552 = vmax.f32 %v8424, 0.0
  %v8553 = vmax.f32 %v8425, 0.0
  %v8554 = vmax.f32 %v8426, 0.0
  %v8555 = vmax.f32 %v8427, 0.0
  %v8556 = vmax.f32 %v8428, 0.0
  %v8557 = vmax.f32 %v8429, 0.0
  %v8558 = vmax.f32 %v8430, 0.0
  %v8559 = vmax.f32 %v8431, 0.0
  %v8560 = vmax.f32 %v8432, 0.0
  %v8561 = vmax.f32 %v8433, 0.0
  %v8562 = vmax.f32 %v8434, 0.0
  %v8563 = vmax.f32 %v8435, 0.0
  %v8564 = vmax.f32 %v8436, 0.0
  %v8565 = vmax.f32 %v8437, 0.0
  %v8566 = vmax.f32 %v8438, 0.0
  %v8567 = vmax.f32 %v8439, 0.0
  %v8568 = vmax.f32 %v8440, 0.0
  %v8569 = vmax.f32 %v8441, 0.0
  %v8570 = vmax.f32 %v8442, 0.0
  %v8571 = vmax.f32 %v8443, 0.0
  %v8572 = vmax.f32 %v8444, 0.0
  %v8573 = vmax.f32 %v8445, 0.0
  %v8574 = vmax.f32 %v8446, 0.0
  %v8575 = vmax.f32 %v8447, 0.0
  %v8576 = vmax.f32 %v8448, 0.0
  %v8577 = vmax.f32 %v8449, 0.0
  %v8578 = vmax.f32 %v8450, 0.0
  %v8579 = vmax.f32 %v8451, 0.0
  %v8580 = vmax.f32 %v8452, 0.0
  %v8581 = vmax.f32 %v8453, 0.0
  %v8582 = vmax.f32 %v8454, 0.0
  %v8583 = vmax.f32 %v8455, 0.0
  %v8584 = vmax.f32 %v8456, 0.0
  %v8585 = vmax.f32 %v8457, 0.0
  %v8586 = vmax.f32 %v8458, 0.0
  %v8587 = vmax.f32 %v8459, 0.0
  %v8588 = vmax.f32 %v8460, 0.0
  %v8589 = vmax.f32 %v8461, 0.0
  %v8590 = vmax.f32 %v8462, 0.0
  %v8591 = vmax.f32 %v8463, 0.0
  %v8592 = vmax.f32 %v8464, 0.0
  %v8593 = vmax.f32 %v8465, 0.0
  %v8594 = vmax.f32 %v8466, 0.0
  %v8595 = vmax.f32 %v8467, 0.0
  %v8596 = vmax.f32 %v8468, 0.0
  %v8597 = vmax.f32 %v8469, 0.0
  %v8598 = vmax.f32 %v8470, 0.0
  %v8599 = vmax.f32 %v8471, 0.0
  %v8600 = vmax.f32 %v8472, 0.0
  %v8601 = vmax.f32 %v8473, 0.0
  %v8602 = vmax.f32 %v8474, 0.0
  %v8603 = vmax.f32 %v8475, 0.0
  %v8604 = vmax.f32 %v8476, 0.0
  %v8605 = vmax.f32 %v8477, 0.0
  %v8606 = vmax.f32 %v8478, 0.0
  %v8607 = vmax.f32 %v8479, 0.0
  %v8608 = vmax.f32 %v8480, 0.0
  %v8609 = vmax.f32 %v8481, 0.0
  %v8610 = vmax.f32 %v8482, 0.0
  %v8611 = vmax.f32 %v8483, 0.0
  %v8612 = vmax.f32 %v8484, 0.0
  %v8613 = vmax.f32 %v8485, 0.0
  %v8614 = vmax.f32 %v8486, 0.0
  %v8615 = vmax.f32 %v8487, 0.0
  %v8616 = vmax.f32 %v8488, 0.0
  %v8617 = vmax.f32 %v8489, 0.0
  %v8618 = vmax.f32 %v8490, 0.0
  %v8619 = vmax.f32 %v8491, 0.0
  %v8620 = vmax.f32 %v8492, 0.0
  %v8621 = vmax.f32 %v8493, 0.0
  %v8622 = vmax.f32 %v8494, 0.0
  %v8623 = vmax.f32 %v8495, 0.0
  %v8624 = vld [vmem:[%s4] sm:$0xff]
  %v8625 = vld [vmem:[%s4 + $0x8] sm:$0xff]
  %v8626 = vld [vmem:[%s4 + $0x10] sm:$0xff]
  %v8627 = vld [vmem:[%s4 + $0x18] sm:$0xff]
  %v8628 = vld [vmem:[%s5] sm:$0x1]
  %v8630 = vperm.slane %v8628, 0
  %vm8632 = vcmask 261120
  %v8634 = vsel %vm8632, %v8496, 0
  %v8637 = vsel %vm8632, %v8497, 0
  %v8640 = vsel %vm8632, %v8498, 0
  %v8643 = vsel %vm8632, %v8499, 0
  %v8646 = vsel %vm8632, %v8500, 0
  %v8649 = vsel %vm8632, %v8501, 0
  %v8652 = vsel %vm8632, %v8502, 0
  %v8655 = vsel %vm8632, %v8503, 0
  %v8658 = vsel %vm8632, %v8504, 0
  %v8661 = vsel %vm8632, %v8505, 0
  %v8664 = vsel %vm8632, %v8506, 0
  %v8667 = vsel %vm8632, %v8507, 0
  %v8670 = vsel %vm8632, %v8508, 0
  %v8673 = vsel %vm8632, %v8509, 0
  %v8676 = vsel %vm8632, %v8510, 0
  %v8679 = vsel %vm8632, %v8511, 0
  %v8682 = vsel %vm8632, %v8512, 0
  %v8685 = vsel %vm8632, %v8513, 0
  %v8688 = vsel %vm8632, %v8514, 0
  %v8691 = vsel %vm8632, %v8515, 0
  %v8694 = vsel %vm8632, %v8516, 0
  %v8697 = vsel %vm8632, %v8517, 0
  %v8700 = vsel %vm8632, %v8518, 0
  %v8703 = vsel %vm8632, %v8519, 0
  %v8706 = vsel %vm8632, %v8520, 0
  %v8709 = vsel %vm8632, %v8521, 0
  %v8712 = vsel %vm8632, %v8522, 0
  %v8715 = vsel %vm8632, %v8523, 0
  %v8718 = vsel %vm8632, %v8524, 0
  %v8721 = vsel %vm8632, %v8525, 0
  %v8724 = vsel %vm8632, %v8526, 0
  %v8727 = vsel %vm8632, %v8527, 0
  %v8730 = vsel %vm8632, %v8528, 0
  %v8733 = vsel %vm8632, %v8529, 0
  %v8736 = vsel %vm8632, %v8530, 0
  %v8739 = vsel %vm8632, %v8531, 0
  %v8742 = vsel %vm8632, %v8532, 0
  %v8745 = vsel %vm8632, %v8533, 0
  %v8748 = vsel %vm8632, %v8534, 0
  %v8751 = vsel %vm8632, %v8535, 0
  %v8754 = vsel %vm8632, %v8536, 0
  %v8757 = vsel %vm8632, %v8537, 0
  %v8760 = vsel %vm8632, %v8538, 0
  %v8763 = vsel %vm8632, %v8539, 0
  %v8766 = vsel %vm8632, %v8540, 0
  %v8769 = vsel %vm8632, %v8541, 0
  %v8772 = vsel %vm8632, %v8542, 0
  %v8775 = vsel %vm8632, %v8543, 0
  %v8778 = vsel %vm8632, %v8544, 0
  %v8781 = vsel %vm8632, %v8545, 0
  %v8784 = vsel %vm8632, %v8546, 0
  %v8787 = vsel %vm8632, %v8547, 0
  %v8790 = vsel %vm8632, %v8548, 0
  %v8793 = vsel %vm8632, %v8549, 0
  %v8796 = vsel %vm8632, %v8550, 0
  %v8799 = vsel %vm8632, %v8551, 0
  %v8802 = vsel %vm8632, %v8552, 0
  %v8805 = vsel %vm8632, %v8553, 0
  %v8808 = vsel %vm8632, %v8554, 0
  %v8811 = vsel %vm8632, %v8555, 0
  %v8814 = vsel %vm8632, %v8556, 0
  %v8817 = vsel %vm8632, %v8557, 0
  %v8820 = vsel %vm8632, %v8558, 0
  %v8823 = vsel %vm8632, %v8559, 0
  %v8826 = vsel %vm8632, %v8560, 0
  %v8829 = vsel %vm8632, %v8561, 0
  %v8832 = vsel %vm8632, %v8562, 0
  %v8835 = vsel %vm8632, %v8563, 0
  %v8838 = vsel %vm8632, %v8564, 0
  %v8841 = vsel %vm8632, %v8565, 0
  %v8844 = vsel %vm8632, %v8566, 0
  %v8847 = vsel %vm8632, %v8567, 0
  %v8850 = vsel %vm8632, %v8568, 0
  %v8853 = vsel %vm8632, %v8569, 0
  %v8856 = vsel %vm8632, %v8570, 0
  %v8859 = vsel %vm8632, %v8571, 0
  %v8862 = vsel %vm8632, %v8572, 0
  %v8865 = vsel %vm8632, %v8573, 0
  %v8868 = vsel %vm8632, %v8574, 0
  %v8871 = vsel %vm8632, %v8575, 0
  %v8874 = vsel %vm8632, %v8576, 0
  %v8877 = vsel %vm8632, %v8577, 0
  %v8880 = vsel %vm8632, %v8578, 0
  %v8883 = vsel %vm8632, %v8579, 0
  %v8886 = vsel %vm8632, %v8580, 0
  %v8889 = vsel %vm8632, %v8581, 0
  %v8892 = vsel %vm8632, %v8582, 0
  %v8895 = vsel %vm8632, %v8583, 0
  %v8898 = vsel %vm8632, %v8584, 0
  %v8901 = vsel %vm8632, %v8585, 0
  %v8904 = vsel %vm8632, %v8586, 0
  %v8907 = vsel %vm8632, %v8587, 0
  %v8910 = vsel %vm8632, %v8588, 0
  %v8913 = vsel %vm8632, %v8589, 0
  %v8916 = vsel %vm8632, %v8590, 0
  %v8919 = vsel %vm8632, %v8591, 0
  %v8922 = vsel %vm8632, %v8592, 0
  %v8925 = vsel %vm8632, %v8593, 0
  %v8928 = vsel %vm8632, %v8594, 0
  %v8931 = vsel %vm8632, %v8595, 0
  %v8934 = vsel %vm8632, %v8596, 0
  %v8937 = vsel %vm8632, %v8597, 0
  %v8940 = vsel %vm8632, %v8598, 0
  %v8943 = vsel %vm8632, %v8599, 0
  %v8946 = vsel %vm8632, %v8600, 0
  %v8949 = vsel %vm8632, %v8601, 0
  %v8952 = vsel %vm8632, %v8602, 0
  %v8955 = vsel %vm8632, %v8603, 0
  %v8958 = vsel %vm8632, %v8604, 0
  %v8961 = vsel %vm8632, %v8605, 0
  %v8964 = vsel %vm8632, %v8606, 0
  %v8967 = vsel %vm8632, %v8607, 0
  %v8970 = vsel %vm8632, %v8608, 0
  %v8973 = vsel %vm8632, %v8609, 0
  %v8976 = vsel %vm8632, %v8610, 0
  %v8979 = vsel %vm8632, %v8611, 0
  %v8982 = vsel %vm8632, %v8612, 0
  %v8985 = vsel %vm8632, %v8613, 0
  %v8988 = vsel %vm8632, %v8614, 0
  %v8991 = vsel %vm8632, %v8615, 0
  %v8994 = vsel %vm8632, %v8616, 0
  %v8997 = vsel %vm8632, %v8617, 0
  %v9000 = vsel %vm8632, %v8618, 0
  %v9003 = vsel %vm8632, %v8619, 0
  %v9006 = vsel %vm8632, %v8620, 0
  %v9009 = vsel %vm8632, %v8621, 0
  %v9012 = vsel %vm8632, %v8622, 0
  %v9015 = vsel %vm8632, %v8623, 0
  %9017 = vmatpush.msra.mxu0 0.0
  %9018 = vmatpush.msra.mxu0 0.0
  %9019 = vmatpush.msra.mxu0 0.0
  %9020 = vmatpush.msra.mxu0 0.0
  %9021 = vmatpush.msra.mxu0 0.0
  %9022 = vmatpush.msra.mxu0 0.0
  %9023 = vmatpush.msra.mxu0 0.0
  %9024 = vmatpush.msra.mxu0 0.0
  %9025 = vmatpush.msra.mxu0 0.0
  %9026 = vmatpush.msra.mxu0 0.0
  %9027 = vmatpush.msra.mxu0 0.0
  %9028 = vmatpush.msra.mxu0 0.0
  %9029 = vmatpush.msra.mxu0 %v8627
  %9030 = vmatpush.msra.mxu0 %v8626
  %9031 = vmatpush.msra.mxu0 %v8625
  %9032 = vmatpush.msra.mxu0 %v8624
  %9033 = vmatmul.f32.gmra.mxu0 %v8634
  %v9034 = vpop.f32.mrf.mxu0
  %v9035 = vadd.f32 %v8630, %v9034
  %9036 = vmatmul.f32.gmra.mxu0 %v8637
  %v9037 = vpop.f32.mrf.mxu0
  %v9038 = vadd.f32 %v8630, %v9037
  %9039 = vmatmul.f32.gmra.mxu0 %v8640
  %v9040 = vpop.f32.mrf.mxu0
  %v9041 = vadd.f32 %v8630, %v9040
  %9042 = vmatmul.f32.gmra.mxu0 %v8643
  %v9043 = vpop.f32.mrf.mxu0
  %v9044 = vadd.f32 %v8630, %v9043
  %9045 = vmatmul.f32.gmra.mxu0 %v8646
  %v9046 = vpop.f32.mrf.mxu0
  %v9047 = vadd.f32 %v8630, %v9046
  %9048 = vmatmul.f32.gmra.mxu0 %v8649
  %v9049 = vpop.f32.mrf.mxu0
  %v9050 = vadd.f32 %v8630, %v9049
  %9051 = vmatmul.f32.gmra.mxu0 %v8652
  %v9052 = vpop.f32.mrf.mxu0
  %v9053 = vadd.f32 %v8630, %v9052
  %9054 = vmatmul.f32.gmra.mxu0 %v8655
  %v9055 = vpop.f32.mrf.mxu0
  %v9056 = vadd.f32 %v8630, %v9055
  %9057 = vmatmul.f32.gmra.mxu0 %v8658
  %v9058 = vpop.f32.mrf.mxu0
  %v9059 = vadd.f32 %v8630, %v9058
  %9060 = vmatmul.f32.gmra.mxu0 %v8661
  %v9061 = vpop.f32.mrf.mxu0
  %v9062 = vadd.f32 %v8630, %v9061
  %9063 = vmatmul.f32.gmra.mxu0 %v8664
  %v9064 = vpop.f32.mrf.mxu0
  %v9065 = vadd.f32 %v8630, %v9064
  %9066 = vmatmul.f32.gmra.mxu0 %v8667
  %v9067 = vpop.f32.mrf.mxu0
  %v9068 = vadd.f32 %v8630, %v9067
  %9069 = vmatmul.f32.gmra.mxu0 %v8670
  %v9070 = vpop.f32.mrf.mxu0
  %v9071 = vadd.f32 %v8630, %v9070
  %9072 = vmatmul.f32.gmra.mxu0 %v8673
  %v9073 = vpop.f32.mrf.mxu0
  %v9074 = vadd.f32 %v8630, %v9073
  %9075 = vmatmul.f32.gmra.mxu0 %v8676
  %v9076 = vpop.f32.mrf.mxu0
  %v9077 = vadd.f32 %v8630, %v9076
  %9078 = vmatmul.f32.gmra.mxu0 %v8679
  %v9079 = vpop.f32.mrf.mxu0
  %v9080 = vadd.f32 %v8630, %v9079
  %9081 = vmatmul.f32.gmra.mxu0 %v8682
  %v9082 = vpop.f32.mrf.mxu0
  %v9083 = vadd.f32 %v8630, %v9082
  %9084 = vmatmul.f32.gmra.mxu0 %v8685
  %v9085 = vpop.f32.mrf.mxu0
  %v9086 = vadd.f32 %v8630, %v9085
  %9087 = vmatmul.f32.gmra.mxu0 %v8688
  %v9088 = vpop.f32.mrf.mxu0
  %v9089 = vadd.f32 %v8630, %v9088
  %9090 = vmatmul.f32.gmra.mxu0 %v8691
  %v9091 = vpop.f32.mrf.mxu0
  %v9092 = vadd.f32 %v8630, %v9091
  %9093 = vmatmul.f32.gmra.mxu0 %v8694
  %v9094 = vpop.f32.mrf.mxu0
  %v9095 = vadd.f32 %v8630, %v9094
  %9096 = vmatmul.f32.gmra.mxu0 %v8697
  %v9097 = vpop.f32.mrf.mxu0
  %v9098 = vadd.f32 %v8630, %v9097
  %9099 = vmatmul.f32.gmra.mxu0 %v8700
  %v9100 = vpop.f32.mrf.mxu0
  %v9101 = vadd.f32 %v8630, %v9100
  %9102 = vmatmul.f32.gmra.mxu0 %v8703
  %v9103 = vpop.f32.mrf.mxu0
  %v9104 = vadd.f32 %v8630, %v9103
  %9105 = vmatmul.f32.gmra.mxu0 %v8706
  %v9106 = vpop.f32.mrf.mxu0
  %v9107 = vadd.f32 %v8630, %v9106
  %9108 = vmatmul.f32.gmra.mxu0 %v8709
  %v9109 = vpop.f32.mrf.mxu0
  %v9110 = vadd.f32 %v8630, %v9109
  %9111 = vmatmul.f32.gmra.mxu0 %v8712
  %v9112 = vpop.f32.mrf.mxu0
  %v9113 = vadd.f32 %v8630, %v9112
  %9114 = vmatmul.f32.gmra.mxu0 %v8715
  %v9115 = vpop.f32.mrf.mxu0
  %v9116 = vadd.f32 %v8630, %v9115
  %9117 = vmatmul.f32.gmra.mxu0 %v8718
  %v9118 = vpop.f32.mrf.mxu0
  %v9119 = vadd.f32 %v8630, %v9118
  %9120 = vmatmul.f32.gmra.mxu0 %v8721
  %v9121 = vpop.f32.mrf.mxu0
  %v9122 = vadd.f32 %v8630, %v9121
  %9123 = vmatmul.f32.gmra.mxu0 %v8724
  %v9124 = vpop.f32.mrf.mxu0
  %v9125 = vadd.f32 %v8630, %v9124
  %9126 = vmatmul.f32.gmra.mxu0 %v8727
  %v9127 = vpop.f32.mrf.mxu0
  %v9128 = vadd.f32 %v8630, %v9127
  %9129 = vmatmul.f32.gmra.mxu0 %v8730
  %v9130 = vpop.f32.mrf.mxu0
  %v9131 = vadd.f32 %v8630, %v9130
  %9132 = vmatmul.f32.gmra.mxu0 %v8733
  %v9133 = vpop.f32.mrf.mxu0
  %v9134 = vadd.f32 %v8630, %v9133
  %9135 = vmatmul.f32.gmra.mxu0 %v8736
  %v9136 = vpop.f32.mrf.mxu0
  %v9137 = vadd.f32 %v8630, %v9136
  %9138 = vmatmul.f32.gmra.mxu0 %v8739
  %v9139 = vpop.f32.mrf.mxu0
  %v9140 = vadd.f32 %v8630, %v9139
  %9141 = vmatmul.f32.gmra.mxu0 %v8742
  %v9142 = vpop.f32.mrf.mxu0
  %v9143 = vadd.f32 %v8630, %v9142
  %9144 = vmatmul.f32.gmra.mxu0 %v8745
  %v9145 = vpop.f32.mrf.mxu0
  %v9146 = vadd.f32 %v8630, %v9145
  %9147 = vmatmul.f32.gmra.mxu0 %v8748
  %v9148 = vpop.f32.mrf.mxu0
  %v9149 = vadd.f32 %v8630, %v9148
  %9150 = vmatmul.f32.gmra.mxu0 %v8751
  %v9151 = vpop.f32.mrf.mxu0
  %v9152 = vadd.f32 %v8630, %v9151
  %9153 = vmatmul.f32.gmra.mxu0 %v8754
  %v9154 = vpop.f32.mrf.mxu0
  %v9155 = vadd.f32 %v8630, %v9154
  %9156 = vmatmul.f32.gmra.mxu0 %v8757
  %v9157 = vpop.f32.mrf.mxu0
  %v9158 = vadd.f32 %v8630, %v9157
  %9159 = vmatmul.f32.gmra.mxu0 %v8760
  %v9160 = vpop.f32.mrf.mxu0
  %v9161 = vadd.f32 %v8630, %v9160
  %9162 = vmatmul.f32.gmra.mxu0 %v8763
  %v9163 = vpop.f32.mrf.mxu0
  %v9164 = vadd.f32 %v8630, %v9163
  %9165 = vmatmul.f32.gmra.mxu0 %v8766
  %v9166 = vpop.f32.mrf.mxu0
  %v9167 = vadd.f32 %v8630, %v9166
  %9168 = vmatmul.f32.gmra.mxu0 %v8769
  %v9169 = vpop.f32.mrf.mxu0
  %v9170 = vadd.f32 %v8630, %v9169
  %9171 = vmatmul.f32.gmra.mxu0 %v8772
  %v9172 = vpop.f32.mrf.mxu0
  %v9173 = vadd.f32 %v8630, %v9172
  %9174 = vmatmul.f32.gmra.mxu0 %v8775
  %v9175 = vpop.f32.mrf.mxu0
  %v9176 = vadd.f32 %v8630, %v9175
  %9177 = vmatmul.f32.gmra.mxu0 %v8778
  %v9178 = vpop.f32.mrf.mxu0
  %v9179 = vadd.f32 %v8630, %v9178
  %9180 = vmatmul.f32.gmra.mxu0 %v8781
  %v9181 = vpop.f32.mrf.mxu0
  %v9182 = vadd.f32 %v8630, %v9181
  %9183 = vmatmul.f32.gmra.mxu0 %v8784
  %v9184 = vpop.f32.mrf.mxu0
  %v9185 = vadd.f32 %v8630, %v9184
  %9186 = vmatmul.f32.gmra.mxu0 %v8787
  %v9187 = vpop.f32.mrf.mxu0
  %v9188 = vadd.f32 %v8630, %v9187
  %9189 = vmatmul.f32.gmra.mxu0 %v8790
  %v9190 = vpop.f32.mrf.mxu0
  %v9191 = vadd.f32 %v8630, %v9190
  %9192 = vmatmul.f32.gmra.mxu0 %v8793
  %v9193 = vpop.f32.mrf.mxu0
  %v9194 = vadd.f32 %v8630, %v9193
  %9195 = vmatmul.f32.gmra.mxu0 %v8796
  %v9196 = vpop.f32.mrf.mxu0
  %v9197 = vadd.f32 %v8630, %v9196
  %9198 = vmatmul.f32.gmra.mxu0 %v8799
  %v9199 = vpop.f32.mrf.mxu0
  %v9200 = vadd.f32 %v8630, %v9199
  %9201 = vmatmul.f32.gmra.mxu0 %v8802
  %v9202 = vpop.f32.mrf.mxu0
  %v9203 = vadd.f32 %v8630, %v9202
  %9204 = vmatmul.f32.gmra.mxu0 %v8805
  %v9205 = vpop.f32.mrf.mxu0
  %v9206 = vadd.f32 %v8630, %v9205
  %9207 = vmatmul.f32.gmra.mxu0 %v8808
  %v9208 = vpop.f32.mrf.mxu0
  %v9209 = vadd.f32 %v8630, %v9208
  %9210 = vmatmul.f32.gmra.mxu0 %v8811
  %v9211 = vpop.f32.mrf.mxu0
  %v9212 = vadd.f32 %v8630, %v9211
  %9213 = vmatmul.f32.gmra.mxu0 %v8814
  %v9214 = vpop.f32.mrf.mxu0
  %v9215 = vadd.f32 %v8630, %v9214
  %9216 = vmatmul.f32.gmra.mxu0 %v8817
  %v9217 = vpop.f32.mrf.mxu0
  %v9218 = vadd.f32 %v8630, %v9217
  %9219 = vmatmul.f32.gmra.mxu0 %v8820
  %v9220 = vpop.f32.mrf.mxu0
  %v9221 = vadd.f32 %v8630, %v9220
  %9222 = vmatmul.f32.gmra.mxu0 %v8823
  %v9223 = vpop.f32.mrf.mxu0
  %v9224 = vadd.f32 %v8630, %v9223
  %9225 = vmatmul.f32.gmra.mxu0 %v8826
  %v9226 = vpop.f32.mrf.mxu0
  %v9227 = vadd.f32 %v8630, %v9226
  %9228 = vmatmul.f32.gmra.mxu0 %v8829
  %v9229 = vpop.f32.mrf.mxu0
  %v9230 = vadd.f32 %v8630, %v9229
  %9231 = vmatmul.f32.gmra.mxu0 %v8832
  %v9232 = vpop.f32.mrf.mxu0
  %v9233 = vadd.f32 %v8630, %v9232
  %9234 = vmatmul.f32.gmra.mxu0 %v8835
  %v9235 = vpop.f32.mrf.mxu0
  %v9236 = vadd.f32 %v8630, %v9235
  %9237 = vmatmul.f32.gmra.mxu0 %v8838
  %v9238 = vpop.f32.mrf.mxu0
  %v9239 = vadd.f32 %v8630, %v9238
  %9240 = vmatmul.f32.gmra.mxu0 %v8841
  %v9241 = vpop.f32.mrf.mxu0
  %v9242 = vadd.f32 %v8630, %v9241
  %9243 = vmatmul.f32.gmra.mxu0 %v8844
  %v9244 = vpop.f32.mrf.mxu0
  %v9245 = vadd.f32 %v8630, %v9244
  %9246 = vmatmul.f32.gmra.mxu0 %v8847
  %v9247 = vpop.f32.mrf.mxu0
  %v9248 = vadd.f32 %v8630, %v9247
  %9249 = vmatmul.f32.gmra.mxu0 %v8850
  %v9250 = vpop.f32.mrf.mxu0
  %v9251 = vadd.f32 %v8630, %v9250
  %9252 = vmatmul.f32.gmra.mxu0 %v8853
  %v9253 = vpop.f32.mrf.mxu0
  %v9254 = vadd.f32 %v8630, %v9253
  %9255 = vmatmul.f32.gmra.mxu0 %v8856
  %v9256 = vpop.f32.mrf.mxu0
  %v9257 = vadd.f32 %v8630, %v9256
  %9258 = vmatmul.f32.gmra.mxu0 %v8859
  %v9259 = vpop.f32.mrf.mxu0
  %v9260 = vadd.f32 %v8630, %v9259
  %9261 = vmatmul.f32.gmra.mxu0 %v8862
  %v9262 = vpop.f32.mrf.mxu0
  %v9263 = vadd.f32 %v8630, %v9262
  %9264 = vmatmul.f32.gmra.mxu0 %v8865
  %v9265 = vpop.f32.mrf.mxu0
  %v9266 = vadd.f32 %v8630, %v9265
  %9267 = vmatmul.f32.gmra.mxu0 %v8868
  %v9268 = vpop.f32.mrf.mxu0
  %v9269 = vadd.f32 %v8630, %v9268
  %9270 = vmatmul.f32.gmra.mxu0 %v8871
  %v9271 = vpop.f32.mrf.mxu0
  %v9272 = vadd.f32 %v8630, %v9271
  %9273 = vmatmul.f32.gmra.mxu0 %v8874
  %v9274 = vpop.f32.mrf.mxu0
  %v9275 = vadd.f32 %v8630, %v9274
  %9276 = vmatmul.f32.gmra.mxu0 %v8877
  %v9277 = vpop.f32.mrf.mxu0
  %v9278 = vadd.f32 %v8630, %v9277
  %9279 = vmatmul.f32.gmra.mxu0 %v8880
  %v9280 = vpop.f32.mrf.mxu0
  %v9281 = vadd.f32 %v8630, %v9280
  %9282 = vmatmul.f32.gmra.mxu0 %v8883
  %v9283 = vpop.f32.mrf.mxu0
  %v9284 = vadd.f32 %v8630, %v9283
  %9285 = vmatmul.f32.gmra.mxu0 %v8886
  %v9286 = vpop.f32.mrf.mxu0
  %v9287 = vadd.f32 %v8630, %v9286
  %9288 = vmatmul.f32.gmra.mxu0 %v8889
  %v9289 = vpop.f32.mrf.mxu0
  %v9290 = vadd.f32 %v8630, %v9289
  %9291 = vmatmul.f32.gmra.mxu0 %v8892
  %v9292 = vpop.f32.mrf.mxu0
  %v9293 = vadd.f32 %v8630, %v9292
  %9294 = vmatmul.f32.gmra.mxu0 %v8895
  %v9295 = vpop.f32.mrf.mxu0
  %v9296 = vadd.f32 %v8630, %v9295
  %9297 = vmatmul.f32.gmra.mxu0 %v8898
  %v9298 = vpop.f32.mrf.mxu0
  %v9299 = vadd.f32 %v8630, %v9298
  %9300 = vmatmul.f32.gmra.mxu0 %v8901
  %v9301 = vpop.f32.mrf.mxu0
  %v9302 = vadd.f32 %v8630, %v9301
  %9303 = vmatmul.f32.gmra.mxu0 %v8904
  %v9304 = vpop.f32.mrf.mxu0
  %v9305 = vadd.f32 %v8630, %v9304
  %9306 = vmatmul.f32.gmra.mxu0 %v8907
  %v9307 = vpop.f32.mrf.mxu0
  %v9308 = vadd.f32 %v8630, %v9307
  %9309 = vmatmul.f32.gmra.mxu0 %v8910
  %v9310 = vpop.f32.mrf.mxu0
  %v9311 = vadd.f32 %v8630, %v9310
  %9312 = vmatmul.f32.gmra.mxu0 %v8913
  %v9313 = vpop.f32.mrf.mxu0
  %v9314 = vadd.f32 %v8630, %v9313
  %9315 = vmatmul.f32.gmra.mxu0 %v8916
  %v9316 = vpop.f32.mrf.mxu0
  %v9317 = vadd.f32 %v8630, %v9316
  %9318 = vmatmul.f32.gmra.mxu0 %v8919
  %v9319 = vpop.f32.mrf.mxu0
  %v9320 = vadd.f32 %v8630, %v9319
  %9321 = vmatmul.f32.gmra.mxu0 %v8922
  %v9322 = vpop.f32.mrf.mxu0
  %v9323 = vadd.f32 %v8630, %v9322
  %9324 = vmatmul.f32.gmra.mxu0 %v8925
  %v9325 = vpop.f32.mrf.mxu0
  %v9326 = vadd.f32 %v8630, %v9325
  %9327 = vmatmul.f32.gmra.mxu0 %v8928
  %v9328 = vpop.f32.mrf.mxu0
  %v9329 = vadd.f32 %v8630, %v9328
  %9330 = vmatmul.f32.gmra.mxu0 %v8931
  %v9331 = vpop.f32.mrf.mxu0
  %v9332 = vadd.f32 %v8630, %v9331
  %9333 = vmatmul.f32.gmra.mxu0 %v8934
  %v9334 = vpop.f32.mrf.mxu0
  %v9335 = vadd.f32 %v8630, %v9334
  %9336 = vmatmul.f32.gmra.mxu0 %v8937
  %v9337 = vpop.f32.mrf.mxu0
  %v9338 = vadd.f32 %v8630, %v9337
  %9339 = vmatmul.f32.gmra.mxu0 %v8940
  %v9340 = vpop.f32.mrf.mxu0
  %v9341 = vadd.f32 %v8630, %v9340
  %9342 = vmatmul.f32.gmra.mxu0 %v8943
  %v9343 = vpop.f32.mrf.mxu0
  %v9344 = vadd.f32 %v8630, %v9343
  %9345 = vmatmul.f32.gmra.mxu0 %v8946
  %v9346 = vpop.f32.mrf.mxu0
  %v9347 = vadd.f32 %v8630, %v9346
  %9348 = vmatmul.f32.gmra.mxu0 %v8949
  %v9349 = vpop.f32.mrf.mxu0
  %v9350 = vadd.f32 %v8630, %v9349
  %9351 = vmatmul.f32.gmra.mxu0 %v8952
  %v9352 = vpop.f32.mrf.mxu0
  %v9353 = vadd.f32 %v8630, %v9352
  %9354 = vmatmul.f32.gmra.mxu0 %v8955
  %v9355 = vpop.f32.mrf.mxu0
  %v9356 = vadd.f32 %v8630, %v9355
  %9357 = vmatmul.f32.gmra.mxu0 %v8958
  %v9358 = vpop.f32.mrf.mxu0
  %v9359 = vadd.f32 %v8630, %v9358
  %9360 = vmatmul.f32.gmra.mxu0 %v8961
  %v9361 = vpop.f32.mrf.mxu0
  %v9362 = vadd.f32 %v8630, %v9361
  %9363 = vmatmul.f32.gmra.mxu0 %v8964
  %v9364 = vpop.f32.mrf.mxu0
  %v9365 = vadd.f32 %v8630, %v9364
  %9366 = vmatmul.f32.gmra.mxu0 %v8967
  %v9367 = vpop.f32.mrf.mxu0
  %v9368 = vadd.f32 %v8630, %v9367
  %9369 = vmatmul.f32.gmra.mxu0 %v8970
  %v9370 = vpop.f32.mrf.mxu0
  %v9371 = vadd.f32 %v8630, %v9370
  %9372 = vmatmul.f32.gmra.mxu0 %v8973
  %v9373 = vpop.f32.mrf.mxu0
  %v9374 = vadd.f32 %v8630, %v9373
  %9375 = vmatmul.f32.gmra.mxu0 %v8976
  %v9376 = vpop.f32.mrf.mxu0
  %v9377 = vadd.f32 %v8630, %v9376
  %9378 = vmatmul.f32.gmra.mxu0 %v8979
  %v9379 = vpop.f32.mrf.mxu0
  %v9380 = vadd.f32 %v8630, %v9379
  %9381 = vmatmul.f32.gmra.mxu0 %v8982
  %v9382 = vpop.f32.mrf.mxu0
  %v9383 = vadd.f32 %v8630, %v9382
  %9384 = vmatmul.f32.gmra.mxu0 %v8985
  %v9385 = vpop.f32.mrf.mxu0
  %v9386 = vadd.f32 %v8630, %v9385
  %9387 = vmatmul.f32.gmra.mxu0 %v8988
  %v9388 = vpop.f32.mrf.mxu0
  %v9389 = vadd.f32 %v8630, %v9388
  %9390 = vmatmul.f32.gmra.mxu0 %v8991
  %v9391 = vpop.f32.mrf.mxu0
  %v9392 = vadd.f32 %v8630, %v9391
  %9393 = vmatmul.f32.gmra.mxu0 %v8994
  %v9394 = vpop.f32.mrf.mxu0
  %v9395 = vadd.f32 %v8630, %v9394
  %9396 = vmatmul.f32.gmra.mxu0 %v8997
  %v9397 = vpop.f32.mrf.mxu0
  %v9398 = vadd.f32 %v8630, %v9397
  %9399 = vmatmul.f32.gmra.mxu0 %v9000
  %v9400 = vpop.f32.mrf.mxu0
  %v9401 = vadd.f32 %v8630, %v9400
  %9402 = vmatmul.f32.gmra.mxu0 %v9003
  %v9403 = vpop.f32.mrf.mxu0
  %v9404 = vadd.f32 %v8630, %v9403
  %9405 = vmatmul.f32.gmra.mxu0 %v9006
  %v9406 = vpop.f32.mrf.mxu0
  %v9407 = vadd.f32 %v8630, %v9406
  %9408 = vmatmul.f32.gmra.mxu0 %v9009
  %v9409 = vpop.f32.mrf.mxu0
  %v9410 = vadd.f32 %v8630, %v9409
  %9411 = vmatmul.f32.gmra.mxu0 %v9012
  %v9412 = vpop.f32.mrf.mxu0
  %v9413 = vadd.f32 %v8630, %v9412
  %9414 = vmatmul.f32.gmra.mxu0 %v9015
  %v9415 = vpop.f32.mrf.mxu0
  %v9416 = vadd.f32 %v8630, %v9415
  %9417 = vdwg.mxu0
  %v9418 = vmax.f32 %v9035, 0.0
  %v9419 = vmax.f32 %v9038, 0.0
  %v9420 = vmax.f32 %v9041, 0.0
  %v9421 = vmax.f32 %v9044, 0.0
  %v9422 = vmax.f32 %v9047, 0.0
  %v9423 = vmax.f32 %v9050, 0.0
  %v9424 = vmax.f32 %v9053, 0.0
  %v9425 = vmax.f32 %v9056, 0.0
  %v9426 = vmax.f32 %v9059, 0.0
  %v9427 = vmax.f32 %v9062, 0.0
  %v9428 = vmax.f32 %v9065, 0.0
  %v9429 = vmax.f32 %v9068, 0.0
  %v9430 = vmax.f32 %v9071, 0.0
  %v9431 = vmax.f32 %v9074, 0.0
  %v9432 = vmax.f32 %v9077, 0.0
  %v9433 = vmax.f32 %v9080, 0.0
  %v9434 = vmax.f32 %v9083, 0.0
  %v9435 = vmax.f32 %v9086, 0.0
  %v9436 = vmax.f32 %v9089, 0.0
  %v9437 = vmax.f32 %v9092, 0.0
  %v9438 = vmax.f32 %v9095, 0.0
  %v9439 = vmax.f32 %v9098, 0.0
  %v9440 = vmax.f32 %v9101, 0.0
  %v9441 = vmax.f32 %v9104, 0.0
  %v9442 = vmax.f32 %v9107, 0.0
  %v9443 = vmax.f32 %v9110, 0.0
  %v9444 = vmax.f32 %v9113, 0.0
  %v9445 = vmax.f32 %v9116, 0.0
  %v9446 = vmax.f32 %v9119, 0.0
  %v9447 = vmax.f32 %v9122, 0.0
  %v9448 = vmax.f32 %v9125, 0.0
  %v9449 = vmax.f32 %v9128, 0.0
  %v9450 = vmax.f32 %v9131, 0.0
  %v9451 = vmax.f32 %v9134, 0.0
  %v9452 = vmax.f32 %v9137, 0.0
  %v9453 = vmax.f32 %v9140, 0.0
  %v9454 = vmax.f32 %v9143, 0.0
  %v9455 = vmax.f32 %v9146, 0.0
  %v9456 = vmax.f32 %v9149, 0.0
  %v9457 = vmax.f32 %v9152, 0.0
  %v9458 = vmax.f32 %v9155, 0.0
  %v9459 = vmax.f32 %v9158, 0.0
  %v9460 = vmax.f32 %v9161, 0.0
  %v9461 = vmax.f32 %v9164, 0.0
  %v9462 = vmax.f32 %v9167, 0.0
  %v9463 = vmax.f32 %v9170, 0.0
  %v9464 = vmax.f32 %v9173, 0.0
  %v9465 = vmax.f32 %v9176, 0.0
  %v9466 = vmax.f32 %v9179, 0.0
  %v9467 = vmax.f32 %v9182, 0.0
  %v9468 = vmax.f32 %v9185, 0.0
  %v9469 = vmax.f32 %v9188, 0.0
  %v9470 = vmax.f32 %v9191, 0.0
  %v9471 = vmax.f32 %v9194, 0.0
  %v9472 = vmax.f32 %v9197, 0.0
  %v9473 = vmax.f32 %v9200, 0.0
  %v9474 = vmax.f32 %v9203, 0.0
  %v9475 = vmax.f32 %v9206, 0.0
  %v9476 = vmax.f32 %v9209, 0.0
  %v9477 = vmax.f32 %v9212, 0.0
  %v9478 = vmax.f32 %v9215, 0.0
  %v9479 = vmax.f32 %v9218, 0.0
  %v9480 = vmax.f32 %v9221, 0.0
  %v9481 = vmax.f32 %v9224, 0.0
  %v9482 = vmax.f32 %v9227, 0.0
  %v9483 = vmax.f32 %v9230, 0.0
  %v9484 = vmax.f32 %v9233, 0.0
  %v9485 = vmax.f32 %v9236, 0.0
  %v9486 = vmax.f32 %v9239, 0.0
  %v9487 = vmax.f32 %v9242, 0.0
  %v9488 = vmax.f32 %v9245, 0.0
  %v9489 = vmax.f32 %v9248, 0.0
  %v9490 = vmax.f32 %v9251, 0.0
  %v9491 = vmax.f32 %v9254, 0.0
  %v9492 = vmax.f32 %v9257, 0.0
  %v9493 = vmax.f32 %v9260, 0.0
  %v9494 = vmax.f32 %v9263, 0.0
  %v9495 = vmax.f32 %v9266, 0.0
  %v9496 = vmax.f32 %v9269, 0.0
  %v9497 = vmax.f32 %v9272, 0.0
  %v9498 = vmax.f32 %v9275, 0.0
  %v9499 = vmax.f32 %v9278, 0.0
  %v9500 = vmax.f32 %v9281, 0.0
  %v9501 = vmax.f32 %v9284, 0.0
  %v9502 = vmax.f32 %v9287, 0.0
  %v9503 = vmax.f32 %v9290, 0.0
  %v9504 = vmax.f32 %v9293, 0.0
  %v9505 = vmax.f32 %v9296, 0.0
  %v9506 = vmax.f32 %v9299, 0.0
  %v9507 = vmax.f32 %v9302, 0.0
  %v9508 = vmax.f32 %v9305, 0.0
  %v9509 = vmax.f32 %v9308, 0.0
  %v9510 = vmax.f32 %v9311, 0.0
  %v9511 = vmax.f32 %v9314, 0.0
  %v9512 = vmax.f32 %v9317, 0.0
  %v9513 = vmax.f32 %v9320, 0.0
  %v9514 = vmax.f32 %v9323, 0.0
  %v9515 = vmax.f32 %v9326, 0.0
  %v9516 = vmax.f32 %v9329, 0.0
  %v9517 = vmax.f32 %v9332, 0.0
  %v9518 = vmax.f32 %v9335, 0.0
  %v9519 = vmax.f32 %v9338, 0.0
  %v9520 = vmax.f32 %v9341, 0.0
  %v9521 = vmax.f32 %v9344, 0.0
  %v9522 = vmax.f32 %v9347, 0.0
  %v9523 = vmax.f32 %v9350, 0.0
  %v9524 = vmax.f32 %v9353, 0.0
  %v9525 = vmax.f32 %v9356, 0.0
  %v9526 = vmax.f32 %v9359, 0.0
  %v9527 = vmax.f32 %v9362, 0.0
  %v9528 = vmax.f32 %v9365, 0.0
  %v9529 = vmax.f32 %v9368, 0.0
  %v9530 = vmax.f32 %v9371, 0.0
  %v9531 = vmax.f32 %v9374, 0.0
  %v9532 = vmax.f32 %v9377, 0.0
  %v9533 = vmax.f32 %v9380, 0.0
  %v9534 = vmax.f32 %v9383, 0.0
  %v9535 = vmax.f32 %v9386, 0.0
  %v9536 = vmax.f32 %v9389, 0.0
  %v9537 = vmax.f32 %v9392, 0.0
  %v9538 = vmax.f32 %v9395, 0.0
  %v9539 = vmax.f32 %v9398, 0.0
  %v9540 = vmax.f32 %v9401, 0.0
  %v9541 = vmax.f32 %v9404, 0.0
  %v9542 = vmax.f32 %v9407, 0.0
  %v9543 = vmax.f32 %v9410, 0.0
  %v9544 = vmax.f32 %v9413, 0.0
  %v9545 = vmax.f32 %v9416, 0.0
  %v9546 = vld [vmem:[%s6] sm:$0xff]
  %v9547 = vld [vmem:[%s6 + $0x8] sm:$0xff]
  %v9548 = vld [vmem:[#allocation2] sm:$0x1]
  %v9550 = vperm.slane %v9548, 0
  %v9553 = vsel %vm937, %v9418, 0
  %v9556 = vsel %vm937, %v9419, 0
  %v9559 = vsel %vm937, %v9420, 0
  %v9562 = vsel %vm937, %v9421, 0
  %v9565 = vsel %vm937, %v9422, 0
  %v9568 = vsel %vm937, %v9423, 0
  %v9571 = vsel %vm937, %v9424, 0
  %v9574 = vsel %vm937, %v9425, 0
  %v9577 = vsel %vm937, %v9426, 0
  %v9580 = vsel %vm937, %v9427, 0
  %v9583 = vsel %vm937, %v9428, 0
  %v9586 = vsel %vm937, %v9429, 0
  %v9589 = vsel %vm937, %v9430, 0
  %v9592 = vsel %vm937, %v9431, 0
  %v9595 = vsel %vm937, %v9432, 0
  %v9598 = vsel %vm937, %v9433, 0
  %v9601 = vsel %vm937, %v9434, 0
  %v9604 = vsel %vm937, %v9435, 0
  %v9607 = vsel %vm937, %v9436, 0
  %v9610 = vsel %vm937, %v9437, 0
  %v9613 = vsel %vm937, %v9438, 0
  %v9616 = vsel %vm937, %v9439, 0
  %v9619 = vsel %vm937, %v9440, 0
  %v9622 = vsel %vm937, %v9441, 0
  %v9625 = vsel %vm937, %v9442, 0
  %v9628 = vsel %vm937, %v9443, 0
  %v9631 = vsel %vm937, %v9444, 0
  %v9634 = vsel %vm937, %v9445, 0
  %v9637 = vsel %vm937, %v9446, 0
  %v9640 = vsel %vm937, %v9447, 0
  %v9643 = vsel %vm937, %v9448, 0
  %v9646 = vsel %vm937, %v9449, 0
  %v9649 = vsel %vm937, %v9450, 0
  %v9652 = vsel %vm937, %v9451, 0
  %v9655 = vsel %vm937, %v9452, 0
  %v9658 = vsel %vm937, %v9453, 0
  %v9661 = vsel %vm937, %v9454, 0
  %v9664 = vsel %vm937, %v9455, 0
  %v9667 = vsel %vm937, %v9456, 0
  %v9670 = vsel %vm937, %v9457, 0
  %v9673 = vsel %vm937, %v9458, 0
  %v9676 = vsel %vm937, %v9459, 0
  %v9679 = vsel %vm937, %v9460, 0
  %v9682 = vsel %vm937, %v9461, 0
  %v9685 = vsel %vm937, %v9462, 0
  %v9688 = vsel %vm937, %v9463, 0
  %v9691 = vsel %vm937, %v9464, 0
  %v9694 = vsel %vm937, %v9465, 0
  %v9697 = vsel %vm937, %v9466, 0
  %v9700 = vsel %vm937, %v9467, 0
  %v9703 = vsel %vm937, %v9468, 0
  %v9706 = vsel %vm937, %v9469, 0
  %v9709 = vsel %vm937, %v9470, 0
  %v9712 = vsel %vm937, %v9471, 0
  %v9715 = vsel %vm937, %v9472, 0
  %v9718 = vsel %vm937, %v9473, 0
  %v9721 = vsel %vm937, %v9474, 0
  %v9724 = vsel %vm937, %v9475, 0
  %v9727 = vsel %vm937, %v9476, 0
  %v9730 = vsel %vm937, %v9477, 0
  %v9733 = vsel %vm937, %v9478, 0
  %v9736 = vsel %vm937, %v9479, 0
  %v9739 = vsel %vm937, %v9480, 0
  %v9742 = vsel %vm937, %v9481, 0
  %v9745 = vsel %vm937, %v9482, 0
  %v9748 = vsel %vm937, %v9483, 0
  %v9751 = vsel %vm937, %v9484, 0
  %v9754 = vsel %vm937, %v9485, 0
  %v9757 = vsel %vm937, %v9486, 0
  %v9760 = vsel %vm937, %v9487, 0
  %v9763 = vsel %vm937, %v9488, 0
  %v9766 = vsel %vm937, %v9489, 0
  %v9769 = vsel %vm937, %v9490, 0
  %v9772 = vsel %vm937, %v9491, 0
  %v9775 = vsel %vm937, %v9492, 0
  %v9778 = vsel %vm937, %v9493, 0
  %v9781 = vsel %vm937, %v9494, 0
  %v9784 = vsel %vm937, %v9495, 0
  %v9787 = vsel %vm937, %v9496, 0
  %v9790 = vsel %vm937, %v9497, 0
  %v9793 = vsel %vm937, %v9498, 0
  %v9796 = vsel %vm937, %v9499, 0
  %v9799 = vsel %vm937, %v9500, 0
  %v9802 = vsel %vm937, %v9501, 0
  %v9805 = vsel %vm937, %v9502, 0
  %v9808 = vsel %vm937, %v9503, 0
  %v9811 = vsel %vm937, %v9504, 0
  %v9814 = vsel %vm937, %v9505, 0
  %v9817 = vsel %vm937, %v9506, 0
  %v9820 = vsel %vm937, %v9507, 0
  %v9823 = vsel %vm937, %v9508, 0
  %v9826 = vsel %vm937, %v9509, 0
  %v9829 = vsel %vm937, %v9510, 0
  %v9832 = vsel %vm937, %v9511, 0
  %v9835 = vsel %vm937, %v9512, 0
  %v9838 = vsel %vm937, %v9513, 0
  %v9841 = vsel %vm937, %v9514, 0
  %v9844 = vsel %vm937, %v9515, 0
  %v9847 = vsel %vm937, %v9516, 0
  %v9850 = vsel %vm937, %v9517, 0
  %v9853 = vsel %vm937, %v9518, 0
  %v9856 = vsel %vm937, %v9519, 0
  %v9859 = vsel %vm937, %v9520, 0
  %v9862 = vsel %vm937, %v9521, 0
  %v9865 = vsel %vm937, %v9522, 0
  %v9868 = vsel %vm937, %v9523, 0
  %v9871 = vsel %vm937, %v9524, 0
  %v9874 = vsel %vm937, %v9525, 0
  %v9877 = vsel %vm937, %v9526, 0
  %v9880 = vsel %vm937, %v9527, 0
  %v9883 = vsel %vm937, %v9528, 0
  %v9886 = vsel %vm937, %v9529, 0
  %v9889 = vsel %vm937, %v9530, 0
  %v9892 = vsel %vm937, %v9531, 0
  %v9895 = vsel %vm937, %v9532, 0
  %v9898 = vsel %vm937, %v9533, 0
  %v9901 = vsel %vm937, %v9534, 0
  %v9904 = vsel %vm937, %v9535, 0
  %v9907 = vsel %vm937, %v9536, 0
  %v9910 = vsel %vm937, %v9537, 0
  %v9913 = vsel %vm937, %v9538, 0
  %v9916 = vsel %vm937, %v9539, 0
  %v9919 = vsel %vm937, %v9540, 0
  %v9922 = vsel %vm937, %v9541, 0
  %v9925 = vsel %vm937, %v9542, 0
  %v9928 = vsel %vm937, %v9543, 0
  %v9931 = vsel %vm937, %v9544, 0
  %v9934 = vsel %vm937, %v9545, 0
  %9936 = vmatpush.msra.mxu0 0.0
  %9937 = vmatpush.msra.mxu0 0.0
  %9938 = vmatpush.msra.mxu0 0.0
  %9939 = vmatpush.msra.mxu0 0.0
  %9940 = vmatpush.msra.mxu0 0.0
  %9941 = vmatpush.msra.mxu0 0.0
  %9942 = vmatpush.msra.mxu0 0.0
  %9943 = vmatpush.msra.mxu0 0.0
  %9944 = vmatpush.msra.mxu0 0.0
  %9945 = vmatpush.msra.mxu0 0.0
  %9946 = vmatpush.msra.mxu0 0.0
  %9947 = vmatpush.msra.mxu0 0.0
  %9948 = vmatpush.msra.mxu0 0.0
  %9949 = vmatpush.msra.mxu0 0.0
  %9950 = vmatpush.msra.mxu0 %v9547
  %9951 = vmatpush.msra.mxu0 %v9546
  %9952 = vmatmul.f32.gmra.mxu0 %v9553
  %v9953 = vpop.f32.mrf.mxu0
  %v9954 = vadd.f32 %v9550, %v9953
  %9955 = vmatmul.f32.gmra.mxu0 %v9556
  %v9956 = vpop.f32.mrf.mxu0
  %v9957 = vadd.f32 %v9550, %v9956
  %9958 = vmatmul.f32.gmra.mxu0 %v9559
  %v9959 = vpop.f32.mrf.mxu0
  %v9960 = vadd.f32 %v9550, %v9959
  %9961 = vmatmul.f32.gmra.mxu0 %v9562
  %v9962 = vpop.f32.mrf.mxu0
  %v9963 = vadd.f32 %v9550, %v9962
  %9964 = vmatmul.f32.gmra.mxu0 %v9565
  %v9965 = vpop.f32.mrf.mxu0
  %v9966 = vadd.f32 %v9550, %v9965
  %9967 = vmatmul.f32.gmra.mxu0 %v9568
  %v9968 = vpop.f32.mrf.mxu0
  %v9969 = vadd.f32 %v9550, %v9968
  %9970 = vmatmul.f32.gmra.mxu0 %v9571
  %v9971 = vpop.f32.mrf.mxu0
  %v9972 = vadd.f32 %v9550, %v9971
  %9973 = vmatmul.f32.gmra.mxu0 %v9574
  %v9974 = vpop.f32.mrf.mxu0
  %v9975 = vadd.f32 %v9550, %v9974
  %9976 = vmatmul.f32.gmra.mxu0 %v9577
  %v9977 = vpop.f32.mrf.mxu0
  %v9978 = vadd.f32 %v9550, %v9977
  %9979 = vmatmul.f32.gmra.mxu0 %v9580
  %v9980 = vpop.f32.mrf.mxu0
  %v9981 = vadd.f32 %v9550, %v9980
  %9982 = vmatmul.f32.gmra.mxu0 %v9583
  %v9983 = vpop.f32.mrf.mxu0
  %v9984 = vadd.f32 %v9550, %v9983
  %9985 = vmatmul.f32.gmra.mxu0 %v9586
  %v9986 = vpop.f32.mrf.mxu0
  %v9987 = vadd.f32 %v9550, %v9986
  %9988 = vmatmul.f32.gmra.mxu0 %v9589
  %v9989 = vpop.f32.mrf.mxu0
  %v9990 = vadd.f32 %v9550, %v9989
  %9991 = vmatmul.f32.gmra.mxu0 %v9592
  %v9992 = vpop.f32.mrf.mxu0
  %v9993 = vadd.f32 %v9550, %v9992
  %9994 = vmatmul.f32.gmra.mxu0 %v9595
  %v9995 = vpop.f32.mrf.mxu0
  %v9996 = vadd.f32 %v9550, %v9995
  %9997 = vmatmul.f32.gmra.mxu0 %v9598
  %v9998 = vpop.f32.mrf.mxu0
  %v9999 = vadd.f32 %v9550, %v9998
  %10000 = vmatmul.f32.gmra.mxu0 %v9601
  %v10001 = vpop.f32.mrf.mxu0
  %v10002 = vadd.f32 %v9550, %v10001
  %10003 = vmatmul.f32.gmra.mxu0 %v9604
  %v10004 = vpop.f32.mrf.mxu0
  %v10005 = vadd.f32 %v9550, %v10004
  %10006 = vmatmul.f32.gmra.mxu0 %v9607
  %v10007 = vpop.f32.mrf.mxu0
  %v10008 = vadd.f32 %v9550, %v10007
  %10009 = vmatmul.f32.gmra.mxu0 %v9610
  %v10010 = vpop.f32.mrf.mxu0
  %v10011 = vadd.f32 %v9550, %v10010
  %10012 = vmatmul.f32.gmra.mxu0 %v9613
  %v10013 = vpop.f32.mrf.mxu0
  %v10014 = vadd.f32 %v9550, %v10013
  %10015 = vmatmul.f32.gmra.mxu0 %v9616
  %v10016 = vpop.f32.mrf.mxu0
  %v10017 = vadd.f32 %v9550, %v10016
  %10018 = vmatmul.f32.gmra.mxu0 %v9619
  %v10019 = vpop.f32.mrf.mxu0
  %v10020 = vadd.f32 %v9550, %v10019
  %10021 = vmatmul.f32.gmra.mxu0 %v9622
  %v10022 = vpop.f32.mrf.mxu0
  %v10023 = vadd.f32 %v9550, %v10022
  %10024 = vmatmul.f32.gmra.mxu0 %v9625
  %v10025 = vpop.f32.mrf.mxu0
  %v10026 = vadd.f32 %v9550, %v10025
  %10027 = vmatmul.f32.gmra.mxu0 %v9628
  %v10028 = vpop.f32.mrf.mxu0
  %v10029 = vadd.f32 %v9550, %v10028
  %10030 = vmatmul.f32.gmra.mxu0 %v9631
  %v10031 = vpop.f32.mrf.mxu0
  %v10032 = vadd.f32 %v9550, %v10031
  %10033 = vmatmul.f32.gmra.mxu0 %v9634
  %v10034 = vpop.f32.mrf.mxu0
  %v10035 = vadd.f32 %v9550, %v10034
  %10036 = vmatmul.f32.gmra.mxu0 %v9637
  %v10037 = vpop.f32.mrf.mxu0
  %v10038 = vadd.f32 %v9550, %v10037
  %10039 = vmatmul.f32.gmra.mxu0 %v9640
  %v10040 = vpop.f32.mrf.mxu0
  %v10041 = vadd.f32 %v9550, %v10040
  %10042 = vmatmul.f32.gmra.mxu0 %v9643
  %v10043 = vpop.f32.mrf.mxu0
  %v10044 = vadd.f32 %v9550, %v10043
  %10045 = vmatmul.f32.gmra.mxu0 %v9646
  %v10046 = vpop.f32.mrf.mxu0
  %v10047 = vadd.f32 %v9550, %v10046
  %10048 = vmatmul.f32.gmra.mxu0 %v9649
  %v10049 = vpop.f32.mrf.mxu0
  %v10050 = vadd.f32 %v9550, %v10049
  %10051 = vmatmul.f32.gmra.mxu0 %v9652
  %v10052 = vpop.f32.mrf.mxu0
  %v10053 = vadd.f32 %v9550, %v10052
  %10054 = vmatmul.f32.gmra.mxu0 %v9655
  %v10055 = vpop.f32.mrf.mxu0
  %v10056 = vadd.f32 %v9550, %v10055
  %10057 = vmatmul.f32.gmra.mxu0 %v9658
  %v10058 = vpop.f32.mrf.mxu0
  %v10059 = vadd.f32 %v9550, %v10058
  %10060 = vmatmul.f32.gmra.mxu0 %v9661
  %v10061 = vpop.f32.mrf.mxu0
  %v10062 = vadd.f32 %v9550, %v10061
  %10063 = vmatmul.f32.gmra.mxu0 %v9664
  %v10064 = vpop.f32.mrf.mxu0
  %v10065 = vadd.f32 %v9550, %v10064
  %10066 = vmatmul.f32.gmra.mxu0 %v9667
  %v10067 = vpop.f32.mrf.mxu0
  %v10068 = vadd.f32 %v9550, %v10067
  %10069 = vmatmul.f32.gmra.mxu0 %v9670
  %v10070 = vpop.f32.mrf.mxu0
  %v10071 = vadd.f32 %v9550, %v10070
  %10072 = vmatmul.f32.gmra.mxu0 %v9673
  %v10073 = vpop.f32.mrf.mxu0
  %v10074 = vadd.f32 %v9550, %v10073
  %10075 = vmatmul.f32.gmra.mxu0 %v9676
  %v10076 = vpop.f32.mrf.mxu0
  %v10077 = vadd.f32 %v9550, %v10076
  %10078 = vmatmul.f32.gmra.mxu0 %v9679
  %v10079 = vpop.f32.mrf.mxu0
  %v10080 = vadd.f32 %v9550, %v10079
  %10081 = vmatmul.f32.gmra.mxu0 %v9682
  %v10082 = vpop.f32.mrf.mxu0
  %v10083 = vadd.f32 %v9550, %v10082
  %10084 = vmatmul.f32.gmra.mxu0 %v9685
  %v10085 = vpop.f32.mrf.mxu0
  %v10086 = vadd.f32 %v9550, %v10085
  %10087 = vmatmul.f32.gmra.mxu0 %v9688
  %v10088 = vpop.f32.mrf.mxu0
  %v10089 = vadd.f32 %v9550, %v10088
  %10090 = vmatmul.f32.gmra.mxu0 %v9691
  %v10091 = vpop.f32.mrf.mxu0
  %v10092 = vadd.f32 %v9550, %v10091
  %10093 = vmatmul.f32.gmra.mxu0 %v9694
  %v10094 = vpop.f32.mrf.mxu0
  %v10095 = vadd.f32 %v9550, %v10094
  %10096 = vmatmul.f32.gmra.mxu0 %v9697
  %v10097 = vpop.f32.mrf.mxu0
  %v10098 = vadd.f32 %v9550, %v10097
  %10099 = vmatmul.f32.gmra.mxu0 %v9700
  %v10100 = vpop.f32.mrf.mxu0
  %v10101 = vadd.f32 %v9550, %v10100
  %10102 = vmatmul.f32.gmra.mxu0 %v9703
  %v10103 = vpop.f32.mrf.mxu0
  %v10104 = vadd.f32 %v9550, %v10103
  %10105 = vmatmul.f32.gmra.mxu0 %v9706
  %v10106 = vpop.f32.mrf.mxu0
  %v10107 = vadd.f32 %v9550, %v10106
  %10108 = vmatmul.f32.gmra.mxu0 %v9709
  %v10109 = vpop.f32.mrf.mxu0
  %v10110 = vadd.f32 %v9550, %v10109
  %10111 = vmatmul.f32.gmra.mxu0 %v9712
  %v10112 = vpop.f32.mrf.mxu0
  %v10113 = vadd.f32 %v9550, %v10112
  %10114 = vmatmul.f32.gmra.mxu0 %v9715
  %v10115 = vpop.f32.mrf.mxu0
  %v10116 = vadd.f32 %v9550, %v10115
  %10117 = vmatmul.f32.gmra.mxu0 %v9718
  %v10118 = vpop.f32.mrf.mxu0
  %v10119 = vadd.f32 %v9550, %v10118
  %10120 = vmatmul.f32.gmra.mxu0 %v9721
  %v10121 = vpop.f32.mrf.mxu0
  %v10122 = vadd.f32 %v9550, %v10121
  %10123 = vmatmul.f32.gmra.mxu0 %v9724
  %v10124 = vpop.f32.mrf.mxu0
  %v10125 = vadd.f32 %v9550, %v10124
  %10126 = vmatmul.f32.gmra.mxu0 %v9727
  %v10127 = vpop.f32.mrf.mxu0
  %v10128 = vadd.f32 %v9550, %v10127
  %10129 = vmatmul.f32.gmra.mxu0 %v9730
  %v10130 = vpop.f32.mrf.mxu0
  %v10131 = vadd.f32 %v9550, %v10130
  %10132 = vmatmul.f32.gmra.mxu0 %v9733
  %v10133 = vpop.f32.mrf.mxu0
  %v10134 = vadd.f32 %v9550, %v10133
  %10135 = vmatmul.f32.gmra.mxu0 %v9736
  %v10136 = vpop.f32.mrf.mxu0
  %v10137 = vadd.f32 %v9550, %v10136
  %10138 = vmatmul.f32.gmra.mxu0 %v9739
  %v10139 = vpop.f32.mrf.mxu0
  %v10140 = vadd.f32 %v9550, %v10139
  %10141 = vmatmul.f32.gmra.mxu0 %v9742
  %v10142 = vpop.f32.mrf.mxu0
  %v10143 = vadd.f32 %v9550, %v10142
  %10144 = vmatmul.f32.gmra.mxu0 %v9745
  %v10145 = vpop.f32.mrf.mxu0
  %v10146 = vadd.f32 %v9550, %v10145
  %10147 = vmatmul.f32.gmra.mxu0 %v9748
  %v10148 = vpop.f32.mrf.mxu0
  %v10149 = vadd.f32 %v9550, %v10148
  %10150 = vmatmul.f32.gmra.mxu0 %v9751
  %v10151 = vpop.f32.mrf.mxu0
  %v10152 = vadd.f32 %v9550, %v10151
  %10153 = vmatmul.f32.gmra.mxu0 %v9754
  %v10154 = vpop.f32.mrf.mxu0
  %v10155 = vadd.f32 %v9550, %v10154
  %10156 = vmatmul.f32.gmra.mxu0 %v9757
  %v10157 = vpop.f32.mrf.mxu0
  %v10158 = vadd.f32 %v9550, %v10157
  %10159 = vmatmul.f32.gmra.mxu0 %v9760
  %v10160 = vpop.f32.mrf.mxu0
  %v10161 = vadd.f32 %v9550, %v10160
  %10162 = vmatmul.f32.gmra.mxu0 %v9763
  %v10163 = vpop.f32.mrf.mxu0
  %v10164 = vadd.f32 %v9550, %v10163
  %10165 = vmatmul.f32.gmra.mxu0 %v9766
  %v10166 = vpop.f32.mrf.mxu0
  %v10167 = vadd.f32 %v9550, %v10166
  %10168 = vmatmul.f32.gmra.mxu0 %v9769
  %v10169 = vpop.f32.mrf.mxu0
  %v10170 = vadd.f32 %v9550, %v10169
  %10171 = vmatmul.f32.gmra.mxu0 %v9772
  %v10172 = vpop.f32.mrf.mxu0
  %v10173 = vadd.f32 %v9550, %v10172
  %10174 = vmatmul.f32.gmra.mxu0 %v9775
  %v10175 = vpop.f32.mrf.mxu0
  %v10176 = vadd.f32 %v9550, %v10175
  %10177 = vmatmul.f32.gmra.mxu0 %v9778
  %v10178 = vpop.f32.mrf.mxu0
  %v10179 = vadd.f32 %v9550, %v10178
  %10180 = vmatmul.f32.gmra.mxu0 %v9781
  %v10181 = vpop.f32.mrf.mxu0
  %v10182 = vadd.f32 %v9550, %v10181
  %10183 = vmatmul.f32.gmra.mxu0 %v9784
  %v10184 = vpop.f32.mrf.mxu0
  %v10185 = vadd.f32 %v9550, %v10184
  %10186 = vmatmul.f32.gmra.mxu0 %v9787
  %v10187 = vpop.f32.mrf.mxu0
  %v10188 = vadd.f32 %v9550, %v10187
  %10189 = vmatmul.f32.gmra.mxu0 %v9790
  %v10190 = vpop.f32.mrf.mxu0
  %v10191 = vadd.f32 %v9550, %v10190
  %10192 = vmatmul.f32.gmra.mxu0 %v9793
  %v10193 = vpop.f32.mrf.mxu0
  %v10194 = vadd.f32 %v9550, %v10193
  %10195 = vmatmul.f32.gmra.mxu0 %v9796
  %v10196 = vpop.f32.mrf.mxu0
  %v10197 = vadd.f32 %v9550, %v10196
  %10198 = vmatmul.f32.gmra.mxu0 %v9799
  %v10199 = vpop.f32.mrf.mxu0
  %v10200 = vadd.f32 %v9550, %v10199
  %10201 = vmatmul.f32.gmra.mxu0 %v9802
  %v10202 = vpop.f32.mrf.mxu0
  %v10203 = vadd.f32 %v9550, %v10202
  %10204 = vmatmul.f32.gmra.mxu0 %v9805
  %v10205 = vpop.f32.mrf.mxu0
  %v10206 = vadd.f32 %v9550, %v10205
  %10207 = vmatmul.f32.gmra.mxu0 %v9808
  %v10208 = vpop.f32.mrf.mxu0
  %v10209 = vadd.f32 %v9550, %v10208
  %10210 = vmatmul.f32.gmra.mxu0 %v9811
  %v10211 = vpop.f32.mrf.mxu0
  %v10212 = vadd.f32 %v9550, %v10211
  %10213 = vmatmul.f32.gmra.mxu0 %v9814
  %v10214 = vpop.f32.mrf.mxu0
  %v10215 = vadd.f32 %v9550, %v10214
  %10216 = vmatmul.f32.gmra.mxu0 %v9817
  %v10217 = vpop.f32.mrf.mxu0
  %v10218 = vadd.f32 %v9550, %v10217
  %10219 = vmatmul.f32.gmra.mxu0 %v9820
  %v10220 = vpop.f32.mrf.mxu0
  %v10221 = vadd.f32 %v9550, %v10220
  %10222 = vmatmul.f32.gmra.mxu0 %v9823
  %v10223 = vpop.f32.mrf.mxu0
  %v10224 = vadd.f32 %v9550, %v10223
  %10225 = vmatmul.f32.gmra.mxu0 %v9826
  %v10226 = vpop.f32.mrf.mxu0
  %v10227 = vadd.f32 %v9550, %v10226
  %10228 = vmatmul.f32.gmra.mxu0 %v9829
  %v10229 = vpop.f32.mrf.mxu0
  %v10230 = vadd.f32 %v9550, %v10229
  %10231 = vmatmul.f32.gmra.mxu0 %v9832
  %v10232 = vpop.f32.mrf.mxu0
  %v10233 = vadd.f32 %v9550, %v10232
  %10234 = vmatmul.f32.gmra.mxu0 %v9835
  %v10235 = vpop.f32.mrf.mxu0
  %v10236 = vadd.f32 %v9550, %v10235
  %10237 = vmatmul.f32.gmra.mxu0 %v9838
  %v10238 = vpop.f32.mrf.mxu0
  %v10239 = vadd.f32 %v9550, %v10238
  %10240 = vmatmul.f32.gmra.mxu0 %v9841
  %v10241 = vpop.f32.mrf.mxu0
  %v10242 = vadd.f32 %v9550, %v10241
  %10243 = vmatmul.f32.gmra.mxu0 %v9844
  %v10244 = vpop.f32.mrf.mxu0
  %v10245 = vadd.f32 %v9550, %v10244
  %10246 = vmatmul.f32.gmra.mxu0 %v9847
  %v10247 = vpop.f32.mrf.mxu0
  %v10248 = vadd.f32 %v9550, %v10247
  %10249 = vmatmul.f32.gmra.mxu0 %v9850
  %v10250 = vpop.f32.mrf.mxu0
  %v10251 = vadd.f32 %v9550, %v10250
  %10252 = vmatmul.f32.gmra.mxu0 %v9853
  %v10253 = vpop.f32.mrf.mxu0
  %v10254 = vadd.f32 %v9550, %v10253
  %10255 = vmatmul.f32.gmra.mxu0 %v9856
  %v10256 = vpop.f32.mrf.mxu0
  %v10257 = vadd.f32 %v9550, %v10256
  %10258 = vmatmul.f32.gmra.mxu0 %v9859
  %v10259 = vpop.f32.mrf.mxu0
  %v10260 = vadd.f32 %v9550, %v10259
  %10261 = vmatmul.f32.gmra.mxu0 %v9862
  %v10262 = vpop.f32.mrf.mxu0
  %v10263 = vadd.f32 %v9550, %v10262
  %10264 = vmatmul.f32.gmra.mxu0 %v9865
  %v10265 = vpop.f32.mrf.mxu0
  %v10266 = vadd.f32 %v9550, %v10265
  %10267 = vmatmul.f32.gmra.mxu0 %v9868
  %v10268 = vpop.f32.mrf.mxu0
  %v10269 = vadd.f32 %v9550, %v10268
  %10270 = vmatmul.f32.gmra.mxu0 %v9871
  %v10271 = vpop.f32.mrf.mxu0
  %v10272 = vadd.f32 %v9550, %v10271
  %10273 = vmatmul.f32.gmra.mxu0 %v9874
  %v10274 = vpop.f32.mrf.mxu0
  %v10275 = vadd.f32 %v9550, %v10274
  %10276 = vmatmul.f32.gmra.mxu0 %v9877
  %v10277 = vpop.f32.mrf.mxu0
  %v10278 = vadd.f32 %v9550, %v10277
  %10279 = vmatmul.f32.gmra.mxu0 %v9880
  %v10280 = vpop.f32.mrf.mxu0
  %v10281 = vadd.f32 %v9550, %v10280
  %10282 = vmatmul.f32.gmra.mxu0 %v9883
  %v10283 = vpop.f32.mrf.mxu0
  %v10284 = vadd.f32 %v9550, %v10283
  %10285 = vmatmul.f32.gmra.mxu0 %v9886
  %v10286 = vpop.f32.mrf.mxu0
  %v10287 = vadd.f32 %v9550, %v10286
  %10288 = vmatmul.f32.gmra.mxu0 %v9889
  %v10289 = vpop.f32.mrf.mxu0
  %v10290 = vadd.f32 %v9550, %v10289
  %10291 = vmatmul.f32.gmra.mxu0 %v9892
  %v10292 = vpop.f32.mrf.mxu0
  %v10293 = vadd.f32 %v9550, %v10292
  %10294 = vmatmul.f32.gmra.mxu0 %v9895
  %v10295 = vpop.f32.mrf.mxu0
  %v10296 = vadd.f32 %v9550, %v10295
  %10297 = vmatmul.f32.gmra.mxu0 %v9898
  %v10298 = vpop.f32.mrf.mxu0
  %v10299 = vadd.f32 %v9550, %v10298
  %10300 = vmatmul.f32.gmra.mxu0 %v9901
  %v10301 = vpop.f32.mrf.mxu0
  %v10302 = vadd.f32 %v9550, %v10301
  %10303 = vmatmul.f32.gmra.mxu0 %v9904
  %v10304 = vpop.f32.mrf.mxu0
  %v10305 = vadd.f32 %v9550, %v10304
  %10306 = vmatmul.f32.gmra.mxu0 %v9907
  %v10307 = vpop.f32.mrf.mxu0
  %v10308 = vadd.f32 %v9550, %v10307
  %10309 = vmatmul.f32.gmra.mxu0 %v9910
  %v10310 = vpop.f32.mrf.mxu0
  %v10311 = vadd.f32 %v9550, %v10310
  %10312 = vmatmul.f32.gmra.mxu0 %v9913
  %v10313 = vpop.f32.mrf.mxu0
  %v10314 = vadd.f32 %v9550, %v10313
  %10315 = vmatmul.f32.gmra.mxu0 %v9916
  %v10316 = vpop.f32.mrf.mxu0
  %v10317 = vadd.f32 %v9550, %v10316
  %10318 = vmatmul.f32.gmra.mxu0 %v9919
  %v10319 = vpop.f32.mrf.mxu0
  %v10320 = vadd.f32 %v9550, %v10319
  %10321 = vmatmul.f32.gmra.mxu0 %v9922
  %v10322 = vpop.f32.mrf.mxu0
  %v10323 = vadd.f32 %v9550, %v10322
  %10324 = vmatmul.f32.gmra.mxu0 %v9925
  %v10325 = vpop.f32.mrf.mxu0
  %v10326 = vadd.f32 %v9550, %v10325
  %10327 = vmatmul.f32.gmra.mxu0 %v9928
  %v10328 = vpop.f32.mrf.mxu0
  %v10329 = vadd.f32 %v9550, %v10328
  %10330 = vmatmul.f32.gmra.mxu0 %v9931
  %v10331 = vpop.f32.mrf.mxu0
  %v10332 = vadd.f32 %v9550, %v10331
  %10333 = vmatmul.f32.gmra.mxu0 %v9934
  %v10334 = vpop.f32.mrf.mxu0
  %v10335 = vadd.f32 %v9550, %v10334
  %10336 = vdwg.mxu0
  %v10337 = vsub.f32 0.0, %v9954
  %v10338 = vsub.f32 0.0, %v9957
  %v10339 = vsub.f32 0.0, %v9960
  %v10340 = vsub.f32 0.0, %v9963
  %v10341 = vsub.f32 0.0, %v9966
  %v10342 = vsub.f32 0.0, %v9969
  %v10343 = vsub.f32 0.0, %v9972
  %v10344 = vsub.f32 0.0, %v9975
  %v10345 = vsub.f32 0.0, %v9978
  %v10346 = vsub.f32 0.0, %v9981
  %v10347 = vsub.f32 0.0, %v9984
  %v10348 = vsub.f32 0.0, %v9987
  %v10349 = vsub.f32 0.0, %v9990
  %v10350 = vsub.f32 0.0, %v9993
  %v10351 = vsub.f32 0.0, %v9996
  %v10352 = vsub.f32 0.0, %v9999
  %v10353 = vsub.f32 0.0, %v10002
  %v10354 = vsub.f32 0.0, %v10005
  %v10355 = vsub.f32 0.0, %v10008
  %v10356 = vsub.f32 0.0, %v10011
  %v10357 = vsub.f32 0.0, %v10014
  %v10358 = vsub.f32 0.0, %v10017
  %v10359 = vsub.f32 0.0, %v10020
  %v10360 = vsub.f32 0.0, %v10023
  %v10361 = vsub.f32 0.0, %v10026
  %v10362 = vsub.f32 0.0, %v10029
  %v10363 = vsub.f32 0.0, %v10032
  %v10364 = vsub.f32 0.0, %v10035
  %v10365 = vsub.f32 0.0, %v10038
  %v10366 = vsub.f32 0.0, %v10041
  %v10367 = vsub.f32 0.0, %v10044
  %v10368 = vsub.f32 0.0, %v10047
  %v10369 = vsub.f32 0.0, %v10050
  %v10370 = vsub.f32 0.0, %v10053
  %v10371 = vsub.f32 0.0, %v10056
  %v10372 = vsub.f32 0.0, %v10059
  %v10373 = vsub.f32 0.0, %v10062
  %v10374 = vsub.f32 0.0, %v10065
  %v10375 = vsub.f32 0.0, %v10068
  %v10376 = vsub.f32 0.0, %v10071
  %v10377 = vsub.f32 0.0, %v10074
  %v10378 = vsub.f32 0.0, %v10077
  %v10379 = vsub.f32 0.0, %v10080
  %v10380 = vsub.f32 0.0, %v10083
  %v10381 = vsub.f32 0.0, %v10086
  %v10382 = vsub.f32 0.0, %v10089
  %v10383 = vsub.f32 0.0, %v10092
  %v10384 = vsub.f32 0.0, %v10095
  %v10385 = vsub.f32 0.0, %v10098
  %v10386 = vsub.f32 0.0, %v10101
  %v10387 = vsub.f32 0.0, %v10104
  %v10388 = vsub.f32 0.0, %v10107
  %v10389 = vsub.f32 0.0, %v10110
  %v10390 = vsub.f32 0.0, %v10113
  %v10391 = vsub.f32 0.0, %v10116
  %v10392 = vsub.f32 0.0, %v10119
  %v10393 = vsub.f32 0.0, %v10122
  %v10394 = vsub.f32 0.0, %v10125
  %v10395 = vsub.f32 0.0, %v10128
  %v10396 = vsub.f32 0.0, %v10131
  %v10397 = vsub.f32 0.0, %v10134
  %v10398 = vsub.f32 0.0, %v10137
  %v10399 = vsub.f32 0.0, %v10140
  %v10400 = vsub.f32 0.0, %v10143
  %v10401 = vsub.f32 0.0, %v10146
  %v10402 = vsub.f32 0.0, %v10149
  %v10403 = vsub.f32 0.0, %v10152
  %v10404 = vsub.f32 0.0, %v10155
  %v10405 = vsub.f32 0.0, %v10158
  %v10406 = vsub.f32 0.0, %v10161
  %v10407 = vsub.f32 0.0, %v10164
  %v10408 = vsub.f32 0.0, %v10167
  %v10409 = vsub.f32 0.0, %v10170
  %v10410 = vsub.f32 0.0, %v10173
  %v10411 = vsub.f32 0.0, %v10176
  %v10412 = vsub.f32 0.0, %v10179
  %v10413 = vsub.f32 0.0, %v10182
  %v10414 = vsub.f32 0.0, %v10185
  %v10415 = vsub.f32 0.0, %v10188
  %v10416 = vsub.f32 0.0, %v10191
  %v10417 = vsub.f32 0.0, %v10194
  %v10418 = vsub.f32 0.0, %v10197
  %v10419 = vsub.f32 0.0, %v10200
  %v10420 = vsub.f32 0.0, %v10203
  %v10421 = vsub.f32 0.0, %v10206
  %v10422 = vsub.f32 0.0, %v10209
  %v10423 = vsub.f32 0.0, %v10212
  %v10424 = vsub.f32 0.0, %v10215
  %v10425 = vsub.f32 0.0, %v10218
  %v10426 = vsub.f32 0.0, %v10221
  %v10427 = vsub.f32 0.0, %v10224
  %v10428 = vsub.f32 0.0, %v10227
  %v10429 = vsub.f32 0.0, %v10230
  %v10430 = vsub.f32 0.0, %v10233
  %v10431 = vsub.f32 0.0, %v10236
  %v10432 = vsub.f32 0.0, %v10239
  %v10433 = vsub.f32 0.0, %v10242
  %v10434 = vsub.f32 0.0, %v10245
  %v10435 = vsub.f32 0.0, %v10248
  %v10436 = vsub.f32 0.0, %v10251
  %v10437 = vsub.f32 0.0, %v10254
  %v10438 = vsub.f32 0.0, %v10257
  %v10439 = vsub.f32 0.0, %v10260
  %v10440 = vsub.f32 0.0, %v10263
  %v10441 = vsub.f32 0.0, %v10266
  %v10442 = vsub.f32 0.0, %v10269
  %v10443 = vsub.f32 0.0, %v10272
  %v10444 = vsub.f32 0.0, %v10275
  %v10445 = vsub.f32 0.0, %v10278
  %v10446 = vsub.f32 0.0, %v10281
  %v10447 = vsub.f32 0.0, %v10284
  %v10448 = vsub.f32 0.0, %v10287
  %v10449 = vsub.f32 0.0, %v10290
  %v10450 = vsub.f32 0.0, %v10293
  %v10451 = vsub.f32 0.0, %v10296
  %v10452 = vsub.f32 0.0, %v10299
  %v10453 = vsub.f32 0.0, %v10302
  %v10454 = vsub.f32 0.0, %v10305
  %v10455 = vsub.f32 0.0, %v10308
  %v10456 = vsub.f32 0.0, %v10311
  %v10457 = vsub.f32 0.0, %v10314
  %v10458 = vsub.f32 0.0, %v10317
  %v10459 = vsub.f32 0.0, %v10320
  %v10460 = vsub.f32 0.0, %v10323
  %v10461 = vsub.f32 0.0, %v10326
  %v10462 = vsub.f32 0.0, %v10329
  %v10463 = vsub.f32 0.0, %v10332
  %v10464 = vsub.f32 0.0, %v10335
  %v10465 = vmul.f32 %v10337, 1.442695
  %v10466 = vpow.pop %v10465
  %v10467 = vmul.f32 %v10338, 1.442695
  %v10468 = vpow.pop %v10467
  %v10469 = vmul.f32 %v10339, 1.442695
  %v10470 = vpow.pop %v10469
  %v10471 = vmul.f32 %v10340, 1.442695
  %v10472 = vpow.pop %v10471
  %v10473 = vmul.f32 %v10341, 1.442695
  %v10474 = vpow.pop %v10473
  %v10475 = vmul.f32 %v10342, 1.442695
  %v10476 = vpow.pop %v10475
  %v10477 = vmul.f32 %v10343, 1.442695
  %v10478 = vpow.pop %v10477
  %v10479 = vmul.f32 %v10344, 1.442695
  %v10480 = vpow.pop %v10479
  %v10481 = vmul.f32 %v10345, 1.442695
  %v10482 = vpow.pop %v10481
  %v10483 = vmul.f32 %v10346, 1.442695
  %v10484 = vpow.pop %v10483
  %v10485 = vmul.f32 %v10347, 1.442695
  %v10486 = vpow.pop %v10485
  %v10487 = vmul.f32 %v10348, 1.442695
  %v10488 = vpow.pop %v10487
  %v10489 = vmul.f32 %v10349, 1.442695
  %v10490 = vpow.pop %v10489
  %v10491 = vmul.f32 %v10350, 1.442695
  %v10492 = vpow.pop %v10491
  %v10493 = vmul.f32 %v10351, 1.442695
  %v10494 = vpow.pop %v10493
  %v10495 = vmul.f32 %v10352, 1.442695
  %v10496 = vpow.pop %v10495
  %v10497 = vmul.f32 %v10353, 1.442695
  %v10498 = vpow.pop %v10497
  %v10499 = vmul.f32 %v10354, 1.442695
  %v10500 = vpow.pop %v10499
  %v10501 = vmul.f32 %v10355, 1.442695
  %v10502 = vpow.pop %v10501
  %v10503 = vmul.f32 %v10356, 1.442695
  %v10504 = vpow.pop %v10503
  %v10505 = vmul.f32 %v10357, 1.442695
  %v10506 = vpow.pop %v10505
  %v10507 = vmul.f32 %v10358, 1.442695
  %v10508 = vpow.pop %v10507
  %v10509 = vmul.f32 %v10359, 1.442695
  %v10510 = vpow.pop %v10509
  %v10511 = vmul.f32 %v10360, 1.442695
  %v10512 = vpow.pop %v10511
  %v10513 = vmul.f32 %v10361, 1.442695
  %v10514 = vpow.pop %v10513
  %v10515 = vmul.f32 %v10362, 1.442695
  %v10516 = vpow.pop %v10515
  %v10517 = vmul.f32 %v10363, 1.442695
  %v10518 = vpow.pop %v10517
  %v10519 = vmul.f32 %v10364, 1.442695
  %v10520 = vpow.pop %v10519
  %v10521 = vmul.f32 %v10365, 1.442695
  %v10522 = vpow.pop %v10521
  %v10523 = vmul.f32 %v10366, 1.442695
  %v10524 = vpow.pop %v10523
  %v10525 = vmul.f32 %v10367, 1.442695
  %v10526 = vpow.pop %v10525
  %v10527 = vmul.f32 %v10368, 1.442695
  %v10528 = vpow.pop %v10527
  %v10529 = vmul.f32 %v10369, 1.442695
  %v10530 = vpow.pop %v10529
  %v10531 = vmul.f32 %v10370, 1.442695
  %v10532 = vpow.pop %v10531
  %v10533 = vmul.f32 %v10371, 1.442695
  %v10534 = vpow.pop %v10533
  %v10535 = vmul.f32 %v10372, 1.442695
  %v10536 = vpow.pop %v10535
  %v10537 = vmul.f32 %v10373, 1.442695
  %v10538 = vpow.pop %v10537
  %v10539 = vmul.f32 %v10374, 1.442695
  %v10540 = vpow.pop %v10539
  %v10541 = vmul.f32 %v10375, 1.442695
  %v10542 = vpow.pop %v10541
  %v10543 = vmul.f32 %v10376, 1.442695
  %v10544 = vpow.pop %v10543
  %v10545 = vmul.f32 %v10377, 1.442695
  %v10546 = vpow.pop %v10545
  %v10547 = vmul.f32 %v10378, 1.442695
  %v10548 = vpow.pop %v10547
  %v10549 = vmul.f32 %v10379, 1.442695
  %v10550 = vpow.pop %v10549
  %v10551 = vmul.f32 %v10380, 1.442695
  %v10552 = vpow.pop %v10551
  %v10553 = vmul.f32 %v10381, 1.442695
  %v10554 = vpow.pop %v10553
  %v10555 = vmul.f32 %v10382, 1.442695
  %v10556 = vpow.pop %v10555
  %v10557 = vmul.f32 %v10383, 1.442695
  %v10558 = vpow.pop %v10557
  %v10559 = vmul.f32 %v10384, 1.442695
  %v10560 = vpow.pop %v10559
  %v10561 = vmul.f32 %v10385, 1.442695
  %v10562 = vpow.pop %v10561
  %v10563 = vmul.f32 %v10386, 1.442695
  %v10564 = vpow.pop %v10563
  %v10565 = vmul.f32 %v10387, 1.442695
  %v10566 = vpow.pop %v10565
  %v10567 = vmul.f32 %v10388, 1.442695
  %v10568 = vpow.pop %v10567
  %v10569 = vmul.f32 %v10389, 1.442695
  %v10570 = vpow.pop %v10569
  %v10571 = vmul.f32 %v10390, 1.442695
  %v10572 = vpow.pop %v10571
  %v10573 = vmul.f32 %v10391, 1.442695
  %v10574 = vpow.pop %v10573
  %v10575 = vmul.f32 %v10392, 1.442695
  %v10576 = vpow.pop %v10575
  %v10577 = vmul.f32 %v10393, 1.442695
  %v10578 = vpow.pop %v10577
  %v10579 = vmul.f32 %v10394, 1.442695
  %v10580 = vpow.pop %v10579
  %v10581 = vmul.f32 %v10395, 1.442695
  %v10582 = vpow.pop %v10581
  %v10583 = vmul.f32 %v10396, 1.442695
  %v10584 = vpow.pop %v10583
  %v10585 = vmul.f32 %v10397, 1.442695
  %v10586 = vpow.pop %v10585
  %v10587 = vmul.f32 %v10398, 1.442695
  %v10588 = vpow.pop %v10587
  %v10589 = vmul.f32 %v10399, 1.442695
  %v10590 = vpow.pop %v10589
  %v10591 = vmul.f32 %v10400, 1.442695
  %v10592 = vpow.pop %v10591
  %v10593 = vmul.f32 %v10401, 1.442695
  %v10594 = vpow.pop %v10593
  %v10595 = vmul.f32 %v10402, 1.442695
  %v10596 = vpow.pop %v10595
  %v10597 = vmul.f32 %v10403, 1.442695
  %v10598 = vpow.pop %v10597
  %v10599 = vmul.f32 %v10404, 1.442695
  %v10600 = vpow.pop %v10599
  %v10601 = vmul.f32 %v10405, 1.442695
  %v10602 = vpow.pop %v10601
  %v10603 = vmul.f32 %v10406, 1.442695
  %v10604 = vpow.pop %v10603
  %v10605 = vmul.f32 %v10407, 1.442695
  %v10606 = vpow.pop %v10605
  %v10607 = vmul.f32 %v10408, 1.442695
  %v10608 = vpow.pop %v10607
  %v10609 = vmul.f32 %v10409, 1.442695
  %v10610 = vpow.pop %v10609
  %v10611 = vmul.f32 %v10410, 1.442695
  %v10612 = vpow.pop %v10611
  %v10613 = vmul.f32 %v10411, 1.442695
  %v10614 = vpow.pop %v10613
  %v10615 = vmul.f32 %v10412, 1.442695
  %v10616 = vpow.pop %v10615
  %v10617 = vmul.f32 %v10413, 1.442695
  %v10618 = vpow.pop %v10617
  %v10619 = vmul.f32 %v10414, 1.442695
  %v10620 = vpow.pop %v10619
  %v10621 = vmul.f32 %v10415, 1.442695
  %v10622 = vpow.pop %v10621
  %v10623 = vmul.f32 %v10416, 1.442695
  %v10624 = vpow.pop %v10623
  %v10625 = vmul.f32 %v10417, 1.442695
  %v10626 = vpow.pop %v10625
  %v10627 = vmul.f32 %v10418, 1.442695
  %v10628 = vpow.pop %v10627
  %v10629 = vmul.f32 %v10419, 1.442695
  %v10630 = vpow.pop %v10629
  %v10631 = vmul.f32 %v10420, 1.442695
  %v10632 = vpow.pop %v10631
  %v10633 = vmul.f32 %v10421, 1.442695
  %v10634 = vpow.pop %v10633
  %v10635 = vmul.f32 %v10422, 1.442695
  %v10636 = vpow.pop %v10635
  %v10637 = vmul.f32 %v10423, 1.442695
  %v10638 = vpow.pop %v10637
  %v10639 = vmul.f32 %v10424, 1.442695
  %v10640 = vpow.pop %v10639
  %v10641 = vmul.f32 %v10425, 1.442695
  %v10642 = vpow.pop %v10641
  %v10643 = vmul.f32 %v10426, 1.442695
  %v10644 = vpow.pop %v10643
  %v10645 = vmul.f32 %v10427, 1.442695
  %v10646 = vpow.pop %v10645
  %v10647 = vmul.f32 %v10428, 1.442695
  %v10648 = vpow.pop %v10647
  %v10649 = vmul.f32 %v10429, 1.442695
  %v10650 = vpow.pop %v10649
  %v10651 = vmul.f32 %v10430, 1.442695
  %v10652 = vpow.pop %v10651
  %v10653 = vmul.f32 %v10431, 1.442695
  %v10654 = vpow.pop %v10653
  %v10655 = vmul.f32 %v10432, 1.442695
  %v10656 = vpow.pop %v10655
  %v10657 = vmul.f32 %v10433, 1.442695
  %v10658 = vpow.pop %v10657
  %v10659 = vmul.f32 %v10434, 1.442695
  %v10660 = vpow.pop %v10659
  %v10661 = vmul.f32 %v10435, 1.442695
  %v10662 = vpow.pop %v10661
  %v10663 = vmul.f32 %v10436, 1.442695
  %v10664 = vpow.pop %v10663
  %v10665 = vmul.f32 %v10437, 1.442695
  %v10666 = vpow.pop %v10665
  %v10667 = vmul.f32 %v10438, 1.442695
  %v10668 = vpow.pop %v10667
  %v10669 = vmul.f32 %v10439, 1.442695
  %v10670 = vpow.pop %v10669
  %v10671 = vmul.f32 %v10440, 1.442695
  %v10672 = vpow.pop %v10671
  %v10673 = vmul.f32 %v10441, 1.442695
  %v10674 = vpow.pop %v10673
  %v10675 = vmul.f32 %v10442, 1.442695
  %v10676 = vpow.pop %v10675
  %v10677 = vmul.f32 %v10443, 1.442695
  %v10678 = vpow.pop %v10677
  %v10679 = vmul.f32 %v10444, 1.442695
  %v10680 = vpow.pop %v10679
  %v10681 = vmul.f32 %v10445, 1.442695
  %v10682 = vpow.pop %v10681
  %v10683 = vmul.f32 %v10446, 1.442695
  %v10684 = vpow.pop %v10683
  %v10685 = vmul.f32 %v10447, 1.442695
  %v10686 = vpow.pop %v10685
  %v10687 = vmul.f32 %v10448, 1.442695
  %v10688 = vpow.pop %v10687
  %v10689 = vmul.f32 %v10449, 1.442695
  %v10690 = vpow.pop %v10689
  %v10691 = vmul.f32 %v10450, 1.442695
  %v10692 = vpow.pop %v10691
  %v10693 = vmul.f32 %v10451, 1.442695
  %v10694 = vpow.pop %v10693
  %v10695 = vmul.f32 %v10452, 1.442695
  %v10696 = vpow.pop %v10695
  %v10697 = vmul.f32 %v10453, 1.442695
  %v10698 = vpow.pop %v10697
  %v10699 = vmul.f32 %v10454, 1.442695
  %v10700 = vpow.pop %v10699
  %v10701 = vmul.f32 %v10455, 1.442695
  %v10702 = vpow.pop %v10701
  %v10703 = vmul.f32 %v10456, 1.442695
  %v10704 = vpow.pop %v10703
  %v10705 = vmul.f32 %v10457, 1.442695
  %v10706 = vpow.pop %v10705
  %v10707 = vmul.f32 %v10458, 1.442695
  %v10708 = vpow.pop %v10707
  %v10709 = vmul.f32 %v10459, 1.442695
  %v10710 = vpow.pop %v10709
  %v10711 = vmul.f32 %v10460, 1.442695
  %v10712 = vpow.pop %v10711
  %v10713 = vmul.f32 %v10461, 1.442695
  %v10714 = vpow.pop %v10713
  %v10715 = vmul.f32 %v10462, 1.442695
  %v10716 = vpow.pop %v10715
  %v10717 = vmul.f32 %v10463, 1.442695
  %v10718 = vpow.pop %v10717
  %v10719 = vmul.f32 %v10464, 1.442695
  %v10720 = vpow.pop %v10719
  %v10721 = vadd.f32 %v10466, 1.0
  %v10722 = vadd.f32 %v10468, 1.0
  %v10723 = vadd.f32 %v10470, 1.0
  %v10724 = vadd.f32 %v10472, 1.0
  %v10725 = vadd.f32 %v10474, 1.0
  %v10726 = vadd.f32 %v10476, 1.0
  %v10727 = vadd.f32 %v10478, 1.0
  %v10728 = vadd.f32 %v10480, 1.0
  %v10729 = vadd.f32 %v10482, 1.0
  %v10730 = vadd.f32 %v10484, 1.0
  %v10731 = vadd.f32 %v10486, 1.0
  %v10732 = vadd.f32 %v10488, 1.0
  %v10733 = vadd.f32 %v10490, 1.0
  %v10734 = vadd.f32 %v10492, 1.0
  %v10735 = vadd.f32 %v10494, 1.0
  %v10736 = vadd.f32 %v10496, 1.0
  %v10737 = vadd.f32 %v10498, 1.0
  %v10738 = vadd.f32 %v10500, 1.0
  %v10739 = vadd.f32 %v10502, 1.0
  %v10740 = vadd.f32 %v10504, 1.0
  %v10741 = vadd.f32 %v10506, 1.0
  %v10742 = vadd.f32 %v10508, 1.0
  %v10743 = vadd.f32 %v10510, 1.0
  %v10744 = vadd.f32 %v10512, 1.0
  %v10745 = vadd.f32 %v10514, 1.0
  %v10746 = vadd.f32 %v10516, 1.0
  %v10747 = vadd.f32 %v10518, 1.0
  %v10748 = vadd.f32 %v10520, 1.0
  %v10749 = vadd.f32 %v10522, 1.0
  %v10750 = vadd.f32 %v10524, 1.0
  %v10751 = vadd.f32 %v10526, 1.0
  %v10752 = vadd.f32 %v10528, 1.0
  %v10753 = vadd.f32 %v10530, 1.0
  %v10754 = vadd.f32 %v10532, 1.0
  %v10755 = vadd.f32 %v10534, 1.0
  %v10756 = vadd.f32 %v10536, 1.0
  %v10757 = vadd.f32 %v10538, 1.0
  %v10758 = vadd.f32 %v10540, 1.0
  %v10759 = vadd.f32 %v10542, 1.0
  %v10760 = vadd.f32 %v10544, 1.0
  %v10761 = vadd.f32 %v10546, 1.0
  %v10762 = vadd.f32 %v10548, 1.0
  %v10763 = vadd.f32 %v10550, 1.0
  %v10764 = vadd.f32 %v10552, 1.0
  %v10765 = vadd.f32 %v10554, 1.0
  %v10766 = vadd.f32 %v10556, 1.0
  %v10767 = vadd.f32 %v10558, 1.0
  %v10768 = vadd.f32 %v10560, 1.0
  %v10769 = vadd.f32 %v10562, 1.0
  %v10770 = vadd.f32 %v10564, 1.0
  %v10771 = vadd.f32 %v10566, 1.0
  %v10772 = vadd.f32 %v10568, 1.0
  %v10773 = vadd.f32 %v10570, 1.0
  %v10774 = vadd.f32 %v10572, 1.0
  %v10775 = vadd.f32 %v10574, 1.0
  %v10776 = vadd.f32 %v10576, 1.0
  %v10777 = vadd.f32 %v10578, 1.0
  %v10778 = vadd.f32 %v10580, 1.0
  %v10779 = vadd.f32 %v10582, 1.0
  %v10780 = vadd.f32 %v10584, 1.0
  %v10781 = vadd.f32 %v10586, 1.0
  %v10782 = vadd.f32 %v10588, 1.0
  %v10783 = vadd.f32 %v10590, 1.0
  %v10784 = vadd.f32 %v10592, 1.0
  %v10785 = vadd.f32 %v10594, 1.0
  %v10786 = vadd.f32 %v10596, 1.0
  %v10787 = vadd.f32 %v10598, 1.0
  %v10788 = vadd.f32 %v10600, 1.0
  %v10789 = vadd.f32 %v10602, 1.0
  %v10790 = vadd.f32 %v10604, 1.0
  %v10791 = vadd.f32 %v10606, 1.0
  %v10792 = vadd.f32 %v10608, 1.0
  %v10793 = vadd.f32 %v10610, 1.0
  %v10794 = vadd.f32 %v10612, 1.0
  %v10795 = vadd.f32 %v10614, 1.0
  %v10796 = vadd.f32 %v10616, 1.0
  %v10797 = vadd.f32 %v10618, 1.0
  %v10798 = vadd.f32 %v10620, 1.0
  %v10799 = vadd.f32 %v10622, 1.0
  %v10800 = vadd.f32 %v10624, 1.0
  %v10801 = vadd.f32 %v10626, 1.0
  %v10802 = vadd.f32 %v10628, 1.0
  %v10803 = vadd.f32 %v10630, 1.0
  %v10804 = vadd.f32 %v10632, 1.0
  %v10805 = vadd.f32 %v10634, 1.0
  %v10806 = vadd.f32 %v10636, 1.0
  %v10807 = vadd.f32 %v10638, 1.0
  %v10808 = vadd.f32 %v10640, 1.0
  %v10809 = vadd.f32 %v10642, 1.0
  %v10810 = vadd.f32 %v10644, 1.0
  %v10811 = vadd.f32 %v10646, 1.0
  %v10812 = vadd.f32 %v10648, 1.0
  %v10813 = vadd.f32 %v10650, 1.0
  %v10814 = vadd.f32 %v10652, 1.0
  %v10815 = vadd.f32 %v10654, 1.0
  %v10816 = vadd.f32 %v10656, 1.0
  %v10817 = vadd.f32 %v10658, 1.0
  %v10818 = vadd.f32 %v10660, 1.0
  %v10819 = vadd.f32 %v10662, 1.0
  %v10820 = vadd.f32 %v10664, 1.0
  %v10821 = vadd.f32 %v10666, 1.0
  %v10822 = vadd.f32 %v10668, 1.0
  %v10823 = vadd.f32 %v10670, 1.0
  %v10824 = vadd.f32 %v10672, 1.0
  %v10825 = vadd.f32 %v10674, 1.0
  %v10826 = vadd.f32 %v10676, 1.0
  %v10827 = vadd.f32 %v10678, 1.0
  %v10828 = vadd.f32 %v10680, 1.0
  %v10829 = vadd.f32 %v10682, 1.0
  %v10830 = vadd.f32 %v10684, 1.0
  %v10831 = vadd.f32 %v10686, 1.0
  %v10832 = vadd.f32 %v10688, 1.0
  %v10833 = vadd.f32 %v10690, 1.0
  %v10834 = vadd.f32 %v10692, 1.0
  %v10835 = vadd.f32 %v10694, 1.0
  %v10836 = vadd.f32 %v10696, 1.0
  %v10837 = vadd.f32 %v10698, 1.0
  %v10838 = vadd.f32 %v10700, 1.0
  %v10839 = vadd.f32 %v10702, 1.0
  %v10840 = vadd.f32 %v10704, 1.0
  %v10841 = vadd.f32 %v10706, 1.0
  %v10842 = vadd.f32 %v10708, 1.0
  %v10843 = vadd.f32 %v10710, 1.0
  %v10844 = vadd.f32 %v10712, 1.0
  %v10845 = vadd.f32 %v10714, 1.0
  %v10846 = vadd.f32 %v10716, 1.0
  %v10847 = vadd.f32 %v10718, 1.0
  %v10848 = vadd.f32 %v10720, 1.0
  %v10849 = vrcp.pop %v10721
  %v10850 = vmul.f32 %v10721, %v10849
  %v10851 = vsub.f32 1.0, %v10850
  %v10852 = vmul.f32 %v10849, %v10851
  %v10853 = vadd.f32 %v10849, %v10852
  %vm10854 = vweird.f32 %v10721
  %vm10855 = vweird.f32 %v10849
  %vm10856 = vmor %vm10854, %vm10855
  %v10857 = vsel %vm10856, %v10849, %v10853
  %v10858 = vand.u32 2147483647, %v10721
  %vm10859 = vcmp.eq.f32.partialorder %v10858, 8.507059e+37
  %v10860 = vand.u32 %v10721, 2147483648
  %v10861 = vor.u32 1.1754944e-38, %v10860
  %v10862 = vsel %vm10859, %v10861, %v10857
  %v10863 = vmul.f32 1.0, %v10862
  %v10864 = vrcp.pop %v10722
  %v10865 = vmul.f32 %v10722, %v10864
  %v10866 = vsub.f32 1.0, %v10865
  %v10867 = vmul.f32 %v10864, %v10866
  %v10868 = vadd.f32 %v10864, %v10867
  %vm10869 = vweird.f32 %v10722
  %vm10870 = vweird.f32 %v10864
  %vm10871 = vmor %vm10869, %vm10870
  %v10872 = vsel %vm10871, %v10864, %v10868
  %v10873 = vand.u32 2147483647, %v10722
  %vm10874 = vcmp.eq.f32.partialorder %v10873, 8.507059e+37
  %v10875 = vand.u32 %v10722, 2147483648
  %v10876 = vor.u32 1.1754944e-38, %v10875
  %v10877 = vsel %vm10874, %v10876, %v10872
  %v10878 = vmul.f32 1.0, %v10877
  %v10879 = vrcp.pop %v10723
  %v10880 = vmul.f32 %v10723, %v10879
  %v10881 = vsub.f32 1.0, %v10880
  %v10882 = vmul.f32 %v10879, %v10881
  %v10883 = vadd.f32 %v10879, %v10882
  %vm10884 = vweird.f32 %v10723
  %vm10885 = vweird.f32 %v10879
  %vm10886 = vmor %vm10884, %vm10885
  %v10887 = vsel %vm10886, %v10879, %v10883
  %v10888 = vand.u32 2147483647, %v10723
  %vm10889 = vcmp.eq.f32.partialorder %v10888, 8.507059e+37
  %v10890 = vand.u32 %v10723, 2147483648
  %v10891 = vor.u32 1.1754944e-38, %v10890
  %v10892 = vsel %vm10889, %v10891, %v10887
  %v10893 = vmul.f32 1.0, %v10892
  %v10894 = vrcp.pop %v10724
  %v10895 = vmul.f32 %v10724, %v10894
  %v10896 = vsub.f32 1.0, %v10895
  %v10897 = vmul.f32 %v10894, %v10896
  %v10898 = vadd.f32 %v10894, %v10897
  %vm10899 = vweird.f32 %v10724
  %vm10900 = vweird.f32 %v10894
  %vm10901 = vmor %vm10899, %vm10900
  %v10902 = vsel %vm10901, %v10894, %v10898
  %v10903 = vand.u32 2147483647, %v10724
  %vm10904 = vcmp.eq.f32.partialorder %v10903, 8.507059e+37
  %v10905 = vand.u32 %v10724, 2147483648
  %v10906 = vor.u32 1.1754944e-38, %v10905
  %v10907 = vsel %vm10904, %v10906, %v10902
  %v10908 = vmul.f32 1.0, %v10907
  %v10909 = vrcp.pop %v10725
  %v10910 = vmul.f32 %v10725, %v10909
  %v10911 = vsub.f32 1.0, %v10910
  %v10912 = vmul.f32 %v10909, %v10911
  %v10913 = vadd.f32 %v10909, %v10912
  %vm10914 = vweird.f32 %v10725
  %vm10915 = vweird.f32 %v10909
  %vm10916 = vmor %vm10914, %vm10915
  %v10917 = vsel %vm10916, %v10909, %v10913
  %v10918 = vand.u32 2147483647, %v10725
  %vm10919 = vcmp.eq.f32.partialorder %v10918, 8.507059e+37
  %v10920 = vand.u32 %v10725, 2147483648
  %v10921 = vor.u32 1.1754944e-38, %v10920
  %v10922 = vsel %vm10919, %v10921, %v10917
  %v10923 = vmul.f32 1.0, %v10922
  %v10924 = vrcp.pop %v10726
  %v10925 = vmul.f32 %v10726, %v10924
  %v10926 = vsub.f32 1.0, %v10925
  %v10927 = vmul.f32 %v10924, %v10926
  %v10928 = vadd.f32 %v10924, %v10927
  %vm10929 = vweird.f32 %v10726
  %vm10930 = vweird.f32 %v10924
  %vm10931 = vmor %vm10929, %vm10930
  %v10932 = vsel %vm10931, %v10924, %v10928
  %v10933 = vand.u32 2147483647, %v10726
  %vm10934 = vcmp.eq.f32.partialorder %v10933, 8.507059e+37
  %v10935 = vand.u32 %v10726, 2147483648
  %v10936 = vor.u32 1.1754944e-38, %v10935
  %v10937 = vsel %vm10934, %v10936, %v10932
  %v10938 = vmul.f32 1.0, %v10937
  %v10939 = vrcp.pop %v10727
  %v10940 = vmul.f32 %v10727, %v10939
  %v10941 = vsub.f32 1.0, %v10940
  %v10942 = vmul.f32 %v10939, %v10941
  %v10943 = vadd.f32 %v10939, %v10942
  %vm10944 = vweird.f32 %v10727
  %vm10945 = vweird.f32 %v10939
  %vm10946 = vmor %vm10944, %vm10945
  %v10947 = vsel %vm10946, %v10939, %v10943
  %v10948 = vand.u32 2147483647, %v10727
  %vm10949 = vcmp.eq.f32.partialorder %v10948, 8.507059e+37
  %v10950 = vand.u32 %v10727, 2147483648
  %v10951 = vor.u32 1.1754944e-38, %v10950
  %v10952 = vsel %vm10949, %v10951, %v10947
  %v10953 = vmul.f32 1.0, %v10952
  %v10954 = vrcp.pop %v10728
  %v10955 = vmul.f32 %v10728, %v10954
  %v10956 = vsub.f32 1.0, %v10955
  %v10957 = vmul.f32 %v10954, %v10956
  %v10958 = vadd.f32 %v10954, %v10957
  %vm10959 = vweird.f32 %v10728
  %vm10960 = vweird.f32 %v10954
  %vm10961 = vmor %vm10959, %vm10960
  %v10962 = vsel %vm10961, %v10954, %v10958
  %v10963 = vand.u32 2147483647, %v10728
  %vm10964 = vcmp.eq.f32.partialorder %v10963, 8.507059e+37
  %v10965 = vand.u32 %v10728, 2147483648
  %v10966 = vor.u32 1.1754944e-38, %v10965
  %v10967 = vsel %vm10964, %v10966, %v10962
  %v10968 = vmul.f32 1.0, %v10967
  %v10969 = vrcp.pop %v10729
  %v10970 = vmul.f32 %v10729, %v10969
  %v10971 = vsub.f32 1.0, %v10970
  %v10972 = vmul.f32 %v10969, %v10971
  %v10973 = vadd.f32 %v10969, %v10972
  %vm10974 = vweird.f32 %v10729
  %vm10975 = vweird.f32 %v10969
  %vm10976 = vmor %vm10974, %vm10975
  %v10977 = vsel %vm10976, %v10969, %v10973
  %v10978 = vand.u32 2147483647, %v10729
  %vm10979 = vcmp.eq.f32.partialorder %v10978, 8.507059e+37
  %v10980 = vand.u32 %v10729, 2147483648
  %v10981 = vor.u32 1.1754944e-38, %v10980
  %v10982 = vsel %vm10979, %v10981, %v10977
  %v10983 = vmul.f32 1.0, %v10982
  %v10984 = vrcp.pop %v10730
  %v10985 = vmul.f32 %v10730, %v10984
  %v10986 = vsub.f32 1.0, %v10985
  %v10987 = vmul.f32 %v10984, %v10986
  %v10988 = vadd.f32 %v10984, %v10987
  %vm10989 = vweird.f32 %v10730
  %vm10990 = vweird.f32 %v10984
  %vm10991 = vmor %vm10989, %vm10990
  %v10992 = vsel %vm10991, %v10984, %v10988
  %v10993 = vand.u32 2147483647, %v10730
  %vm10994 = vcmp.eq.f32.partialorder %v10993, 8.507059e+37
  %v10995 = vand.u32 %v10730, 2147483648
  %v10996 = vor.u32 1.1754944e-38, %v10995
  %v10997 = vsel %vm10994, %v10996, %v10992
  %v10998 = vmul.f32 1.0, %v10997
  %v10999 = vrcp.pop %v10731
  %v11000 = vmul.f32 %v10731, %v10999
  %v11001 = vsub.f32 1.0, %v11000
  %v11002 = vmul.f32 %v10999, %v11001
  %v11003 = vadd.f32 %v10999, %v11002
  %vm11004 = vweird.f32 %v10731
  %vm11005 = vweird.f32 %v10999
  %vm11006 = vmor %vm11004, %vm11005
  %v11007 = vsel %vm11006, %v10999, %v11003
  %v11008 = vand.u32 2147483647, %v10731
  %vm11009 = vcmp.eq.f32.partialorder %v11008, 8.507059e+37
  %v11010 = vand.u32 %v10731, 2147483648
  %v11011 = vor.u32 1.1754944e-38, %v11010
  %v11012 = vsel %vm11009, %v11011, %v11007
  %v11013 = vmul.f32 1.0, %v11012
  %v11014 = vrcp.pop %v10732
  %v11015 = vmul.f32 %v10732, %v11014
  %v11016 = vsub.f32 1.0, %v11015
  %v11017 = vmul.f32 %v11014, %v11016
  %v11018 = vadd.f32 %v11014, %v11017
  %vm11019 = vweird.f32 %v10732
  %vm11020 = vweird.f32 %v11014
  %vm11021 = vmor %vm11019, %vm11020
  %v11022 = vsel %vm11021, %v11014, %v11018
  %v11023 = vand.u32 2147483647, %v10732
  %vm11024 = vcmp.eq.f32.partialorder %v11023, 8.507059e+37
  %v11025 = vand.u32 %v10732, 2147483648
  %v11026 = vor.u32 1.1754944e-38, %v11025
  %v11027 = vsel %vm11024, %v11026, %v11022
  %v11028 = vmul.f32 1.0, %v11027
  %v11029 = vrcp.pop %v10733
  %v11030 = vmul.f32 %v10733, %v11029
  %v11031 = vsub.f32 1.0, %v11030
  %v11032 = vmul.f32 %v11029, %v11031
  %v11033 = vadd.f32 %v11029, %v11032
  %vm11034 = vweird.f32 %v10733
  %vm11035 = vweird.f32 %v11029
  %vm11036 = vmor %vm11034, %vm11035
  %v11037 = vsel %vm11036, %v11029, %v11033
  %v11038 = vand.u32 2147483647, %v10733
  %vm11039 = vcmp.eq.f32.partialorder %v11038, 8.507059e+37
  %v11040 = vand.u32 %v10733, 2147483648
  %v11041 = vor.u32 1.1754944e-38, %v11040
  %v11042 = vsel %vm11039, %v11041, %v11037
  %v11043 = vmul.f32 1.0, %v11042
  %v11044 = vrcp.pop %v10734
  %v11045 = vmul.f32 %v10734, %v11044
  %v11046 = vsub.f32 1.0, %v11045
  %v11047 = vmul.f32 %v11044, %v11046
  %v11048 = vadd.f32 %v11044, %v11047
  %vm11049 = vweird.f32 %v10734
  %vm11050 = vweird.f32 %v11044
  %vm11051 = vmor %vm11049, %vm11050
  %v11052 = vsel %vm11051, %v11044, %v11048
  %v11053 = vand.u32 2147483647, %v10734
  %vm11054 = vcmp.eq.f32.partialorder %v11053, 8.507059e+37
  %v11055 = vand.u32 %v10734, 2147483648
  %v11056 = vor.u32 1.1754944e-38, %v11055
  %v11057 = vsel %vm11054, %v11056, %v11052
  %v11058 = vmul.f32 1.0, %v11057
  %v11059 = vrcp.pop %v10735
  %v11060 = vmul.f32 %v10735, %v11059
  %v11061 = vsub.f32 1.0, %v11060
  %v11062 = vmul.f32 %v11059, %v11061
  %v11063 = vadd.f32 %v11059, %v11062
  %vm11064 = vweird.f32 %v10735
  %vm11065 = vweird.f32 %v11059
  %vm11066 = vmor %vm11064, %vm11065
  %v11067 = vsel %vm11066, %v11059, %v11063
  %v11068 = vand.u32 2147483647, %v10735
  %vm11069 = vcmp.eq.f32.partialorder %v11068, 8.507059e+37
  %v11070 = vand.u32 %v10735, 2147483648
  %v11071 = vor.u32 1.1754944e-38, %v11070
  %v11072 = vsel %vm11069, %v11071, %v11067
  %v11073 = vmul.f32 1.0, %v11072
  %v11074 = vrcp.pop %v10736
  %v11075 = vmul.f32 %v10736, %v11074
  %v11076 = vsub.f32 1.0, %v11075
  %v11077 = vmul.f32 %v11074, %v11076
  %v11078 = vadd.f32 %v11074, %v11077
  %vm11079 = vweird.f32 %v10736
  %vm11080 = vweird.f32 %v11074
  %vm11081 = vmor %vm11079, %vm11080
  %v11082 = vsel %vm11081, %v11074, %v11078
  %v11083 = vand.u32 2147483647, %v10736
  %vm11084 = vcmp.eq.f32.partialorder %v11083, 8.507059e+37
  %v11085 = vand.u32 %v10736, 2147483648
  %v11086 = vor.u32 1.1754944e-38, %v11085
  %v11087 = vsel %vm11084, %v11086, %v11082
  %v11088 = vmul.f32 1.0, %v11087
  %v11089 = vrcp.pop %v10737
  %v11090 = vmul.f32 %v10737, %v11089
  %v11091 = vsub.f32 1.0, %v11090
  %v11092 = vmul.f32 %v11089, %v11091
  %v11093 = vadd.f32 %v11089, %v11092
  %vm11094 = vweird.f32 %v10737
  %vm11095 = vweird.f32 %v11089
  %vm11096 = vmor %vm11094, %vm11095
  %v11097 = vsel %vm11096, %v11089, %v11093
  %v11098 = vand.u32 2147483647, %v10737
  %vm11099 = vcmp.eq.f32.partialorder %v11098, 8.507059e+37
  %v11100 = vand.u32 %v10737, 2147483648
  %v11101 = vor.u32 1.1754944e-38, %v11100
  %v11102 = vsel %vm11099, %v11101, %v11097
  %v11103 = vmul.f32 1.0, %v11102
  %v11104 = vrcp.pop %v10738
  %v11105 = vmul.f32 %v10738, %v11104
  %v11106 = vsub.f32 1.0, %v11105
  %v11107 = vmul.f32 %v11104, %v11106
  %v11108 = vadd.f32 %v11104, %v11107
  %vm11109 = vweird.f32 %v10738
  %vm11110 = vweird.f32 %v11104
  %vm11111 = vmor %vm11109, %vm11110
  %v11112 = vsel %vm11111, %v11104, %v11108
  %v11113 = vand.u32 2147483647, %v10738
  %vm11114 = vcmp.eq.f32.partialorder %v11113, 8.507059e+37
  %v11115 = vand.u32 %v10738, 2147483648
  %v11116 = vor.u32 1.1754944e-38, %v11115
  %v11117 = vsel %vm11114, %v11116, %v11112
  %v11118 = vmul.f32 1.0, %v11117
  %v11119 = vrcp.pop %v10739
  %v11120 = vmul.f32 %v10739, %v11119
  %v11121 = vsub.f32 1.0, %v11120
  %v11122 = vmul.f32 %v11119, %v11121
  %v11123 = vadd.f32 %v11119, %v11122
  %vm11124 = vweird.f32 %v10739
  %vm11125 = vweird.f32 %v11119
  %vm11126 = vmor %vm11124, %vm11125
  %v11127 = vsel %vm11126, %v11119, %v11123
  %v11128 = vand.u32 2147483647, %v10739
  %vm11129 = vcmp.eq.f32.partialorder %v11128, 8.507059e+37
  %v11130 = vand.u32 %v10739, 2147483648
  %v11131 = vor.u32 1.1754944e-38, %v11130
  %v11132 = vsel %vm11129, %v11131, %v11127
  %v11133 = vmul.f32 1.0, %v11132
  %v11134 = vrcp.pop %v10740
  %v11135 = vmul.f32 %v10740, %v11134
  %v11136 = vsub.f32 1.0, %v11135
  %v11137 = vmul.f32 %v11134, %v11136
  %v11138 = vadd.f32 %v11134, %v11137
  %vm11139 = vweird.f32 %v10740
  %vm11140 = vweird.f32 %v11134
  %vm11141 = vmor %vm11139, %vm11140
  %v11142 = vsel %vm11141, %v11134, %v11138
  %v11143 = vand.u32 2147483647, %v10740
  %vm11144 = vcmp.eq.f32.partialorder %v11143, 8.507059e+37
  %v11145 = vand.u32 %v10740, 2147483648
  %v11146 = vor.u32 1.1754944e-38, %v11145
  %v11147 = vsel %vm11144, %v11146, %v11142
  %v11148 = vmul.f32 1.0, %v11147
  %v11149 = vrcp.pop %v10741
  %v11150 = vmul.f32 %v10741, %v11149
  %v11151 = vsub.f32 1.0, %v11150
  %v11152 = vmul.f32 %v11149, %v11151
  %v11153 = vadd.f32 %v11149, %v11152
  %vm11154 = vweird.f32 %v10741
  %vm11155 = vweird.f32 %v11149
  %vm11156 = vmor %vm11154, %vm11155
  %v11157 = vsel %vm11156, %v11149, %v11153
  %v11158 = vand.u32 2147483647, %v10741
  %vm11159 = vcmp.eq.f32.partialorder %v11158, 8.507059e+37
  %v11160 = vand.u32 %v10741, 2147483648
  %v11161 = vor.u32 1.1754944e-38, %v11160
  %v11162 = vsel %vm11159, %v11161, %v11157
  %v11163 = vmul.f32 1.0, %v11162
  %v11164 = vrcp.pop %v10742
  %v11165 = vmul.f32 %v10742, %v11164
  %v11166 = vsub.f32 1.0, %v11165
  %v11167 = vmul.f32 %v11164, %v11166
  %v11168 = vadd.f32 %v11164, %v11167
  %vm11169 = vweird.f32 %v10742
  %vm11170 = vweird.f32 %v11164
  %vm11171 = vmor %vm11169, %vm11170
  %v11172 = vsel %vm11171, %v11164, %v11168
  %v11173 = vand.u32 2147483647, %v10742
  %vm11174 = vcmp.eq.f32.partialorder %v11173, 8.507059e+37
  %v11175 = vand.u32 %v10742, 2147483648
  %v11176 = vor.u32 1.1754944e-38, %v11175
  %v11177 = vsel %vm11174, %v11176, %v11172
  %v11178 = vmul.f32 1.0, %v11177
  %v11179 = vrcp.pop %v10743
  %v11180 = vmul.f32 %v10743, %v11179
  %v11181 = vsub.f32 1.0, %v11180
  %v11182 = vmul.f32 %v11179, %v11181
  %v11183 = vadd.f32 %v11179, %v11182
  %vm11184 = vweird.f32 %v10743
  %vm11185 = vweird.f32 %v11179
  %vm11186 = vmor %vm11184, %vm11185
  %v11187 = vsel %vm11186, %v11179, %v11183
  %v11188 = vand.u32 2147483647, %v10743
  %vm11189 = vcmp.eq.f32.partialorder %v11188, 8.507059e+37
  %v11190 = vand.u32 %v10743, 2147483648
  %v11191 = vor.u32 1.1754944e-38, %v11190
  %v11192 = vsel %vm11189, %v11191, %v11187
  %v11193 = vmul.f32 1.0, %v11192
  %v11194 = vrcp.pop %v10744
  %v11195 = vmul.f32 %v10744, %v11194
  %v11196 = vsub.f32 1.0, %v11195
  %v11197 = vmul.f32 %v11194, %v11196
  %v11198 = vadd.f32 %v11194, %v11197
  %vm11199 = vweird.f32 %v10744
  %vm11200 = vweird.f32 %v11194
  %vm11201 = vmor %vm11199, %vm11200
  %v11202 = vsel %vm11201, %v11194, %v11198
  %v11203 = vand.u32 2147483647, %v10744
  %vm11204 = vcmp.eq.f32.partialorder %v11203, 8.507059e+37
  %v11205 = vand.u32 %v10744, 2147483648
  %v11206 = vor.u32 1.1754944e-38, %v11205
  %v11207 = vsel %vm11204, %v11206, %v11202
  %v11208 = vmul.f32 1.0, %v11207
  %v11209 = vrcp.pop %v10745
  %v11210 = vmul.f32 %v10745, %v11209
  %v11211 = vsub.f32 1.0, %v11210
  %v11212 = vmul.f32 %v11209, %v11211
  %v11213 = vadd.f32 %v11209, %v11212
  %vm11214 = vweird.f32 %v10745
  %vm11215 = vweird.f32 %v11209
  %vm11216 = vmor %vm11214, %vm11215
  %v11217 = vsel %vm11216, %v11209, %v11213
  %v11218 = vand.u32 2147483647, %v10745
  %vm11219 = vcmp.eq.f32.partialorder %v11218, 8.507059e+37
  %v11220 = vand.u32 %v10745, 2147483648
  %v11221 = vor.u32 1.1754944e-38, %v11220
  %v11222 = vsel %vm11219, %v11221, %v11217
  %v11223 = vmul.f32 1.0, %v11222
  %v11224 = vrcp.pop %v10746
  %v11225 = vmul.f32 %v10746, %v11224
  %v11226 = vsub.f32 1.0, %v11225
  %v11227 = vmul.f32 %v11224, %v11226
  %v11228 = vadd.f32 %v11224, %v11227
  %vm11229 = vweird.f32 %v10746
  %vm11230 = vweird.f32 %v11224
  %vm11231 = vmor %vm11229, %vm11230
  %v11232 = vsel %vm11231, %v11224, %v11228
  %v11233 = vand.u32 2147483647, %v10746
  %vm11234 = vcmp.eq.f32.partialorder %v11233, 8.507059e+37
  %v11235 = vand.u32 %v10746, 2147483648
  %v11236 = vor.u32 1.1754944e-38, %v11235
  %v11237 = vsel %vm11234, %v11236, %v11232
  %v11238 = vmul.f32 1.0, %v11237
  %v11239 = vrcp.pop %v10747
  %v11240 = vmul.f32 %v10747, %v11239
  %v11241 = vsub.f32 1.0, %v11240
  %v11242 = vmul.f32 %v11239, %v11241
  %v11243 = vadd.f32 %v11239, %v11242
  %vm11244 = vweird.f32 %v10747
  %vm11245 = vweird.f32 %v11239
  %vm11246 = vmor %vm11244, %vm11245
  %v11247 = vsel %vm11246, %v11239, %v11243
  %v11248 = vand.u32 2147483647, %v10747
  %vm11249 = vcmp.eq.f32.partialorder %v11248, 8.507059e+37
  %v11250 = vand.u32 %v10747, 2147483648
  %v11251 = vor.u32 1.1754944e-38, %v11250
  %v11252 = vsel %vm11249, %v11251, %v11247
  %v11253 = vmul.f32 1.0, %v11252
  %v11254 = vrcp.pop %v10748
  %v11255 = vmul.f32 %v10748, %v11254
  %v11256 = vsub.f32 1.0, %v11255
  %v11257 = vmul.f32 %v11254, %v11256
  %v11258 = vadd.f32 %v11254, %v11257
  %vm11259 = vweird.f32 %v10748
  %vm11260 = vweird.f32 %v11254
  %vm11261 = vmor %vm11259, %vm11260
  %v11262 = vsel %vm11261, %v11254, %v11258
  %v11263 = vand.u32 2147483647, %v10748
  %vm11264 = vcmp.eq.f32.partialorder %v11263, 8.507059e+37
  %v11265 = vand.u32 %v10748, 2147483648
  %v11266 = vor.u32 1.1754944e-38, %v11265
  %v11267 = vsel %vm11264, %v11266, %v11262
  %v11268 = vmul.f32 1.0, %v11267
  %v11269 = vrcp.pop %v10749
  %v11270 = vmul.f32 %v10749, %v11269
  %v11271 = vsub.f32 1.0, %v11270
  %v11272 = vmul.f32 %v11269, %v11271
  %v11273 = vadd.f32 %v11269, %v11272
  %vm11274 = vweird.f32 %v10749
  %vm11275 = vweird.f32 %v11269
  %vm11276 = vmor %vm11274, %vm11275
  %v11277 = vsel %vm11276, %v11269, %v11273
  %v11278 = vand.u32 2147483647, %v10749
  %vm11279 = vcmp.eq.f32.partialorder %v11278, 8.507059e+37
  %v11280 = vand.u32 %v10749, 2147483648
  %v11281 = vor.u32 1.1754944e-38, %v11280
  %v11282 = vsel %vm11279, %v11281, %v11277
  %v11283 = vmul.f32 1.0, %v11282
  %v11284 = vrcp.pop %v10750
  %v11285 = vmul.f32 %v10750, %v11284
  %v11286 = vsub.f32 1.0, %v11285
  %v11287 = vmul.f32 %v11284, %v11286
  %v11288 = vadd.f32 %v11284, %v11287
  %vm11289 = vweird.f32 %v10750
  %vm11290 = vweird.f32 %v11284
  %vm11291 = vmor %vm11289, %vm11290
  %v11292 = vsel %vm11291, %v11284, %v11288
  %v11293 = vand.u32 2147483647, %v10750
  %vm11294 = vcmp.eq.f32.partialorder %v11293, 8.507059e+37
  %v11295 = vand.u32 %v10750, 2147483648
  %v11296 = vor.u32 1.1754944e-38, %v11295
  %v11297 = vsel %vm11294, %v11296, %v11292
  %v11298 = vmul.f32 1.0, %v11297
  %v11299 = vrcp.pop %v10751
  %v11300 = vmul.f32 %v10751, %v11299
  %v11301 = vsub.f32 1.0, %v11300
  %v11302 = vmul.f32 %v11299, %v11301
  %v11303 = vadd.f32 %v11299, %v11302
  %vm11304 = vweird.f32 %v10751
  %vm11305 = vweird.f32 %v11299
  %vm11306 = vmor %vm11304, %vm11305
  %v11307 = vsel %vm11306, %v11299, %v11303
  %v11308 = vand.u32 2147483647, %v10751
  %vm11309 = vcmp.eq.f32.partialorder %v11308, 8.507059e+37
  %v11310 = vand.u32 %v10751, 2147483648
  %v11311 = vor.u32 1.1754944e-38, %v11310
  %v11312 = vsel %vm11309, %v11311, %v11307
  %v11313 = vmul.f32 1.0, %v11312
  %v11314 = vrcp.pop %v10752
  %v11315 = vmul.f32 %v10752, %v11314
  %v11316 = vsub.f32 1.0, %v11315
  %v11317 = vmul.f32 %v11314, %v11316
  %v11318 = vadd.f32 %v11314, %v11317
  %vm11319 = vweird.f32 %v10752
  %vm11320 = vweird.f32 %v11314
  %vm11321 = vmor %vm11319, %vm11320
  %v11322 = vsel %vm11321, %v11314, %v11318
  %v11323 = vand.u32 2147483647, %v10752
  %vm11324 = vcmp.eq.f32.partialorder %v11323, 8.507059e+37
  %v11325 = vand.u32 %v10752, 2147483648
  %v11326 = vor.u32 1.1754944e-38, %v11325
  %v11327 = vsel %vm11324, %v11326, %v11322
  %v11328 = vmul.f32 1.0, %v11327
  %v11329 = vrcp.pop %v10753
  %v11330 = vmul.f32 %v10753, %v11329
  %v11331 = vsub.f32 1.0, %v11330
  %v11332 = vmul.f32 %v11329, %v11331
  %v11333 = vadd.f32 %v11329, %v11332
  %vm11334 = vweird.f32 %v10753
  %vm11335 = vweird.f32 %v11329
  %vm11336 = vmor %vm11334, %vm11335
  %v11337 = vsel %vm11336, %v11329, %v11333
  %v11338 = vand.u32 2147483647, %v10753
  %vm11339 = vcmp.eq.f32.partialorder %v11338, 8.507059e+37
  %v11340 = vand.u32 %v10753, 2147483648
  %v11341 = vor.u32 1.1754944e-38, %v11340
  %v11342 = vsel %vm11339, %v11341, %v11337
  %v11343 = vmul.f32 1.0, %v11342
  %v11344 = vrcp.pop %v10754
  %v11345 = vmul.f32 %v10754, %v11344
  %v11346 = vsub.f32 1.0, %v11345
  %v11347 = vmul.f32 %v11344, %v11346
  %v11348 = vadd.f32 %v11344, %v11347
  %vm11349 = vweird.f32 %v10754
  %vm11350 = vweird.f32 %v11344
  %vm11351 = vmor %vm11349, %vm11350
  %v11352 = vsel %vm11351, %v11344, %v11348
  %v11353 = vand.u32 2147483647, %v10754
  %vm11354 = vcmp.eq.f32.partialorder %v11353, 8.507059e+37
  %v11355 = vand.u32 %v10754, 2147483648
  %v11356 = vor.u32 1.1754944e-38, %v11355
  %v11357 = vsel %vm11354, %v11356, %v11352
  %v11358 = vmul.f32 1.0, %v11357
  %v11359 = vrcp.pop %v10755
  %v11360 = vmul.f32 %v10755, %v11359
  %v11361 = vsub.f32 1.0, %v11360
  %v11362 = vmul.f32 %v11359, %v11361
  %v11363 = vadd.f32 %v11359, %v11362
  %vm11364 = vweird.f32 %v10755
  %vm11365 = vweird.f32 %v11359
  %vm11366 = vmor %vm11364, %vm11365
  %v11367 = vsel %vm11366, %v11359, %v11363
  %v11368 = vand.u32 2147483647, %v10755
  %vm11369 = vcmp.eq.f32.partialorder %v11368, 8.507059e+37
  %v11370 = vand.u32 %v10755, 2147483648
  %v11371 = vor.u32 1.1754944e-38, %v11370
  %v11372 = vsel %vm11369, %v11371, %v11367
  %v11373 = vmul.f32 1.0, %v11372
  %v11374 = vrcp.pop %v10756
  %v11375 = vmul.f32 %v10756, %v11374
  %v11376 = vsub.f32 1.0, %v11375
  %v11377 = vmul.f32 %v11374, %v11376
  %v11378 = vadd.f32 %v11374, %v11377
  %vm11379 = vweird.f32 %v10756
  %vm11380 = vweird.f32 %v11374
  %vm11381 = vmor %vm11379, %vm11380
  %v11382 = vsel %vm11381, %v11374, %v11378
  %v11383 = vand.u32 2147483647, %v10756
  %vm11384 = vcmp.eq.f32.partialorder %v11383, 8.507059e+37
  %v11385 = vand.u32 %v10756, 2147483648
  %v11386 = vor.u32 1.1754944e-38, %v11385
  %v11387 = vsel %vm11384, %v11386, %v11382
  %v11388 = vmul.f32 1.0, %v11387
  %v11389 = vrcp.pop %v10757
  %v11390 = vmul.f32 %v10757, %v11389
  %v11391 = vsub.f32 1.0, %v11390
  %v11392 = vmul.f32 %v11389, %v11391
  %v11393 = vadd.f32 %v11389, %v11392
  %vm11394 = vweird.f32 %v10757
  %vm11395 = vweird.f32 %v11389
  %vm11396 = vmor %vm11394, %vm11395
  %v11397 = vsel %vm11396, %v11389, %v11393
  %v11398 = vand.u32 2147483647, %v10757
  %vm11399 = vcmp.eq.f32.partialorder %v11398, 8.507059e+37
  %v11400 = vand.u32 %v10757, 2147483648
  %v11401 = vor.u32 1.1754944e-38, %v11400
  %v11402 = vsel %vm11399, %v11401, %v11397
  %v11403 = vmul.f32 1.0, %v11402
  %v11404 = vrcp.pop %v10758
  %v11405 = vmul.f32 %v10758, %v11404
  %v11406 = vsub.f32 1.0, %v11405
  %v11407 = vmul.f32 %v11404, %v11406
  %v11408 = vadd.f32 %v11404, %v11407
  %vm11409 = vweird.f32 %v10758
  %vm11410 = vweird.f32 %v11404
  %vm11411 = vmor %vm11409, %vm11410
  %v11412 = vsel %vm11411, %v11404, %v11408
  %v11413 = vand.u32 2147483647, %v10758
  %vm11414 = vcmp.eq.f32.partialorder %v11413, 8.507059e+37
  %v11415 = vand.u32 %v10758, 2147483648
  %v11416 = vor.u32 1.1754944e-38, %v11415
  %v11417 = vsel %vm11414, %v11416, %v11412
  %v11418 = vmul.f32 1.0, %v11417
  %v11419 = vrcp.pop %v10759
  %v11420 = vmul.f32 %v10759, %v11419
  %v11421 = vsub.f32 1.0, %v11420
  %v11422 = vmul.f32 %v11419, %v11421
  %v11423 = vadd.f32 %v11419, %v11422
  %vm11424 = vweird.f32 %v10759
  %vm11425 = vweird.f32 %v11419
  %vm11426 = vmor %vm11424, %vm11425
  %v11427 = vsel %vm11426, %v11419, %v11423
  %v11428 = vand.u32 2147483647, %v10759
  %vm11429 = vcmp.eq.f32.partialorder %v11428, 8.507059e+37
  %v11430 = vand.u32 %v10759, 2147483648
  %v11431 = vor.u32 1.1754944e-38, %v11430
  %v11432 = vsel %vm11429, %v11431, %v11427
  %v11433 = vmul.f32 1.0, %v11432
  %v11434 = vrcp.pop %v10760
  %v11435 = vmul.f32 %v10760, %v11434
  %v11436 = vsub.f32 1.0, %v11435
  %v11437 = vmul.f32 %v11434, %v11436
  %v11438 = vadd.f32 %v11434, %v11437
  %vm11439 = vweird.f32 %v10760
  %vm11440 = vweird.f32 %v11434
  %vm11441 = vmor %vm11439, %vm11440
  %v11442 = vsel %vm11441, %v11434, %v11438
  %v11443 = vand.u32 2147483647, %v10760
  %vm11444 = vcmp.eq.f32.partialorder %v11443, 8.507059e+37
  %v11445 = vand.u32 %v10760, 2147483648
  %v11446 = vor.u32 1.1754944e-38, %v11445
  %v11447 = vsel %vm11444, %v11446, %v11442
  %v11448 = vmul.f32 1.0, %v11447
  %v11449 = vrcp.pop %v10761
  %v11450 = vmul.f32 %v10761, %v11449
  %v11451 = vsub.f32 1.0, %v11450
  %v11452 = vmul.f32 %v11449, %v11451
  %v11453 = vadd.f32 %v11449, %v11452
  %vm11454 = vweird.f32 %v10761
  %vm11455 = vweird.f32 %v11449
  %vm11456 = vmor %vm11454, %vm11455
  %v11457 = vsel %vm11456, %v11449, %v11453
  %v11458 = vand.u32 2147483647, %v10761
  %vm11459 = vcmp.eq.f32.partialorder %v11458, 8.507059e+37
  %v11460 = vand.u32 %v10761, 2147483648
  %v11461 = vor.u32 1.1754944e-38, %v11460
  %v11462 = vsel %vm11459, %v11461, %v11457
  %v11463 = vmul.f32 1.0, %v11462
  %v11464 = vrcp.pop %v10762
  %v11465 = vmul.f32 %v10762, %v11464
  %v11466 = vsub.f32 1.0, %v11465
  %v11467 = vmul.f32 %v11464, %v11466
  %v11468 = vadd.f32 %v11464, %v11467
  %vm11469 = vweird.f32 %v10762
  %vm11470 = vweird.f32 %v11464
  %vm11471 = vmor %vm11469, %vm11470
  %v11472 = vsel %vm11471, %v11464, %v11468
  %v11473 = vand.u32 2147483647, %v10762
  %vm11474 = vcmp.eq.f32.partialorder %v11473, 8.507059e+37
  %v11475 = vand.u32 %v10762, 2147483648
  %v11476 = vor.u32 1.1754944e-38, %v11475
  %v11477 = vsel %vm11474, %v11476, %v11472
  %v11478 = vmul.f32 1.0, %v11477
  %v11479 = vrcp.pop %v10763
  %v11480 = vmul.f32 %v10763, %v11479
  %v11481 = vsub.f32 1.0, %v11480
  %v11482 = vmul.f32 %v11479, %v11481
  %v11483 = vadd.f32 %v11479, %v11482
  %vm11484 = vweird.f32 %v10763
  %vm11485 = vweird.f32 %v11479
  %vm11486 = vmor %vm11484, %vm11485
  %v11487 = vsel %vm11486, %v11479, %v11483
  %v11488 = vand.u32 2147483647, %v10763
  %vm11489 = vcmp.eq.f32.partialorder %v11488, 8.507059e+37
  %v11490 = vand.u32 %v10763, 2147483648
  %v11491 = vor.u32 1.1754944e-38, %v11490
  %v11492 = vsel %vm11489, %v11491, %v11487
  %v11493 = vmul.f32 1.0, %v11492
  %v11494 = vrcp.pop %v10764
  %v11495 = vmul.f32 %v10764, %v11494
  %v11496 = vsub.f32 1.0, %v11495
  %v11497 = vmul.f32 %v11494, %v11496
  %v11498 = vadd.f32 %v11494, %v11497
  %vm11499 = vweird.f32 %v10764
  %vm11500 = vweird.f32 %v11494
  %vm11501 = vmor %vm11499, %vm11500
  %v11502 = vsel %vm11501, %v11494, %v11498
  %v11503 = vand.u32 2147483647, %v10764
  %vm11504 = vcmp.eq.f32.partialorder %v11503, 8.507059e+37
  %v11505 = vand.u32 %v10764, 2147483648
  %v11506 = vor.u32 1.1754944e-38, %v11505
  %v11507 = vsel %vm11504, %v11506, %v11502
  %v11508 = vmul.f32 1.0, %v11507
  %v11509 = vrcp.pop %v10765
  %v11510 = vmul.f32 %v10765, %v11509
  %v11511 = vsub.f32 1.0, %v11510
  %v11512 = vmul.f32 %v11509, %v11511
  %v11513 = vadd.f32 %v11509, %v11512
  %vm11514 = vweird.f32 %v10765
  %vm11515 = vweird.f32 %v11509
  %vm11516 = vmor %vm11514, %vm11515
  %v11517 = vsel %vm11516, %v11509, %v11513
  %v11518 = vand.u32 2147483647, %v10765
  %vm11519 = vcmp.eq.f32.partialorder %v11518, 8.507059e+37
  %v11520 = vand.u32 %v10765, 2147483648
  %v11521 = vor.u32 1.1754944e-38, %v11520
  %v11522 = vsel %vm11519, %v11521, %v11517
  %v11523 = vmul.f32 1.0, %v11522
  %v11524 = vrcp.pop %v10766
  %v11525 = vmul.f32 %v10766, %v11524
  %v11526 = vsub.f32 1.0, %v11525
  %v11527 = vmul.f32 %v11524, %v11526
  %v11528 = vadd.f32 %v11524, %v11527
  %vm11529 = vweird.f32 %v10766
  %vm11530 = vweird.f32 %v11524
  %vm11531 = vmor %vm11529, %vm11530
  %v11532 = vsel %vm11531, %v11524, %v11528
  %v11533 = vand.u32 2147483647, %v10766
  %vm11534 = vcmp.eq.f32.partialorder %v11533, 8.507059e+37
  %v11535 = vand.u32 %v10766, 2147483648
  %v11536 = vor.u32 1.1754944e-38, %v11535
  %v11537 = vsel %vm11534, %v11536, %v11532
  %v11538 = vmul.f32 1.0, %v11537
  %v11539 = vrcp.pop %v10767
  %v11540 = vmul.f32 %v10767, %v11539
  %v11541 = vsub.f32 1.0, %v11540
  %v11542 = vmul.f32 %v11539, %v11541
  %v11543 = vadd.f32 %v11539, %v11542
  %vm11544 = vweird.f32 %v10767
  %vm11545 = vweird.f32 %v11539
  %vm11546 = vmor %vm11544, %vm11545
  %v11547 = vsel %vm11546, %v11539, %v11543
  %v11548 = vand.u32 2147483647, %v10767
  %vm11549 = vcmp.eq.f32.partialorder %v11548, 8.507059e+37
  %v11550 = vand.u32 %v10767, 2147483648
  %v11551 = vor.u32 1.1754944e-38, %v11550
  %v11552 = vsel %vm11549, %v11551, %v11547
  %v11553 = vmul.f32 1.0, %v11552
  %v11554 = vrcp.pop %v10768
  %v11555 = vmul.f32 %v10768, %v11554
  %v11556 = vsub.f32 1.0, %v11555
  %v11557 = vmul.f32 %v11554, %v11556
  %v11558 = vadd.f32 %v11554, %v11557
  %vm11559 = vweird.f32 %v10768
  %vm11560 = vweird.f32 %v11554
  %vm11561 = vmor %vm11559, %vm11560
  %v11562 = vsel %vm11561, %v11554, %v11558
  %v11563 = vand.u32 2147483647, %v10768
  %vm11564 = vcmp.eq.f32.partialorder %v11563, 8.507059e+37
  %v11565 = vand.u32 %v10768, 2147483648
  %v11566 = vor.u32 1.1754944e-38, %v11565
  %v11567 = vsel %vm11564, %v11566, %v11562
  %v11568 = vmul.f32 1.0, %v11567
  %v11569 = vrcp.pop %v10769
  %v11570 = vmul.f32 %v10769, %v11569
  %v11571 = vsub.f32 1.0, %v11570
  %v11572 = vmul.f32 %v11569, %v11571
  %v11573 = vadd.f32 %v11569, %v11572
  %vm11574 = vweird.f32 %v10769
  %vm11575 = vweird.f32 %v11569
  %vm11576 = vmor %vm11574, %vm11575
  %v11577 = vsel %vm11576, %v11569, %v11573
  %v11578 = vand.u32 2147483647, %v10769
  %vm11579 = vcmp.eq.f32.partialorder %v11578, 8.507059e+37
  %v11580 = vand.u32 %v10769, 2147483648
  %v11581 = vor.u32 1.1754944e-38, %v11580
  %v11582 = vsel %vm11579, %v11581, %v11577
  %v11583 = vmul.f32 1.0, %v11582
  %v11584 = vrcp.pop %v10770
  %v11585 = vmul.f32 %v10770, %v11584
  %v11586 = vsub.f32 1.0, %v11585
  %v11587 = vmul.f32 %v11584, %v11586
  %v11588 = vadd.f32 %v11584, %v11587
  %vm11589 = vweird.f32 %v10770
  %vm11590 = vweird.f32 %v11584
  %vm11591 = vmor %vm11589, %vm11590
  %v11592 = vsel %vm11591, %v11584, %v11588
  %v11593 = vand.u32 2147483647, %v10770
  %vm11594 = vcmp.eq.f32.partialorder %v11593, 8.507059e+37
  %v11595 = vand.u32 %v10770, 2147483648
  %v11596 = vor.u32 1.1754944e-38, %v11595
  %v11597 = vsel %vm11594, %v11596, %v11592
  %v11598 = vmul.f32 1.0, %v11597
  %v11599 = vrcp.pop %v10771
  %v11600 = vmul.f32 %v10771, %v11599
  %v11601 = vsub.f32 1.0, %v11600
  %v11602 = vmul.f32 %v11599, %v11601
  %v11603 = vadd.f32 %v11599, %v11602
  %vm11604 = vweird.f32 %v10771
  %vm11605 = vweird.f32 %v11599
  %vm11606 = vmor %vm11604, %vm11605
  %v11607 = vsel %vm11606, %v11599, %v11603
  %v11608 = vand.u32 2147483647, %v10771
  %vm11609 = vcmp.eq.f32.partialorder %v11608, 8.507059e+37
  %v11610 = vand.u32 %v10771, 2147483648
  %v11611 = vor.u32 1.1754944e-38, %v11610
  %v11612 = vsel %vm11609, %v11611, %v11607
  %v11613 = vmul.f32 1.0, %v11612
  %v11614 = vrcp.pop %v10772
  %v11615 = vmul.f32 %v10772, %v11614
  %v11616 = vsub.f32 1.0, %v11615
  %v11617 = vmul.f32 %v11614, %v11616
  %v11618 = vadd.f32 %v11614, %v11617
  %vm11619 = vweird.f32 %v10772
  %vm11620 = vweird.f32 %v11614
  %vm11621 = vmor %vm11619, %vm11620
  %v11622 = vsel %vm11621, %v11614, %v11618
  %v11623 = vand.u32 2147483647, %v10772
  %vm11624 = vcmp.eq.f32.partialorder %v11623, 8.507059e+37
  %v11625 = vand.u32 %v10772, 2147483648
  %v11626 = vor.u32 1.1754944e-38, %v11625
  %v11627 = vsel %vm11624, %v11626, %v11622
  %v11628 = vmul.f32 1.0, %v11627
  %v11629 = vrcp.pop %v10773
  %v11630 = vmul.f32 %v10773, %v11629
  %v11631 = vsub.f32 1.0, %v11630
  %v11632 = vmul.f32 %v11629, %v11631
  %v11633 = vadd.f32 %v11629, %v11632
  %vm11634 = vweird.f32 %v10773
  %vm11635 = vweird.f32 %v11629
  %vm11636 = vmor %vm11634, %vm11635
  %v11637 = vsel %vm11636, %v11629, %v11633
  %v11638 = vand.u32 2147483647, %v10773
  %vm11639 = vcmp.eq.f32.partialorder %v11638, 8.507059e+37
  %v11640 = vand.u32 %v10773, 2147483648
  %v11641 = vor.u32 1.1754944e-38, %v11640
  %v11642 = vsel %vm11639, %v11641, %v11637
  %v11643 = vmul.f32 1.0, %v11642
  %v11644 = vrcp.pop %v10774
  %v11645 = vmul.f32 %v10774, %v11644
  %v11646 = vsub.f32 1.0, %v11645
  %v11647 = vmul.f32 %v11644, %v11646
  %v11648 = vadd.f32 %v11644, %v11647
  %vm11649 = vweird.f32 %v10774
  %vm11650 = vweird.f32 %v11644
  %vm11651 = vmor %vm11649, %vm11650
  %v11652 = vsel %vm11651, %v11644, %v11648
  %v11653 = vand.u32 2147483647, %v10774
  %vm11654 = vcmp.eq.f32.partialorder %v11653, 8.507059e+37
  %v11655 = vand.u32 %v10774, 2147483648
  %v11656 = vor.u32 1.1754944e-38, %v11655
  %v11657 = vsel %vm11654, %v11656, %v11652
  %v11658 = vmul.f32 1.0, %v11657
  %v11659 = vrcp.pop %v10775
  %v11660 = vmul.f32 %v10775, %v11659
  %v11661 = vsub.f32 1.0, %v11660
  %v11662 = vmul.f32 %v11659, %v11661
  %v11663 = vadd.f32 %v11659, %v11662
  %vm11664 = vweird.f32 %v10775
  %vm11665 = vweird.f32 %v11659
  %vm11666 = vmor %vm11664, %vm11665
  %v11667 = vsel %vm11666, %v11659, %v11663
  %v11668 = vand.u32 2147483647, %v10775
  %vm11669 = vcmp.eq.f32.partialorder %v11668, 8.507059e+37
  %v11670 = vand.u32 %v10775, 2147483648
  %v11671 = vor.u32 1.1754944e-38, %v11670
  %v11672 = vsel %vm11669, %v11671, %v11667
  %v11673 = vmul.f32 1.0, %v11672
  %v11674 = vrcp.pop %v10776
  %v11675 = vmul.f32 %v10776, %v11674
  %v11676 = vsub.f32 1.0, %v11675
  %v11677 = vmul.f32 %v11674, %v11676
  %v11678 = vadd.f32 %v11674, %v11677
  %vm11679 = vweird.f32 %v10776
  %vm11680 = vweird.f32 %v11674
  %vm11681 = vmor %vm11679, %vm11680
  %v11682 = vsel %vm11681, %v11674, %v11678
  %v11683 = vand.u32 2147483647, %v10776
  %vm11684 = vcmp.eq.f32.partialorder %v11683, 8.507059e+37
  %v11685 = vand.u32 %v10776, 2147483648
  %v11686 = vor.u32 1.1754944e-38, %v11685
  %v11687 = vsel %vm11684, %v11686, %v11682
  %v11688 = vmul.f32 1.0, %v11687
  %v11689 = vrcp.pop %v10777
  %v11690 = vmul.f32 %v10777, %v11689
  %v11691 = vsub.f32 1.0, %v11690
  %v11692 = vmul.f32 %v11689, %v11691
  %v11693 = vadd.f32 %v11689, %v11692
  %vm11694 = vweird.f32 %v10777
  %vm11695 = vweird.f32 %v11689
  %vm11696 = vmor %vm11694, %vm11695
  %v11697 = vsel %vm11696, %v11689, %v11693
  %v11698 = vand.u32 2147483647, %v10777
  %vm11699 = vcmp.eq.f32.partialorder %v11698, 8.507059e+37
  %v11700 = vand.u32 %v10777, 2147483648
  %v11701 = vor.u32 1.1754944e-38, %v11700
  %v11702 = vsel %vm11699, %v11701, %v11697
  %v11703 = vmul.f32 1.0, %v11702
  %v11704 = vrcp.pop %v10778
  %v11705 = vmul.f32 %v10778, %v11704
  %v11706 = vsub.f32 1.0, %v11705
  %v11707 = vmul.f32 %v11704, %v11706
  %v11708 = vadd.f32 %v11704, %v11707
  %vm11709 = vweird.f32 %v10778
  %vm11710 = vweird.f32 %v11704
  %vm11711 = vmor %vm11709, %vm11710
  %v11712 = vsel %vm11711, %v11704, %v11708
  %v11713 = vand.u32 2147483647, %v10778
  %vm11714 = vcmp.eq.f32.partialorder %v11713, 8.507059e+37
  %v11715 = vand.u32 %v10778, 2147483648
  %v11716 = vor.u32 1.1754944e-38, %v11715
  %v11717 = vsel %vm11714, %v11716, %v11712
  %v11718 = vmul.f32 1.0, %v11717
  %v11719 = vrcp.pop %v10779
  %v11720 = vmul.f32 %v10779, %v11719
  %v11721 = vsub.f32 1.0, %v11720
  %v11722 = vmul.f32 %v11719, %v11721
  %v11723 = vadd.f32 %v11719, %v11722
  %vm11724 = vweird.f32 %v10779
  %vm11725 = vweird.f32 %v11719
  %vm11726 = vmor %vm11724, %vm11725
  %v11727 = vsel %vm11726, %v11719, %v11723
  %v11728 = vand.u32 2147483647, %v10779
  %vm11729 = vcmp.eq.f32.partialorder %v11728, 8.507059e+37
  %v11730 = vand.u32 %v10779, 2147483648
  %v11731 = vor.u32 1.1754944e-38, %v11730
  %v11732 = vsel %vm11729, %v11731, %v11727
  %v11733 = vmul.f32 1.0, %v11732
  %v11734 = vrcp.pop %v10780
  %v11735 = vmul.f32 %v10780, %v11734
  %v11736 = vsub.f32 1.0, %v11735
  %v11737 = vmul.f32 %v11734, %v11736
  %v11738 = vadd.f32 %v11734, %v11737
  %vm11739 = vweird.f32 %v10780
  %vm11740 = vweird.f32 %v11734
  %vm11741 = vmor %vm11739, %vm11740
  %v11742 = vsel %vm11741, %v11734, %v11738
  %v11743 = vand.u32 2147483647, %v10780
  %vm11744 = vcmp.eq.f32.partialorder %v11743, 8.507059e+37
  %v11745 = vand.u32 %v10780, 2147483648
  %v11746 = vor.u32 1.1754944e-38, %v11745
  %v11747 = vsel %vm11744, %v11746, %v11742
  %v11748 = vmul.f32 1.0, %v11747
  %v11749 = vrcp.pop %v10781
  %v11750 = vmul.f32 %v10781, %v11749
  %v11751 = vsub.f32 1.0, %v11750
  %v11752 = vmul.f32 %v11749, %v11751
  %v11753 = vadd.f32 %v11749, %v11752
  %vm11754 = vweird.f32 %v10781
  %vm11755 = vweird.f32 %v11749
  %vm11756 = vmor %vm11754, %vm11755
  %v11757 = vsel %vm11756, %v11749, %v11753
  %v11758 = vand.u32 2147483647, %v10781
  %vm11759 = vcmp.eq.f32.partialorder %v11758, 8.507059e+37
  %v11760 = vand.u32 %v10781, 2147483648
  %v11761 = vor.u32 1.1754944e-38, %v11760
  %v11762 = vsel %vm11759, %v11761, %v11757
  %v11763 = vmul.f32 1.0, %v11762
  %v11764 = vrcp.pop %v10782
  %v11765 = vmul.f32 %v10782, %v11764
  %v11766 = vsub.f32 1.0, %v11765
  %v11767 = vmul.f32 %v11764, %v11766
  %v11768 = vadd.f32 %v11764, %v11767
  %vm11769 = vweird.f32 %v10782
  %vm11770 = vweird.f32 %v11764
  %vm11771 = vmor %vm11769, %vm11770
  %v11772 = vsel %vm11771, %v11764, %v11768
  %v11773 = vand.u32 2147483647, %v10782
  %vm11774 = vcmp.eq.f32.partialorder %v11773, 8.507059e+37
  %v11775 = vand.u32 %v10782, 2147483648
  %v11776 = vor.u32 1.1754944e-38, %v11775
  %v11777 = vsel %vm11774, %v11776, %v11772
  %v11778 = vmul.f32 1.0, %v11777
  %v11779 = vrcp.pop %v10783
  %v11780 = vmul.f32 %v10783, %v11779
  %v11781 = vsub.f32 1.0, %v11780
  %v11782 = vmul.f32 %v11779, %v11781
  %v11783 = vadd.f32 %v11779, %v11782
  %vm11784 = vweird.f32 %v10783
  %vm11785 = vweird.f32 %v11779
  %vm11786 = vmor %vm11784, %vm11785
  %v11787 = vsel %vm11786, %v11779, %v11783
  %v11788 = vand.u32 2147483647, %v10783
  %vm11789 = vcmp.eq.f32.partialorder %v11788, 8.507059e+37
  %v11790 = vand.u32 %v10783, 2147483648
  %v11791 = vor.u32 1.1754944e-38, %v11790
  %v11792 = vsel %vm11789, %v11791, %v11787
  %v11793 = vmul.f32 1.0, %v11792
  %v11794 = vrcp.pop %v10784
  %v11795 = vmul.f32 %v10784, %v11794
  %v11796 = vsub.f32 1.0, %v11795
  %v11797 = vmul.f32 %v11794, %v11796
  %v11798 = vadd.f32 %v11794, %v11797
  %vm11799 = vweird.f32 %v10784
  %vm11800 = vweird.f32 %v11794
  %vm11801 = vmor %vm11799, %vm11800
  %v11802 = vsel %vm11801, %v11794, %v11798
  %v11803 = vand.u32 2147483647, %v10784
  %vm11804 = vcmp.eq.f32.partialorder %v11803, 8.507059e+37
  %v11805 = vand.u32 %v10784, 2147483648
  %v11806 = vor.u32 1.1754944e-38, %v11805
  %v11807 = vsel %vm11804, %v11806, %v11802
  %v11808 = vmul.f32 1.0, %v11807
  %v11809 = vrcp.pop %v10785
  %v11810 = vmul.f32 %v10785, %v11809
  %v11811 = vsub.f32 1.0, %v11810
  %v11812 = vmul.f32 %v11809, %v11811
  %v11813 = vadd.f32 %v11809, %v11812
  %vm11814 = vweird.f32 %v10785
  %vm11815 = vweird.f32 %v11809
  %vm11816 = vmor %vm11814, %vm11815
  %v11817 = vsel %vm11816, %v11809, %v11813
  %v11818 = vand.u32 2147483647, %v10785
  %vm11819 = vcmp.eq.f32.partialorder %v11818, 8.507059e+37
  %v11820 = vand.u32 %v10785, 2147483648
  %v11821 = vor.u32 1.1754944e-38, %v11820
  %v11822 = vsel %vm11819, %v11821, %v11817
  %v11823 = vmul.f32 1.0, %v11822
  %v11824 = vrcp.pop %v10786
  %v11825 = vmul.f32 %v10786, %v11824
  %v11826 = vsub.f32 1.0, %v11825
  %v11827 = vmul.f32 %v11824, %v11826
  %v11828 = vadd.f32 %v11824, %v11827
  %vm11829 = vweird.f32 %v10786
  %vm11830 = vweird.f32 %v11824
  %vm11831 = vmor %vm11829, %vm11830
  %v11832 = vsel %vm11831, %v11824, %v11828
  %v11833 = vand.u32 2147483647, %v10786
  %vm11834 = vcmp.eq.f32.partialorder %v11833, 8.507059e+37
  %v11835 = vand.u32 %v10786, 2147483648
  %v11836 = vor.u32 1.1754944e-38, %v11835
  %v11837 = vsel %vm11834, %v11836, %v11832
  %v11838 = vmul.f32 1.0, %v11837
  %v11839 = vrcp.pop %v10787
  %v11840 = vmul.f32 %v10787, %v11839
  %v11841 = vsub.f32 1.0, %v11840
  %v11842 = vmul.f32 %v11839, %v11841
  %v11843 = vadd.f32 %v11839, %v11842
  %vm11844 = vweird.f32 %v10787
  %vm11845 = vweird.f32 %v11839
  %vm11846 = vmor %vm11844, %vm11845
  %v11847 = vsel %vm11846, %v11839, %v11843
  %v11848 = vand.u32 2147483647, %v10787
  %vm11849 = vcmp.eq.f32.partialorder %v11848, 8.507059e+37
  %v11850 = vand.u32 %v10787, 2147483648
  %v11851 = vor.u32 1.1754944e-38, %v11850
  %v11852 = vsel %vm11849, %v11851, %v11847
  %v11853 = vmul.f32 1.0, %v11852
  %v11854 = vrcp.pop %v10788
  %v11855 = vmul.f32 %v10788, %v11854
  %v11856 = vsub.f32 1.0, %v11855
  %v11857 = vmul.f32 %v11854, %v11856
  %v11858 = vadd.f32 %v11854, %v11857
  %vm11859 = vweird.f32 %v10788
  %vm11860 = vweird.f32 %v11854
  %vm11861 = vmor %vm11859, %vm11860
  %v11862 = vsel %vm11861, %v11854, %v11858
  %v11863 = vand.u32 2147483647, %v10788
  %vm11864 = vcmp.eq.f32.partialorder %v11863, 8.507059e+37
  %v11865 = vand.u32 %v10788, 2147483648
  %v11866 = vor.u32 1.1754944e-38, %v11865
  %v11867 = vsel %vm11864, %v11866, %v11862
  %v11868 = vmul.f32 1.0, %v11867
  %v11869 = vrcp.pop %v10789
  %v11870 = vmul.f32 %v10789, %v11869
  %v11871 = vsub.f32 1.0, %v11870
  %v11872 = vmul.f32 %v11869, %v11871
  %v11873 = vadd.f32 %v11869, %v11872
  %vm11874 = vweird.f32 %v10789
  %vm11875 = vweird.f32 %v11869
  %vm11876 = vmor %vm11874, %vm11875
  %v11877 = vsel %vm11876, %v11869, %v11873
  %v11878 = vand.u32 2147483647, %v10789
  %vm11879 = vcmp.eq.f32.partialorder %v11878, 8.507059e+37
  %v11880 = vand.u32 %v10789, 2147483648
  %v11881 = vor.u32 1.1754944e-38, %v11880
  %v11882 = vsel %vm11879, %v11881, %v11877
  %v11883 = vmul.f32 1.0, %v11882
  %v11884 = vrcp.pop %v10790
  %v11885 = vmul.f32 %v10790, %v11884
  %v11886 = vsub.f32 1.0, %v11885
  %v11887 = vmul.f32 %v11884, %v11886
  %v11888 = vadd.f32 %v11884, %v11887
  %vm11889 = vweird.f32 %v10790
  %vm11890 = vweird.f32 %v11884
  %vm11891 = vmor %vm11889, %vm11890
  %v11892 = vsel %vm11891, %v11884, %v11888
  %v11893 = vand.u32 2147483647, %v10790
  %vm11894 = vcmp.eq.f32.partialorder %v11893, 8.507059e+37
  %v11895 = vand.u32 %v10790, 2147483648
  %v11896 = vor.u32 1.1754944e-38, %v11895
  %v11897 = vsel %vm11894, %v11896, %v11892
  %v11898 = vmul.f32 1.0, %v11897
  %v11899 = vrcp.pop %v10791
  %v11900 = vmul.f32 %v10791, %v11899
  %v11901 = vsub.f32 1.0, %v11900
  %v11902 = vmul.f32 %v11899, %v11901
  %v11903 = vadd.f32 %v11899, %v11902
  %vm11904 = vweird.f32 %v10791
  %vm11905 = vweird.f32 %v11899
  %vm11906 = vmor %vm11904, %vm11905
  %v11907 = vsel %vm11906, %v11899, %v11903
  %v11908 = vand.u32 2147483647, %v10791
  %vm11909 = vcmp.eq.f32.partialorder %v11908, 8.507059e+37
  %v11910 = vand.u32 %v10791, 2147483648
  %v11911 = vor.u32 1.1754944e-38, %v11910
  %v11912 = vsel %vm11909, %v11911, %v11907
  %v11913 = vmul.f32 1.0, %v11912
  %v11914 = vrcp.pop %v10792
  %v11915 = vmul.f32 %v10792, %v11914
  %v11916 = vsub.f32 1.0, %v11915
  %v11917 = vmul.f32 %v11914, %v11916
  %v11918 = vadd.f32 %v11914, %v11917
  %vm11919 = vweird.f32 %v10792
  %vm11920 = vweird.f32 %v11914
  %vm11921 = vmor %vm11919, %vm11920
  %v11922 = vsel %vm11921, %v11914, %v11918
  %v11923 = vand.u32 2147483647, %v10792
  %vm11924 = vcmp.eq.f32.partialorder %v11923, 8.507059e+37
  %v11925 = vand.u32 %v10792, 2147483648
  %v11926 = vor.u32 1.1754944e-38, %v11925
  %v11927 = vsel %vm11924, %v11926, %v11922
  %v11928 = vmul.f32 1.0, %v11927
  %v11929 = vrcp.pop %v10793
  %v11930 = vmul.f32 %v10793, %v11929
  %v11931 = vsub.f32 1.0, %v11930
  %v11932 = vmul.f32 %v11929, %v11931
  %v11933 = vadd.f32 %v11929, %v11932
  %vm11934 = vweird.f32 %v10793
  %vm11935 = vweird.f32 %v11929
  %vm11936 = vmor %vm11934, %vm11935
  %v11937 = vsel %vm11936, %v11929, %v11933
  %v11938 = vand.u32 2147483647, %v10793
  %vm11939 = vcmp.eq.f32.partialorder %v11938, 8.507059e+37
  %v11940 = vand.u32 %v10793, 2147483648
  %v11941 = vor.u32 1.1754944e-38, %v11940
  %v11942 = vsel %vm11939, %v11941, %v11937
  %v11943 = vmul.f32 1.0, %v11942
  %v11944 = vrcp.pop %v10794
  %v11945 = vmul.f32 %v10794, %v11944
  %v11946 = vsub.f32 1.0, %v11945
  %v11947 = vmul.f32 %v11944, %v11946
  %v11948 = vadd.f32 %v11944, %v11947
  %vm11949 = vweird.f32 %v10794
  %vm11950 = vweird.f32 %v11944
  %vm11951 = vmor %vm11949, %vm11950
  %v11952 = vsel %vm11951, %v11944, %v11948
  %v11953 = vand.u32 2147483647, %v10794
  %vm11954 = vcmp.eq.f32.partialorder %v11953, 8.507059e+37
  %v11955 = vand.u32 %v10794, 2147483648
  %v11956 = vor.u32 1.1754944e-38, %v11955
  %v11957 = vsel %vm11954, %v11956, %v11952
  %v11958 = vmul.f32 1.0, %v11957
  %v11959 = vrcp.pop %v10795
  %v11960 = vmul.f32 %v10795, %v11959
  %v11961 = vsub.f32 1.0, %v11960
  %v11962 = vmul.f32 %v11959, %v11961
  %v11963 = vadd.f32 %v11959, %v11962
  %vm11964 = vweird.f32 %v10795
  %vm11965 = vweird.f32 %v11959
  %vm11966 = vmor %vm11964, %vm11965
  %v11967 = vsel %vm11966, %v11959, %v11963
  %v11968 = vand.u32 2147483647, %v10795
  %vm11969 = vcmp.eq.f32.partialorder %v11968, 8.507059e+37
  %v11970 = vand.u32 %v10795, 2147483648
  %v11971 = vor.u32 1.1754944e-38, %v11970
  %v11972 = vsel %vm11969, %v11971, %v11967
  %v11973 = vmul.f32 1.0, %v11972
  %v11974 = vrcp.pop %v10796
  %v11975 = vmul.f32 %v10796, %v11974
  %v11976 = vsub.f32 1.0, %v11975
  %v11977 = vmul.f32 %v11974, %v11976
  %v11978 = vadd.f32 %v11974, %v11977
  %vm11979 = vweird.f32 %v10796
  %vm11980 = vweird.f32 %v11974
  %vm11981 = vmor %vm11979, %vm11980
  %v11982 = vsel %vm11981, %v11974, %v11978
  %v11983 = vand.u32 2147483647, %v10796
  %vm11984 = vcmp.eq.f32.partialorder %v11983, 8.507059e+37
  %v11985 = vand.u32 %v10796, 2147483648
  %v11986 = vor.u32 1.1754944e-38, %v11985
  %v11987 = vsel %vm11984, %v11986, %v11982
  %v11988 = vmul.f32 1.0, %v11987
  %v11989 = vrcp.pop %v10797
  %v11990 = vmul.f32 %v10797, %v11989
  %v11991 = vsub.f32 1.0, %v11990
  %v11992 = vmul.f32 %v11989, %v11991
  %v11993 = vadd.f32 %v11989, %v11992
  %vm11994 = vweird.f32 %v10797
  %vm11995 = vweird.f32 %v11989
  %vm11996 = vmor %vm11994, %vm11995
  %v11997 = vsel %vm11996, %v11989, %v11993
  %v11998 = vand.u32 2147483647, %v10797
  %vm11999 = vcmp.eq.f32.partialorder %v11998, 8.507059e+37
  %v12000 = vand.u32 %v10797, 2147483648
  %v12001 = vor.u32 1.1754944e-38, %v12000
  %v12002 = vsel %vm11999, %v12001, %v11997
  %v12003 = vmul.f32 1.0, %v12002
  %v12004 = vrcp.pop %v10798
  %v12005 = vmul.f32 %v10798, %v12004
  %v12006 = vsub.f32 1.0, %v12005
  %v12007 = vmul.f32 %v12004, %v12006
  %v12008 = vadd.f32 %v12004, %v12007
  %vm12009 = vweird.f32 %v10798
  %vm12010 = vweird.f32 %v12004
  %vm12011 = vmor %vm12009, %vm12010
  %v12012 = vsel %vm12011, %v12004, %v12008
  %v12013 = vand.u32 2147483647, %v10798
  %vm12014 = vcmp.eq.f32.partialorder %v12013, 8.507059e+37
  %v12015 = vand.u32 %v10798, 2147483648
  %v12016 = vor.u32 1.1754944e-38, %v12015
  %v12017 = vsel %vm12014, %v12016, %v12012
  %v12018 = vmul.f32 1.0, %v12017
  %v12019 = vrcp.pop %v10799
  %v12020 = vmul.f32 %v10799, %v12019
  %v12021 = vsub.f32 1.0, %v12020
  %v12022 = vmul.f32 %v12019, %v12021
  %v12023 = vadd.f32 %v12019, %v12022
  %vm12024 = vweird.f32 %v10799
  %vm12025 = vweird.f32 %v12019
  %vm12026 = vmor %vm12024, %vm12025
  %v12027 = vsel %vm12026, %v12019, %v12023
  %v12028 = vand.u32 2147483647, %v10799
  %vm12029 = vcmp.eq.f32.partialorder %v12028, 8.507059e+37
  %v12030 = vand.u32 %v10799, 2147483648
  %v12031 = vor.u32 1.1754944e-38, %v12030
  %v12032 = vsel %vm12029, %v12031, %v12027
  %v12033 = vmul.f32 1.0, %v12032
  %v12034 = vrcp.pop %v10800
  %v12035 = vmul.f32 %v10800, %v12034
  %v12036 = vsub.f32 1.0, %v12035
  %v12037 = vmul.f32 %v12034, %v12036
  %v12038 = vadd.f32 %v12034, %v12037
  %vm12039 = vweird.f32 %v10800
  %vm12040 = vweird.f32 %v12034
  %vm12041 = vmor %vm12039, %vm12040
  %v12042 = vsel %vm12041, %v12034, %v12038
  %v12043 = vand.u32 2147483647, %v10800
  %vm12044 = vcmp.eq.f32.partialorder %v12043, 8.507059e+37
  %v12045 = vand.u32 %v10800, 2147483648
  %v12046 = vor.u32 1.1754944e-38, %v12045
  %v12047 = vsel %vm12044, %v12046, %v12042
  %v12048 = vmul.f32 1.0, %v12047
  %v12049 = vrcp.pop %v10801
  %v12050 = vmul.f32 %v10801, %v12049
  %v12051 = vsub.f32 1.0, %v12050
  %v12052 = vmul.f32 %v12049, %v12051
  %v12053 = vadd.f32 %v12049, %v12052
  %vm12054 = vweird.f32 %v10801
  %vm12055 = vweird.f32 %v12049
  %vm12056 = vmor %vm12054, %vm12055
  %v12057 = vsel %vm12056, %v12049, %v12053
  %v12058 = vand.u32 2147483647, %v10801
  %vm12059 = vcmp.eq.f32.partialorder %v12058, 8.507059e+37
  %v12060 = vand.u32 %v10801, 2147483648
  %v12061 = vor.u32 1.1754944e-38, %v12060
  %v12062 = vsel %vm12059, %v12061, %v12057
  %v12063 = vmul.f32 1.0, %v12062
  %v12064 = vrcp.pop %v10802
  %v12065 = vmul.f32 %v10802, %v12064
  %v12066 = vsub.f32 1.0, %v12065
  %v12067 = vmul.f32 %v12064, %v12066
  %v12068 = vadd.f32 %v12064, %v12067
  %vm12069 = vweird.f32 %v10802
  %vm12070 = vweird.f32 %v12064
  %vm12071 = vmor %vm12069, %vm12070
  %v12072 = vsel %vm12071, %v12064, %v12068
  %v12073 = vand.u32 2147483647, %v10802
  %vm12074 = vcmp.eq.f32.partialorder %v12073, 8.507059e+37
  %v12075 = vand.u32 %v10802, 2147483648
  %v12076 = vor.u32 1.1754944e-38, %v12075
  %v12077 = vsel %vm12074, %v12076, %v12072
  %v12078 = vmul.f32 1.0, %v12077
  %v12079 = vrcp.pop %v10803
  %v12080 = vmul.f32 %v10803, %v12079
  %v12081 = vsub.f32 1.0, %v12080
  %v12082 = vmul.f32 %v12079, %v12081
  %v12083 = vadd.f32 %v12079, %v12082
  %vm12084 = vweird.f32 %v10803
  %vm12085 = vweird.f32 %v12079
  %vm12086 = vmor %vm12084, %vm12085
  %v12087 = vsel %vm12086, %v12079, %v12083
  %v12088 = vand.u32 2147483647, %v10803
  %vm12089 = vcmp.eq.f32.partialorder %v12088, 8.507059e+37
  %v12090 = vand.u32 %v10803, 2147483648
  %v12091 = vor.u32 1.1754944e-38, %v12090
  %v12092 = vsel %vm12089, %v12091, %v12087
  %v12093 = vmul.f32 1.0, %v12092
  %v12094 = vrcp.pop %v10804
  %v12095 = vmul.f32 %v10804, %v12094
  %v12096 = vsub.f32 1.0, %v12095
  %v12097 = vmul.f32 %v12094, %v12096
  %v12098 = vadd.f32 %v12094, %v12097
  %vm12099 = vweird.f32 %v10804
  %vm12100 = vweird.f32 %v12094
  %vm12101 = vmor %vm12099, %vm12100
  %v12102 = vsel %vm12101, %v12094, %v12098
  %v12103 = vand.u32 2147483647, %v10804
  %vm12104 = vcmp.eq.f32.partialorder %v12103, 8.507059e+37
  %v12105 = vand.u32 %v10804, 2147483648
  %v12106 = vor.u32 1.1754944e-38, %v12105
  %v12107 = vsel %vm12104, %v12106, %v12102
  %v12108 = vmul.f32 1.0, %v12107
  %v12109 = vrcp.pop %v10805
  %v12110 = vmul.f32 %v10805, %v12109
  %v12111 = vsub.f32 1.0, %v12110
  %v12112 = vmul.f32 %v12109, %v12111
  %v12113 = vadd.f32 %v12109, %v12112
  %vm12114 = vweird.f32 %v10805
  %vm12115 = vweird.f32 %v12109
  %vm12116 = vmor %vm12114, %vm12115
  %v12117 = vsel %vm12116, %v12109, %v12113
  %v12118 = vand.u32 2147483647, %v10805
  %vm12119 = vcmp.eq.f32.partialorder %v12118, 8.507059e+37
  %v12120 = vand.u32 %v10805, 2147483648
  %v12121 = vor.u32 1.1754944e-38, %v12120
  %v12122 = vsel %vm12119, %v12121, %v12117
  %v12123 = vmul.f32 1.0, %v12122
  %v12124 = vrcp.pop %v10806
  %v12125 = vmul.f32 %v10806, %v12124
  %v12126 = vsub.f32 1.0, %v12125
  %v12127 = vmul.f32 %v12124, %v12126
  %v12128 = vadd.f32 %v12124, %v12127
  %vm12129 = vweird.f32 %v10806
  %vm12130 = vweird.f32 %v12124
  %vm12131 = vmor %vm12129, %vm12130
  %v12132 = vsel %vm12131, %v12124, %v12128
  %v12133 = vand.u32 2147483647, %v10806
  %vm12134 = vcmp.eq.f32.partialorder %v12133, 8.507059e+37
  %v12135 = vand.u32 %v10806, 2147483648
  %v12136 = vor.u32 1.1754944e-38, %v12135
  %v12137 = vsel %vm12134, %v12136, %v12132
  %v12138 = vmul.f32 1.0, %v12137
  %v12139 = vrcp.pop %v10807
  %v12140 = vmul.f32 %v10807, %v12139
  %v12141 = vsub.f32 1.0, %v12140
  %v12142 = vmul.f32 %v12139, %v12141
  %v12143 = vadd.f32 %v12139, %v12142
  %vm12144 = vweird.f32 %v10807
  %vm12145 = vweird.f32 %v12139
  %vm12146 = vmor %vm12144, %vm12145
  %v12147 = vsel %vm12146, %v12139, %v12143
  %v12148 = vand.u32 2147483647, %v10807
  %vm12149 = vcmp.eq.f32.partialorder %v12148, 8.507059e+37
  %v12150 = vand.u32 %v10807, 2147483648
  %v12151 = vor.u32 1.1754944e-38, %v12150
  %v12152 = vsel %vm12149, %v12151, %v12147
  %v12153 = vmul.f32 1.0, %v12152
  %v12154 = vrcp.pop %v10808
  %v12155 = vmul.f32 %v10808, %v12154
  %v12156 = vsub.f32 1.0, %v12155
  %v12157 = vmul.f32 %v12154, %v12156
  %v12158 = vadd.f32 %v12154, %v12157
  %vm12159 = vweird.f32 %v10808
  %vm12160 = vweird.f32 %v12154
  %vm12161 = vmor %vm12159, %vm12160
  %v12162 = vsel %vm12161, %v12154, %v12158
  %v12163 = vand.u32 2147483647, %v10808
  %vm12164 = vcmp.eq.f32.partialorder %v12163, 8.507059e+37
  %v12165 = vand.u32 %v10808, 2147483648
  %v12166 = vor.u32 1.1754944e-38, %v12165
  %v12167 = vsel %vm12164, %v12166, %v12162
  %v12168 = vmul.f32 1.0, %v12167
  %v12169 = vrcp.pop %v10809
  %v12170 = vmul.f32 %v10809, %v12169
  %v12171 = vsub.f32 1.0, %v12170
  %v12172 = vmul.f32 %v12169, %v12171
  %v12173 = vadd.f32 %v12169, %v12172
  %vm12174 = vweird.f32 %v10809
  %vm12175 = vweird.f32 %v12169
  %vm12176 = vmor %vm12174, %vm12175
  %v12177 = vsel %vm12176, %v12169, %v12173
  %v12178 = vand.u32 2147483647, %v10809
  %vm12179 = vcmp.eq.f32.partialorder %v12178, 8.507059e+37
  %v12180 = vand.u32 %v10809, 2147483648
  %v12181 = vor.u32 1.1754944e-38, %v12180
  %v12182 = vsel %vm12179, %v12181, %v12177
  %v12183 = vmul.f32 1.0, %v12182
  %v12184 = vrcp.pop %v10810
  %v12185 = vmul.f32 %v10810, %v12184
  %v12186 = vsub.f32 1.0, %v12185
  %v12187 = vmul.f32 %v12184, %v12186
  %v12188 = vadd.f32 %v12184, %v12187
  %vm12189 = vweird.f32 %v10810
  %vm12190 = vweird.f32 %v12184
  %vm12191 = vmor %vm12189, %vm12190
  %v12192 = vsel %vm12191, %v12184, %v12188
  %v12193 = vand.u32 2147483647, %v10810
  %vm12194 = vcmp.eq.f32.partialorder %v12193, 8.507059e+37
  %v12195 = vand.u32 %v10810, 2147483648
  %v12196 = vor.u32 1.1754944e-38, %v12195
  %v12197 = vsel %vm12194, %v12196, %v12192
  %v12198 = vmul.f32 1.0, %v12197
  %v12199 = vrcp.pop %v10811
  %v12200 = vmul.f32 %v10811, %v12199
  %v12201 = vsub.f32 1.0, %v12200
  %v12202 = vmul.f32 %v12199, %v12201
  %v12203 = vadd.f32 %v12199, %v12202
  %vm12204 = vweird.f32 %v10811
  %vm12205 = vweird.f32 %v12199
  %vm12206 = vmor %vm12204, %vm12205
  %v12207 = vsel %vm12206, %v12199, %v12203
  %v12208 = vand.u32 2147483647, %v10811
  %vm12209 = vcmp.eq.f32.partialorder %v12208, 8.507059e+37
  %v12210 = vand.u32 %v10811, 2147483648
  %v12211 = vor.u32 1.1754944e-38, %v12210
  %v12212 = vsel %vm12209, %v12211, %v12207
  %v12213 = vmul.f32 1.0, %v12212
  %v12214 = vrcp.pop %v10812
  %v12215 = vmul.f32 %v10812, %v12214
  %v12216 = vsub.f32 1.0, %v12215
  %v12217 = vmul.f32 %v12214, %v12216
  %v12218 = vadd.f32 %v12214, %v12217
  %vm12219 = vweird.f32 %v10812
  %vm12220 = vweird.f32 %v12214
  %vm12221 = vmor %vm12219, %vm12220
  %v12222 = vsel %vm12221, %v12214, %v12218
  %v12223 = vand.u32 2147483647, %v10812
  %vm12224 = vcmp.eq.f32.partialorder %v12223, 8.507059e+37
  %v12225 = vand.u32 %v10812, 2147483648
  %v12226 = vor.u32 1.1754944e-38, %v12225
  %v12227 = vsel %vm12224, %v12226, %v12222
  %v12228 = vmul.f32 1.0, %v12227
  %v12229 = vrcp.pop %v10813
  %v12230 = vmul.f32 %v10813, %v12229
  %v12231 = vsub.f32 1.0, %v12230
  %v12232 = vmul.f32 %v12229, %v12231
  %v12233 = vadd.f32 %v12229, %v12232
  %vm12234 = vweird.f32 %v10813
  %vm12235 = vweird.f32 %v12229
  %vm12236 = vmor %vm12234, %vm12235
  %v12237 = vsel %vm12236, %v12229, %v12233
  %v12238 = vand.u32 2147483647, %v10813
  %vm12239 = vcmp.eq.f32.partialorder %v12238, 8.507059e+37
  %v12240 = vand.u32 %v10813, 2147483648
  %v12241 = vor.u32 1.1754944e-38, %v12240
  %v12242 = vsel %vm12239, %v12241, %v12237
  %v12243 = vmul.f32 1.0, %v12242
  %v12244 = vrcp.pop %v10814
  %v12245 = vmul.f32 %v10814, %v12244
  %v12246 = vsub.f32 1.0, %v12245
  %v12247 = vmul.f32 %v12244, %v12246
  %v12248 = vadd.f32 %v12244, %v12247
  %vm12249 = vweird.f32 %v10814
  %vm12250 = vweird.f32 %v12244
  %vm12251 = vmor %vm12249, %vm12250
  %v12252 = vsel %vm12251, %v12244, %v12248
  %v12253 = vand.u32 2147483647, %v10814
  %vm12254 = vcmp.eq.f32.partialorder %v12253, 8.507059e+37
  %v12255 = vand.u32 %v10814, 2147483648
  %v12256 = vor.u32 1.1754944e-38, %v12255
  %v12257 = vsel %vm12254, %v12256, %v12252
  %v12258 = vmul.f32 1.0, %v12257
  %v12259 = vrcp.pop %v10815
  %v12260 = vmul.f32 %v10815, %v12259
  %v12261 = vsub.f32 1.0, %v12260
  %v12262 = vmul.f32 %v12259, %v12261
  %v12263 = vadd.f32 %v12259, %v12262
  %vm12264 = vweird.f32 %v10815
  %vm12265 = vweird.f32 %v12259
  %vm12266 = vmor %vm12264, %vm12265
  %v12267 = vsel %vm12266, %v12259, %v12263
  %v12268 = vand.u32 2147483647, %v10815
  %vm12269 = vcmp.eq.f32.partialorder %v12268, 8.507059e+37
  %v12270 = vand.u32 %v10815, 2147483648
  %v12271 = vor.u32 1.1754944e-38, %v12270
  %v12272 = vsel %vm12269, %v12271, %v12267
  %v12273 = vmul.f32 1.0, %v12272
  %v12274 = vrcp.pop %v10816
  %v12275 = vmul.f32 %v10816, %v12274
  %v12276 = vsub.f32 1.0, %v12275
  %v12277 = vmul.f32 %v12274, %v12276
  %v12278 = vadd.f32 %v12274, %v12277
  %vm12279 = vweird.f32 %v10816
  %vm12280 = vweird.f32 %v12274
  %vm12281 = vmor %vm12279, %vm12280
  %v12282 = vsel %vm12281, %v12274, %v12278
  %v12283 = vand.u32 2147483647, %v10816
  %vm12284 = vcmp.eq.f32.partialorder %v12283, 8.507059e+37
  %v12285 = vand.u32 %v10816, 2147483648
  %v12286 = vor.u32 1.1754944e-38, %v12285
  %v12287 = vsel %vm12284, %v12286, %v12282
  %v12288 = vmul.f32 1.0, %v12287
  %v12289 = vrcp.pop %v10817
  %v12290 = vmul.f32 %v10817, %v12289
  %v12291 = vsub.f32 1.0, %v12290
  %v12292 = vmul.f32 %v12289, %v12291
  %v12293 = vadd.f32 %v12289, %v12292
  %vm12294 = vweird.f32 %v10817
  %vm12295 = vweird.f32 %v12289
  %vm12296 = vmor %vm12294, %vm12295
  %v12297 = vsel %vm12296, %v12289, %v12293
  %v12298 = vand.u32 2147483647, %v10817
  %vm12299 = vcmp.eq.f32.partialorder %v12298, 8.507059e+37
  %v12300 = vand.u32 %v10817, 2147483648
  %v12301 = vor.u32 1.1754944e-38, %v12300
  %v12302 = vsel %vm12299, %v12301, %v12297
  %v12303 = vmul.f32 1.0, %v12302
  %v12304 = vrcp.pop %v10818
  %v12305 = vmul.f32 %v10818, %v12304
  %v12306 = vsub.f32 1.0, %v12305
  %v12307 = vmul.f32 %v12304, %v12306
  %v12308 = vadd.f32 %v12304, %v12307
  %vm12309 = vweird.f32 %v10818
  %vm12310 = vweird.f32 %v12304
  %vm12311 = vmor %vm12309, %vm12310
  %v12312 = vsel %vm12311, %v12304, %v12308
  %v12313 = vand.u32 2147483647, %v10818
  %vm12314 = vcmp.eq.f32.partialorder %v12313, 8.507059e+37
  %v12315 = vand.u32 %v10818, 2147483648
  %v12316 = vor.u32 1.1754944e-38, %v12315
  %v12317 = vsel %vm12314, %v12316, %v12312
  %v12318 = vmul.f32 1.0, %v12317
  %v12319 = vrcp.pop %v10819
  %v12320 = vmul.f32 %v10819, %v12319
  %v12321 = vsub.f32 1.0, %v12320
  %v12322 = vmul.f32 %v12319, %v12321
  %v12323 = vadd.f32 %v12319, %v12322
  %vm12324 = vweird.f32 %v10819
  %vm12325 = vweird.f32 %v12319
  %vm12326 = vmor %vm12324, %vm12325
  %v12327 = vsel %vm12326, %v12319, %v12323
  %v12328 = vand.u32 2147483647, %v10819
  %vm12329 = vcmp.eq.f32.partialorder %v12328, 8.507059e+37
  %v12330 = vand.u32 %v10819, 2147483648
  %v12331 = vor.u32 1.1754944e-38, %v12330
  %v12332 = vsel %vm12329, %v12331, %v12327
  %v12333 = vmul.f32 1.0, %v12332
  %v12334 = vrcp.pop %v10820
  %v12335 = vmul.f32 %v10820, %v12334
  %v12336 = vsub.f32 1.0, %v12335
  %v12337 = vmul.f32 %v12334, %v12336
  %v12338 = vadd.f32 %v12334, %v12337
  %vm12339 = vweird.f32 %v10820
  %vm12340 = vweird.f32 %v12334
  %vm12341 = vmor %vm12339, %vm12340
  %v12342 = vsel %vm12341, %v12334, %v12338
  %v12343 = vand.u32 2147483647, %v10820
  %vm12344 = vcmp.eq.f32.partialorder %v12343, 8.507059e+37
  %v12345 = vand.u32 %v10820, 2147483648
  %v12346 = vor.u32 1.1754944e-38, %v12345
  %v12347 = vsel %vm12344, %v12346, %v12342
  %v12348 = vmul.f32 1.0, %v12347
  %v12349 = vrcp.pop %v10821
  %v12350 = vmul.f32 %v10821, %v12349
  %v12351 = vsub.f32 1.0, %v12350
  %v12352 = vmul.f32 %v12349, %v12351
  %v12353 = vadd.f32 %v12349, %v12352
  %vm12354 = vweird.f32 %v10821
  %vm12355 = vweird.f32 %v12349
  %vm12356 = vmor %vm12354, %vm12355
  %v12357 = vsel %vm12356, %v12349, %v12353
  %v12358 = vand.u32 2147483647, %v10821
  %vm12359 = vcmp.eq.f32.partialorder %v12358, 8.507059e+37
  %v12360 = vand.u32 %v10821, 2147483648
  %v12361 = vor.u32 1.1754944e-38, %v12360
  %v12362 = vsel %vm12359, %v12361, %v12357
  %v12363 = vmul.f32 1.0, %v12362
  %v12364 = vrcp.pop %v10822
  %v12365 = vmul.f32 %v10822, %v12364
  %v12366 = vsub.f32 1.0, %v12365
  %v12367 = vmul.f32 %v12364, %v12366
  %v12368 = vadd.f32 %v12364, %v12367
  %vm12369 = vweird.f32 %v10822
  %vm12370 = vweird.f32 %v12364
  %vm12371 = vmor %vm12369, %vm12370
  %v12372 = vsel %vm12371, %v12364, %v12368
  %v12373 = vand.u32 2147483647, %v10822
  %vm12374 = vcmp.eq.f32.partialorder %v12373, 8.507059e+37
  %v12375 = vand.u32 %v10822, 2147483648
  %v12376 = vor.u32 1.1754944e-38, %v12375
  %v12377 = vsel %vm12374, %v12376, %v12372
  %v12378 = vmul.f32 1.0, %v12377
  %v12379 = vrcp.pop %v10823
  %v12380 = vmul.f32 %v10823, %v12379
  %v12381 = vsub.f32 1.0, %v12380
  %v12382 = vmul.f32 %v12379, %v12381
  %v12383 = vadd.f32 %v12379, %v12382
  %vm12384 = vweird.f32 %v10823
  %vm12385 = vweird.f32 %v12379
  %vm12386 = vmor %vm12384, %vm12385
  %v12387 = vsel %vm12386, %v12379, %v12383
  %v12388 = vand.u32 2147483647, %v10823
  %vm12389 = vcmp.eq.f32.partialorder %v12388, 8.507059e+37
  %v12390 = vand.u32 %v10823, 2147483648
  %v12391 = vor.u32 1.1754944e-38, %v12390
  %v12392 = vsel %vm12389, %v12391, %v12387
  %v12393 = vmul.f32 1.0, %v12392
  %v12394 = vrcp.pop %v10824
  %v12395 = vmul.f32 %v10824, %v12394
  %v12396 = vsub.f32 1.0, %v12395
  %v12397 = vmul.f32 %v12394, %v12396
  %v12398 = vadd.f32 %v12394, %v12397
  %vm12399 = vweird.f32 %v10824
  %vm12400 = vweird.f32 %v12394
  %vm12401 = vmor %vm12399, %vm12400
  %v12402 = vsel %vm12401, %v12394, %v12398
  %v12403 = vand.u32 2147483647, %v10824
  %vm12404 = vcmp.eq.f32.partialorder %v12403, 8.507059e+37
  %v12405 = vand.u32 %v10824, 2147483648
  %v12406 = vor.u32 1.1754944e-38, %v12405
  %v12407 = vsel %vm12404, %v12406, %v12402
  %v12408 = vmul.f32 1.0, %v12407
  %v12409 = vrcp.pop %v10825
  %v12410 = vmul.f32 %v10825, %v12409
  %v12411 = vsub.f32 1.0, %v12410
  %v12412 = vmul.f32 %v12409, %v12411
  %v12413 = vadd.f32 %v12409, %v12412
  %vm12414 = vweird.f32 %v10825
  %vm12415 = vweird.f32 %v12409
  %vm12416 = vmor %vm12414, %vm12415
  %v12417 = vsel %vm12416, %v12409, %v12413
  %v12418 = vand.u32 2147483647, %v10825
  %vm12419 = vcmp.eq.f32.partialorder %v12418, 8.507059e+37
  %v12420 = vand.u32 %v10825, 2147483648
  %v12421 = vor.u32 1.1754944e-38, %v12420
  %v12422 = vsel %vm12419, %v12421, %v12417
  %v12423 = vmul.f32 1.0, %v12422
  %v12424 = vrcp.pop %v10826
  %v12425 = vmul.f32 %v10826, %v12424
  %v12426 = vsub.f32 1.0, %v12425
  %v12427 = vmul.f32 %v12424, %v12426
  %v12428 = vadd.f32 %v12424, %v12427
  %vm12429 = vweird.f32 %v10826
  %vm12430 = vweird.f32 %v12424
  %vm12431 = vmor %vm12429, %vm12430
  %v12432 = vsel %vm12431, %v12424, %v12428
  %v12433 = vand.u32 2147483647, %v10826
  %vm12434 = vcmp.eq.f32.partialorder %v12433, 8.507059e+37
  %v12435 = vand.u32 %v10826, 2147483648
  %v12436 = vor.u32 1.1754944e-38, %v12435
  %v12437 = vsel %vm12434, %v12436, %v12432
  %v12438 = vmul.f32 1.0, %v12437
  %v12439 = vrcp.pop %v10827
  %v12440 = vmul.f32 %v10827, %v12439
  %v12441 = vsub.f32 1.0, %v12440
  %v12442 = vmul.f32 %v12439, %v12441
  %v12443 = vadd.f32 %v12439, %v12442
  %vm12444 = vweird.f32 %v10827
  %vm12445 = vweird.f32 %v12439
  %vm12446 = vmor %vm12444, %vm12445
  %v12447 = vsel %vm12446, %v12439, %v12443
  %v12448 = vand.u32 2147483647, %v10827
  %vm12449 = vcmp.eq.f32.partialorder %v12448, 8.507059e+37
  %v12450 = vand.u32 %v10827, 2147483648
  %v12451 = vor.u32 1.1754944e-38, %v12450
  %v12452 = vsel %vm12449, %v12451, %v12447
  %v12453 = vmul.f32 1.0, %v12452
  %v12454 = vrcp.pop %v10828
  %v12455 = vmul.f32 %v10828, %v12454
  %v12456 = vsub.f32 1.0, %v12455
  %v12457 = vmul.f32 %v12454, %v12456
  %v12458 = vadd.f32 %v12454, %v12457
  %vm12459 = vweird.f32 %v10828
  %vm12460 = vweird.f32 %v12454
  %vm12461 = vmor %vm12459, %vm12460
  %v12462 = vsel %vm12461, %v12454, %v12458
  %v12463 = vand.u32 2147483647, %v10828
  %vm12464 = vcmp.eq.f32.partialorder %v12463, 8.507059e+37
  %v12465 = vand.u32 %v10828, 2147483648
  %v12466 = vor.u32 1.1754944e-38, %v12465
  %v12467 = vsel %vm12464, %v12466, %v12462
  %v12468 = vmul.f32 1.0, %v12467
  %v12469 = vrcp.pop %v10829
  %v12470 = vmul.f32 %v10829, %v12469
  %v12471 = vsub.f32 1.0, %v12470
  %v12472 = vmul.f32 %v12469, %v12471
  %v12473 = vadd.f32 %v12469, %v12472
  %vm12474 = vweird.f32 %v10829
  %vm12475 = vweird.f32 %v12469
  %vm12476 = vmor %vm12474, %vm12475
  %v12477 = vsel %vm12476, %v12469, %v12473
  %v12478 = vand.u32 2147483647, %v10829
  %vm12479 = vcmp.eq.f32.partialorder %v12478, 8.507059e+37
  %v12480 = vand.u32 %v10829, 2147483648
  %v12481 = vor.u32 1.1754944e-38, %v12480
  %v12482 = vsel %vm12479, %v12481, %v12477
  %v12483 = vmul.f32 1.0, %v12482
  %v12484 = vrcp.pop %v10830
  %v12485 = vmul.f32 %v10830, %v12484
  %v12486 = vsub.f32 1.0, %v12485
  %v12487 = vmul.f32 %v12484, %v12486
  %v12488 = vadd.f32 %v12484, %v12487
  %vm12489 = vweird.f32 %v10830
  %vm12490 = vweird.f32 %v12484
  %vm12491 = vmor %vm12489, %vm12490
  %v12492 = vsel %vm12491, %v12484, %v12488
  %v12493 = vand.u32 2147483647, %v10830
  %vm12494 = vcmp.eq.f32.partialorder %v12493, 8.507059e+37
  %v12495 = vand.u32 %v10830, 2147483648
  %v12496 = vor.u32 1.1754944e-38, %v12495
  %v12497 = vsel %vm12494, %v12496, %v12492
  %v12498 = vmul.f32 1.0, %v12497
  %v12499 = vrcp.pop %v10831
  %v12500 = vmul.f32 %v10831, %v12499
  %v12501 = vsub.f32 1.0, %v12500
  %v12502 = vmul.f32 %v12499, %v12501
  %v12503 = vadd.f32 %v12499, %v12502
  %vm12504 = vweird.f32 %v10831
  %vm12505 = vweird.f32 %v12499
  %vm12506 = vmor %vm12504, %vm12505
  %v12507 = vsel %vm12506, %v12499, %v12503
  %v12508 = vand.u32 2147483647, %v10831
  %vm12509 = vcmp.eq.f32.partialorder %v12508, 8.507059e+37
  %v12510 = vand.u32 %v10831, 2147483648
  %v12511 = vor.u32 1.1754944e-38, %v12510
  %v12512 = vsel %vm12509, %v12511, %v12507
  %v12513 = vmul.f32 1.0, %v12512
  %v12514 = vrcp.pop %v10832
  %v12515 = vmul.f32 %v10832, %v12514
  %v12516 = vsub.f32 1.0, %v12515
  %v12517 = vmul.f32 %v12514, %v12516
  %v12518 = vadd.f32 %v12514, %v12517
  %vm12519 = vweird.f32 %v10832
  %vm12520 = vweird.f32 %v12514
  %vm12521 = vmor %vm12519, %vm12520
  %v12522 = vsel %vm12521, %v12514, %v12518
  %v12523 = vand.u32 2147483647, %v10832
  %vm12524 = vcmp.eq.f32.partialorder %v12523, 8.507059e+37
  %v12525 = vand.u32 %v10832, 2147483648
  %v12526 = vor.u32 1.1754944e-38, %v12525
  %v12527 = vsel %vm12524, %v12526, %v12522
  %v12528 = vmul.f32 1.0, %v12527
  %v12529 = vrcp.pop %v10833
  %v12530 = vmul.f32 %v10833, %v12529
  %v12531 = vsub.f32 1.0, %v12530
  %v12532 = vmul.f32 %v12529, %v12531
  %v12533 = vadd.f32 %v12529, %v12532
  %vm12534 = vweird.f32 %v10833
  %vm12535 = vweird.f32 %v12529
  %vm12536 = vmor %vm12534, %vm12535
  %v12537 = vsel %vm12536, %v12529, %v12533
  %v12538 = vand.u32 2147483647, %v10833
  %vm12539 = vcmp.eq.f32.partialorder %v12538, 8.507059e+37
  %v12540 = vand.u32 %v10833, 2147483648
  %v12541 = vor.u32 1.1754944e-38, %v12540
  %v12542 = vsel %vm12539, %v12541, %v12537
  %v12543 = vmul.f32 1.0, %v12542
  %v12544 = vrcp.pop %v10834
  %v12545 = vmul.f32 %v10834, %v12544
  %v12546 = vsub.f32 1.0, %v12545
  %v12547 = vmul.f32 %v12544, %v12546
  %v12548 = vadd.f32 %v12544, %v12547
  %vm12549 = vweird.f32 %v10834
  %vm12550 = vweird.f32 %v12544
  %vm12551 = vmor %vm12549, %vm12550
  %v12552 = vsel %vm12551, %v12544, %v12548
  %v12553 = vand.u32 2147483647, %v10834
  %vm12554 = vcmp.eq.f32.partialorder %v12553, 8.507059e+37
  %v12555 = vand.u32 %v10834, 2147483648
  %v12556 = vor.u32 1.1754944e-38, %v12555
  %v12557 = vsel %vm12554, %v12556, %v12552
  %v12558 = vmul.f32 1.0, %v12557
  %v12559 = vrcp.pop %v10835
  %v12560 = vmul.f32 %v10835, %v12559
  %v12561 = vsub.f32 1.0, %v12560
  %v12562 = vmul.f32 %v12559, %v12561
  %v12563 = vadd.f32 %v12559, %v12562
  %vm12564 = vweird.f32 %v10835
  %vm12565 = vweird.f32 %v12559
  %vm12566 = vmor %vm12564, %vm12565
  %v12567 = vsel %vm12566, %v12559, %v12563
  %v12568 = vand.u32 2147483647, %v10835
  %vm12569 = vcmp.eq.f32.partialorder %v12568, 8.507059e+37
  %v12570 = vand.u32 %v10835, 2147483648
  %v12571 = vor.u32 1.1754944e-38, %v12570
  %v12572 = vsel %vm12569, %v12571, %v12567
  %v12573 = vmul.f32 1.0, %v12572
  %v12574 = vrcp.pop %v10836
  %v12575 = vmul.f32 %v10836, %v12574
  %v12576 = vsub.f32 1.0, %v12575
  %v12577 = vmul.f32 %v12574, %v12576
  %v12578 = vadd.f32 %v12574, %v12577
  %vm12579 = vweird.f32 %v10836
  %vm12580 = vweird.f32 %v12574
  %vm12581 = vmor %vm12579, %vm12580
  %v12582 = vsel %vm12581, %v12574, %v12578
  %v12583 = vand.u32 2147483647, %v10836
  %vm12584 = vcmp.eq.f32.partialorder %v12583, 8.507059e+37
  %v12585 = vand.u32 %v10836, 2147483648
  %v12586 = vor.u32 1.1754944e-38, %v12585
  %v12587 = vsel %vm12584, %v12586, %v12582
  %v12588 = vmul.f32 1.0, %v12587
  %v12589 = vrcp.pop %v10837
  %v12590 = vmul.f32 %v10837, %v12589
  %v12591 = vsub.f32 1.0, %v12590
  %v12592 = vmul.f32 %v12589, %v12591
  %v12593 = vadd.f32 %v12589, %v12592
  %vm12594 = vweird.f32 %v10837
  %vm12595 = vweird.f32 %v12589
  %vm12596 = vmor %vm12594, %vm12595
  %v12597 = vsel %vm12596, %v12589, %v12593
  %v12598 = vand.u32 2147483647, %v10837
  %vm12599 = vcmp.eq.f32.partialorder %v12598, 8.507059e+37
  %v12600 = vand.u32 %v10837, 2147483648
  %v12601 = vor.u32 1.1754944e-38, %v12600
  %v12602 = vsel %vm12599, %v12601, %v12597
  %v12603 = vmul.f32 1.0, %v12602
  %v12604 = vrcp.pop %v10838
  %v12605 = vmul.f32 %v10838, %v12604
  %v12606 = vsub.f32 1.0, %v12605
  %v12607 = vmul.f32 %v12604, %v12606
  %v12608 = vadd.f32 %v12604, %v12607
  %vm12609 = vweird.f32 %v10838
  %vm12610 = vweird.f32 %v12604
  %vm12611 = vmor %vm12609, %vm12610
  %v12612 = vsel %vm12611, %v12604, %v12608
  %v12613 = vand.u32 2147483647, %v10838
  %vm12614 = vcmp.eq.f32.partialorder %v12613, 8.507059e+37
  %v12615 = vand.u32 %v10838, 2147483648
  %v12616 = vor.u32 1.1754944e-38, %v12615
  %v12617 = vsel %vm12614, %v12616, %v12612
  %v12618 = vmul.f32 1.0, %v12617
  %v12619 = vrcp.pop %v10839
  %v12620 = vmul.f32 %v10839, %v12619
  %v12621 = vsub.f32 1.0, %v12620
  %v12622 = vmul.f32 %v12619, %v12621
  %v12623 = vadd.f32 %v12619, %v12622
  %vm12624 = vweird.f32 %v10839
  %vm12625 = vweird.f32 %v12619
  %vm12626 = vmor %vm12624, %vm12625
  %v12627 = vsel %vm12626, %v12619, %v12623
  %v12628 = vand.u32 2147483647, %v10839
  %vm12629 = vcmp.eq.f32.partialorder %v12628, 8.507059e+37
  %v12630 = vand.u32 %v10839, 2147483648
  %v12631 = vor.u32 1.1754944e-38, %v12630
  %v12632 = vsel %vm12629, %v12631, %v12627
  %v12633 = vmul.f32 1.0, %v12632
  %v12634 = vrcp.pop %v10840
  %v12635 = vmul.f32 %v10840, %v12634
  %v12636 = vsub.f32 1.0, %v12635
  %v12637 = vmul.f32 %v12634, %v12636
  %v12638 = vadd.f32 %v12634, %v12637
  %vm12639 = vweird.f32 %v10840
  %vm12640 = vweird.f32 %v12634
  %vm12641 = vmor %vm12639, %vm12640
  %v12642 = vsel %vm12641, %v12634, %v12638
  %v12643 = vand.u32 2147483647, %v10840
  %vm12644 = vcmp.eq.f32.partialorder %v12643, 8.507059e+37
  %v12645 = vand.u32 %v10840, 2147483648
  %v12646 = vor.u32 1.1754944e-38, %v12645
  %v12647 = vsel %vm12644, %v12646, %v12642
  %v12648 = vmul.f32 1.0, %v12647
  %v12649 = vrcp.pop %v10841
  %v12650 = vmul.f32 %v10841, %v12649
  %v12651 = vsub.f32 1.0, %v12650
  %v12652 = vmul.f32 %v12649, %v12651
  %v12653 = vadd.f32 %v12649, %v12652
  %vm12654 = vweird.f32 %v10841
  %vm12655 = vweird.f32 %v12649
  %vm12656 = vmor %vm12654, %vm12655
  %v12657 = vsel %vm12656, %v12649, %v12653
  %v12658 = vand.u32 2147483647, %v10841
  %vm12659 = vcmp.eq.f32.partialorder %v12658, 8.507059e+37
  %v12660 = vand.u32 %v10841, 2147483648
  %v12661 = vor.u32 1.1754944e-38, %v12660
  %v12662 = vsel %vm12659, %v12661, %v12657
  %v12663 = vmul.f32 1.0, %v12662
  %v12664 = vrcp.pop %v10842
  %v12665 = vmul.f32 %v10842, %v12664
  %v12666 = vsub.f32 1.0, %v12665
  %v12667 = vmul.f32 %v12664, %v12666
  %v12668 = vadd.f32 %v12664, %v12667
  %vm12669 = vweird.f32 %v10842
  %vm12670 = vweird.f32 %v12664
  %vm12671 = vmor %vm12669, %vm12670
  %v12672 = vsel %vm12671, %v12664, %v12668
  %v12673 = vand.u32 2147483647, %v10842
  %vm12674 = vcmp.eq.f32.partialorder %v12673, 8.507059e+37
  %v12675 = vand.u32 %v10842, 2147483648
  %v12676 = vor.u32 1.1754944e-38, %v12675
  %v12677 = vsel %vm12674, %v12676, %v12672
  %v12678 = vmul.f32 1.0, %v12677
  %v12679 = vrcp.pop %v10843
  %v12680 = vmul.f32 %v10843, %v12679
  %v12681 = vsub.f32 1.0, %v12680
  %v12682 = vmul.f32 %v12679, %v12681
  %v12683 = vadd.f32 %v12679, %v12682
  %vm12684 = vweird.f32 %v10843
  %vm12685 = vweird.f32 %v12679
  %vm12686 = vmor %vm12684, %vm12685
  %v12687 = vsel %vm12686, %v12679, %v12683
  %v12688 = vand.u32 2147483647, %v10843
  %vm12689 = vcmp.eq.f32.partialorder %v12688, 8.507059e+37
  %v12690 = vand.u32 %v10843, 2147483648
  %v12691 = vor.u32 1.1754944e-38, %v12690
  %v12692 = vsel %vm12689, %v12691, %v12687
  %v12693 = vmul.f32 1.0, %v12692
  %v12694 = vrcp.pop %v10844
  %v12695 = vmul.f32 %v10844, %v12694
  %v12696 = vsub.f32 1.0, %v12695
  %v12697 = vmul.f32 %v12694, %v12696
  %v12698 = vadd.f32 %v12694, %v12697
  %vm12699 = vweird.f32 %v10844
  %vm12700 = vweird.f32 %v12694
  %vm12701 = vmor %vm12699, %vm12700
  %v12702 = vsel %vm12701, %v12694, %v12698
  %v12703 = vand.u32 2147483647, %v10844
  %vm12704 = vcmp.eq.f32.partialorder %v12703, 8.507059e+37
  %v12705 = vand.u32 %v10844, 2147483648
  %v12706 = vor.u32 1.1754944e-38, %v12705
  %v12707 = vsel %vm12704, %v12706, %v12702
  %v12708 = vmul.f32 1.0, %v12707
  %v12709 = vrcp.pop %v10845
  %v12710 = vmul.f32 %v10845, %v12709
  %v12711 = vsub.f32 1.0, %v12710
  %v12712 = vmul.f32 %v12709, %v12711
  %v12713 = vadd.f32 %v12709, %v12712
  %vm12714 = vweird.f32 %v10845
  %vm12715 = vweird.f32 %v12709
  %vm12716 = vmor %vm12714, %vm12715
  %v12717 = vsel %vm12716, %v12709, %v12713
  %v12718 = vand.u32 2147483647, %v10845
  %vm12719 = vcmp.eq.f32.partialorder %v12718, 8.507059e+37
  %v12720 = vand.u32 %v10845, 2147483648
  %v12721 = vor.u32 1.1754944e-38, %v12720
  %v12722 = vsel %vm12719, %v12721, %v12717
  %v12723 = vmul.f32 1.0, %v12722
  %v12724 = vrcp.pop %v10846
  %v12725 = vmul.f32 %v10846, %v12724
  %v12726 = vsub.f32 1.0, %v12725
  %v12727 = vmul.f32 %v12724, %v12726
  %v12728 = vadd.f32 %v12724, %v12727
  %vm12729 = vweird.f32 %v10846
  %vm12730 = vweird.f32 %v12724
  %vm12731 = vmor %vm12729, %vm12730
  %v12732 = vsel %vm12731, %v12724, %v12728
  %v12733 = vand.u32 2147483647, %v10846
  %vm12734 = vcmp.eq.f32.partialorder %v12733, 8.507059e+37
  %v12735 = vand.u32 %v10846, 2147483648
  %v12736 = vor.u32 1.1754944e-38, %v12735
  %v12737 = vsel %vm12734, %v12736, %v12732
  %v12738 = vmul.f32 1.0, %v12737
  %v12739 = vrcp.pop %v10847
  %v12740 = vmul.f32 %v10847, %v12739
  %v12741 = vsub.f32 1.0, %v12740
  %v12742 = vmul.f32 %v12739, %v12741
  %v12743 = vadd.f32 %v12739, %v12742
  %vm12744 = vweird.f32 %v10847
  %vm12745 = vweird.f32 %v12739
  %vm12746 = vmor %vm12744, %vm12745
  %v12747 = vsel %vm12746, %v12739, %v12743
  %v12748 = vand.u32 2147483647, %v10847
  %vm12749 = vcmp.eq.f32.partialorder %v12748, 8.507059e+37
  %v12750 = vand.u32 %v10847, 2147483648
  %v12751 = vor.u32 1.1754944e-38, %v12750
  %v12752 = vsel %vm12749, %v12751, %v12747
  %v12753 = vmul.f32 1.0, %v12752
  %v12754 = vrcp.pop %v10848
  %v12755 = vmul.f32 %v10848, %v12754
  %v12756 = vsub.f32 1.0, %v12755
  %v12757 = vmul.f32 %v12754, %v12756
  %v12758 = vadd.f32 %v12754, %v12757
  %vm12759 = vweird.f32 %v10848
  %vm12760 = vweird.f32 %v12754
  %vm12761 = vmor %vm12759, %vm12760
  %v12762 = vsel %vm12761, %v12754, %v12758
  %v12763 = vand.u32 2147483647, %v10848
  %vm12764 = vcmp.eq.f32.partialorder %v12763, 8.507059e+37
  %v12765 = vand.u32 %v10848, 2147483648
  %v12766 = vor.u32 1.1754944e-38, %v12765
  %v12767 = vsel %vm12764, %v12766, %v12762
  %v12768 = vmul.f32 1.0, %v12767
  %vm12769 = vcmask 7168
  %12770 = vst.msk [vmem:[%s8] sm:$0xff] %vm12769, %v10863
  %12771 = vst.msk [vmem:[%s8 + $0x8] sm:$0xff] %vm12769, %v10878
  %12772 = vst.msk [vmem:[%s8 + $0x10] sm:$0xff] %vm12769, %v10893
  %12773 = vst.msk [vmem:[%s8 + $0x18] sm:$0xff] %vm12769, %v10908
  %12774 = vst.msk [vmem:[%s8 + $0x20] sm:$0xff] %vm12769, %v10923
  %12775 = vst.msk [vmem:[%s8 + $0x28] sm:$0xff] %vm12769, %v10938
  %12776 = vst.msk [vmem:[%s8 + $0x30] sm:$0xff] %vm12769, %v10953
  %12777 = vst.msk [vmem:[%s8 + $0x38] sm:$0xff] %vm12769, %v10968
  %12778 = vst.msk [vmem:[%s8 + $0x40] sm:$0xff] %vm12769, %v10983
  %12779 = vst.msk [vmem:[%s8 + $0x48] sm:$0xff] %vm12769, %v10998
  %12780 = vst.msk [vmem:[%s8 + $0x50] sm:$0xff] %vm12769, %v11013
  %12781 = vst.msk [vmem:[%s8 + $0x58] sm:$0xff] %vm12769, %v11028
  %12782 = vst.msk [vmem:[%s8 + $0x60] sm:$0xff] %vm12769, %v11043
  %12783 = vst.msk [vmem:[%s8 + $0x68] sm:$0xff] %vm12769, %v11058
  %12784 = vst.msk [vmem:[%s8 + $0x70] sm:$0xff] %vm12769, %v11073
  %12785 = vst.msk [vmem:[%s8 + $0x78] sm:$0xff] %vm12769, %v11088
  %12786 = vst.msk [vmem:[%s8 + $0x80] sm:$0xff] %vm12769, %v11103
  %12787 = vst.msk [vmem:[%s8 + $0x88] sm:$0xff] %vm12769, %v11118
  %12788 = vst.msk [vmem:[%s8 + $0x90] sm:$0xff] %vm12769, %v11133
  %12789 = vst.msk [vmem:[%s8 + $0x98] sm:$0xff] %vm12769, %v11148
  %12790 = vst.msk [vmem:[%s8 + $0xa0] sm:$0xff] %vm12769, %v11163
  %12791 = vst.msk [vmem:[%s8 + $0xa8] sm:$0xff] %vm12769, %v11178
  %12792 = vst.msk [vmem:[%s8 + $0xb0] sm:$0xff] %vm12769, %v11193
  %12793 = vst.msk [vmem:[%s8 + $0xb8] sm:$0xff] %vm12769, %v11208
  %12794 = vst.msk [vmem:[%s8 + $0xc0] sm:$0xff] %vm12769, %v11223
  %12795 = vst.msk [vmem:[%s8 + $0xc8] sm:$0xff] %vm12769, %v11238
  %12796 = vst.msk [vmem:[%s8 + $0xd0] sm:$0xff] %vm12769, %v11253
  %12797 = vst.msk [vmem:[%s8 + $0xd8] sm:$0xff] %vm12769, %v11268
  %12798 = vst.msk [vmem:[%s8 + $0xe0] sm:$0xff] %vm12769, %v11283
  %12799 = vst.msk [vmem:[%s8 + $0xe8] sm:$0xff] %vm12769, %v11298
  %12800 = vst.msk [vmem:[%s8 + $0xf0] sm:$0xff] %vm12769, %v11313
  %12801 = vst.msk [vmem:[%s8 + $0xf8] sm:$0xff] %vm12769, %v11328
  %12802 = vst.msk [vmem:[%s8 + $0x100] sm:$0xff] %vm12769, %v11343
  %12803 = vst.msk [vmem:[%s8 + $0x108] sm:$0xff] %vm12769, %v11358
  %12804 = vst.msk [vmem:[%s8 + $0x110] sm:$0xff] %vm12769, %v11373
  %12805 = vst.msk [vmem:[%s8 + $0x118] sm:$0xff] %vm12769, %v11388
  %12806 = vst.msk [vmem:[%s8 + $0x120] sm:$0xff] %vm12769, %v11403
  %12807 = vst.msk [vmem:[%s8 + $0x128] sm:$0xff] %vm12769, %v11418
  %12808 = vst.msk [vmem:[%s8 + $0x130] sm:$0xff] %vm12769, %v11433
  %12809 = vst.msk [vmem:[%s8 + $0x138] sm:$0xff] %vm12769, %v11448
  %12810 = vst.msk [vmem:[%s8 + $0x140] sm:$0xff] %vm12769, %v11463
  %12811 = vst.msk [vmem:[%s8 + $0x148] sm:$0xff] %vm12769, %v11478
  %12812 = vst.msk [vmem:[%s8 + $0x150] sm:$0xff] %vm12769, %v11493
  %12813 = vst.msk [vmem:[%s8 + $0x158] sm:$0xff] %vm12769, %v11508
  %12814 = vst.msk [vmem:[%s8 + $0x160] sm:$0xff] %vm12769, %v11523
  %12815 = vst.msk [vmem:[%s8 + $0x168] sm:$0xff] %vm12769, %v11538
  %12816 = vst.msk [vmem:[%s8 + $0x170] sm:$0xff] %vm12769, %v11553
  %12817 = vst.msk [vmem:[%s8 + $0x178] sm:$0xff] %vm12769, %v11568
  %12818 = vst.msk [vmem:[%s8 + $0x180] sm:$0xff] %vm12769, %v11583
  %12819 = vst.msk [vmem:[%s8 + $0x188] sm:$0xff] %vm12769, %v11598
  %12820 = vst.msk [vmem:[%s8 + $0x190] sm:$0xff] %vm12769, %v11613
  %12821 = vst.msk [vmem:[%s8 + $0x198] sm:$0xff] %vm12769, %v11628
  %12822 = vst.msk [vmem:[%s8 + $0x1a0] sm:$0xff] %vm12769, %v11643
  %12823 = vst.msk [vmem:[%s8 + $0x1a8] sm:$0xff] %vm12769, %v11658
  %12824 = vst.msk [vmem:[%s8 + $0x1b0] sm:$0xff] %vm12769, %v11673
  %12825 = vst.msk [vmem:[%s8 + $0x1b8] sm:$0xff] %vm12769, %v11688
  %12826 = vst.msk [vmem:[%s8 + $0x1c0] sm:$0xff] %vm12769, %v11703
  %12827 = vst.msk [vmem:[%s8 + $0x1c8] sm:$0xff] %vm12769, %v11718
  %12828 = vst.msk [vmem:[%s8 + $0x1d0] sm:$0xff] %vm12769, %v11733
  %12829 = vst.msk [vmem:[%s8 + $0x1d8] sm:$0xff] %vm12769, %v11748
  %12830 = vst.msk [vmem:[%s8 + $0x1e0] sm:$0xff] %vm12769, %v11763
  %12831 = vst.msk [vmem:[%s8 + $0x1e8] sm:$0xff] %vm12769, %v11778
  %12832 = vst.msk [vmem:[%s8 + $0x1f0] sm:$0xff] %vm12769, %v11793
  %12833 = vst.msk [vmem:[%s8 + $0x1f8] sm:$0xff] %vm12769, %v11808
  %12834 = vst.msk [vmem:[%s8 + $0x200] sm:$0xff] %vm12769, %v11823
  %12835 = vst.msk [vmem:[%s8 + $0x208] sm:$0xff] %vm12769, %v11838
  %12836 = vst.msk [vmem:[%s8 + $0x210] sm:$0xff] %vm12769, %v11853
  %12837 = vst.msk [vmem:[%s8 + $0x218] sm:$0xff] %vm12769, %v11868
  %12838 = vst.msk [vmem:[%s8 + $0x220] sm:$0xff] %vm12769, %v11883
  %12839 = vst.msk [vmem:[%s8 + $0x228] sm:$0xff] %vm12769, %v11898
  %12840 = vst.msk [vmem:[%s8 + $0x230] sm:$0xff] %vm12769, %v11913
  %12841 = vst.msk [vmem:[%s8 + $0x238] sm:$0xff] %vm12769, %v11928
  %12842 = vst.msk [vmem:[%s8 + $0x240] sm:$0xff] %vm12769, %v11943
  %12843 = vst.msk [vmem:[%s8 + $0x248] sm:$0xff] %vm12769, %v11958
  %12844 = vst.msk [vmem:[%s8 + $0x250] sm:$0xff] %vm12769, %v11973
  %12845 = vst.msk [vmem:[%s8 + $0x258] sm:$0xff] %vm12769, %v11988
  %12846 = vst.msk [vmem:[%s8 + $0x260] sm:$0xff] %vm12769, %v12003
  %12847 = vst.msk [vmem:[%s8 + $0x268] sm:$0xff] %vm12769, %v12018
  %12848 = vst.msk [vmem:[%s8 + $0x270] sm:$0xff] %vm12769, %v12033
  %12849 = vst.msk [vmem:[%s8 + $0x278] sm:$0xff] %vm12769, %v12048
  %12850 = vst.msk [vmem:[%s8 + $0x280] sm:$0xff] %vm12769, %v12063
  %12851 = vst.msk [vmem:[%s8 + $0x288] sm:$0xff] %vm12769, %v12078
  %12852 = vst.msk [vmem:[%s8 + $0x290] sm:$0xff] %vm12769, %v12093
  %12853 = vst.msk [vmem:[%s8 + $0x298] sm:$0xff] %vm12769, %v12108
  %12854 = vst.msk [vmem:[%s8 + $0x2a0] sm:$0xff] %vm12769, %v12123
  %12855 = vst.msk [vmem:[%s8 + $0x2a8] sm:$0xff] %vm12769, %v12138
  %12856 = vst.msk [vmem:[%s8 + $0x2b0] sm:$0xff] %vm12769, %v12153
  %12857 = vst.msk [vmem:[%s8 + $0x2b8] sm:$0xff] %vm12769, %v12168
  %12858 = vst.msk [vmem:[%s8 + $0x2c0] sm:$0xff] %vm12769, %v12183
  %12859 = vst.msk [vmem:[%s8 + $0x2c8] sm:$0xff] %vm12769, %v12198
  %12860 = vst.msk [vmem:[%s8 + $0x2d0] sm:$0xff] %vm12769, %v12213
  %12861 = vst.msk [vmem:[%s8 + $0x2d8] sm:$0xff] %vm12769, %v12228
  %12862 = vst.msk [vmem:[%s8 + $0x2e0] sm:$0xff] %vm12769, %v12243
  %12863 = vst.msk [vmem:[%s8 + $0x2e8] sm:$0xff] %vm12769, %v12258
  %12864 = vst.msk [vmem:[%s8 + $0x2f0] sm:$0xff] %vm12769, %v12273
  %12865 = vst.msk [vmem:[%s8 + $0x2f8] sm:$0xff] %vm12769, %v12288
  %12866 = vst.msk [vmem:[%s8 + $0x300] sm:$0xff] %vm12769, %v12303
  %12867 = vst.msk [vmem:[%s8 + $0x308] sm:$0xff] %vm12769, %v12318
  %12868 = vst.msk [vmem:[%s8 + $0x310] sm:$0xff] %vm12769, %v12333
  %12869 = vst.msk [vmem:[%s8 + $0x318] sm:$0xff] %vm12769, %v12348
  %12870 = vst.msk [vmem:[%s8 + $0x320] sm:$0xff] %vm12769, %v12363
  %12871 = vst.msk [vmem:[%s8 + $0x328] sm:$0xff] %vm12769, %v12378
  %12872 = vst.msk [vmem:[%s8 + $0x330] sm:$0xff] %vm12769, %v12393
  %12873 = vst.msk [vmem:[%s8 + $0x338] sm:$0xff] %vm12769, %v12408
  %12874 = vst.msk [vmem:[%s8 + $0x340] sm:$0xff] %vm12769, %v12423
  %12875 = vst.msk [vmem:[%s8 + $0x348] sm:$0xff] %vm12769, %v12438
  %12876 = vst.msk [vmem:[%s8 + $0x350] sm:$0xff] %vm12769, %v12453
  %12877 = vst.msk [vmem:[%s8 + $0x358] sm:$0xff] %vm12769, %v12468
  %12878 = vst.msk [vmem:[%s8 + $0x360] sm:$0xff] %vm12769, %v12483
  %12879 = vst.msk [vmem:[%s8 + $0x368] sm:$0xff] %vm12769, %v12498
  %12880 = vst.msk [vmem:[%s8 + $0x370] sm:$0xff] %vm12769, %v12513
  %12881 = vst.msk [vmem:[%s8 + $0x378] sm:$0xff] %vm12769, %v12528
  %12882 = vst.msk [vmem:[%s8 + $0x380] sm:$0xff] %vm12769, %v12543
  %12883 = vst.msk [vmem:[%s8 + $0x388] sm:$0xff] %vm12769, %v12558
  %12884 = vst.msk [vmem:[%s8 + $0x390] sm:$0xff] %vm12769, %v12573
  %12885 = vst.msk [vmem:[%s8 + $0x398] sm:$0xff] %vm12769, %v12588
  %12886 = vst.msk [vmem:[%s8 + $0x3a0] sm:$0xff] %vm12769, %v12603
  %12887 = vst.msk [vmem:[%s8 + $0x3a8] sm:$0xff] %vm12769, %v12618
  %12888 = vst.msk [vmem:[%s8 + $0x3b0] sm:$0xff] %vm12769, %v12633
  %12889 = vst.msk [vmem:[%s8 + $0x3b8] sm:$0xff] %vm12769, %v12648
  %12890 = vst.msk [vmem:[%s8 + $0x3c0] sm:$0xff] %vm12769, %v12663
  %12891 = vst.msk [vmem:[%s8 + $0x3c8] sm:$0xff] %vm12769, %v12678
  %12892 = vst.msk [vmem:[%s8 + $0x3d0] sm:$0xff] %vm12769, %v12693
  %12893 = vst.msk [vmem:[%s8 + $0x3d8] sm:$0xff] %vm12769, %v12708
  %12894 = vst.msk [vmem:[%s8 + $0x3e0] sm:$0xff] %vm12769, %v12723
  %12895 = vst.msk [vmem:[%s8 + $0x3e8] sm:$0xff] %vm12769, %v12738
  %12896 = vst.msk [vmem:[%s8 + $0x3f0] sm:$0xff] %vm12769, %v12753
  %12897 = vst.msk [vmem:[%s8 + $0x3f8] sm:$0xff] %vm12769, %v12768
  // Predicated region
  $region34: #{tpu_custom_call.1} parent=0 // pred_check
    _
  $region35: #{tpu_custom_call.1} parent=0 // pred_check_branch
    %12899 = sbr.rel (0) target = $region37
  $region36: #{tpu_custom_call.1} parent=0 // pred_region
    _
  $region37: #{tpu_custom_call.1} parent=0 // pred_fallthru
    _
  // Predicated region
  $region38: #{tpu_custom_call.1} parent=0 // pred_check
    _
  $region39: #{tpu_custom_call.1} parent=0 // pred_check_branch
    %12901 = sbr.rel (0) target = $region41
  $region40: #{tpu_custom_call.1} parent=0 // pred_region
    _
  $region41: #{tpu_custom_call.1} parent=0 // pred_fallthru
    _

</llo_original>
